<compile_context>
chip_gen: v7x
topology: tpu7x:2x2x1
jax: 0.10.0
libtpu: 0.0.40
codegen_flags: <defaults>
</compile_context>

<pallas_src>
import jax
import jax.numpy as jnp
from jax import lax
from jax.experimental import pallas as pl
from jax.experimental.pallas import tpu as pltpu


_VMEM_LIMIT = 32 * 1024 * 1024   # explicit scoped-VMEM budget, safe on v5e/v6e/v7x


# ----------------------------------------------------------------------------
# Fused Pallas kernel: conv1 + pool1 + conv2 + pool2 + linear1 + ReLU + linear2
# ----------------------------------------------------------------------------
def _mnist_fused_kernel(x_ref, m1_ref, cb1_ref, m2_ref, cb2_ref,
                        w1_ref, b1_ref, w2_ref, b2_ref, o_ref):
    """One batch block end-to-end.

    x_ref  : (bb, 28, 28)      bf16   input, channels-last (Cin = 1)
    m1_ref : (5, 28, 768)      bf16   banded conv1 weights, even/odd-ow halves
    cb1_ref: (1, 768)          f32    conv1 bias tiled over output columns
    m2_ref : (5, 384, 512)     bf16   banded conv2 weights, even/odd-ow halves
    cb2_ref: (1, 512)          f32    conv2 bias tiled over output columns
    w1_ref : (1024, 512)       bf16   lin1, rows permuted to (h, w, c) flatten
    b1_ref : (1, 512)          f32
    w2_ref : (512, 128)        bf16   lin2, N zero-padded 10 -> 128
    b2_ref : (1, 128)          f32
    o_ref  : (bb, 128)         f32    logits (first 10 columns valid)
    """
    bb = x_ref.shape[0]
    KH1 = m1_ref.shape[0]
    KH2 = m2_ref.shape[0]
    Ho1 = x_ref.shape[1] - KH1 + 1          # 24
    Hp1 = Ho1 // 2                          # 12
    half1 = m1_ref.shape[2] // 2            # 384 = Wp1 * C1 (lane-aligned)
    Ho2 = Hp1 - KH2 + 1                     # 8
    Hp2 = Ho2 // 2                          # 4
    half2 = m2_ref.shape[2] // 2            # 256 = Wp2 * C2 (lane-aligned)

    flat_rows = []
    for b in range(bb):                     # bb is small & static -> unrolled
        # ---- conv1: KH MXU matmuls, f32 accumulation, + bias ---------------
        acc = jnp.dot(x_ref[b, 0:Ho1, :], m1_ref[0],
                      preferred_element_type=jnp.float32)
        for kh in range(1, KH1):
            acc = acc + jnp.dot(x_ref[b, kh:kh + Ho1, :], m1_ref[kh],
                                preferred_element_type=jnp.float32)
        acc = acc + cb1_ref[...]                                # (24, 768)
        # ---- 2x2/2 max-pool: W direction is one max of contiguous halves ---
        wp = jnp.maximum(acc[:, :half1], acc[:, half1:])        # (24, 384)
        a1 = jnp.concatenate(
            [jnp.maximum(wp[2 * i:2 * i + 1, :], wp[2 * i + 1:2 * i + 2, :])
             for i in range(Hp1)], axis=0).astype(jnp.bfloat16)  # (12, 384)

        # ---- conv2: KH MXU matmuls, f32 accumulation, + bias ---------------
        acc2 = jnp.dot(a1[0:Ho2, :], m2_ref[0],
                       preferred_element_type=jnp.float32)
        for kh in range(1, KH2):
            acc2 = acc2 + jnp.dot(a1[kh:kh + Ho2, :], m2_ref[kh],
                                  preferred_element_type=jnp.float32)
        acc2 = acc2 + cb2_ref[...]                              # (8, 512)
        # ---- 2x2/2 max-pool + channels-last flatten to one lane-dense row --
        wp2 = jnp.maximum(acc2[:, :half2], acc2[:, half2:])     # (8, 256)
        p2 = [jnp.maximum(wp2[2 * i:2 * i + 1, :], wp2[2 * i + 1:2 * i + 2, :])
              for i in range(Hp2)]                              # Hp2 x (1, 256)
        flat_rows.append(
            jnp.concatenate(p2, axis=1).astype(jnp.bfloat16))   # (1, 1024)

    flat = flat_rows[0] if bb == 1 else jnp.concatenate(flat_rows, axis=0)

    # ---- flatten -> linear1 -> ReLU -> linear2 ------------------------------
    h = jnp.dot(flat, w1_ref[...], preferred_element_type=jnp.float32)
    h = jnp.maximum(h + b1_ref[...], 0.0)
    y = jnp.dot(h.astype(jnp.bfloat16), w2_ref[...],
                preferred_element_type=jnp.float32)
    o_ref[...] = (y + b2_ref[...]).astype(o_ref.dtype)


# ----------------------------------------------------------------------------
# Parameters (PyTorch layout) + one-time preprocessing into kernel layouts
# ----------------------------------------------------------------------------
def _uniform(key, shape, fan_in):
    bound = 1.0 / jnp.sqrt(jnp.float32(fan_in))
    return jax.random.uniform(key, shape, jnp.float32, -bound, bound)


def init_params(key):
    ks = jax.random.split(key, 8)
    return {
        "conv1_w": _uniform(ks[0], (32, 1, 5, 5), 1 * 5 * 5),
        "conv1_b": _uniform(ks[1], (32,), 1 * 5 * 5),
        "conv2_w": _uniform(ks[2], (64, 32, 5, 5), 32 * 5 * 5),
        "conv2_b": _uniform(ks[3], (64,), 32 * 5 * 5),
        "lin1_w": _uniform(ks[4], (512, 64 * 4 * 4), 64 * 4 * 4),
        "lin1_b": _uniform(ks[5], (512,), 64 * 4 * 4),
        "lin2_w": _uniform(ks[6], (10, 512), 512),
        "lin2_b": _uniform(ks[7], (10,), 512),
    }


def _build_banded(w, W):
    """Banded conv matrices: M[kh, w*Cin+ci, ow'*Cout+co] = w[co,ci,kh,w-ow]
    (zero outside the band), with the output-column (ow) axis reordered so all
    even ow come first and all odd ow second.  The fused kernel can then do
    the W-direction 2x2 max-pool as a single max of two lane-aligned halves.
    """
    Cout, Cin, KH, KW = w.shape
    Wo = W - KW + 1
    q = jnp.arange(KW)[:, None, None]
    wp = jnp.arange(W)[None, :, None]
    ow = jnp.arange(Wo)[None, None, :]
    sel = (wp == ow + q).astype(w.dtype)                 # (KW, W, Wo)
    m = jnp.einsum("qwo,dchq->hwcod", sel, w)            # (KH, W, Cin, Wo, Cout)
    perm = jnp.concatenate([jnp.arange(0, Wo, 2), jnp.arange(1, Wo, 2)])
    m = m[:, :, :, perm, :]                              # even-ow half | odd-ow half
    return m.reshape(KH, W * Cin, Wo * Cout)


def preprocess_params(params):
    """One-time transposition / permutation / padding / bf16 cast of the
    PyTorch-layout params into the layouts the fused kernel consumes."""
    bf = jnp.bfloat16
    m1 = _build_banded(params["conv1_w"], W=28).astype(bf)       # (5, 28, 768)
    m2 = _build_banded(params["conv2_w"], W=12).astype(bf)       # (5, 384, 512)
    # Bias only depends on the output channel -> tiling is layout-invariant.
    cb1 = jnp.tile(params["conv1_b"], 24).reshape(1, -1).astype(jnp.float32)
    cb2 = jnp.tile(params["conv2_b"], 8).reshape(1, -1).astype(jnp.float32)
    # lin1: permute input columns from NCHW flatten (c,h,w) to the kernel's
    # channels-last flatten (h,w,c), then pre-transpose to (K, N).
    w1 = params["lin1_w"].reshape(512, 64, 4, 4)
    w1 = jnp.transpose(w1, (0, 2, 3, 1)).reshape(512, 1024).T.astype(bf)
    b1 = params["lin1_b"].reshape(1, 512).astype(jnp.float32)
    # lin2: pre-transpose and zero-pad N from 10 -> 128 (lane-dense output).
    w2 = jnp.zeros((512, 128), jnp.float32).at[:, :10].set(params["lin2_w"].T)
    b2 = jnp.zeros((1, 128), jnp.float32).at[0, :10].set(params["lin2_b"])
    return {"m1": m1, "cb1": cb1, "m2": m2, "cb2": cb2,
            "w1": w1, "b1": b1, "w2": w2.astype(bf), "b2": b2}


# ----------------------------------------------------------------------------
# Forward pass (mirrors MNIST_CNN.forward)
# ----------------------------------------------------------------------------
def mnist_cnn_forward(kparams, x):
    """x: (B, 1, 28, 28) f32 NCHW (PyTorch convention) -> logits (B, 10) f32."""
    B = x.shape[0]
    a0 = x.reshape(B, 28, 28).astype(jnp.bfloat16)   # channels-last, Cin = 1

    # Batch blocking: whole batch if small, else blocks of 8 (zero-pad batch
    # so the 2-D output block stays (8, 128)-compliant).
    if B <= 8:
        bb, Bp = B, B
    else:
        bb = 8
        Bp = -(-B // 8) * 8
        if Bp != B:
            a0 = jnp.pad(a0, ((0, Bp - B), (0, 0), (0, 0)))

    m1, cb1 = kparams["m1"], kparams["cb1"]
    m2, cb2 = kparams["m2"], kparams["cb2"]
    w1, b1 = kparams["w1"], kparams["b1"]
    w2, b2 = kparams["w2"], kparams["b2"]
    N2 = w2.shape[1]

    y = pl.pallas_call(
        _mnist_fused_kernel,
        out_shape=jax.ShapeDtypeStruct((Bp, N2), jnp.float32),
        grid_spec=pltpu.PrefetchScalarGridSpec(
            num_scalar_prefetch=0,
            grid=(Bp // bb,),
            in_specs=[
                pl.BlockSpec((bb,) + a0.shape[1:], lambda i: (i, 0, 0)),
                pl.BlockSpec(m1.shape, lambda i: (0, 0, 0)),
                pl.BlockSpec(cb1.shape, lambda i: (0, 0)),
                pl.BlockSpec(m2.shape, lambda i: (0, 0, 0)),
                pl.BlockSpec(cb2.shape, lambda i: (0, 0)),
                pl.BlockSpec(w1.shape, lambda i: (0, 0)),
                pl.BlockSpec(b1.shape, lambda i: (0, 0)),
                pl.BlockSpec(w2.shape, lambda i: (0, 0)),
                pl.BlockSpec(b2.shape, lambda i: (0, 0)),
            ],
            out_specs=pl.BlockSpec((bb, N2), lambda i: (i, 0)),
        ),
        compiler_params=pltpu.CompilerParams(
            dimension_semantics=("parallel",),
            vmem_limit_bytes=_VMEM_LIMIT,
        ),
    )(a0, m1, cb1, m2, cb2, w1, b1, w2, b2)
    return y[:B, :10]                                   # drop batch/N padding


# ----------------------------------------------------------------------------
# Pure-JAX reference (mirrors the kernel's bf16/f32 mix) for a sanity check
# ----------------------------------------------------------------------------
def reference_forward(params, x):
    f32 = jnp.float32

    def bf16(v):
        return v.astype(jnp.bfloat16).astype(f32)

    def pool(v):  # NCHW 2x2 / stride-2 max pool
        return jnp.maximum(
            jnp.maximum(v[:, :, 0::2, 0::2], v[:, :, 0::2, 1::2]),
            jnp.maximum(v[:, :, 1::2, 0::2], v[:, :, 1::2, 1::2]))

    def conv(v, w, b):
        y = lax.conv_general_dilated(
            bf16(v), bf16(w), window_strides=(1, 1), padding="VALID",
            dimension_numbers=("NCHW", "OIHW", "NCHW"),
            preferred_element_type=f32)
        return y + b.reshape(1, -1, 1, 1)

    a1 = pool(conv(x, params["conv1_w"], params["conv1_b"]))
    a2 = pool(conv(a1, params["conv2_w"], params["conv2_b"]))
    flat = bf16(a2).reshape(x.shape[0], -1)                   # NCHW flatten
    h = jnp.maximum(flat @ bf16(params["lin1_w"]).T + params["lin1_b"], 0.0)
    return bf16(h) @ bf16(params["lin2_w"]).T + params["lin2_b"]


if __name__ == "__main__":
    key = jax.random.PRNGKey(0)
    kp, kx = jax.random.split(key)
    params = init_params(kp)
    kparams = preprocess_params(params)

    # 28x28 input is dictated by the 64*4*4 linear layer; batch kept small.
    B = 2
    x = jax.random.normal(kx, (B, 1, 28, 28), jnp.float32)

    fwd = jax.jit(mnist_cnn_forward)
    y = jax.block_until_ready(fwd(kparams, x))
    assert y.shape == (B, 10) and y.dtype == jnp.float32

    y_ref = jax.block_until_ready(reference_forward(params, x))
    err = float(jnp.max(jnp.abs(y - y_ref)))
    assert err < 5e-2, f"Pallas forward mismatch vs reference (max |err| = {err})"
    print("KERNEL_OK")
</pallas_src>

<mosaic_0001>
module attributes {stable_mosaic.version = 11 : i64} {
  func.func @_mnist_fused_kernel(%arg0: i32, %arg1: memref<2x28x28xbf16, #tpu.memory_space<vmem>>, %arg2: memref<5x28x768xbf16, #tpu.memory_space<vmem>>, %arg3: memref<1x768xf32, #tpu.memory_space<vmem>>, %arg4: memref<5x384x512xbf16, #tpu.memory_space<vmem>>, %arg5: memref<1x512xf32, #tpu.memory_space<vmem>>, %arg6: memref<1024x512xbf16, #tpu.memory_space<vmem>>, %arg7: memref<1x512xf32, #tpu.memory_space<vmem>>, %arg8: memref<512x128xbf16, #tpu.memory_space<vmem>>, %arg9: memref<1x128xf32, #tpu.memory_space<vmem>>, %arg10: memref<2x128xf32, #tpu.memory_space<vmem>>) attributes {dimension_semantics = [#tpu.dimension_semantics<parallel>], iteration_bounds = array<i64: 1>, scalar_prefetch = 0 : i64, scratch_operands = 0 : i64, tpu.core_type = #tpu.core_type<tc>, window_params = [{transform_indices = @transform_0, window_bounds = array<i64: 2, 28, 28>}, {pipeline_mode = #tpu.pipeline_mode<synchronous>, transform_indices = @transform_1, window_bounds = array<i64: 5, 28, 768>}, {pipeline_mode = #tpu.pipeline_mode<synchronous>, transform_indices = @transform_2, window_bounds = array<i64: 1, 768>}, {pipeline_mode = #tpu.pipeline_mode<synchronous>, transform_indices = @transform_3, window_bounds = array<i64: 5, 384, 512>}, {pipeline_mode = #tpu.pipeline_mode<synchronous>, transform_indices = @transform_4, window_bounds = array<i64: 1, 512>}, {pipeline_mode = #tpu.pipeline_mode<synchronous>, transform_indices = @transform_5, window_bounds = array<i64: 1024, 512>}, {pipeline_mode = #tpu.pipeline_mode<synchronous>, transform_indices = @transform_6, window_bounds = array<i64: 1, 512>}, {pipeline_mode = #tpu.pipeline_mode<synchronous>, transform_indices = @transform_7, window_bounds = array<i64: 512, 128>}, {pipeline_mode = #tpu.pipeline_mode<synchronous>, transform_indices = @transform_8, window_bounds = array<i64: 1, 128>}, {transform_indices = @transform_9, window_bounds = array<i64: 2, 128>}]} {
    %c0 = arith.constant 0 : index
    %c0_0 = arith.constant 0 : index
    %c0_1 = arith.constant 0 : index
    %0 = vector.load %arg1[%c0, %c0_0, %c0_1] : memref<2x28x28xbf16, #tpu.memory_space<vmem>>, vector<1x24x28xbf16>
    %1 = vector.shape_cast %0 : vector<1x24x28xbf16> to vector<24x28xbf16>
    %c0_2 = arith.constant 0 : index
    %c0_3 = arith.constant 0 : index
    %c0_4 = arith.constant 0 : index
    %2 = vector.load %arg2[%c0_2, %c0_3, %c0_4] : memref<5x28x768xbf16, #tpu.memory_space<vmem>>, vector<1x28x768xbf16>
    %3 = vector.shape_cast %2 : vector<1x28x768xbf16> to vector<28x768xbf16>
    %cst = arith.constant dense<0.000000e+00> : vector<24x768xf32>
    %4 = tpu.matmul %1, %3, %cst {dimension_numbers = #tpu.dot_dimension_numbers<[1], [0], [0], [1], [0, 0, 1, 1], [], []>} : vector<24x28xbf16>, vector<28x768xbf16>, vector<24x768xf32> -> vector<24x768xf32>
    %c0_5 = arith.constant 0 : index
    %c1 = arith.constant 1 : index
    %c0_6 = arith.constant 0 : index
    %5 = vector.load %arg1[%c0_5, %c1, %c0_6] : memref<2x28x28xbf16, #tpu.memory_space<vmem>>, vector<1x24x28xbf16>
    %6 = vector.shape_cast %5 : vector<1x24x28xbf16> to vector<24x28xbf16>
    %c1_7 = arith.constant 1 : index
    %c0_8 = arith.constant 0 : index
    %c0_9 = arith.constant 0 : index
    %7 = vector.load %arg2[%c1_7, %c0_8, %c0_9] : memref<5x28x768xbf16, #tpu.memory_space<vmem>>, vector<1x28x768xbf16>
    %8 = vector.shape_cast %7 : vector<1x28x768xbf16> to vector<28x768xbf16>
    %cst_10 = arith.constant dense<0.000000e+00> : vector<24x768xf32>
    %9 = tpu.matmul %6, %8, %cst_10 {dimension_numbers = #tpu.dot_dimension_numbers<[1], [0], [0], [1], [0, 0, 1, 1], [], []>} : vector<24x28xbf16>, vector<28x768xbf16>, vector<24x768xf32> -> vector<24x768xf32>
    %10 = arith.addf %4, %9 : vector<24x768xf32>
    %c0_11 = arith.constant 0 : index
    %c2 = arith.constant 2 : index
    %c0_12 = arith.constant 0 : index
    %11 = vector.load %arg1[%c0_11, %c2, %c0_12] : memref<2x28x28xbf16, #tpu.memory_space<vmem>>, vector<1x24x28xbf16>
    %12 = vector.shape_cast %11 : vector<1x24x28xbf16> to vector<24x28xbf16>
    %c2_13 = arith.constant 2 : index
    %c0_14 = arith.constant 0 : index
    %c0_15 = arith.constant 0 : index
    %13 = vector.load %arg2[%c2_13, %c0_14, %c0_15] : memref<5x28x768xbf16, #tpu.memory_space<vmem>>, vector<1x28x768xbf16>
    %14 = vector.shape_cast %13 : vector<1x28x768xbf16> to vector<28x768xbf16>
    %cst_16 = arith.constant dense<0.000000e+00> : vector<24x768xf32>
    %15 = tpu.matmul %12, %14, %cst_16 {dimension_numbers = #tpu.dot_dimension_numbers<[1], [0], [0], [1], [0, 0, 1, 1], [], []>} : vector<24x28xbf16>, vector<28x768xbf16>, vector<24x768xf32> -> vector<24x768xf32>
    %16 = arith.addf %10, %15 : vector<24x768xf32>
    %c0_17 = arith.constant 0 : index
    %c3 = arith.constant 3 : index
    %c0_18 = arith.constant 0 : index
    %17 = vector.load %arg1[%c0_17, %c3, %c0_18] : memref<2x28x28xbf16, #tpu.memory_space<vmem>>, vector<1x24x28xbf16>
    %18 = vector.shape_cast %17 : vector<1x24x28xbf16> to vector<24x28xbf16>
    %c3_19 = arith.constant 3 : index
    %c0_20 = arith.constant 0 : index
    %c0_21 = arith.constant 0 : index
    %19 = vector.load %arg2[%c3_19, %c0_20, %c0_21] : memref<5x28x768xbf16, #tpu.memory_space<vmem>>, vector<1x28x768xbf16>
    %20 = vector.shape_cast %19 : vector<1x28x768xbf16> to vector<28x768xbf16>
    %cst_22 = arith.constant dense<0.000000e+00> : vector<24x768xf32>
    %21 = tpu.matmul %18, %20, %cst_22 {dimension_numbers = #tpu.dot_dimension_numbers<[1], [0], [0], [1], [0, 0, 1, 1], [], []>} : vector<24x28xbf16>, vector<28x768xbf16>, vector<24x768xf32> -> vector<24x768xf32>
    %22 = arith.addf %16, %21 : vector<24x768xf32>
    %c0_23 = arith.constant 0 : index
    %c4 = arith.constant 4 : index
    %c0_24 = arith.constant 0 : index
    %23 = vector.load %arg1[%c0_23, %c4, %c0_24] : memref<2x28x28xbf16, #tpu.memory_space<vmem>>, vector<1x24x28xbf16>
    %24 = vector.shape_cast %23 : vector<1x24x28xbf16> to vector<24x28xbf16>
    %c4_25 = arith.constant 4 : index
    %c0_26 = arith.constant 0 : index
    %c0_27 = arith.constant 0 : index
    %25 = vector.load %arg2[%c4_25, %c0_26, %c0_27] : memref<5x28x768xbf16, #tpu.memory_space<vmem>>, vector<1x28x768xbf16>
    %26 = vector.shape_cast %25 : vector<1x28x768xbf16> to vector<28x768xbf16>
    %cst_28 = arith.constant dense<0.000000e+00> : vector<24x768xf32>
    %27 = tpu.matmul %24, %26, %cst_28 {dimension_numbers = #tpu.dot_dimension_numbers<[1], [0], [0], [1], [0, 0, 1, 1], [], []>} : vector<24x28xbf16>, vector<28x768xbf16>, vector<24x768xf32> -> vector<24x768xf32>
    %28 = arith.addf %22, %27 : vector<24x768xf32>
    %c0_29 = arith.constant 0 : index
    %c0_30 = arith.constant 0 : index
    %29 = vector.load %arg3[%c0_29, %c0_30] : memref<1x768xf32, #tpu.memory_space<vmem>>, vector<1x768xf32>
    %30 = vector.broadcast %29 : vector<1x768xf32> to vector<24x768xf32>
    %31 = arith.addf %28, %30 : vector<24x768xf32>
    %32 = vector.extract_strided_slice %31 {offsets = [0, 0], sizes = [24, 384], strides = [1, 1]} : vector<24x768xf32> to vector<24x384xf32>
    %33 = vector.extract_strided_slice %31 {offsets = [0, 384], sizes = [24, 384], strides = [1, 1]} : vector<24x768xf32> to vector<24x384xf32>
    %34 = arith.maximumf %32, %33 : vector<24x384xf32>
    %35 = vector.extract_strided_slice %34 {offsets = [0, 0], sizes = [1, 384], strides = [1, 1]} : vector<24x384xf32> to vector<1x384xf32>
    %36 = vector.extract_strided_slice %34 {offsets = [1, 0], sizes = [1, 384], strides = [1, 1]} : vector<24x384xf32> to vector<1x384xf32>
    %37 = arith.maximumf %35, %36 : vector<1x384xf32>
    %38 = vector.extract_strided_slice %34 {offsets = [2, 0], sizes = [1, 384], strides = [1, 1]} : vector<24x384xf32> to vector<1x384xf32>
    %39 = vector.extract_strided_slice %34 {offsets = [3, 0], sizes = [1, 384], strides = [1, 1]} : vector<24x384xf32> to vector<1x384xf32>
    %40 = arith.maximumf %38, %39 : vector<1x384xf32>
    %41 = vector.extract_strided_slice %34 {offsets = [4, 0], sizes = [1, 384], strides = [1, 1]} : vector<24x384xf32> to vector<1x384xf32>
    %42 = vector.extract_strided_slice %34 {offsets = [5, 0], sizes = [1, 384], strides = [1, 1]} : vector<24x384xf32> to vector<1x384xf32>
    %43 = arith.maximumf %41, %42 : vector<1x384xf32>
    %44 = vector.extract_strided_slice %34 {offsets = [6, 0], sizes = [1, 384], strides = [1, 1]} : vector<24x384xf32> to vector<1x384xf32>
    %45 = vector.extract_strided_slice %34 {offsets = [7, 0], sizes = [1, 384], strides = [1, 1]} : vector<24x384xf32> to vector<1x384xf32>
    %46 = arith.maximumf %44, %45 : vector<1x384xf32>
    %47 = vector.extract_strided_slice %34 {offsets = [8, 0], sizes = [1, 384], strides = [1, 1]} : vector<24x384xf32> to vector<1x384xf32>
    %48 = vector.extract_strided_slice %34 {offsets = [9, 0], sizes = [1, 384], strides = [1, 1]} : vector<24x384xf32> to vector<1x384xf32>
    %49 = arith.maximumf %47, %48 : vector<1x384xf32>
    %50 = vector.extract_strided_slice %34 {offsets = [10, 0], sizes = [1, 384], strides = [1, 1]} : vector<24x384xf32> to vector<1x384xf32>
    %51 = vector.extract_strided_slice %34 {offsets = [11, 0], sizes = [1, 384], strides = [1, 1]} : vector<24x384xf32> to vector<1x384xf32>
    %52 = arith.maximumf %50, %51 : vector<1x384xf32>
    %53 = vector.extract_strided_slice %34 {offsets = [12, 0], sizes = [1, 384], strides = [1, 1]} : vector<24x384xf32> to vector<1x384xf32>
    %54 = vector.extract_strided_slice %34 {offsets = [13, 0], sizes = [1, 384], strides = [1, 1]} : vector<24x384xf32> to vector<1x384xf32>
    %55 = arith.maximumf %53, %54 : vector<1x384xf32>
    %56 = vector.extract_strided_slice %34 {offsets = [14, 0], sizes = [1, 384], strides = [1, 1]} : vector<24x384xf32> to vector<1x384xf32>
    %57 = vector.extract_strided_slice %34 {offsets = [15, 0], sizes = [1, 384], strides = [1, 1]} : vector<24x384xf32> to vector<1x384xf32>
    %58 = arith.maximumf %56, %57 : vector<1x384xf32>
    %59 = vector.extract_strided_slice %34 {offsets = [16, 0], sizes = [1, 384], strides = [1, 1]} : vector<24x384xf32> to vector<1x384xf32>
    %60 = vector.extract_strided_slice %34 {offsets = [17, 0], sizes = [1, 384], strides = [1, 1]} : vector<24x384xf32> to vector<1x384xf32>
    %61 = arith.maximumf %59, %60 : vector<1x384xf32>
    %62 = vector.extract_strided_slice %34 {offsets = [18, 0], sizes = [1, 384], strides = [1, 1]} : vector<24x384xf32> to vector<1x384xf32>
    %63 = vector.extract_strided_slice %34 {offsets = [19, 0], sizes = [1, 384], strides = [1, 1]} : vector<24x384xf32> to vector<1x384xf32>
    %64 = arith.maximumf %62, %63 : vector<1x384xf32>
    %65 = vector.extract_strided_slice %34 {offsets = [20, 0], sizes = [1, 384], strides = [1, 1]} : vector<24x384xf32> to vector<1x384xf32>
    %66 = vector.extract_strided_slice %34 {offsets = [21, 0], sizes = [1, 384], strides = [1, 1]} : vector<24x384xf32> to vector<1x384xf32>
    %67 = arith.maximumf %65, %66 : vector<1x384xf32>
    %68 = vector.extract_strided_slice %34 {offsets = [22, 0], sizes = [1, 384], strides = [1, 1]} : vector<24x384xf32> to vector<1x384xf32>
    %69 = vector.extract_strided_slice %34 {offsets = [23, 0], sizes = [1, 384], strides = [1, 1]} : vector<24x384xf32> to vector<1x384xf32>
    %70 = arith.maximumf %68, %69 : vector<1x384xf32>
    %71 = tpu.concatenate %37, %40, %43, %46, %49, %52, %55, %58, %61, %64, %67, %70 in 0 : vector<1x384xf32>, vector<1x384xf32>, vector<1x384xf32>, vector<1x384xf32>, vector<1x384xf32>, vector<1x384xf32>, vector<1x384xf32>, vector<1x384xf32>, vector<1x384xf32>, vector<1x384xf32>, vector<1x384xf32>, vector<1x384xf32> -> vector<12x384xf32>
    %72 = arith.truncf %71 : vector<12x384xf32> to vector<12x384xbf16>
    %73 = vector.extract_strided_slice %72 {offsets = [0, 0], sizes = [8, 384], strides = [1, 1]} : vector<12x384xbf16> to vector<8x384xbf16>
    %c0_31 = arith.constant 0 : index
    %c0_32 = arith.constant 0 : index
    %c0_33 = arith.constant 0 : index
    %74 = vector.load %arg4[%c0_31, %c0_32, %c0_33] : memref<5x384x512xbf16, #tpu.memory_space<vmem>>, vector<1x384x512xbf16>
    %75 = vector.shape_cast %74 : vector<1x384x512xbf16> to vector<384x512xbf16>
    %cst_34 = arith.constant dense<0.000000e+00> : vector<8x512xf32>
    %76 = tpu.matmul %73, %75, %cst_34 {dimension_numbers = #tpu.dot_dimension_numbers<[1], [0], [0], [1], [0, 0, 1, 1], [], []>} : vector<8x384xbf16>, vector<384x512xbf16>, vector<8x512xf32> -> vector<8x512xf32>
    %77 = vector.extract_strided_slice %72 {offsets = [1, 0], sizes = [8, 384], strides = [1, 1]} : vector<12x384xbf16> to vector<8x384xbf16>
    %c1_35 = arith.constant 1 : index
    %c0_36 = arith.constant 0 : index
    %c0_37 = arith.constant 0 : index
    %78 = vector.load %arg4[%c1_35, %c0_36, %c0_37] : memref<5x384x512xbf16, #tpu.memory_space<vmem>>, vector<1x384x512xbf16>
    %79 = vector.shape_cast %78 : vector<1x384x512xbf16> to vector<384x512xbf16>
    %cst_38 = arith.constant dense<0.000000e+00> : vector<8x512xf32>
    %80 = tpu.matmul %77, %79, %cst_38 {dimension_numbers = #tpu.dot_dimension_numbers<[1], [0], [0], [1], [0, 0, 1, 1], [], []>} : vector<8x384xbf16>, vector<384x512xbf16>, vector<8x512xf32> -> vector<8x512xf32>
    %81 = arith.addf %76, %80 : vector<8x512xf32>
    %82 = vector.extract_strided_slice %72 {offsets = [2, 0], sizes = [8, 384], strides = [1, 1]} : vector<12x384xbf16> to vector<8x384xbf16>
    %c2_39 = arith.constant 2 : index
    %c0_40 = arith.constant 0 : index
    %c0_41 = arith.constant 0 : index
    %83 = vector.load %arg4[%c2_39, %c0_40, %c0_41] : memref<5x384x512xbf16, #tpu.memory_space<vmem>>, vector<1x384x512xbf16>
    %84 = vector.shape_cast %83 : vector<1x384x512xbf16> to vector<384x512xbf16>
    %cst_42 = arith.constant dense<0.000000e+00> : vector<8x512xf32>
    %85 = tpu.matmul %82, %84, %cst_42 {dimension_numbers = #tpu.dot_dimension_numbers<[1], [0], [0], [1], [0, 0, 1, 1], [], []>} : vector<8x384xbf16>, vector<384x512xbf16>, vector<8x512xf32> -> vector<8x512xf32>
    %86 = arith.addf %81, %85 : vector<8x512xf32>
    %87 = vector.extract_strided_slice %72 {offsets = [3, 0], sizes = [8, 384], strides = [1, 1]} : vector<12x384xbf16> to vector<8x384xbf16>
    %c3_43 = arith.constant 3 : index
    %c0_44 = arith.constant 0 : index
    %c0_45 = arith.constant 0 : index
    %88 = vector.load %arg4[%c3_43, %c0_44, %c0_45] : memref<5x384x512xbf16, #tpu.memory_space<vmem>>, vector<1x384x512xbf16>
    %89 = vector.shape_cast %88 : vector<1x384x512xbf16> to vector<384x512xbf16>
    %cst_46 = arith.constant dense<0.000000e+00> : vector<8x512xf32>
    %90 = tpu.matmul %87, %89, %cst_46 {dimension_numbers = #tpu.dot_dimension_numbers<[1], [0], [0], [1], [0, 0, 1, 1], [], []>} : vector<8x384xbf16>, vector<384x512xbf16>, vector<8x512xf32> -> vector<8x512xf32>
    %91 = arith.addf %86, %90 : vector<8x512xf32>
    %92 = vector.extract_strided_slice %72 {offsets = [4, 0], sizes = [8, 384], strides = [1, 1]} : vector<12x384xbf16> to vector<8x384xbf16>
    %c4_47 = arith.constant 4 : index
    %c0_48 = arith.constant 0 : index
    %c0_49 = arith.constant 0 : index
    %93 = vector.load %arg4[%c4_47, %c0_48, %c0_49] : memref<5x384x512xbf16, #tpu.memory_space<vmem>>, vector<1x384x512xbf16>
    %94 = vector.shape_cast %93 : vector<1x384x512xbf16> to vector<384x512xbf16>
    %cst_50 = arith.constant dense<0.000000e+00> : vector<8x512xf32>
    %95 = tpu.matmul %92, %94, %cst_50 {dimension_numbers = #tpu.dot_dimension_numbers<[1], [0], [0], [1], [0, 0, 1, 1], [], []>} : vector<8x384xbf16>, vector<384x512xbf16>, vector<8x512xf32> -> vector<8x512xf32>
    %96 = arith.addf %91, %95 : vector<8x512xf32>
    %c0_51 = arith.constant 0 : index
    %c0_52 = arith.constant 0 : index
    %97 = vector.load %arg5[%c0_51, %c0_52] : memref<1x512xf32, #tpu.memory_space<vmem>>, vector<1x512xf32>
    %98 = vector.broadcast %97 : vector<1x512xf32> to vector<8x512xf32>
    %99 = arith.addf %96, %98 : vector<8x512xf32>
    %100 = vector.extract_strided_slice %99 {offsets = [0, 0], sizes = [8, 256], strides = [1, 1]} : vector<8x512xf32> to vector<8x256xf32>
    %101 = vector.extract_strided_slice %99 {offsets = [0, 256], sizes = [8, 256], strides = [1, 1]} : vector<8x512xf32> to vector<8x256xf32>
    %102 = arith.maximumf %100, %101 : vector<8x256xf32>
    %103 = vector.extract_strided_slice %102 {offsets = [0, 0], sizes = [1, 256], strides = [1, 1]} : vector<8x256xf32> to vector<1x256xf32>
    %104 = vector.extract_strided_slice %102 {offsets = [1, 0], sizes = [1, 256], strides = [1, 1]} : vector<8x256xf32> to vector<1x256xf32>
    %105 = arith.maximumf %103, %104 : vector<1x256xf32>
    %106 = vector.extract_strided_slice %102 {offsets = [2, 0], sizes = [1, 256], strides = [1, 1]} : vector<8x256xf32> to vector<1x256xf32>
    %107 = vector.extract_strided_slice %102 {offsets = [3, 0], sizes = [1, 256], strides = [1, 1]} : vector<8x256xf32> to vector<1x256xf32>
    %108 = arith.maximumf %106, %107 : vector<1x256xf32>
    %109 = vector.extract_strided_slice %102 {offsets = [4, 0], sizes = [1, 256], strides = [1, 1]} : vector<8x256xf32> to vector<1x256xf32>
    %110 = vector.extract_strided_slice %102 {offsets = [5, 0], sizes = [1, 256], strides = [1, 1]} : vector<8x256xf32> to vector<1x256xf32>
    %111 = arith.maximumf %109, %110 : vector<1x256xf32>
    %112 = vector.extract_strided_slice %102 {offsets = [6, 0], sizes = [1, 256], strides = [1, 1]} : vector<8x256xf32> to vector<1x256xf32>
    %113 = vector.extract_strided_slice %102 {offsets = [7, 0], sizes = [1, 256], strides = [1, 1]} : vector<8x256xf32> to vector<1x256xf32>
    %114 = arith.maximumf %112, %113 : vector<1x256xf32>
    %115 = tpu.concatenate %105, %108, %111, %114 in 1 : vector<1x256xf32>, vector<1x256xf32>, vector<1x256xf32>, vector<1x256xf32> -> vector<1x1024xf32>
    %116 = arith.truncf %115 : vector<1x1024xf32> to vector<1x1024xbf16>
    %c1_53 = arith.constant 1 : index
    %c0_54 = arith.constant 0 : index
    %c0_55 = arith.constant 0 : index
    %117 = vector.load %arg1[%c1_53, %c0_54, %c0_55] : memref<2x28x28xbf16, #tpu.memory_space<vmem>>, vector<1x24x28xbf16>
    %118 = vector.shape_cast %117 : vector<1x24x28xbf16> to vector<24x28xbf16>
    %c0_56 = arith.constant 0 : index
    %c0_57 = arith.constant 0 : index
    %c0_58 = arith.constant 0 : index
    %119 = vector.load %arg2[%c0_56, %c0_57, %c0_58] : memref<5x28x768xbf16, #tpu.memory_space<vmem>>, vector<1x28x768xbf16>
    %120 = vector.shape_cast %119 : vector<1x28x768xbf16> to vector<28x768xbf16>
    %cst_59 = arith.constant dense<0.000000e+00> : vector<24x768xf32>
    %121 = tpu.matmul %118, %120, %cst_59 {dimension_numbers = #tpu.dot_dimension_numbers<[1], [0], [0], [1], [0, 0, 1, 1], [], []>} : vector<24x28xbf16>, vector<28x768xbf16>, vector<24x768xf32> -> vector<24x768xf32>
    %c1_60 = arith.constant 1 : index
    %c1_61 = arith.constant 1 : index
    %c0_62 = arith.constant 0 : index
    %122 = vector.load %arg1[%c1_60, %c1_61, %c0_62] : memref<2x28x28xbf16, #tpu.memory_space<vmem>>, vector<1x24x28xbf16>
    %123 = vector.shape_cast %122 : vector<1x24x28xbf16> to vector<24x28xbf16>
    %c1_63 = arith.constant 1 : index
    %c0_64 = arith.constant 0 : index
    %c0_65 = arith.constant 0 : index
    %124 = vector.load %arg2[%c1_63, %c0_64, %c0_65] : memref<5x28x768xbf16, #tpu.memory_space<vmem>>, vector<1x28x768xbf16>
    %125 = vector.shape_cast %124 : vector<1x28x768xbf16> to vector<28x768xbf16>
    %cst_66 = arith.constant dense<0.000000e+00> : vector<24x768xf32>
    %126 = tpu.matmul %123, %125, %cst_66 {dimension_numbers = #tpu.dot_dimension_numbers<[1], [0], [0], [1], [0, 0, 1, 1], [], []>} : vector<24x28xbf16>, vector<28x768xbf16>, vector<24x768xf32> -> vector<24x768xf32>
    %127 = arith.addf %121, %126 : vector<24x768xf32>
    %c1_67 = arith.constant 1 : index
    %c2_68 = arith.constant 2 : index
    %c0_69 = arith.constant 0 : index
    %128 = vector.load %arg1[%c1_67, %c2_68, %c0_69] : memref<2x28x28xbf16, #tpu.memory_space<vmem>>, vector<1x24x28xbf16>
    %129 = vector.shape_cast %128 : vector<1x24x28xbf16> to vector<24x28xbf16>
    %c2_70 = arith.constant 2 : index
    %c0_71 = arith.constant 0 : index
    %c0_72 = arith.constant 0 : index
    %130 = vector.load %arg2[%c2_70, %c0_71, %c0_72] : memref<5x28x768xbf16, #tpu.memory_space<vmem>>, vector<1x28x768xbf16>
    %131 = vector.shape_cast %130 : vector<1x28x768xbf16> to vector<28x768xbf16>
    %cst_73 = arith.constant dense<0.000000e+00> : vector<24x768xf32>
    %132 = tpu.matmul %129, %131, %cst_73 {dimension_numbers = #tpu.dot_dimension_numbers<[1], [0], [0], [1], [0, 0, 1, 1], [], []>} : vector<24x28xbf16>, vector<28x768xbf16>, vector<24x768xf32> -> vector<24x768xf32>
    %133 = arith.addf %127, %132 : vector<24x768xf32>
    %c1_74 = arith.constant 1 : index
    %c3_75 = arith.constant 3 : index
    %c0_76 = arith.constant 0 : index
    %134 = vector.load %arg1[%c1_74, %c3_75, %c0_76] : memref<2x28x28xbf16, #tpu.memory_space<vmem>>, vector<1x24x28xbf16>
    %135 = vector.shape_cast %134 : vector<1x24x28xbf16> to vector<24x28xbf16>
    %c3_77 = arith.constant 3 : index
    %c0_78 = arith.constant 0 : index
    %c0_79 = arith.constant 0 : index
    %136 = vector.load %arg2[%c3_77, %c0_78, %c0_79] : memref<5x28x768xbf16, #tpu.memory_space<vmem>>, vector<1x28x768xbf16>
    %137 = vector.shape_cast %136 : vector<1x28x768xbf16> to vector<28x768xbf16>
    %cst_80 = arith.constant dense<0.000000e+00> : vector<24x768xf32>
    %138 = tpu.matmul %135, %137, %cst_80 {dimension_numbers = #tpu.dot_dimension_numbers<[1], [0], [0], [1], [0, 0, 1, 1], [], []>} : vector<24x28xbf16>, vector<28x768xbf16>, vector<24x768xf32> -> vector<24x768xf32>
    %139 = arith.addf %133, %138 : vector<24x768xf32>
    %c1_81 = arith.constant 1 : index
    %c4_82 = arith.constant 4 : index
    %c0_83 = arith.constant 0 : index
    %140 = vector.load %arg1[%c1_81, %c4_82, %c0_83] : memref<2x28x28xbf16, #tpu.memory_space<vmem>>, vector<1x24x28xbf16>
    %141 = vector.shape_cast %140 : vector<1x24x28xbf16> to vector<24x28xbf16>
    %c4_84 = arith.constant 4 : index
    %c0_85 = arith.constant 0 : index
    %c0_86 = arith.constant 0 : index
    %142 = vector.load %arg2[%c4_84, %c0_85, %c0_86] : memref<5x28x768xbf16, #tpu.memory_space<vmem>>, vector<1x28x768xbf16>
    %143 = vector.shape_cast %142 : vector<1x28x768xbf16> to vector<28x768xbf16>
    %cst_87 = arith.constant dense<0.000000e+00> : vector<24x768xf32>
    %144 = tpu.matmul %141, %143, %cst_87 {dimension_numbers = #tpu.dot_dimension_numbers<[1], [0], [0], [1], [0, 0, 1, 1], [], []>} : vector<24x28xbf16>, vector<28x768xbf16>, vector<24x768xf32> -> vector<24x768xf32>
    %145 = arith.addf %139, %144 : vector<24x768xf32>
    %c0_88 = arith.constant 0 : index
    %c0_89 = arith.constant 0 : index
    %146 = vector.load %arg3[%c0_88, %c0_89] : memref<1x768xf32, #tpu.memory_space<vmem>>, vector<1x768xf32>
    %147 = vector.broadcast %146 : vector<1x768xf32> to vector<24x768xf32>
    %148 = arith.addf %145, %147 : vector<24x768xf32>
    %149 = vector.extract_strided_slice %148 {offsets = [0, 0], sizes = [24, 384], strides = [1, 1]} : vector<24x768xf32> to vector<24x384xf32>
    %150 = vector.extract_strided_slice %148 {offsets = [0, 384], sizes = [24, 384], strides = [1, 1]} : vector<24x768xf32> to vector<24x384xf32>
    %151 = arith.maximumf %149, %150 : vector<24x384xf32>
    %152 = vector.extract_strided_slice %151 {offsets = [0, 0], sizes = [1, 384], strides = [1, 1]} : vector<24x384xf32> to vector<1x384xf32>
    %153 = vector.extract_strided_slice %151 {offsets = [1, 0], sizes = [1, 384], strides = [1, 1]} : vector<24x384xf32> to vector<1x384xf32>
    %154 = arith.maximumf %152, %153 : vector<1x384xf32>
    %155 = vector.extract_strided_slice %151 {offsets = [2, 0], sizes = [1, 384], strides = [1, 1]} : vector<24x384xf32> to vector<1x384xf32>
    %156 = vector.extract_strided_slice %151 {offsets = [3, 0], sizes = [1, 384], strides = [1, 1]} : vector<24x384xf32> to vector<1x384xf32>
    %157 = arith.maximumf %155, %156 : vector<1x384xf32>
    %158 = vector.extract_strided_slice %151 {offsets = [4, 0], sizes = [1, 384], strides = [1, 1]} : vector<24x384xf32> to vector<1x384xf32>
    %159 = vector.extract_strided_slice %151 {offsets = [5, 0], sizes = [1, 384], strides = [1, 1]} : vector<24x384xf32> to vector<1x384xf32>
    %160 = arith.maximumf %158, %159 : vector<1x384xf32>
    %161 = vector.extract_strided_slice %151 {offsets = [6, 0], sizes = [1, 384], strides = [1, 1]} : vector<24x384xf32> to vector<1x384xf32>
    %162 = vector.extract_strided_slice %151 {offsets = [7, 0], sizes = [1, 384], strides = [1, 1]} : vector<24x384xf32> to vector<1x384xf32>
    %163 = arith.maximumf %161, %162 : vector<1x384xf32>
    %164 = vector.extract_strided_slice %151 {offsets = [8, 0], sizes = [1, 384], strides = [1, 1]} : vector<24x384xf32> to vector<1x384xf32>
    %165 = vector.extract_strided_slice %151 {offsets = [9, 0], sizes = [1, 384], strides = [1, 1]} : vector<24x384xf32> to vector<1x384xf32>
    %166 = arith.maximumf %164, %165 : vector<1x384xf32>
    %167 = vector.extract_strided_slice %151 {offsets = [10, 0], sizes = [1, 384], strides = [1, 1]} : vector<24x384xf32> to vector<1x384xf32>
    %168 = vector.extract_strided_slice %151 {offsets = [11, 0], sizes = [1, 384], strides = [1, 1]} : vector<24x384xf32> to vector<1x384xf32>
    %169 = arith.maximumf %167, %168 : vector<1x384xf32>
    %170 = vector.extract_strided_slice %151 {offsets = [12, 0], sizes = [1, 384], strides = [1, 1]} : vector<24x384xf32> to vector<1x384xf32>
    %171 = vector.extract_strided_slice %151 {offsets = [13, 0], sizes = [1, 384], strides = [1, 1]} : vector<24x384xf32> to vector<1x384xf32>
    %172 = arith.maximumf %170, %171 : vector<1x384xf32>
    %173 = vector.extract_strided_slice %151 {offsets = [14, 0], sizes = [1, 384], strides = [1, 1]} : vector<24x384xf32> to vector<1x384xf32>
    %174 = vector.extract_strided_slice %151 {offsets = [15, 0], sizes = [1, 384], strides = [1, 1]} : vector<24x384xf32> to vector<1x384xf32>
    %175 = arith.maximumf %173, %174 : vector<1x384xf32>
    %176 = vector.extract_strided_slice %151 {offsets = [16, 0], sizes = [1, 384], strides = [1, 1]} : vector<24x384xf32> to vector<1x384xf32>
    %177 = vector.extract_strided_slice %151 {offsets = [17, 0], sizes = [1, 384], strides = [1, 1]} : vector<24x384xf32> to vector<1x384xf32>
    %178 = arith.maximumf %176, %177 : vector<1x384xf32>
    %179 = vector.extract_strided_slice %151 {offsets = [18, 0], sizes = [1, 384], strides = [1, 1]} : vector<24x384xf32> to vector<1x384xf32>
    %180 = vector.extract_strided_slice %151 {offsets = [19, 0], sizes = [1, 384], strides = [1, 1]} : vector<24x384xf32> to vector<1x384xf32>
    %181 = arith.maximumf %179, %180 : vector<1x384xf32>
    %182 = vector.extract_strided_slice %151 {offsets = [20, 0], sizes = [1, 384], strides = [1, 1]} : vector<24x384xf32> to vector<1x384xf32>
    %183 = vector.extract_strided_slice %151 {offsets = [21, 0], sizes = [1, 384], strides = [1, 1]} : vector<24x384xf32> to vector<1x384xf32>
    %184 = arith.maximumf %182, %183 : vector<1x384xf32>
    %185 = vector.extract_strided_slice %151 {offsets = [22, 0], sizes = [1, 384], strides = [1, 1]} : vector<24x384xf32> to vector<1x384xf32>
    %186 = vector.extract_strided_slice %151 {offsets = [23, 0], sizes = [1, 384], strides = [1, 1]} : vector<24x384xf32> to vector<1x384xf32>
    %187 = arith.maximumf %185, %186 : vector<1x384xf32>
    %188 = tpu.concatenate %154, %157, %160, %163, %166, %169, %172, %175, %178, %181, %184, %187 in 0 : vector<1x384xf32>, vector<1x384xf32>, vector<1x384xf32>, vector<1x384xf32>, vector<1x384xf32>, vector<1x384xf32>, vector<1x384xf32>, vector<1x384xf32>, vector<1x384xf32>, vector<1x384xf32>, vector<1x384xf32>, vector<1x384xf32> -> vector<12x384xf32>
    %189 = arith.truncf %188 : vector<12x384xf32> to vector<12x384xbf16>
    %190 = vector.extract_strided_slice %189 {offsets = [0, 0], sizes = [8, 384], strides = [1, 1]} : vector<12x384xbf16> to vector<8x384xbf16>
    %c0_90 = arith.constant 0 : index
    %c0_91 = arith.constant 0 : index
    %c0_92 = arith.constant 0 : index
    %191 = vector.load %arg4[%c0_90, %c0_91, %c0_92] : memref<5x384x512xbf16, #tpu.memory_space<vmem>>, vector<1x384x512xbf16>
    %192 = vector.shape_cast %191 : vector<1x384x512xbf16> to vector<384x512xbf16>
    %cst_93 = arith.constant dense<0.000000e+00> : vector<8x512xf32>
    %193 = tpu.matmul %190, %192, %cst_93 {dimension_numbers = #tpu.dot_dimension_numbers<[1], [0], [0], [1], [0, 0, 1, 1], [], []>} : vector<8x384xbf16>, vector<384x512xbf16>, vector<8x512xf32> -> vector<8x512xf32>
    %194 = vector.extract_strided_slice %189 {offsets = [1, 0], sizes = [8, 384], strides = [1, 1]} : vector<12x384xbf16> to vector<8x384xbf16>
    %c1_94 = arith.constant 1 : index
    %c0_95 = arith.constant 0 : index
    %c0_96 = arith.constant 0 : index
    %195 = vector.load %arg4[%c1_94, %c0_95, %c0_96] : memref<5x384x512xbf16, #tpu.memory_space<vmem>>, vector<1x384x512xbf16>
    %196 = vector.shape_cast %195 : vector<1x384x512xbf16> to vector<384x512xbf16>
    %cst_97 = arith.constant dense<0.000000e+00> : vector<8x512xf32>
    %197 = tpu.matmul %194, %196, %cst_97 {dimension_numbers = #tpu.dot_dimension_numbers<[1], [0], [0], [1], [0, 0, 1, 1], [], []>} : vector<8x384xbf16>, vector<384x512xbf16>, vector<8x512xf32> -> vector<8x512xf32>
    %198 = arith.addf %193, %197 : vector<8x512xf32>
    %199 = vector.extract_strided_slice %189 {offsets = [2, 0], sizes = [8, 384], strides = [1, 1]} : vector<12x384xbf16> to vector<8x384xbf16>
    %c2_98 = arith.constant 2 : index
    %c0_99 = arith.constant 0 : index
    %c0_100 = arith.constant 0 : index
    %200 = vector.load %arg4[%c2_98, %c0_99, %c0_100] : memref<5x384x512xbf16, #tpu.memory_space<vmem>>, vector<1x384x512xbf16>
    %201 = vector.shape_cast %200 : vector<1x384x512xbf16> to vector<384x512xbf16>
    %cst_101 = arith.constant dense<0.000000e+00> : vector<8x512xf32>
    %202 = tpu.matmul %199, %201, %cst_101 {dimension_numbers = #tpu.dot_dimension_numbers<[1], [0], [0], [1], [0, 0, 1, 1], [], []>} : vector<8x384xbf16>, vector<384x512xbf16>, vector<8x512xf32> -> vector<8x512xf32>
    %203 = arith.addf %198, %202 : vector<8x512xf32>
    %204 = vector.extract_strided_slice %189 {offsets = [3, 0], sizes = [8, 384], strides = [1, 1]} : vector<12x384xbf16> to vector<8x384xbf16>
    %c3_102 = arith.constant 3 : index
    %c0_103 = arith.constant 0 : index
    %c0_104 = arith.constant 0 : index
    %205 = vector.load %arg4[%c3_102, %c0_103, %c0_104] : memref<5x384x512xbf16, #tpu.memory_space<vmem>>, vector<1x384x512xbf16>
    %206 = vector.shape_cast %205 : vector<1x384x512xbf16> to vector<384x512xbf16>
    %cst_105 = arith.constant dense<0.000000e+00> : vector<8x512xf32>
    %207 = tpu.matmul %204, %206, %cst_105 {dimension_numbers = #tpu.dot_dimension_numbers<[1], [0], [0], [1], [0, 0, 1, 1], [], []>} : vector<8x384xbf16>, vector<384x512xbf16>, vector<8x512xf32> -> vector<8x512xf32>
    %208 = arith.addf %203, %207 : vector<8x512xf32>
    %209 = vector.extract_strided_slice %189 {offsets = [4, 0], sizes = [8, 384], strides = [1, 1]} : vector<12x384xbf16> to vector<8x384xbf16>
    %c4_106 = arith.constant 4 : index
    %c0_107 = arith.constant 0 : index
    %c0_108 = arith.constant 0 : index
    %210 = vector.load %arg4[%c4_106, %c0_107, %c0_108] : memref<5x384x512xbf16, #tpu.memory_space<vmem>>, vector<1x384x512xbf16>
    %211 = vector.shape_cast %210 : vector<1x384x512xbf16> to vector<384x512xbf16>
    %cst_109 = arith.constant dense<0.000000e+00> : vector<8x512xf32>
    %212 = tpu.matmul %209, %211, %cst_109 {dimension_numbers = #tpu.dot_dimension_numbers<[1], [0], [0], [1], [0, 0, 1, 1], [], []>} : vector<8x384xbf16>, vector<384x512xbf16>, vector<8x512xf32> -> vector<8x512xf32>
    %213 = arith.addf %208, %212 : vector<8x512xf32>
    %c0_110 = arith.constant 0 : index
    %c0_111 = arith.constant 0 : index
    %214 = vector.load %arg5[%c0_110, %c0_111] : memref<1x512xf32, #tpu.memory_space<vmem>>, vector<1x512xf32>
    %215 = vector.broadcast %214 : vector<1x512xf32> to vector<8x512xf32>
    %216 = arith.addf %213, %215 : vector<8x512xf32>
    %217 = vector.extract_strided_slice %216 {offsets = [0, 0], sizes = [8, 256], strides = [1, 1]} : vector<8x512xf32> to vector<8x256xf32>
    %218 = vector.extract_strided_slice %216 {offsets = [0, 256], sizes = [8, 256], strides = [1, 1]} : vector<8x512xf32> to vector<8x256xf32>
    %219 = arith.maximumf %217, %218 : vector<8x256xf32>
    %220 = vector.extract_strided_slice %219 {offsets = [0, 0], sizes = [1, 256], strides = [1, 1]} : vector<8x256xf32> to vector<1x256xf32>
    %221 = vector.extract_strided_slice %219 {offsets = [1, 0], sizes = [1, 256], strides = [1, 1]} : vector<8x256xf32> to vector<1x256xf32>
    %222 = arith.maximumf %220, %221 : vector<1x256xf32>
    %223 = vector.extract_strided_slice %219 {offsets = [2, 0], sizes = [1, 256], strides = [1, 1]} : vector<8x256xf32> to vector<1x256xf32>
    %224 = vector.extract_strided_slice %219 {offsets = [3, 0], sizes = [1, 256], strides = [1, 1]} : vector<8x256xf32> to vector<1x256xf32>
    %225 = arith.maximumf %223, %224 : vector<1x256xf32>
    %226 = vector.extract_strided_slice %219 {offsets = [4, 0], sizes = [1, 256], strides = [1, 1]} : vector<8x256xf32> to vector<1x256xf32>
    %227 = vector.extract_strided_slice %219 {offsets = [5, 0], sizes = [1, 256], strides = [1, 1]} : vector<8x256xf32> to vector<1x256xf32>
    %228 = arith.maximumf %226, %227 : vector<1x256xf32>
    %229 = vector.extract_strided_slice %219 {offsets = [6, 0], sizes = [1, 256], strides = [1, 1]} : vector<8x256xf32> to vector<1x256xf32>
    %230 = vector.extract_strided_slice %219 {offsets = [7, 0], sizes = [1, 256], strides = [1, 1]} : vector<8x256xf32> to vector<1x256xf32>
    %231 = arith.maximumf %229, %230 : vector<1x256xf32>
    %232 = tpu.concatenate %222, %225, %228, %231 in 1 : vector<1x256xf32>, vector<1x256xf32>, vector<1x256xf32>, vector<1x256xf32> -> vector<1x1024xf32>
    %233 = arith.truncf %232 : vector<1x1024xf32> to vector<1x1024xbf16>
    %234 = tpu.concatenate %116, %233 in 0 : vector<1x1024xbf16>, vector<1x1024xbf16> -> vector<2x1024xbf16>
    %c0_112 = arith.constant 0 : index
    %c0_113 = arith.constant 0 : index
    %235 = vector.load %arg6[%c0_112, %c0_113] : memref<1024x512xbf16, #tpu.memory_space<vmem>>, vector<1024x512xbf16>
    %cst_114 = arith.constant dense<0.000000e+00> : vector<2x512xf32>
    %236 = tpu.matmul %234, %235, %cst_114 {dimension_numbers = #tpu.dot_dimension_numbers<[1], [0], [0], [1], [0, 0, 1, 1], [], []>} : vector<2x1024xbf16>, vector<1024x512xbf16>, vector<2x512xf32> -> vector<2x512xf32>
    %c0_115 = arith.constant 0 : index
    %c0_116 = arith.constant 0 : index
    %237 = vector.load %arg7[%c0_115, %c0_116] : memref<1x512xf32, #tpu.memory_space<vmem>>, vector<1x512xf32>
    %238 = vector.broadcast %237 : vector<1x512xf32> to vector<2x512xf32>
    %239 = arith.addf %236, %238 : vector<2x512xf32>
    %cst_117 = arith.constant 0.000000e+00 : f32
    %240 = vector.broadcast %cst_117 : f32 to vector<2x512xf32>
    %241 = arith.maximumf %239, %240 : vector<2x512xf32>
    %242 = arith.truncf %241 : vector<2x512xf32> to vector<2x512xbf16>
    %c0_118 = arith.constant 0 : index
    %c0_119 = arith.constant 0 : index
    %243 = vector.load %arg8[%c0_118, %c0_119] : memref<512x128xbf16, #tpu.memory_space<vmem>>, vector<512x128xbf16>
    %cst_120 = arith.constant dense<0.000000e+00> : vector<2x128xf32>
    %244 = tpu.matmul %242, %243, %cst_120 {dimension_numbers = #tpu.dot_dimension_numbers<[1], [0], [0], [1], [0, 0, 1, 1], [], []>} : vector<2x512xbf16>, vector<512x128xbf16>, vector<2x128xf32> -> vector<2x128xf32>
    %c0_121 = arith.constant 0 : index
    %c0_122 = arith.constant 0 : index
    %245 = vector.load %arg9[%c0_121, %c0_122] : memref<1x128xf32, #tpu.memory_space<vmem>>, vector<1x128xf32>
    %246 = vector.broadcast %245 : vector<1x128xf32> to vector<2x128xf32>
    %247 = arith.addf %244, %246 : vector<2x128xf32>
    %c0_123 = arith.constant 0 : index
    %c0_124 = arith.constant 0 : index
    %248 = vector.load %arg10[%c0_123, %c0_124] : memref<2x128xf32, #tpu.memory_space<vmem>>, vector<2x128xf32>
    tpu.vector_store %arg10[%c0_123, %c0_124], %247 {strides = array<i32>} : memref<2x128xf32, #tpu.memory_space<vmem>>, vector<2x128xf32>,
    return
  }
  func.func @transform_0(%arg0: i32) -> (i32, i32, i32) {
    %c0_i32 = arith.constant 0 : i32
    %c0_i32_0 = arith.constant 0 : i32
    %c0_i32_1 = arith.constant 0 : i32
    return %arg0, %c0_i32, %c0_i32_0 : i32, i32, i32
  }
  func.func @transform_1(%arg0: i32) -> (i32, i32, i32) {
    %c0_i32 = arith.constant 0 : i32
    %c0_i32_0 = arith.constant 0 : i32
    %c0_i32_1 = arith.constant 0 : i32
    %c0_i32_2 = arith.constant 0 : i32
    return %c0_i32, %c0_i32_0, %c0_i32_1 : i32, i32, i32
  }
  func.func @transform_2(%arg0: i32) -> (i32, i32) {
    %c0_i32 = arith.constant 0 : i32
    %c0_i32_0 = arith.constant 0 : i32
    %c0_i32_1 = arith.constant 0 : i32
    return %c0_i32, %c0_i32_0 : i32, i32
  }
  func.func @transform_3(%arg0: i32) -> (i32, i32, i32) {
    %c0_i32 = arith.constant 0 : i32
    %c0_i32_0 = arith.constant 0 : i32
    %c0_i32_1 = arith.constant 0 : i32
    %c0_i32_2 = arith.constant 0 : i32
    return %c0_i32, %c0_i32_0, %c0_i32_1 : i32, i32, i32
  }
  func.func @transform_4(%arg0: i32) -> (i32, i32) {
    %c0_i32 = arith.constant 0 : i32
    %c0_i32_0 = arith.constant 0 : i32
    %c0_i32_1 = arith.constant 0 : i32
    return %c0_i32, %c0_i32_0 : i32, i32
  }
  func.func @transform_5(%arg0: i32) -> (i32, i32) {
    %c0_i32 = arith.constant 0 : i32
    %c0_i32_0 = arith.constant 0 : i32
    %c0_i32_1 = arith.constant 0 : i32
    return %c0_i32, %c0_i32_0 : i32, i32
  }
  func.func @transform_6(%arg0: i32) -> (i32, i32) {
    %c0_i32 = arith.constant 0 : i32
    %c0_i32_0 = arith.constant 0 : i32
    %c0_i32_1 = arith.constant 0 : i32
    return %c0_i32, %c0_i32_0 : i32, i32
  }
  func.func @transform_7(%arg0: i32) -> (i32, i32) {
    %c0_i32 = arith.constant 0 : i32
    %c0_i32_0 = arith.constant 0 : i32
    %c0_i32_1 = arith.constant 0 : i32
    return %c0_i32, %c0_i32_0 : i32, i32
  }
  func.func @transform_8(%arg0: i32) -> (i32, i32) {
    %c0_i32 = arith.constant 0 : i32
    %c0_i32_0 = arith.constant 0 : i32
    %c0_i32_1 = arith.constant 0 : i32
    return %c0_i32, %c0_i32_0 : i32, i32
  }
  func.func @transform_9(%arg0: i32) -> (i32, i32) {
    %c0_i32 = arith.constant 0 : i32
    %c0_i32_0 = arith.constant 0 : i32
    return %arg0, %c0_i32 : i32, i32
  }
}

</mosaic_0001>

<llo_original>
// kernel: mnist_cnn_forward.1
$region0: #{mnist_cnn_forward.1}
  #allocation0 [shape = 'u32[]', space=smem, size = 0x4, offset = 0x4, fixed_abs, tag = 'smem constant byte address 0x4 - core index']
  #allocation1 [shape = 'u32[144,128]{1,0:T(1,128)}', space=vmem, size = 0x12000, scoped, tag = 'internal scratch']
  %s0 = inlined_call_operand.vmem [shape: bf16[2,28,28], index: 0, kind: input, shape index: {}]
  %s1 = inlined_call_operand.hbm [shape: bf16[5,28,768], index: 1, kind: input, shape index: {}]
  %s2 = inlined_call_operand.hbm [shape: f32[1,768], index: 2, kind: input, shape index: {}]
  %s3 = inlined_call_operand.hbm [shape: bf16[5,384,512], index: 3, kind: input, shape index: {}]
  %s4 = inlined_call_operand.hbm [shape: f32[1,512], index: 4, kind: input, shape index: {}]
  %s5 = inlined_call_operand.hbm [shape: bf16[1024,512], index: 5, kind: input, shape index: {}]
  %s6 = inlined_call_operand.hbm [shape: f32[1,512], index: 6, kind: input, shape index: {}]
  %s7 = inlined_call_operand.hbm [shape: bf16[512,128], index: 7, kind: input, shape index: {}]
  %s8 = inlined_call_operand.hbm [shape: f32[1,128], index: 8, kind: input, shape index: {}]
  %s9 = inlined_call_operand.hbm [shape: f32[2,128], index: 9, kind: output, shape index: {}]
  %s10 = sld [smem:[#allocation0]]
  $region78: #{mnist_cnn_forward.1} parent=0
    _
  %s12 = ssub.s32 1, %s10
  %s13 = scalar_select 0, %s12, %s10
  $region1: #{mnist_cnn_forward.1} parent=0
    #allocation2 [shape = 'u8[245760]{0}', space=vmem, size = 0x3c000, scoped, tag = 'input window, operand 1, single buffered']
    #allocation3 [shape = 's32[1]{0}', space=sflag, size = 0x4, scoped, tag = 'scoped memory for mnist_cnn_forward.1']
    #allocation4 [shape = 's32[1]{0}', space=sflag, size = 0x4, scoped, tag = 'scoped memory for mnist_cnn_forward.1']
    #allocation5 [shape = 'u8[3072]{0}', space=vmem, size = 0xc00, scoped, tag = 'input window, operand 2, single buffered']
    #allocation6 [shape = 's32[1]{0}', space=sflag, size = 0x4, scoped, tag = 'scoped memory for mnist_cnn_forward.1']
    #allocation7 [shape = 'u8[1966080]{0}', space=vmem, size = 0x1e0000, scoped, tag = 'input window, operand 3, single buffered']
    #allocation8 [shape = 'u8[2048]{0}', space=vmem, size = 0x800, scoped, tag = 'input window, operand 4, single buffered']
    #allocation9 [shape = 's32[1]{0}', space=sflag, size = 0x4, scoped, tag = 'scoped memory for mnist_cnn_forward.1']
    #allocation10 [shape = 'u8[1048576]{0}', space=vmem, size = 0x100000, scoped, tag = 'input window, operand 5, single buffered']
    #allocation11 [shape = 'u8[2048]{0}', space=vmem, size = 0x800, scoped, tag = 'input window, operand 6, single buffered']
    #allocation12 [shape = 's32[1]{0}', space=sflag, size = 0x4, scoped, tag = 'scoped memory for mnist_cnn_forward.1']
    #allocation13 [shape = 'u8[131072]{0}', space=vmem, size = 0x20000, scoped, tag = 'input window, operand 7, single buffered']
    #allocation14 [shape = 'u8[512]{0}', space=vmem, size = 0x400, scoped, tag = 'input window, operand 8, single buffered']
    #allocation15 [shape = 's32[1]{0}', space=sflag, size = 0x4, scoped, tag = 'scoped memory for mnist_cnn_forward.1']
    #allocation16 [shape = 'u8[1024]{0}', space=vmem, size = 0x400, scoped, tag = 'output window, operand 0, single buffered']
    %14 = vsyncpa [#allocation3], 0
    %15 = vsyncpa [#allocation6], 0
    %16 = vsyncpa [#allocation9], 0
    %17 = vsyncpa [#allocation12], 0
    %18 = vsyncpa [#allocation15], 0
    %19 = vsyncpa [#allocation4], 0
    // Predicated region
    $region2: #{mnist_cnn_forward.1} parent=1 // pred_check
      _
    $region3: #{mnist_cnn_forward.1} parent=1 // pred_check_branch
      %21 = sbr.rel (0) target = $region5
    $region4: #{mnist_cnn_forward.1} parent=1 // pred_region
      _
    $region5: #{mnist_cnn_forward.1} parent=1 // pred_fallthru
      _
    // Predicated region
    $region6: #{mnist_cnn_forward.1} parent=1 // pred_check
      _
    $region7: #{mnist_cnn_forward.1} parent=1 // pred_check_branch
      %23 = sbr.rel (0) target = $region9
    $region8: #{mnist_cnn_forward.1} parent=1 // pred_region
      %s25 = ssub.s32 7680, 7680
      %26 = vsyncadd [#allocation3], %s25
      %s27 = sshll.u32 [#allocation2], 4
      %s28 = int_to_ptr.vmem [resolvable:$true] %s27
      %33 = dma.hbm_to_vmem [thread:$0]  %s1, 7680, %s28, [#allocation3], 384, 384, 24
    $region9: #{mnist_cnn_forward.1} parent=1 // pred_fallthru
      _
    // Predicated region
    $region10: #{mnist_cnn_forward.1} parent=1 // pred_check
      _
    $region11: #{mnist_cnn_forward.1} parent=1 // pred_check_branch
      %35 = sbr.rel (0) target = $region13
    $region12: #{mnist_cnn_forward.1} parent=1 // pred_region
      %s37 = ssub.s32 96, 96
      %38 = vsyncadd [#allocation6], %s37
      %s40 = sshll.u32 [#allocation5], 4
      %s41 = int_to_ptr.vmem [resolvable:$true] %s40
      %43 = dma.hbm_to_vmem [thread:$0]  %s2, 96, %s41, [#allocation6]
    $region13: #{mnist_cnn_forward.1} parent=1 // pred_fallthru
      _
    // Predicated region
    $region14: #{mnist_cnn_forward.1} parent=1 // pred_check
      _
    $region15: #{mnist_cnn_forward.1} parent=1 // pred_check_branch
      %45 = sbr.rel (0) target = $region17
    $region16: #{mnist_cnn_forward.1} parent=1 // pred_region
      %s47 = ssub.s32 61440, 61440
      %48 = vsyncadd [#allocation6], %s47
      %s49 = sshll.u32 [#allocation7], 4
      %s50 = int_to_ptr.vmem [resolvable:$true] %s49
      %55 = dma.hbm_to_vmem [thread:$0]  %s3, 61440, %s50, [#allocation6], 256, 256, 16
    $region17: #{mnist_cnn_forward.1} parent=1 // pred_fallthru
      _
    // Predicated region
    $region18: #{mnist_cnn_forward.1} parent=1 // pred_check
      _
    $region19: #{mnist_cnn_forward.1} parent=1 // pred_check_branch
      %57 = sbr.rel (0) target = $region21
    $region20: #{mnist_cnn_forward.1} parent=1 // pred_region
      %s59 = ssub.s32 64, 64
      %60 = vsyncadd [#allocation9], %s59
      %s62 = sshll.u32 [#allocation8], 4
      %s63 = int_to_ptr.vmem [resolvable:$true] %s62
      %65 = dma.hbm_to_vmem [thread:$0]  %s4, 64, %s63, [#allocation9]
    $region21: #{mnist_cnn_forward.1} parent=1 // pred_fallthru
      _
    // Predicated region
    $region22: #{mnist_cnn_forward.1} parent=1 // pred_check
      _
    $region23: #{mnist_cnn_forward.1} parent=1 // pred_check_branch
      %67 = sbr.rel (0) target = $region25
    $region24: #{mnist_cnn_forward.1} parent=1 // pred_region
      %s69 = ssub.s32 32768, 32768
      %70 = vsyncadd [#allocation9], %s69
      %s71 = sshll.u32 [#allocation10], 4
      %s72 = int_to_ptr.vmem [resolvable:$true] %s71
      %77 = dma.hbm_to_vmem [thread:$0]  %s5, 32768, %s72, [#allocation9], 256, 256, 16
    $region25: #{mnist_cnn_forward.1} parent=1 // pred_fallthru
      _
    // Predicated region
    $region26: #{mnist_cnn_forward.1} parent=1 // pred_check
      _
    $region27: #{mnist_cnn_forward.1} parent=1 // pred_check_branch
      %79 = sbr.rel (0) target = $region29
    $region28: #{mnist_cnn_forward.1} parent=1 // pred_region
      %s81 = ssub.s32 64, 64
      %82 = vsyncadd [#allocation12], %s81
      %s84 = sshll.u32 [#allocation11], 4
      %s85 = int_to_ptr.vmem [resolvable:$true] %s84
      %87 = dma.hbm_to_vmem [thread:$0]  %s6, 64, %s85, [#allocation12]
    $region29: #{mnist_cnn_forward.1} parent=1 // pred_fallthru
      _
    // Predicated region
    $region30: #{mnist_cnn_forward.1} parent=1 // pred_check
      _
    $region31: #{mnist_cnn_forward.1} parent=1 // pred_check_branch
      %89 = sbr.rel (0) target = $region33
    $region32: #{mnist_cnn_forward.1} parent=1 // pred_region
      %s91 = ssub.s32 4096, 4096
      %92 = vsyncadd [#allocation12], %s91
      %s93 = sshll.u32 [#allocation13], 4
      %s94 = int_to_ptr.vmem [resolvable:$true] %s93
      %99 = dma.hbm_to_vmem [thread:$0]  %s7, 4096, %s94, [#allocation12], 64, 64, 4
    $region33: #{mnist_cnn_forward.1} parent=1 // pred_fallthru
      _
    // Predicated region
    $region34: #{mnist_cnn_forward.1} parent=1 // pred_check
      _
    $region35: #{mnist_cnn_forward.1} parent=1 // pred_check_branch
      %101 = sbr.rel (0) target = $region37
    $region36: #{mnist_cnn_forward.1} parent=1 // pred_region
      %s103 = ssub.s32 16, 16
      %104 = vsyncadd [#allocation15], %s103
      %s106 = sshll.u32 [#allocation14], 4
      %s107 = int_to_ptr.vmem [resolvable:$true] %s106
      %109 = dma.hbm_to_vmem [thread:$0]  %s8, 16, %s107, [#allocation15]
    $region37: #{mnist_cnn_forward.1} parent=1 // pred_fallthru
      _
    // Predicated region
    $region38: #{mnist_cnn_forward.1} parent=1 // pred_check
      _
    $region39: #{mnist_cnn_forward.1} parent=1 // pred_check_branch
      %111 = sbr.rel (0) target = $region41
    $region40: #{mnist_cnn_forward.1} parent=1 // pred_region
      %112 = dma.done [#allocation3], 7680
    $region41: #{mnist_cnn_forward.1} parent=1 // pred_fallthru
      _
    // Predicated region
    $region42: #{mnist_cnn_forward.1} parent=1 // pred_check
      _
    $region43: #{mnist_cnn_forward.1} parent=1 // pred_check_branch
      %114 = sbr.rel (0) target = $region45
    $region44: #{mnist_cnn_forward.1} parent=1 // pred_region
      %115 = dma.done [#allocation6], 96
    $region45: #{mnist_cnn_forward.1} parent=1 // pred_fallthru
      _
    // Predicated region
    $region46: #{mnist_cnn_forward.1} parent=1 // pred_check
      _
    $region47: #{mnist_cnn_forward.1} parent=1 // pred_check_branch
      %117 = sbr.rel (0) target = $region49
    $region48: #{mnist_cnn_forward.1} parent=1 // pred_region
      %118 = dma.done [#allocation6], 61440
    $region49: #{mnist_cnn_forward.1} parent=1 // pred_fallthru
      _
    // Predicated region
    $region50: #{mnist_cnn_forward.1} parent=1 // pred_check
      _
    $region51: #{mnist_cnn_forward.1} parent=1 // pred_check_branch
      %120 = sbr.rel (0) target = $region53
    $region52: #{mnist_cnn_forward.1} parent=1 // pred_region
      %121 = dma.done [#allocation9], 64
    $region53: #{mnist_cnn_forward.1} parent=1 // pred_fallthru
      _
    // Predicated region
    $region54: #{mnist_cnn_forward.1} parent=1 // pred_check
      _
    $region55: #{mnist_cnn_forward.1} parent=1 // pred_check_branch
      %123 = sbr.rel (0) target = $region57
    $region56: #{mnist_cnn_forward.1} parent=1 // pred_region
      %124 = dma.done [#allocation9], 32768
    $region57: #{mnist_cnn_forward.1} parent=1 // pred_fallthru
      _
    // Predicated region
    $region58: #{mnist_cnn_forward.1} parent=1 // pred_check
      _
    $region59: #{mnist_cnn_forward.1} parent=1 // pred_check_branch
      %126 = sbr.rel (0) target = $region61
    $region60: #{mnist_cnn_forward.1} parent=1 // pred_region
      %127 = dma.done [#allocation12], 64
    $region61: #{mnist_cnn_forward.1} parent=1 // pred_fallthru
      _
    // Predicated region
    $region62: #{mnist_cnn_forward.1} parent=1 // pred_check
      _
    $region63: #{mnist_cnn_forward.1} parent=1 // pred_check_branch
      %129 = sbr.rel (0) target = $region65
    $region64: #{mnist_cnn_forward.1} parent=1 // pred_region
      %130 = dma.done [#allocation12], 4096
    $region65: #{mnist_cnn_forward.1} parent=1 // pred_fallthru
      _
    // Predicated region
    $region66: #{mnist_cnn_forward.1} parent=1 // pred_check
      _
    $region67: #{mnist_cnn_forward.1} parent=1 // pred_check_branch
      %132 = sbr.rel (0) target = $region69
    $region68: #{mnist_cnn_forward.1} parent=1 // pred_region
      %133 = dma.done [#allocation15], 16
    $region69: #{mnist_cnn_forward.1} parent=1 // pred_fallthru
      _
    %v135 = vld [vmem:[%s0] sm:$0xf]
    %v136 = vld [vmem:[%s0 + $0x4] sm:$0xf]
    %v137 = vld [vmem:[%s0 + $0x8] sm:$0xf]
    %v138 = vld [vmem:[#allocation2] sm:$0xff]
    %v139 = vld [vmem:[#allocation2 + $0x8] sm:$0xff]
    %v140 = vld [vmem:[#allocation2 + $0x10] sm:$0xff]
    %v141 = vld [vmem:[#allocation2 + $0x18] sm:$0xff]
    %v142 = vld [vmem:[#allocation2 + $0x20] sm:$0xff]
    %v143 = vld [vmem:[#allocation2 + $0x28] sm:$0xff]
    %v144 = vld [vmem:[#allocation2 + $0x30] sm:$0xff]
    %v145 = vld [vmem:[#allocation2 + $0x38] sm:$0xff]
    %v146 = vld [vmem:[#allocation2 + $0x40] sm:$0xff]
    %v147 = vld [vmem:[#allocation2 + $0x48] sm:$0x33]
    %v148 = vld [vmem:[#allocation2 + $0x50] sm:$0x33]
    %v149 = vld [vmem:[#allocation2 + $0x58] sm:$0x33]
    %v150 = vld [vmem:[%s0 + $0xc] sm:$0x1]
    %s151 = scalar_lea.vmem [#allocation2], 96
    %v152 = vld [vmem:[%s151] sm:$0xff]
    %v153 = vld [vmem:[%s151 + $0x8] sm:$0xff]
    %v154 = vld [vmem:[%s151 + $0x10] sm:$0xff]
    %v155 = vld [vmem:[%s151 + $0x18] sm:$0xff]
    %v156 = vld [vmem:[%s151 + $0x20] sm:$0xff]
    %v157 = vld [vmem:[%s151 + $0x28] sm:$0xff]
    %v158 = vld [vmem:[%s151 + $0x30] sm:$0xff]
    %v159 = vld [vmem:[%s151 + $0x38] sm:$0xff]
    %v160 = vld [vmem:[%s151 + $0x40] sm:$0xff]
    %v161 = vld [vmem:[%s151 + $0x48] sm:$0x33]
    %v162 = vld [vmem:[%s151 + $0x50] sm:$0x33]
    %v163 = vld [vmem:[%s151 + $0x58] sm:$0x33]
    %v168 = vunpack.c.l.b16 %v135
    %v169 = vunpack.c.l.b16 %v136
    %v170 = vunpack.c.l.b16 %v137
    %v171 = vunpack.c.l.b16 %v150
    %v172 = vpack.c.b16 %v169, %v168
    %v173 = vpack.c.b16 %v171, %v170
    %vm174 = vsmask.f32 7424
    %v176 = vshrl.u32 %v172, 16
    %v178 = vshll.u32 %v172, 16
    %v180 = vrot.slane %v178, 1
    %v181 = vor.u32 %v176, %v180
    %v183 = vshll.u32 %v173, 16
    %v185 = vrot.slane %v183, 1
    %v186 = vsel %vm174, %v181, %v185
    %v187 = vshrl.u32 %v173, 16
    %v189 = vor.u32 %v187, %v185
    %v202 = vunpack.c.l.b16 %v152
    %v203 = vunpack.c.h.b16 %v152
    %v204 = vunpack.c.l.b16 %v153
    %v205 = vunpack.c.h.b16 %v153
    %v206 = vunpack.c.l.b16 %v154
    %v207 = vunpack.c.h.b16 %v154
    %v208 = vunpack.c.l.b16 %v155
    %v209 = vunpack.c.h.b16 %v155
    %v210 = vunpack.c.l.b16 %v156
    %v211 = vunpack.c.h.b16 %v156
    %v212 = vunpack.c.l.b16 %v157
    %v213 = vunpack.c.h.b16 %v157
    %v214 = vunpack.c.l.b16 %v158
    %v215 = vunpack.c.h.b16 %v158
    %v216 = vunpack.c.l.b16 %v159
    %v217 = vunpack.c.h.b16 %v159
    %v218 = vunpack.c.l.b16 %v160
    %v219 = vunpack.c.h.b16 %v160
    %v220 = vunpack.c.l.b16 %v161
    %v221 = vunpack.c.h.b16 %v161
    %v222 = vunpack.c.l.b16 %v162
    %v223 = vunpack.c.h.b16 %v162
    %v224 = vunpack.c.l.b16 %v163
    %v225 = vunpack.c.h.b16 %v163
    %v226 = vpack.c.b16 %v208, %v202
    %v227 = vpack.c.b16 %v209, %v203
    %v228 = vpack.c.b16 %v210, %v204
    %v229 = vpack.c.b16 %v211, %v205
    %v230 = vpack.c.b16 %v212, %v206
    %v231 = vpack.c.b16 %v213, %v207
    %v232 = vpack.c.b16 %v220, %v214
    %v233 = vpack.c.b16 %v221, %v215
    %v234 = vpack.c.b16 %v222, %v216
    %v235 = vpack.c.b16 %v223, %v217
    %v236 = vpack.c.b16 %v224, %v218
    %v237 = vpack.c.b16 %v225, %v219
    %vm244 = vcmask 228352
    %v246 = vsel %vm244, %v186, 0
    %v249 = vsel %vm244, %v189, 0
    %vm251 = vcmask 1045504
    %v253 = vsel %vm251, %v232, 0
    %v256 = vsel %vm251, %v233, 0
    %v259 = vsel %vm251, %v234, 0
    %v262 = vsel %vm251, %v235, 0
    %v265 = vsel %vm251, %v236, 0
    %v268 = vsel %vm251, %v237, 0
    %270 = vmatprep.subr.bf16.mxu0 %v227
    %271 = vmatpush1.bf16.msra.mxu0 %v226
    %272 = vmatprep.subr.bf16.mxu0 %v256
    %273 = vmatpush1.bf16.msra.mxu0 %v253
    %274 = vmatprep.subr.bf16.mxu0 0
    %275 = vmatpush1.bf16.msra.mxu0 0
    %276 = vmatprep.subr.bf16.mxu0 0
    %277 = vmatpush1.bf16.msra.mxu0 0
    %278 = vmatprep.subr.bf16.mxu0 0
    %279 = vmatpush1.bf16.msra.mxu0 0
    %280 = vmatprep.subr.bf16.mxu0 0
    %281 = vmatpush1.bf16.msra.mxu0 0
    %282 = vmatprep.subr.bf16.mxu0 0
    %283 = vmatpush1.bf16.msra.mxu0 0
    %284 = vmatprep.subr.bf16.mxu0 0
    %285 = vmatpush1.bf16.msra.mxu0 0
    %286 = vmatprep.subr.bf16.mxu0 0
    %287 = vmatpush1.bf16.msra.mxu0 0
    %288 = vmatprep.subr.bf16.mxu0 0
    %289 = vmatpush1.bf16.msra.mxu0 0
    %290 = vmatprep.subr.bf16.mxu0 0
    %291 = vmatpush1.bf16.msra.mxu0 0
    %292 = vmatprep.subr.bf16.mxu0 0
    %293 = vmatpush1.bf16.msra.mxu0 0
    %294 = vmatprep.subr.bf16.mxu0 0
    %295 = vmatpush1.bf16.msra.mxu0 0
    %296 = vmatprep.subr.bf16.mxu0 0
    %297 = vmatpush1.bf16.msra.mxu0 0
    %298 = vmatprep.subr.bf16.mxu0 0
    %299 = vmatpush1.bf16.msra.mxu0 0
    %300 = vmatprep.subr.bf16.mxu0 0
    %301 = vmatpush1.bf16.msra.mxu0 0
    %302 = vmatprep.mubr.bf16.mxu0 0
    %303 = vmatmul.mubr.bf16.gmra.mrb[0].mxu0 %v246
    %v304 = vpop.f32.mrb[0].mxu0
    %v305 = vadd.f32 0.0, %v304
    %v306 = vpop.f32.mrb[0].mxu0
    %v307 = vadd.f32 0.0, %v306
    %v308 = vpop.f32.mrb[0].mxu0
    %v309 = vadd.f32 0.0, %v308
    %v310 = vpop.f32.mrb[0].mxu0
    %v311 = vadd.f32 0.0, %v310
    %312 = vmatprep.mubr.bf16.mxu0 0
    %313 = vmatmul.mubr.bf16.gmra.mrb[0].mxu0 %v249
    %v314 = vpop.f32.mrb[0].mxu0
    %v315 = vadd.f32 0.0, %v314
    %v316 = vpop.f32.mrb[0].mxu0
    %v317 = vadd.f32 0.0, %v316
    %v318 = vpop.f32.mrb[0].mxu0
    %v319 = vpop.f32.mrb[0].mxu0
    %320 = vdwg.mxu0
    %321 = vmatprep.subr.bf16.mxu0 %v229
    %322 = vmatpush1.bf16.msra.mxu0 %v228
    %323 = vmatprep.subr.bf16.mxu0 %v262
    %324 = vmatpush1.bf16.msra.mxu0 %v259
    %325 = vmatprep.subr.bf16.mxu0 0
    %326 = vmatpush1.bf16.msra.mxu0 0
    %327 = vmatprep.subr.bf16.mxu0 0
    %328 = vmatpush1.bf16.msra.mxu0 0
    %329 = vmatprep.subr.bf16.mxu0 0
    %330 = vmatpush1.bf16.msra.mxu0 0
    %331 = vmatprep.subr.bf16.mxu0 0
    %332 = vmatpush1.bf16.msra.mxu0 0
    %333 = vmatprep.subr.bf16.mxu0 0
    %334 = vmatpush1.bf16.msra.mxu0 0
    %335 = vmatprep.subr.bf16.mxu0 0
    %336 = vmatpush1.bf16.msra.mxu0 0
    %337 = vmatprep.subr.bf16.mxu0 0
    %338 = vmatpush1.bf16.msra.mxu0 0
    %339 = vmatprep.subr.bf16.mxu0 0
    %340 = vmatpush1.bf16.msra.mxu0 0
    %341 = vmatprep.subr.bf16.mxu0 0
    %342 = vmatpush1.bf16.msra.mxu0 0
    %343 = vmatprep.subr.bf16.mxu0 0
    %344 = vmatpush1.bf16.msra.mxu0 0
    %345 = vmatprep.subr.bf16.mxu0 0
    %346 = vmatpush1.bf16.msra.mxu0 0
    %347 = vmatprep.subr.bf16.mxu0 0
    %348 = vmatpush1.bf16.msra.mxu0 0
    %349 = vmatprep.subr.bf16.mxu0 0
    %350 = vmatpush1.bf16.msra.mxu0 0
    %351 = vmatprep.subr.bf16.mxu0 0
    %352 = vmatpush1.bf16.msra.mxu0 0
    %353 = vmatprep.mubr.bf16.mxu0 0
    %354 = vmatmul.mubr.bf16.gmra.mrb[0].mxu0 %v246
    %v355 = vpop.f32.mrb[0].mxu0
    %v356 = vadd.f32 0.0, %v355
    %v357 = vpop.f32.mrb[0].mxu0
    %v358 = vadd.f32 0.0, %v357
    %v359 = vpop.f32.mrb[0].mxu0
    %v360 = vadd.f32 0.0, %v359
    %v361 = vpop.f32.mrb[0].mxu0
    %v362 = vadd.f32 0.0, %v361
    %363 = vmatprep.mubr.bf16.mxu0 0
    %364 = vmatmul.mubr.bf16.gmra.mrb[0].mxu0 %v249
    %v365 = vpop.f32.mrb[0].mxu0
    %v366 = vadd.f32 0.0, %v365
    %v367 = vpop.f32.mrb[0].mxu0
    %v368 = vadd.f32 0.0, %v367
    %v369 = vpop.f32.mrb[0].mxu0
    %v370 = vpop.f32.mrb[0].mxu0
    %371 = vdwg.mxu0
    %372 = vmatprep.subr.bf16.mxu0 %v231
    %373 = vmatpush1.bf16.msra.mxu0 %v230
    %374 = vmatprep.subr.bf16.mxu0 %v268
    %375 = vmatpush1.bf16.msra.mxu0 %v265
    %376 = vmatprep.subr.bf16.mxu0 0
    %377 = vmatpush1.bf16.msra.mxu0 0
    %378 = vmatprep.subr.bf16.mxu0 0
    %379 = vmatpush1.bf16.msra.mxu0 0
    %380 = vmatprep.subr.bf16.mxu0 0
    %381 = vmatpush1.bf16.msra.mxu0 0
    %382 = vmatprep.subr.bf16.mxu0 0
    %383 = vmatpush1.bf16.msra.mxu0 0
    %384 = vmatprep.subr.bf16.mxu0 0
    %385 = vmatpush1.bf16.msra.mxu0 0
    %386 = vmatprep.subr.bf16.mxu0 0
    %387 = vmatpush1.bf16.msra.mxu0 0
    %388 = vmatprep.subr.bf16.mxu0 0
    %389 = vmatpush1.bf16.msra.mxu0 0
    %390 = vmatprep.subr.bf16.mxu0 0
    %391 = vmatpush1.bf16.msra.mxu0 0
    %392 = vmatprep.subr.bf16.mxu0 0
    %393 = vmatpush1.bf16.msra.mxu0 0
    %394 = vmatprep.subr.bf16.mxu0 0
    %395 = vmatpush1.bf16.msra.mxu0 0
    %396 = vmatprep.subr.bf16.mxu0 0
    %397 = vmatpush1.bf16.msra.mxu0 0
    %398 = vmatprep.subr.bf16.mxu0 0
    %399 = vmatpush1.bf16.msra.mxu0 0
    %400 = vmatprep.subr.bf16.mxu0 0
    %401 = vmatpush1.bf16.msra.mxu0 0
    %402 = vmatprep.subr.bf16.mxu0 0
    %403 = vmatpush1.bf16.msra.mxu0 0
    %404 = vmatprep.mubr.bf16.mxu0 0
    %405 = vmatmul.mubr.bf16.gmra.mrb[0].mxu0 %v246
    %v406 = vpop.f32.mrb[0].mxu0
    %v407 = vadd.f32 0.0, %v406
    %v408 = vpop.f32.mrb[0].mxu0
    %v409 = vadd.f32 0.0, %v408
    %v410 = vpop.f32.mrb[0].mxu0
    %v411 = vadd.f32 0.0, %v410
    %v412 = vpop.f32.mrb[0].mxu0
    %v413 = vadd.f32 0.0, %v412
    %414 = vmatprep.mubr.bf16.mxu0 0
    %415 = vmatmul.mubr.bf16.gmra.mrb[0].mxu0 %v249
    %v416 = vpop.f32.mrb[0].mxu0
    %v417 = vadd.f32 0.0, %v416
    %v418 = vpop.f32.mrb[0].mxu0
    %v419 = vadd.f32 0.0, %v418
    %v420 = vpop.f32.mrb[0].mxu0
    %v421 = vpop.f32.mrb[0].mxu0
    %422 = vdwg.mxu0
    %v423 = vpack.c.b16 %v170, %v170
    %v436 = vunpack.c.l.b16 %v138
    %v437 = vunpack.c.h.b16 %v138
    %v438 = vunpack.c.l.b16 %v139
    %v439 = vunpack.c.h.b16 %v139
    %v440 = vunpack.c.l.b16 %v140
    %v441 = vunpack.c.h.b16 %v140
    %v442 = vunpack.c.l.b16 %v141
    %v443 = vunpack.c.h.b16 %v141
    %v444 = vunpack.c.l.b16 %v142
    %v445 = vunpack.c.h.b16 %v142
    %v446 = vunpack.c.l.b16 %v143
    %v447 = vunpack.c.h.b16 %v143
    %v448 = vunpack.c.l.b16 %v144
    %v449 = vunpack.c.h.b16 %v144
    %v450 = vunpack.c.l.b16 %v145
    %v451 = vunpack.c.h.b16 %v145
    %v452 = vunpack.c.l.b16 %v146
    %v453 = vunpack.c.h.b16 %v146
    %v454 = vunpack.c.l.b16 %v147
    %v455 = vunpack.c.h.b16 %v147
    %v456 = vunpack.c.l.b16 %v148
    %v457 = vunpack.c.h.b16 %v148
    %v458 = vunpack.c.l.b16 %v149
    %v459 = vunpack.c.h.b16 %v149
    %v460 = vpack.c.b16 %v442, %v436
    %v461 = vpack.c.b16 %v443, %v437
    %v462 = vpack.c.b16 %v444, %v438
    %v463 = vpack.c.b16 %v445, %v439
    %v464 = vpack.c.b16 %v446, %v440
    %v465 = vpack.c.b16 %v447, %v441
    %v466 = vpack.c.b16 %v454, %v448
    %v467 = vpack.c.b16 %v455, %v449
    %v468 = vpack.c.b16 %v456, %v450
    %v469 = vpack.c.b16 %v457, %v451
    %v470 = vpack.c.b16 %v458, %v452
    %v471 = vpack.c.b16 %v459, %v453
    %v478 = vsel %vm244, %v172, 0
    %v481 = vsel %vm244, %v423, 0
    %v484 = vsel %vm251, %v466, 0
    %v487 = vsel %vm251, %v467, 0
    %v490 = vsel %vm251, %v468, 0
    %v493 = vsel %vm251, %v469, 0
    %v496 = vsel %vm251, %v470, 0
    %v499 = vsel %vm251, %v471, 0
    %501 = vmatprep.subr.bf16.mxu0 %v461
    %502 = vmatpush1.bf16.msra.mxu0 %v460
    %503 = vmatprep.subr.bf16.mxu0 %v487
    %504 = vmatpush1.bf16.msra.mxu0 %v484
    %505 = vmatprep.subr.bf16.mxu0 0
    %506 = vmatpush1.bf16.msra.mxu0 0
    %507 = vmatprep.subr.bf16.mxu0 0
    %508 = vmatpush1.bf16.msra.mxu0 0
    %509 = vmatprep.subr.bf16.mxu0 0
    %510 = vmatpush1.bf16.msra.mxu0 0
    %511 = vmatprep.subr.bf16.mxu0 0
    %512 = vmatpush1.bf16.msra.mxu0 0
    %513 = vmatprep.subr.bf16.mxu0 0
    %514 = vmatpush1.bf16.msra.mxu0 0
    %515 = vmatprep.subr.bf16.mxu0 0
    %516 = vmatpush1.bf16.msra.mxu0 0
    %517 = vmatprep.subr.bf16.mxu0 0
    %518 = vmatpush1.bf16.msra.mxu0 0
    %519 = vmatprep.subr.bf16.mxu0 0
    %520 = vmatpush1.bf16.msra.mxu0 0
    %521 = vmatprep.subr.bf16.mxu0 0
    %522 = vmatpush1.bf16.msra.mxu0 0
    %523 = vmatprep.subr.bf16.mxu0 0
    %524 = vmatpush1.bf16.msra.mxu0 0
    %525 = vmatprep.subr.bf16.mxu0 0
    %526 = vmatpush1.bf16.msra.mxu0 0
    %527 = vmatprep.subr.bf16.mxu0 0
    %528 = vmatpush1.bf16.msra.mxu0 0
    %529 = vmatprep.subr.bf16.mxu0 0
    %530 = vmatpush1.bf16.msra.mxu0 0
    %531 = vmatprep.subr.bf16.mxu0 0
    %532 = vmatpush1.bf16.msra.mxu0 0
    %533 = vmatprep.mubr.bf16.mxu0 0
    %534 = vmatmul.mubr.bf16.gmra.mrb[0].mxu0 %v478
    %v535 = vpop.f32.mrb[0].mxu0
    %v536 = vadd.f32 %v305, %v535
    %v537 = vpop.f32.mrb[0].mxu0
    %v538 = vadd.f32 %v307, %v537
    %v539 = vpop.f32.mrb[0].mxu0
    %v540 = vadd.f32 %v309, %v539
    %v541 = vpop.f32.mrb[0].mxu0
    %v542 = vadd.f32 %v311, %v541
    %543 = vmatprep.mubr.bf16.mxu0 0
    %544 = vmatmul.mubr.bf16.gmra.mrb[0].mxu0 %v481
    %v545 = vpop.f32.mrb[0].mxu0
    %v546 = vadd.f32 %v315, %v545
    %v547 = vpop.f32.mrb[0].mxu0
    %v548 = vadd.f32 %v317, %v547
    %v549 = vpop.f32.mrb[0].mxu0
    %v550 = vpop.f32.mrb[0].mxu0
    %551 = vdwg.mxu0
    %552 = vmatprep.subr.bf16.mxu0 %v463
    %553 = vmatpush1.bf16.msra.mxu0 %v462
    %554 = vmatprep.subr.bf16.mxu0 %v493
    %555 = vmatpush1.bf16.msra.mxu0 %v490
    %556 = vmatprep.subr.bf16.mxu0 0
    %557 = vmatpush1.bf16.msra.mxu0 0
    %558 = vmatprep.subr.bf16.mxu0 0
    %559 = vmatpush1.bf16.msra.mxu0 0
    %560 = vmatprep.subr.bf16.mxu0 0
    %561 = vmatpush1.bf16.msra.mxu0 0
    %562 = vmatprep.subr.bf16.mxu0 0
    %563 = vmatpush1.bf16.msra.mxu0 0
    %564 = vmatprep.subr.bf16.mxu0 0
    %565 = vmatpush1.bf16.msra.mxu0 0
    %566 = vmatprep.subr.bf16.mxu0 0
    %567 = vmatpush1.bf16.msra.mxu0 0
    %568 = vmatprep.subr.bf16.mxu0 0
    %569 = vmatpush1.bf16.msra.mxu0 0
    %570 = vmatprep.subr.bf16.mxu0 0
    %571 = vmatpush1.bf16.msra.mxu0 0
    %572 = vmatprep.subr.bf16.mxu0 0
    %573 = vmatpush1.bf16.msra.mxu0 0
    %574 = vmatprep.subr.bf16.mxu0 0
    %575 = vmatpush1.bf16.msra.mxu0 0
    %576 = vmatprep.subr.bf16.mxu0 0
    %577 = vmatpush1.bf16.msra.mxu0 0
    %578 = vmatprep.subr.bf16.mxu0 0
    %579 = vmatpush1.bf16.msra.mxu0 0
    %580 = vmatprep.subr.bf16.mxu0 0
    %581 = vmatpush1.bf16.msra.mxu0 0
    %582 = vmatprep.subr.bf16.mxu0 0
    %583 = vmatpush1.bf16.msra.mxu0 0
    %584 = vmatprep.mubr.bf16.mxu0 0
    %585 = vmatmul.mubr.bf16.gmra.mrb[0].mxu0 %v478
    %v586 = vpop.f32.mrb[0].mxu0
    %v587 = vadd.f32 %v356, %v586
    %v588 = vpop.f32.mrb[0].mxu0
    %v589 = vadd.f32 %v358, %v588
    %v590 = vpop.f32.mrb[0].mxu0
    %v591 = vadd.f32 %v360, %v590
    %v592 = vpop.f32.mrb[0].mxu0
    %v593 = vadd.f32 %v362, %v592
    %594 = vmatprep.mubr.bf16.mxu0 0
    %595 = vmatmul.mubr.bf16.gmra.mrb[0].mxu0 %v481
    %v596 = vpop.f32.mrb[0].mxu0
    %v597 = vadd.f32 %v366, %v596
    %v598 = vpop.f32.mrb[0].mxu0
    %v599 = vadd.f32 %v368, %v598
    %v600 = vpop.f32.mrb[0].mxu0
    %v601 = vpop.f32.mrb[0].mxu0
    %602 = vdwg.mxu0
    %603 = vmatprep.subr.bf16.mxu0 %v465
    %604 = vmatpush1.bf16.msra.mxu0 %v464
    %605 = vmatprep.subr.bf16.mxu0 %v499
    %606 = vmatpush1.bf16.msra.mxu0 %v496
    %607 = vmatprep.subr.bf16.mxu0 0
    %608 = vmatpush1.bf16.msra.mxu0 0
    %609 = vmatprep.subr.bf16.mxu0 0
    %610 = vmatpush1.bf16.msra.mxu0 0
    %611 = vmatprep.subr.bf16.mxu0 0
    %612 = vmatpush1.bf16.msra.mxu0 0
    %613 = vmatprep.subr.bf16.mxu0 0
    %614 = vmatpush1.bf16.msra.mxu0 0
    %615 = vmatprep.subr.bf16.mxu0 0
    %616 = vmatpush1.bf16.msra.mxu0 0
    %617 = vmatprep.subr.bf16.mxu0 0
    %618 = vmatpush1.bf16.msra.mxu0 0
    %619 = vmatprep.subr.bf16.mxu0 0
    %620 = vmatpush1.bf16.msra.mxu0 0
    %621 = vmatprep.subr.bf16.mxu0 0
    %622 = vmatpush1.bf16.msra.mxu0 0
    %623 = vmatprep.subr.bf16.mxu0 0
    %624 = vmatpush1.bf16.msra.mxu0 0
    %625 = vmatprep.subr.bf16.mxu0 0
    %626 = vmatpush1.bf16.msra.mxu0 0
    %627 = vmatprep.subr.bf16.mxu0 0
    %628 = vmatpush1.bf16.msra.mxu0 0
    %629 = vmatprep.subr.bf16.mxu0 0
    %630 = vmatpush1.bf16.msra.mxu0 0
    %631 = vmatprep.subr.bf16.mxu0 0
    %632 = vmatpush1.bf16.msra.mxu0 0
    %633 = vmatprep.subr.bf16.mxu0 0
    %634 = vmatpush1.bf16.msra.mxu0 0
    %635 = vmatprep.mubr.bf16.mxu0 0
    %636 = vmatmul.mubr.bf16.gmra.mrb[0].mxu0 %v478
    %v637 = vpop.f32.mrb[0].mxu0
    %v638 = vadd.f32 %v407, %v637
    %v639 = vpop.f32.mrb[0].mxu0
    %v640 = vadd.f32 %v409, %v639
    %v641 = vpop.f32.mrb[0].mxu0
    %v642 = vadd.f32 %v411, %v641
    %v643 = vpop.f32.mrb[0].mxu0
    %v644 = vadd.f32 %v413, %v643
    %645 = vmatprep.mubr.bf16.mxu0 0
    %646 = vmatmul.mubr.bf16.gmra.mrb[0].mxu0 %v481
    %v647 = vpop.f32.mrb[0].mxu0
    %v648 = vadd.f32 %v417, %v647
    %v649 = vpop.f32.mrb[0].mxu0
    %v650 = vadd.f32 %v419, %v649
    %v651 = vpop.f32.mrb[0].mxu0
    %v652 = vpop.f32.mrb[0].mxu0
    %653 = vdwg.mxu0
    %v654 = vld [vmem:[%s0] sm:$0xe]
    %s655 = scalar_lea.vmem [#allocation2], 192
    %v656 = vld [vmem:[%s655] sm:$0xff]
    %v657 = vld [vmem:[%s655 + $0x8] sm:$0xff]
    %v658 = vld [vmem:[%s655 + $0x10] sm:$0xff]
    %v659 = vld [vmem:[%s655 + $0x18] sm:$0xff]
    %v660 = vld [vmem:[%s655 + $0x20] sm:$0xff]
    %v661 = vld [vmem:[%s655 + $0x28] sm:$0xff]
    %v662 = vld [vmem:[%s655 + $0x30] sm:$0xff]
    %v663 = vld [vmem:[%s655 + $0x38] sm:$0xff]
    %v664 = vld [vmem:[%s655 + $0x40] sm:$0xff]
    %v665 = vld [vmem:[%s655 + $0x48] sm:$0x33]
    %v666 = vld [vmem:[%s655 + $0x50] sm:$0x33]
    %v667 = vld [vmem:[%s655 + $0x58] sm:$0x33]
    %v669 = vunpack.c.l.b16 %v654
    %v670 = vpack.c.b16 %v169, %v669
    %vm671 = vcmask 1046528
    %v672 = vrot.slane %v670, 1
    %v673 = vrot.slane %v173, 1
    %v674 = vsel %vm671, %v672, %v673
    %v687 = vunpack.c.l.b16 %v656
    %v688 = vunpack.c.h.b16 %v656
    %v689 = vunpack.c.l.b16 %v657
    %v690 = vunpack.c.h.b16 %v657
    %v691 = vunpack.c.l.b16 %v658
    %v692 = vunpack.c.h.b16 %v658
    %v693 = vunpack.c.l.b16 %v659
    %v694 = vunpack.c.h.b16 %v659
    %v695 = vunpack.c.l.b16 %v660
    %v696 = vunpack.c.h.b16 %v660
    %v697 = vunpack.c.l.b16 %v661
    %v698 = vunpack.c.h.b16 %v661
    %v699 = vunpack.c.l.b16 %v662
    %v700 = vunpack.c.h.b16 %v662
    %v701 = vunpack.c.l.b16 %v663
    %v702 = vunpack.c.h.b16 %v663
    %v703 = vunpack.c.l.b16 %v664
    %v704 = vunpack.c.h.b16 %v664
    %v705 = vunpack.c.l.b16 %v665
    %v706 = vunpack.c.h.b16 %v665
    %v707 = vunpack.c.l.b16 %v666
    %v708 = vunpack.c.h.b16 %v666
    %v709 = vunpack.c.l.b16 %v667
    %v710 = vunpack.c.h.b16 %v667
    %v711 = vpack.c.b16 %v693, %v687
    %v712 = vpack.c.b16 %v694, %v688
    %v713 = vpack.c.b16 %v695, %v689
    %v714 = vpack.c.b16 %v696, %v690
    %v715 = vpack.c.b16 %v697, %v691
    %v716 = vpack.c.b16 %v698, %v692
    %v717 = vpack.c.b16 %v705, %v699
    %v718 = vpack.c.b16 %v706, %v700
    %v719 = vpack.c.b16 %v707, %v701
    %v720 = vpack.c.b16 %v708, %v702
    %v721 = vpack.c.b16 %v709, %v703
    %v722 = vpack.c.b16 %v710, %v704
    %v730 = vsel %vm244, %v674, 0
    %v733 = vsel %vm244, %v673, 0
    %v736 = vsel %vm251, %v717, 0
    %v739 = vsel %vm251, %v718, 0
    %v742 = vsel %vm251, %v719, 0
    %v745 = vsel %vm251, %v720, 0
    %v748 = vsel %vm251, %v721, 0
    %v751 = vsel %vm251, %v722, 0
    %753 = vmatprep.subr.bf16.mxu0 %v712
    %754 = vmatpush1.bf16.msra.mxu0 %v711
    %755 = vmatprep.subr.bf16.mxu0 %v739
    %756 = vmatpush1.bf16.msra.mxu0 %v736
    %757 = vmatprep.subr.bf16.mxu0 0
    %758 = vmatpush1.bf16.msra.mxu0 0
    %759 = vmatprep.subr.bf16.mxu0 0
    %760 = vmatpush1.bf16.msra.mxu0 0
    %761 = vmatprep.subr.bf16.mxu0 0
    %762 = vmatpush1.bf16.msra.mxu0 0
    %763 = vmatprep.subr.bf16.mxu0 0
    %764 = vmatpush1.bf16.msra.mxu0 0
    %765 = vmatprep.subr.bf16.mxu0 0
    %766 = vmatpush1.bf16.msra.mxu0 0
    %767 = vmatprep.subr.bf16.mxu0 0
    %768 = vmatpush1.bf16.msra.mxu0 0
    %769 = vmatprep.subr.bf16.mxu0 0
    %770 = vmatpush1.bf16.msra.mxu0 0
    %771 = vmatprep.subr.bf16.mxu0 0
    %772 = vmatpush1.bf16.msra.mxu0 0
    %773 = vmatprep.subr.bf16.mxu0 0
    %774 = vmatpush1.bf16.msra.mxu0 0
    %775 = vmatprep.subr.bf16.mxu0 0
    %776 = vmatpush1.bf16.msra.mxu0 0
    %777 = vmatprep.subr.bf16.mxu0 0
    %778 = vmatpush1.bf16.msra.mxu0 0
    %779 = vmatprep.subr.bf16.mxu0 0
    %780 = vmatpush1.bf16.msra.mxu0 0
    %781 = vmatprep.subr.bf16.mxu0 0
    %782 = vmatpush1.bf16.msra.mxu0 0
    %783 = vmatprep.subr.bf16.mxu0 0
    %784 = vmatpush1.bf16.msra.mxu0 0
    %785 = vmatprep.mubr.bf16.mxu0 0
    %786 = vmatmul.mubr.bf16.gmra.mrb[0].mxu0 %v730
    %v787 = vpop.f32.mrb[0].mxu0
    %v788 = vadd.f32 0.0, %v787
    %v789 = vpop.f32.mrb[0].mxu0
    %v790 = vadd.f32 0.0, %v789
    %v791 = vpop.f32.mrb[0].mxu0
    %v792 = vadd.f32 0.0, %v791
    %v793 = vpop.f32.mrb[0].mxu0
    %v794 = vadd.f32 0.0, %v793
    %795 = vmatprep.mubr.bf16.mxu0 0
    %796 = vmatmul.mubr.bf16.gmra.mrb[0].mxu0 %v733
    %v797 = vpop.f32.mrb[0].mxu0
    %v798 = vadd.f32 0.0, %v797
    %v799 = vpop.f32.mrb[0].mxu0
    %v800 = vadd.f32 0.0, %v799
    %v801 = vpop.f32.mrb[0].mxu0
    %v802 = vpop.f32.mrb[0].mxu0
    %803 = vdwg.mxu0
    %804 = vmatprep.subr.bf16.mxu0 %v714
    %805 = vmatpush1.bf16.msra.mxu0 %v713
    %806 = vmatprep.subr.bf16.mxu0 %v745
    %807 = vmatpush1.bf16.msra.mxu0 %v742
    %808 = vmatprep.subr.bf16.mxu0 0
    %809 = vmatpush1.bf16.msra.mxu0 0
    %810 = vmatprep.subr.bf16.mxu0 0
    %811 = vmatpush1.bf16.msra.mxu0 0
    %812 = vmatprep.subr.bf16.mxu0 0
    %813 = vmatpush1.bf16.msra.mxu0 0
    %814 = vmatprep.subr.bf16.mxu0 0
    %815 = vmatpush1.bf16.msra.mxu0 0
    %816 = vmatprep.subr.bf16.mxu0 0
    %817 = vmatpush1.bf16.msra.mxu0 0
    %818 = vmatprep.subr.bf16.mxu0 0
    %819 = vmatpush1.bf16.msra.mxu0 0
    %820 = vmatprep.subr.bf16.mxu0 0
    %821 = vmatpush1.bf16.msra.mxu0 0
    %822 = vmatprep.subr.bf16.mxu0 0
    %823 = vmatpush1.bf16.msra.mxu0 0
    %824 = vmatprep.subr.bf16.mxu0 0
    %825 = vmatpush1.bf16.msra.mxu0 0
    %826 = vmatprep.subr.bf16.mxu0 0
    %827 = vmatpush1.bf16.msra.mxu0 0
    %828 = vmatprep.subr.bf16.mxu0 0
    %829 = vmatpush1.bf16.msra.mxu0 0
    %830 = vmatprep.subr.bf16.mxu0 0
    %831 = vmatpush1.bf16.msra.mxu0 0
    %832 = vmatprep.subr.bf16.mxu0 0
    %833 = vmatpush1.bf16.msra.mxu0 0
    %834 = vmatprep.subr.bf16.mxu0 0
    %835 = vmatpush1.bf16.msra.mxu0 0
    %836 = vmatprep.mubr.bf16.mxu0 0
    %837 = vmatmul.mubr.bf16.gmra.mrb[0].mxu0 %v730
    %v838 = vpop.f32.mrb[0].mxu0
    %v839 = vadd.f32 0.0, %v838
    %v840 = vpop.f32.mrb[0].mxu0
    %v841 = vadd.f32 0.0, %v840
    %v842 = vpop.f32.mrb[0].mxu0
    %v843 = vadd.f32 0.0, %v842
    %v844 = vpop.f32.mrb[0].mxu0
    %v845 = vadd.f32 0.0, %v844
    %846 = vmatprep.mubr.bf16.mxu0 0
    %847 = vmatmul.mubr.bf16.gmra.mrb[0].mxu0 %v733
    %v848 = vpop.f32.mrb[0].mxu0
    %v849 = vadd.f32 0.0, %v848
    %v850 = vpop.f32.mrb[0].mxu0
    %v851 = vadd.f32 0.0, %v850
    %v852 = vpop.f32.mrb[0].mxu0
    %v853 = vpop.f32.mrb[0].mxu0
    %854 = vdwg.mxu0
    %855 = vmatprep.subr.bf16.mxu0 %v716
    %856 = vmatpush1.bf16.msra.mxu0 %v715
    %857 = vmatprep.subr.bf16.mxu0 %v751
    %858 = vmatpush1.bf16.msra.mxu0 %v748
    %859 = vmatprep.subr.bf16.mxu0 0
    %860 = vmatpush1.bf16.msra.mxu0 0
    %861 = vmatprep.subr.bf16.mxu0 0
    %862 = vmatpush1.bf16.msra.mxu0 0
    %863 = vmatprep.subr.bf16.mxu0 0
    %864 = vmatpush1.bf16.msra.mxu0 0
    %865 = vmatprep.subr.bf16.mxu0 0
    %866 = vmatpush1.bf16.msra.mxu0 0
    %867 = vmatprep.subr.bf16.mxu0 0
    %868 = vmatpush1.bf16.msra.mxu0 0
    %869 = vmatprep.subr.bf16.mxu0 0
    %870 = vmatpush1.bf16.msra.mxu0 0
    %871 = vmatprep.subr.bf16.mxu0 0
    %872 = vmatpush1.bf16.msra.mxu0 0
    %873 = vmatprep.subr.bf16.mxu0 0
    %874 = vmatpush1.bf16.msra.mxu0 0
    %875 = vmatprep.subr.bf16.mxu0 0
    %876 = vmatpush1.bf16.msra.mxu0 0
    %877 = vmatprep.subr.bf16.mxu0 0
    %878 = vmatpush1.bf16.msra.mxu0 0
    %879 = vmatprep.subr.bf16.mxu0 0
    %880 = vmatpush1.bf16.msra.mxu0 0
    %881 = vmatprep.subr.bf16.mxu0 0
    %882 = vmatpush1.bf16.msra.mxu0 0
    %883 = vmatprep.subr.bf16.mxu0 0
    %884 = vmatpush1.bf16.msra.mxu0 0
    %885 = vmatprep.subr.bf16.mxu0 0
    %886 = vmatpush1.bf16.msra.mxu0 0
    %887 = vmatprep.mubr.bf16.mxu0 0
    %888 = vmatmul.mubr.bf16.gmra.mrb[0].mxu0 %v730
    %v889 = vpop.f32.mrb[0].mxu0
    %v890 = vadd.f32 0.0, %v889
    %v891 = vpop.f32.mrb[0].mxu0
    %v892 = vadd.f32 0.0, %v891
    %v893 = vpop.f32.mrb[0].mxu0
    %v894 = vadd.f32 0.0, %v893
    %v895 = vpop.f32.mrb[0].mxu0
    %v896 = vadd.f32 0.0, %v895
    %897 = vmatprep.mubr.bf16.mxu0 0
    %898 = vmatmul.mubr.bf16.gmra.mrb[0].mxu0 %v733
    %v899 = vpop.f32.mrb[0].mxu0
    %v900 = vadd.f32 0.0, %v899
    %v901 = vpop.f32.mrb[0].mxu0
    %v902 = vadd.f32 0.0, %v901
    %v903 = vpop.f32.mrb[0].mxu0
    %v904 = vpop.f32.mrb[0].mxu0
    %905 = vdwg.mxu0
    %v906 = vadd.f32 %v536, %v788
    %v907 = vadd.f32 %v538, %v790
    %v908 = vadd.f32 %v587, %v839
    %v909 = vadd.f32 %v589, %v841
    %v910 = vadd.f32 %v638, %v890
    %v911 = vadd.f32 %v640, %v892
    %v912 = vadd.f32 %v540, %v792
    %v913 = vadd.f32 %v542, %v794
    %v914 = vadd.f32 %v591, %v843
    %v915 = vadd.f32 %v593, %v845
    %v916 = vadd.f32 %v642, %v894
    %v917 = vadd.f32 %v644, %v896
    %v918 = vadd.f32 %v546, %v798
    %v919 = vadd.f32 %v548, %v800
    %v920 = vadd.f32 %v597, %v849
    %v921 = vadd.f32 %v599, %v851
    %v922 = vadd.f32 %v648, %v900
    %v923 = vadd.f32 %v650, %v902
    %v924 = vld [vmem:[%s0 + $0xc] sm:$0x3]
    %s925 = scalar_lea.vmem [#allocation2], 288
    %v926 = vld [vmem:[%s925] sm:$0xff]
    %v927 = vld [vmem:[%s925 + $0x8] sm:$0xff]
    %v928 = vld [vmem:[%s925 + $0x10] sm:$0xff]
    %v929 = vld [vmem:[%s925 + $0x18] sm:$0xff]
    %v930 = vld [vmem:[%s925 + $0x20] sm:$0xff]
    %v931 = vld [vmem:[%s925 + $0x28] sm:$0xff]
    %v932 = vld [vmem:[%s925 + $0x30] sm:$0xff]
    %v933 = vld [vmem:[%s925 + $0x38] sm:$0xff]
    %v934 = vld [vmem:[%s925 + $0x40] sm:$0xff]
    %v935 = vld [vmem:[%s925 + $0x48] sm:$0x33]
    %v936 = vld [vmem:[%s925 + $0x50] sm:$0x33]
    %v937 = vld [vmem:[%s925 + $0x58] sm:$0x33]
    %v939 = vunpack.c.l.b16 %v924
    %v940 = vpack.c.b16 %v939, %v170
    %vm941 = vsmask.f32 6400
    %v943 = vshrl.u32 %v670, 16
    %v945 = vrot.slane %v943, 1
    %v946 = vshll.u32 %v670, 16
    %v948 = vrot.slane %v946, 2
    %v949 = vor.u32 %v945, %v948
    %v951 = vshrl.u32 %v940, 16
    %v953 = vrot.slane %v951, 1
    %v954 = vshll.u32 %v940, 16
    %v956 = vrot.slane %v954, 2
    %v957 = vor.u32 %v953, %v956
    %v958 = vsel %vm941, %v949, %v957
    %v971 = vunpack.c.l.b16 %v926
    %v972 = vunpack.c.h.b16 %v926
    %v973 = vunpack.c.l.b16 %v927
    %v974 = vunpack.c.h.b16 %v927
    %v975 = vunpack.c.l.b16 %v928
    %v976 = vunpack.c.h.b16 %v928
    %v977 = vunpack.c.l.b16 %v929
    %v978 = vunpack.c.h.b16 %v929
    %v979 = vunpack.c.l.b16 %v930
    %v980 = vunpack.c.h.b16 %v930
    %v981 = vunpack.c.l.b16 %v931
    %v982 = vunpack.c.h.b16 %v931
    %v983 = vunpack.c.l.b16 %v932
    %v984 = vunpack.c.h.b16 %v932
    %v985 = vunpack.c.l.b16 %v933
    %v986 = vunpack.c.h.b16 %v933
    %v987 = vunpack.c.l.b16 %v934
    %v988 = vunpack.c.h.b16 %v934
    %v989 = vunpack.c.l.b16 %v935
    %v990 = vunpack.c.h.b16 %v935
    %v991 = vunpack.c.l.b16 %v936
    %v992 = vunpack.c.h.b16 %v936
    %v993 = vunpack.c.l.b16 %v937
    %v994 = vunpack.c.h.b16 %v937
    %v995 = vpack.c.b16 %v977, %v971
    %v996 = vpack.c.b16 %v978, %v972
    %v997 = vpack.c.b16 %v979, %v973
    %v998 = vpack.c.b16 %v980, %v974
    %v999 = vpack.c.b16 %v981, %v975
    %v1000 = vpack.c.b16 %v982, %v976
    %v1001 = vpack.c.b16 %v989, %v983
    %v1002 = vpack.c.b16 %v990, %v984
    %v1003 = vpack.c.b16 %v991, %v985
    %v1004 = vpack.c.b16 %v992, %v986
    %v1005 = vpack.c.b16 %v993, %v987
    %v1006 = vpack.c.b16 %v994, %v988
    %v1014 = vsel %vm244, %v958, 0
    %v1017 = vsel %vm244, %v957, 0
    %v1020 = vsel %vm251, %v1001, 0
    %v1023 = vsel %vm251, %v1002, 0
    %v1026 = vsel %vm251, %v1003, 0
    %v1029 = vsel %vm251, %v1004, 0
    %v1032 = vsel %vm251, %v1005, 0
    %v1035 = vsel %vm251, %v1006, 0
    %1037 = vmatprep.subr.bf16.mxu0 %v996
    %1038 = vmatpush1.bf16.msra.mxu0 %v995
    %1039 = vmatprep.subr.bf16.mxu0 %v1023
    %1040 = vmatpush1.bf16.msra.mxu0 %v1020
    %1041 = vmatprep.subr.bf16.mxu0 0
    %1042 = vmatpush1.bf16.msra.mxu0 0
    %1043 = vmatprep.subr.bf16.mxu0 0
    %1044 = vmatpush1.bf16.msra.mxu0 0
    %1045 = vmatprep.subr.bf16.mxu0 0
    %1046 = vmatpush1.bf16.msra.mxu0 0
    %1047 = vmatprep.subr.bf16.mxu0 0
    %1048 = vmatpush1.bf16.msra.mxu0 0
    %1049 = vmatprep.subr.bf16.mxu0 0
    %1050 = vmatpush1.bf16.msra.mxu0 0
    %1051 = vmatprep.subr.bf16.mxu0 0
    %1052 = vmatpush1.bf16.msra.mxu0 0
    %1053 = vmatprep.subr.bf16.mxu0 0
    %1054 = vmatpush1.bf16.msra.mxu0 0
    %1055 = vmatprep.subr.bf16.mxu0 0
    %1056 = vmatpush1.bf16.msra.mxu0 0
    %1057 = vmatprep.subr.bf16.mxu0 0
    %1058 = vmatpush1.bf16.msra.mxu0 0
    %1059 = vmatprep.subr.bf16.mxu0 0
    %1060 = vmatpush1.bf16.msra.mxu0 0
    %1061 = vmatprep.subr.bf16.mxu0 0
    %1062 = vmatpush1.bf16.msra.mxu0 0
    %1063 = vmatprep.subr.bf16.mxu0 0
    %1064 = vmatpush1.bf16.msra.mxu0 0
    %1065 = vmatprep.subr.bf16.mxu0 0
    %1066 = vmatpush1.bf16.msra.mxu0 0
    %1067 = vmatprep.subr.bf16.mxu0 0
    %1068 = vmatpush1.bf16.msra.mxu0 0
    %1069 = vmatprep.mubr.bf16.mxu0 0
    %1070 = vmatmul.mubr.bf16.gmra.mrb[0].mxu0 %v1014
    %v1071 = vpop.f32.mrb[0].mxu0
    %v1072 = vadd.f32 0.0, %v1071
    %v1073 = vpop.f32.mrb[0].mxu0
    %v1074 = vadd.f32 0.0, %v1073
    %v1075 = vpop.f32.mrb[0].mxu0
    %v1076 = vadd.f32 0.0, %v1075
    %v1077 = vpop.f32.mrb[0].mxu0
    %v1078 = vadd.f32 0.0, %v1077
    %1079 = vmatprep.mubr.bf16.mxu0 0
    %1080 = vmatmul.mubr.bf16.gmra.mrb[0].mxu0 %v1017
    %v1081 = vpop.f32.mrb[0].mxu0
    %v1082 = vadd.f32 0.0, %v1081
    %v1083 = vpop.f32.mrb[0].mxu0
    %v1084 = vadd.f32 0.0, %v1083
    %v1085 = vpop.f32.mrb[0].mxu0
    %v1086 = vpop.f32.mrb[0].mxu0
    %1087 = vdwg.mxu0
    %1088 = vmatprep.subr.bf16.mxu0 %v998
    %1089 = vmatpush1.bf16.msra.mxu0 %v997
    %1090 = vmatprep.subr.bf16.mxu0 %v1029
    %1091 = vmatpush1.bf16.msra.mxu0 %v1026
    %1092 = vmatprep.subr.bf16.mxu0 0
    %1093 = vmatpush1.bf16.msra.mxu0 0
    %1094 = vmatprep.subr.bf16.mxu0 0
    %1095 = vmatpush1.bf16.msra.mxu0 0
    %1096 = vmatprep.subr.bf16.mxu0 0
    %1097 = vmatpush1.bf16.msra.mxu0 0
    %1098 = vmatprep.subr.bf16.mxu0 0
    %1099 = vmatpush1.bf16.msra.mxu0 0
    %1100 = vmatprep.subr.bf16.mxu0 0
    %1101 = vmatpush1.bf16.msra.mxu0 0
    %1102 = vmatprep.subr.bf16.mxu0 0
    %1103 = vmatpush1.bf16.msra.mxu0 0
    %1104 = vmatprep.subr.bf16.mxu0 0
    %1105 = vmatpush1.bf16.msra.mxu0 0
    %1106 = vmatprep.subr.bf16.mxu0 0
    %1107 = vmatpush1.bf16.msra.mxu0 0
    %1108 = vmatprep.subr.bf16.mxu0 0
    %1109 = vmatpush1.bf16.msra.mxu0 0
    %1110 = vmatprep.subr.bf16.mxu0 0
    %1111 = vmatpush1.bf16.msra.mxu0 0
    %1112 = vmatprep.subr.bf16.mxu0 0
    %1113 = vmatpush1.bf16.msra.mxu0 0
    %1114 = vmatprep.subr.bf16.mxu0 0
    %1115 = vmatpush1.bf16.msra.mxu0 0
    %1116 = vmatprep.subr.bf16.mxu0 0
    %1117 = vmatpush1.bf16.msra.mxu0 0
    %1118 = vmatprep.subr.bf16.mxu0 0
    %1119 = vmatpush1.bf16.msra.mxu0 0
    %1120 = vmatprep.mubr.bf16.mxu0 0
    %1121 = vmatmul.mubr.bf16.gmra.mrb[0].mxu0 %v1014
    %v1122 = vpop.f32.mrb[0].mxu0
    %v1123 = vadd.f32 0.0, %v1122
    %v1124 = vpop.f32.mrb[0].mxu0
    %v1125 = vadd.f32 0.0, %v1124
    %v1126 = vpop.f32.mrb[0].mxu0
    %v1127 = vadd.f32 0.0, %v1126
    %v1128 = vpop.f32.mrb[0].mxu0
    %v1129 = vadd.f32 0.0, %v1128
    %1130 = vmatprep.mubr.bf16.mxu0 0
    %1131 = vmatmul.mubr.bf16.gmra.mrb[0].mxu0 %v1017
    %v1132 = vpop.f32.mrb[0].mxu0
    %v1133 = vadd.f32 0.0, %v1132
    %v1134 = vpop.f32.mrb[0].mxu0
    %v1135 = vadd.f32 0.0, %v1134
    %v1136 = vpop.f32.mrb[0].mxu0
    %v1137 = vpop.f32.mrb[0].mxu0
    %1138 = vdwg.mxu0
    %1139 = vmatprep.subr.bf16.mxu0 %v1000
    %1140 = vmatpush1.bf16.msra.mxu0 %v999
    %1141 = vmatprep.subr.bf16.mxu0 %v1035
    %1142 = vmatpush1.bf16.msra.mxu0 %v1032
    %1143 = vmatprep.subr.bf16.mxu0 0
    %1144 = vmatpush1.bf16.msra.mxu0 0
    %1145 = vmatprep.subr.bf16.mxu0 0
    %1146 = vmatpush1.bf16.msra.mxu0 0
    %1147 = vmatprep.subr.bf16.mxu0 0
    %1148 = vmatpush1.bf16.msra.mxu0 0
    %1149 = vmatprep.subr.bf16.mxu0 0
    %1150 = vmatpush1.bf16.msra.mxu0 0
    %1151 = vmatprep.subr.bf16.mxu0 0
    %1152 = vmatpush1.bf16.msra.mxu0 0
    %1153 = vmatprep.subr.bf16.mxu0 0
    %1154 = vmatpush1.bf16.msra.mxu0 0
    %1155 = vmatprep.subr.bf16.mxu0 0
    %1156 = vmatpush1.bf16.msra.mxu0 0
    %1157 = vmatprep.subr.bf16.mxu0 0
    %1158 = vmatpush1.bf16.msra.mxu0 0
    %1159 = vmatprep.subr.bf16.mxu0 0
    %1160 = vmatpush1.bf16.msra.mxu0 0
    %1161 = vmatprep.subr.bf16.mxu0 0
    %1162 = vmatpush1.bf16.msra.mxu0 0
    %1163 = vmatprep.subr.bf16.mxu0 0
    %1164 = vmatpush1.bf16.msra.mxu0 0
    %1165 = vmatprep.subr.bf16.mxu0 0
    %1166 = vmatpush1.bf16.msra.mxu0 0
    %1167 = vmatprep.subr.bf16.mxu0 0
    %1168 = vmatpush1.bf16.msra.mxu0 0
    %1169 = vmatprep.subr.bf16.mxu0 0
    %1170 = vmatpush1.bf16.msra.mxu0 0
    %1171 = vmatprep.mubr.bf16.mxu0 0
    %1172 = vmatmul.mubr.bf16.gmra.mrb[0].mxu0 %v1014
    %v1173 = vpop.f32.mrb[0].mxu0
    %v1174 = vadd.f32 0.0, %v1173
    %v1175 = vpop.f32.mrb[0].mxu0
    %v1176 = vadd.f32 0.0, %v1175
    %v1177 = vpop.f32.mrb[0].mxu0
    %v1178 = vadd.f32 0.0, %v1177
    %v1179 = vpop.f32.mrb[0].mxu0
    %v1180 = vadd.f32 0.0, %v1179
    %1181 = vmatprep.mubr.bf16.mxu0 0
    %1182 = vmatmul.mubr.bf16.gmra.mrb[0].mxu0 %v1017
    %v1183 = vpop.f32.mrb[0].mxu0
    %v1184 = vadd.f32 0.0, %v1183
    %v1185 = vpop.f32.mrb[0].mxu0
    %v1186 = vadd.f32 0.0, %v1185
    %v1187 = vpop.f32.mrb[0].mxu0
    %v1188 = vpop.f32.mrb[0].mxu0
    %1189 = vdwg.mxu0
    %v1190 = vadd.f32 %v906, %v1072
    %v1191 = vadd.f32 %v907, %v1074
    %v1192 = vadd.f32 %v908, %v1123
    %v1193 = vadd.f32 %v909, %v1125
    %v1194 = vadd.f32 %v910, %v1174
    %v1195 = vadd.f32 %v911, %v1176
    %v1196 = vadd.f32 %v912, %v1076
    %v1197 = vadd.f32 %v913, %v1078
    %v1198 = vadd.f32 %v914, %v1127
    %v1199 = vadd.f32 %v915, %v1129
    %v1200 = vadd.f32 %v916, %v1178
    %v1201 = vadd.f32 %v917, %v1180
    %v1202 = vadd.f32 %v918, %v1082
    %v1203 = vadd.f32 %v919, %v1084
    %v1204 = vadd.f32 %v920, %v1133
    %v1205 = vadd.f32 %v921, %v1135
    %v1206 = vadd.f32 %v922, %v1184
    %v1207 = vadd.f32 %v923, %v1186
    %v1208 = vld [vmem:[%s0] sm:$0xc]
    %s1209 = scalar_lea.vmem [#allocation2], 384
    %v1210 = vld [vmem:[%s1209] sm:$0xff]
    %v1211 = vld [vmem:[%s1209 + $0x8] sm:$0xff]
    %v1212 = vld [vmem:[%s1209 + $0x10] sm:$0xff]
    %v1213 = vld [vmem:[%s1209 + $0x18] sm:$0xff]
    %v1214 = vld [vmem:[%s1209 + $0x20] sm:$0xff]
    %v1215 = vld [vmem:[%s1209 + $0x28] sm:$0xff]
    %v1216 = vld [vmem:[%s1209 + $0x30] sm:$0xff]
    %v1217 = vld [vmem:[%s1209 + $0x38] sm:$0xff]
    %v1218 = vld [vmem:[%s1209 + $0x40] sm:$0xff]
    %v1219 = vld [vmem:[%s1209 + $0x48] sm:$0x33]
    %v1220 = vld [vmem:[%s1209 + $0x50] sm:$0x33]
    %v1221 = vld [vmem:[%s1209 + $0x58] sm:$0x33]
    %v1223 = vunpack.c.l.b16 %v1208
    %v1224 = vpack.c.b16 %v169, %v1223
    %vm1225 = vcmask 1045504
    %v1226 = vrot.slane %v1224, 2
    %v1227 = vrot.slane %v940, 2
    %v1228 = vsel %vm1225, %v1226, %v1227
    %v1241 = vunpack.c.l.b16 %v1210
    %v1242 = vunpack.c.h.b16 %v1210
    %v1243 = vunpack.c.l.b16 %v1211
    %v1244 = vunpack.c.h.b16 %v1211
    %v1245 = vunpack.c.l.b16 %v1212
    %v1246 = vunpack.c.h.b16 %v1212
    %v1247 = vunpack.c.l.b16 %v1213
    %v1248 = vunpack.c.h.b16 %v1213
    %v1249 = vunpack.c.l.b16 %v1214
    %v1250 = vunpack.c.h.b16 %v1214
    %v1251 = vunpack.c.l.b16 %v1215
    %v1252 = vunpack.c.h.b16 %v1215
    %v1253 = vunpack.c.l.b16 %v1216
    %v1254 = vunpack.c.h.b16 %v1216
    %v1255 = vunpack.c.l.b16 %v1217
    %v1256 = vunpack.c.h.b16 %v1217
    %v1257 = vunpack.c.l.b16 %v1218
    %v1258 = vunpack.c.h.b16 %v1218
    %v1259 = vunpack.c.l.b16 %v1219
    %v1260 = vunpack.c.h.b16 %v1219
    %v1261 = vunpack.c.l.b16 %v1220
    %v1262 = vunpack.c.h.b16 %v1220
    %v1263 = vunpack.c.l.b16 %v1221
    %v1264 = vunpack.c.h.b16 %v1221
    %v1265 = vpack.c.b16 %v1247, %v1241
    %v1266 = vpack.c.b16 %v1248, %v1242
    %v1267 = vpack.c.b16 %v1249, %v1243
    %v1268 = vpack.c.b16 %v1250, %v1244
    %v1269 = vpack.c.b16 %v1251, %v1245
    %v1270 = vpack.c.b16 %v1252, %v1246
    %v1271 = vpack.c.b16 %v1259, %v1253
    %v1272 = vpack.c.b16 %v1260, %v1254
    %v1273 = vpack.c.b16 %v1261, %v1255
    %v1274 = vpack.c.b16 %v1262, %v1256
    %v1275 = vpack.c.b16 %v1263, %v1257
    %v1276 = vpack.c.b16 %v1264, %v1258
    %v1284 = vsel %vm244, %v1228, 0
    %v1287 = vsel %vm244, %v1227, 0
    %v1290 = vsel %vm251, %v1271, 0
    %v1293 = vsel %vm251, %v1272, 0
    %v1296 = vsel %vm251, %v1273, 0
    %v1299 = vsel %vm251, %v1274, 0
    %v1302 = vsel %vm251, %v1275, 0
    %v1305 = vsel %vm251, %v1276, 0
    %1307 = vmatprep.subr.bf16.mxu0 %v1266
    %1308 = vmatpush1.bf16.msra.mxu0 %v1265
    %1309 = vmatprep.subr.bf16.mxu0 %v1293
    %1310 = vmatpush1.bf16.msra.mxu0 %v1290
    %1311 = vmatprep.subr.bf16.mxu0 0
    %1312 = vmatpush1.bf16.msra.mxu0 0
    %1313 = vmatprep.subr.bf16.mxu0 0
    %1314 = vmatpush1.bf16.msra.mxu0 0
    %1315 = vmatprep.subr.bf16.mxu0 0
    %1316 = vmatpush1.bf16.msra.mxu0 0
    %1317 = vmatprep.subr.bf16.mxu0 0
    %1318 = vmatpush1.bf16.msra.mxu0 0
    %1319 = vmatprep.subr.bf16.mxu0 0
    %1320 = vmatpush1.bf16.msra.mxu0 0
    %1321 = vmatprep.subr.bf16.mxu0 0
    %1322 = vmatpush1.bf16.msra.mxu0 0
    %1323 = vmatprep.subr.bf16.mxu0 0
    %1324 = vmatpush1.bf16.msra.mxu0 0
    %1325 = vmatprep.subr.bf16.mxu0 0
    %1326 = vmatpush1.bf16.msra.mxu0 0
    %1327 = vmatprep.subr.bf16.mxu0 0
    %1328 = vmatpush1.bf16.msra.mxu0 0
    %1329 = vmatprep.subr.bf16.mxu0 0
    %1330 = vmatpush1.bf16.msra.mxu0 0
    %1331 = vmatprep.subr.bf16.mxu0 0
    %1332 = vmatpush1.bf16.msra.mxu0 0
    %1333 = vmatprep.subr.bf16.mxu0 0
    %1334 = vmatpush1.bf16.msra.mxu0 0
    %1335 = vmatprep.subr.bf16.mxu0 0
    %1336 = vmatpush1.bf16.msra.mxu0 0
    %1337 = vmatprep.subr.bf16.mxu0 0
    %1338 = vmatpush1.bf16.msra.mxu0 0
    %1339 = vmatprep.mubr.bf16.mxu0 0
    %1340 = vmatmul.mubr.bf16.gmra.mrb[0].mxu0 %v1284
    %v1341 = vpop.f32.mrb[0].mxu0
    %v1342 = vadd.f32 0.0, %v1341
    %v1343 = vpop.f32.mrb[0].mxu0
    %v1344 = vadd.f32 0.0, %v1343
    %v1345 = vpop.f32.mrb[0].mxu0
    %v1346 = vadd.f32 0.0, %v1345
    %v1347 = vpop.f32.mrb[0].mxu0
    %v1348 = vadd.f32 0.0, %v1347
    %1349 = vmatprep.mubr.bf16.mxu0 0
    %1350 = vmatmul.mubr.bf16.gmra.mrb[0].mxu0 %v1287
    %v1351 = vpop.f32.mrb[0].mxu0
    %v1352 = vadd.f32 0.0, %v1351
    %v1353 = vpop.f32.mrb[0].mxu0
    %v1354 = vadd.f32 0.0, %v1353
    %v1355 = vpop.f32.mrb[0].mxu0
    %v1356 = vpop.f32.mrb[0].mxu0
    %1357 = vdwg.mxu0
    %1358 = vmatprep.subr.bf16.mxu0 %v1268
    %1359 = vmatpush1.bf16.msra.mxu0 %v1267
    %1360 = vmatprep.subr.bf16.mxu0 %v1299
    %1361 = vmatpush1.bf16.msra.mxu0 %v1296
    %1362 = vmatprep.subr.bf16.mxu0 0
    %1363 = vmatpush1.bf16.msra.mxu0 0
    %1364 = vmatprep.subr.bf16.mxu0 0
    %1365 = vmatpush1.bf16.msra.mxu0 0
    %1366 = vmatprep.subr.bf16.mxu0 0
    %1367 = vmatpush1.bf16.msra.mxu0 0
    %1368 = vmatprep.subr.bf16.mxu0 0
    %1369 = vmatpush1.bf16.msra.mxu0 0
    %1370 = vmatprep.subr.bf16.mxu0 0
    %1371 = vmatpush1.bf16.msra.mxu0 0
    %1372 = vmatprep.subr.bf16.mxu0 0
    %1373 = vmatpush1.bf16.msra.mxu0 0
    %1374 = vmatprep.subr.bf16.mxu0 0
    %1375 = vmatpush1.bf16.msra.mxu0 0
    %1376 = vmatprep.subr.bf16.mxu0 0
    %1377 = vmatpush1.bf16.msra.mxu0 0
    %1378 = vmatprep.subr.bf16.mxu0 0
    %1379 = vmatpush1.bf16.msra.mxu0 0
    %1380 = vmatprep.subr.bf16.mxu0 0
    %1381 = vmatpush1.bf16.msra.mxu0 0
    %1382 = vmatprep.subr.bf16.mxu0 0
    %1383 = vmatpush1.bf16.msra.mxu0 0
    %1384 = vmatprep.subr.bf16.mxu0 0
    %1385 = vmatpush1.bf16.msra.mxu0 0
    %1386 = vmatprep.subr.bf16.mxu0 0
    %1387 = vmatpush1.bf16.msra.mxu0 0
    %1388 = vmatprep.subr.bf16.mxu0 0
    %1389 = vmatpush1.bf16.msra.mxu0 0
    %1390 = vmatprep.mubr.bf16.mxu0 0
    %1391 = vmatmul.mubr.bf16.gmra.mrb[0].mxu0 %v1284
    %v1392 = vpop.f32.mrb[0].mxu0
    %v1393 = vadd.f32 0.0, %v1392
    %v1394 = vpop.f32.mrb[0].mxu0
    %v1395 = vadd.f32 0.0, %v1394
    %v1396 = vpop.f32.mrb[0].mxu0
    %v1397 = vadd.f32 0.0, %v1396
    %v1398 = vpop.f32.mrb[0].mxu0
    %v1399 = vadd.f32 0.0, %v1398
    %1400 = vmatprep.mubr.bf16.mxu0 0
    %1401 = vmatmul.mubr.bf16.gmra.mrb[0].mxu0 %v1287
    %v1402 = vpop.f32.mrb[0].mxu0
    %v1403 = vadd.f32 0.0, %v1402
    %v1404 = vpop.f32.mrb[0].mxu0
    %v1405 = vadd.f32 0.0, %v1404
    %v1406 = vpop.f32.mrb[0].mxu0
    %v1407 = vpop.f32.mrb[0].mxu0
    %1408 = vdwg.mxu0
    %1409 = vmatprep.subr.bf16.mxu0 %v1270
    %1410 = vmatpush1.bf16.msra.mxu0 %v1269
    %1411 = vmatprep.subr.bf16.mxu0 %v1305
    %1412 = vmatpush1.bf16.msra.mxu0 %v1302
    %1413 = vmatprep.subr.bf16.mxu0 0
    %1414 = vmatpush1.bf16.msra.mxu0 0
    %1415 = vmatprep.subr.bf16.mxu0 0
    %1416 = vmatpush1.bf16.msra.mxu0 0
    %1417 = vmatprep.subr.bf16.mxu0 0
    %1418 = vmatpush1.bf16.msra.mxu0 0
    %1419 = vmatprep.subr.bf16.mxu0 0
    %1420 = vmatpush1.bf16.msra.mxu0 0
    %1421 = vmatprep.subr.bf16.mxu0 0
    %1422 = vmatpush1.bf16.msra.mxu0 0
    %1423 = vmatprep.subr.bf16.mxu0 0
    %1424 = vmatpush1.bf16.msra.mxu0 0
    %1425 = vmatprep.subr.bf16.mxu0 0
    %1426 = vmatpush1.bf16.msra.mxu0 0
    %1427 = vmatprep.subr.bf16.mxu0 0
    %1428 = vmatpush1.bf16.msra.mxu0 0
    %1429 = vmatprep.subr.bf16.mxu0 0
    %1430 = vmatpush1.bf16.msra.mxu0 0
    %1431 = vmatprep.subr.bf16.mxu0 0
    %1432 = vmatpush1.bf16.msra.mxu0 0
    %1433 = vmatprep.subr.bf16.mxu0 0
    %1434 = vmatpush1.bf16.msra.mxu0 0
    %1435 = vmatprep.subr.bf16.mxu0 0
    %1436 = vmatpush1.bf16.msra.mxu0 0
    %1437 = vmatprep.subr.bf16.mxu0 0
    %1438 = vmatpush1.bf16.msra.mxu0 0
    %1439 = vmatprep.subr.bf16.mxu0 0
    %1440 = vmatpush1.bf16.msra.mxu0 0
    %1441 = vmatprep.mubr.bf16.mxu0 0
    %1442 = vmatmul.mubr.bf16.gmra.mrb[0].mxu0 %v1284
    %v1443 = vpop.f32.mrb[0].mxu0
    %v1444 = vadd.f32 0.0, %v1443
    %v1445 = vpop.f32.mrb[0].mxu0
    %v1446 = vadd.f32 0.0, %v1445
    %v1447 = vpop.f32.mrb[0].mxu0
    %v1448 = vadd.f32 0.0, %v1447
    %v1449 = vpop.f32.mrb[0].mxu0
    %v1450 = vadd.f32 0.0, %v1449
    %1451 = vmatprep.mubr.bf16.mxu0 0
    %1452 = vmatmul.mubr.bf16.gmra.mrb[0].mxu0 %v1287
    %v1453 = vpop.f32.mrb[0].mxu0
    %v1454 = vadd.f32 0.0, %v1453
    %v1455 = vpop.f32.mrb[0].mxu0
    %v1456 = vadd.f32 0.0, %v1455
    %v1457 = vpop.f32.mrb[0].mxu0
    %v1458 = vpop.f32.mrb[0].mxu0
    %1459 = vdwg.mxu0
    %v1460 = vadd.f32 %v1190, %v1342
    %v1461 = vadd.f32 %v1191, %v1344
    %v1462 = vadd.f32 %v1192, %v1393
    %v1463 = vadd.f32 %v1193, %v1395
    %v1464 = vadd.f32 %v1194, %v1444
    %v1465 = vadd.f32 %v1195, %v1446
    %v1466 = vadd.f32 %v1196, %v1346
    %v1467 = vadd.f32 %v1197, %v1348
    %v1468 = vadd.f32 %v1198, %v1397
    %v1469 = vadd.f32 %v1199, %v1399
    %v1470 = vadd.f32 %v1200, %v1448
    %v1471 = vadd.f32 %v1201, %v1450
    %v1472 = vadd.f32 %v1202, %v1352
    %v1473 = vadd.f32 %v1203, %v1354
    %v1474 = vadd.f32 %v1204, %v1403
    %v1475 = vadd.f32 %v1205, %v1405
    %v1476 = vadd.f32 %v1206, %v1454
    %v1477 = vadd.f32 %v1207, %v1456
    %v1478 = vld [vmem:[#allocation5] sm:$0x3f]
    %v1480 = vlaneseq
    %v1481 = vshrl.u32 %v1480, 7
    %v1482 = vsub.s32 0, %v1481
    %v1483 = vrot.slane %v1478, %v1482
    %v1484 = vlaneseq
    %v1485 = vshrl.u32 %v1484, 7
    %v1486 = vsub.s32 1, %v1485
    %v1487 = vrot.slane %v1478, %v1486
    %v1488 = vlaneseq
    %v1489 = vshrl.u32 %v1488, 7
    %v1490 = vsub.s32 2, %v1489
    %v1491 = vrot.slane %v1478, %v1490
    %v1492 = vlaneseq
    %v1493 = vshrl.u32 %v1492, 7
    %v1494 = vsub.s32 3, %v1493
    %v1495 = vrot.slane %v1478, %v1494
    %v1496 = vlaneseq
    %v1497 = vshrl.u32 %v1496, 7
    %v1498 = vsub.s32 4, %v1497
    %v1499 = vrot.slane %v1478, %v1498
    %v1500 = vlaneseq
    %v1501 = vshrl.u32 %v1500, 7
    %v1502 = vsub.s32 5, %v1501
    %v1503 = vrot.slane %v1478, %v1502
    %v1510 = vadd.f32 %v1460, %v1483
    %v1511 = vadd.f32 %v1461, %v1487
    %v1512 = vadd.f32 %v1462, %v1491
    %v1513 = vadd.f32 %v1463, %v1495
    %v1514 = vadd.f32 %v1464, %v1499
    %v1515 = vadd.f32 %v1465, %v1503
    %v1516 = vadd.f32 %v1466, %v1483
    %v1517 = vadd.f32 %v1467, %v1487
    %v1518 = vadd.f32 %v1468, %v1491
    %v1519 = vadd.f32 %v1469, %v1495
    %v1520 = vadd.f32 %v1470, %v1499
    %v1521 = vadd.f32 %v1471, %v1503
    %v1522 = vadd.f32 %v1472, %v1483
    %v1523 = vadd.f32 %v1473, %v1487
    %v1524 = vadd.f32 %v1474, %v1491
    %v1525 = vadd.f32 %v1475, %v1495
    %v1526 = vadd.f32 %v1476, %v1499
    %v1527 = vadd.f32 %v1477, %v1503
    %v1528 = vmax.f32 %v1510, %v1513
    %v1529 = vmax.f32 %v1511, %v1514
    %v1530 = vmax.f32 %v1512, %v1515
    %v1531 = vmax.f32 %v1516, %v1519
    %v1532 = vmax.f32 %v1517, %v1520
    %v1533 = vmax.f32 %v1518, %v1521
    %v1534 = vmax.f32 %v1522, %v1525
    %v1535 = vmax.f32 %v1523, %v1526
    %v1536 = vmax.f32 %v1524, %v1527
    %v1540 = vrot.slane %v1528, 1
    %v1541 = vrot.slane %v1529, 1
    %v1542 = vrot.slane %v1530, 1
    %v1546 = vmax.f32 %v1528, %v1540
    %v1547 = vmax.f32 %v1529, %v1541
    %v1548 = vmax.f32 %v1530, %v1542
    %v1552 = vrot.slane %v1531, 1
    %v1553 = vrot.slane %v1532, 1
    %v1554 = vrot.slane %v1533, 1
    %v1558 = vmax.f32 %v1531, %v1552
    %v1559 = vmax.f32 %v1532, %v1553
    %v1560 = vmax.f32 %v1533, %v1554
    %v1564 = vrot.slane %v1534, 1
    %v1565 = vrot.slane %v1535, 1
    %v1566 = vrot.slane %v1536, 1
    %v1570 = vmax.f32 %v1534, %v1564
    %v1571 = vmax.f32 %v1535, %v1565
    %v1572 = vmax.f32 %v1536, %v1566
    %v1576 = vrot.slane %v1546, 1
    %v1577 = vrot.slane %v1547, 1
    %v1578 = vrot.slane %v1548, 1
    %v1582 = vrot.slane %v1546, 2
    %v1583 = vrot.slane %v1547, 2
    %v1584 = vrot.slane %v1548, 2
    %v1588 = vrot.slane %v1546, 3
    %v1589 = vrot.slane %v1547, 3
    %v1590 = vrot.slane %v1548, 3
    %v1597 = vrot.slane %v1558, 4
    %v1598 = vrot.slane %v1559, 4
    %v1599 = vrot.slane %v1560, 4
    %v1603 = vrot.slane %v1558, 5
    %v1604 = vrot.slane %v1559, 5
    %v1605 = vrot.slane %v1560, 5
    %v1609 = vrot.slane %v1558, 6
    %v1610 = vrot.slane %v1559, 6
    %v1611 = vrot.slane %v1560, 6
    %v1615 = vrot.slane %v1558, 7
    %v1616 = vrot.slane %v1559, 7
    %v1617 = vrot.slane %v1560, 7
    %v1624 = vrot.slane %v1570, 1
    %v1625 = vrot.slane %v1571, 1
    %v1626 = vrot.slane %v1572, 1
    %v1630 = vrot.slane %v1570, 2
    %v1631 = vrot.slane %v1571, 2
    %v1632 = vrot.slane %v1572, 2
    %v1636 = vrot.slane %v1570, 3
    %v1637 = vrot.slane %v1571, 3
    %v1638 = vrot.slane %v1572, 3
    %vm1642 = vcmask 1040384
    %v1643 = vsel %vm1642, %v1546, %v1576
    %v1644 = vsel %vm1642, %v1547, %v1577
    %v1645 = vsel %vm1642, %v1548, %v1578
    %vm1646 = vcmask 1041408
    %v1647 = vsel %vm1646, %v1643, %v1582
    %v1648 = vsel %vm1646, %v1644, %v1583
    %v1649 = vsel %vm1646, %v1645, %v1584
    %vm1650 = vcmask 1042432
    %v1651 = vsel %vm1650, %v1647, %v1588
    %v1652 = vsel %vm1650, %v1648, %v1589
    %v1653 = vsel %vm1650, %v1649, %v1590
    %vm1654 = vcmask 1043456
    %v1655 = vsel %vm1654, %v1651, %v1597
    %v1656 = vsel %vm1654, %v1652, %v1598
    %v1657 = vsel %vm1654, %v1653, %v1599
    %vm1658 = vcmask 1044480
    %v1659 = vsel %vm1658, %v1655, %v1603
    %v1660 = vsel %vm1658, %v1656, %v1604
    %v1661 = vsel %vm1658, %v1657, %v1605
    %v1662 = vsel %vm251, %v1659, %v1609
    %v1663 = vsel %vm251, %v1660, %v1610
    %v1664 = vsel %vm251, %v1661, %v1611
    %vm1665 = vcmask 1046528
    %v1666 = vsel %vm1665, %v1662, %v1615
    %v1667 = vsel %vm1665, %v1663, %v1616
    %v1668 = vsel %vm1665, %v1664, %v1617
    %v1669 = vsel %vm1642, %v1570, %v1624
    %v1670 = vsel %vm1642, %v1571, %v1625
    %v1671 = vsel %vm1642, %v1572, %v1626
    %v1672 = vsel %vm1646, %v1669, %v1630
    %v1673 = vsel %vm1646, %v1670, %v1631
    %v1674 = vsel %vm1646, %v1671, %v1632
    %v1675 = vsel %vm1650, %v1672, %v1636
    %v1676 = vsel %vm1650, %v1673, %v1637
    %v1677 = vsel %vm1650, %v1674, %v1638
    %v1678 = vpack.c.bf16 %v1675, %v1666
    %v1679 = vpack.c.bf16 %v1676, %v1667
    %v1680 = vpack.c.bf16 %v1677, %v1668
    %v1681 = vld [vmem:[#allocation7] sm:$0xff]
    %v1682 = vld [vmem:[#allocation7 + $0x8] sm:$0xff]
    %v1683 = vld [vmem:[#allocation7 + $0x10] sm:$0xff]
    %v1684 = vld [vmem:[#allocation7 + $0x18] sm:$0xff]
    %v1685 = vld [vmem:[#allocation7 + $0x20] sm:$0xff]
    %v1686 = vld [vmem:[#allocation7 + $0x28] sm:$0xff]
    %v1687 = vld [vmem:[#allocation7 + $0x30] sm:$0xff]
    %v1688 = vld [vmem:[#allocation7 + $0x38] sm:$0xff]
    %v1689 = vld [vmem:[#allocation7 + $0x40] sm:$0xff]
    %v1690 = vld [vmem:[#allocation7 + $0x48] sm:$0xff]
    %v1691 = vld [vmem:[#allocation7 + $0x50] sm:$0xff]
    %v1692 = vld [vmem:[#allocation7 + $0x58] sm:$0xff]
    %v1693 = vld [vmem:[#allocation7 + $0x60] sm:$0xff]
    %v1694 = vld [vmem:[#allocation7 + $0x68] sm:$0xff]
    %v1695 = vld [vmem:[#allocation7 + $0x70] sm:$0xff]
    %v1696 = vld [vmem:[#allocation7 + $0x78] sm:$0xff]
    %v1697 = vld [vmem:[#allocation7 + $0x80] sm:$0xff]
    %v1698 = vld [vmem:[#allocation7 + $0x88] sm:$0xff]
    %v1699 = vld [vmem:[#allocation7 + $0x90] sm:$0xff]
    %v1700 = vld [vmem:[#allocation7 + $0x98] sm:$0xff]
    %v1701 = vld [vmem:[#allocation7 + $0xa0] sm:$0xff]
    %v1702 = vld [vmem:[#allocation7 + $0xa8] sm:$0xff]
    %v1703 = vld [vmem:[#allocation7 + $0xb0] sm:$0xff]
    %v1704 = vld [vmem:[#allocation7 + $0xb8] sm:$0xff]
    %v1705 = vld [vmem:[#allocation7 + $0xc0] sm:$0xff]
    %v1706 = vld [vmem:[#allocation7 + $0xc8] sm:$0xff]
    %v1707 = vld [vmem:[#allocation7 + $0xd0] sm:$0xff]
    %v1708 = vld [vmem:[#allocation7 + $0xd8] sm:$0xff]
    %v1709 = vld [vmem:[#allocation7 + $0xe0] sm:$0xff]
    %v1710 = vld [vmem:[#allocation7 + $0xe8] sm:$0xff]
    %v1711 = vld [vmem:[#allocation7 + $0xf0] sm:$0xff]
    %v1712 = vld [vmem:[#allocation7 + $0xf8] sm:$0xff]
    %v1713 = vld [vmem:[#allocation7 + $0x100] sm:$0xff]
    %v1714 = vld [vmem:[#allocation7 + $0x108] sm:$0xff]
    %v1715 = vld [vmem:[#allocation7 + $0x110] sm:$0xff]
    %v1716 = vld [vmem:[#allocation7 + $0x118] sm:$0xff]
    %v1717 = vld [vmem:[#allocation7 + $0x120] sm:$0xff]
    %v1718 = vld [vmem:[#allocation7 + $0x128] sm:$0xff]
    %v1719 = vld [vmem:[#allocation7 + $0x130] sm:$0xff]
    %v1720 = vld [vmem:[#allocation7 + $0x138] sm:$0xff]
    %v1721 = vld [vmem:[#allocation7 + $0x140] sm:$0xff]
    %v1722 = vld [vmem:[#allocation7 + $0x148] sm:$0xff]
    %v1723 = vld [vmem:[#allocation7 + $0x150] sm:$0xff]
    %v1724 = vld [vmem:[#allocation7 + $0x158] sm:$0xff]
    %v1725 = vld [vmem:[#allocation7 + $0x160] sm:$0xff]
    %v1726 = vld [vmem:[#allocation7 + $0x168] sm:$0xff]
    %v1727 = vld [vmem:[#allocation7 + $0x170] sm:$0xff]
    %v1728 = vld [vmem:[#allocation7 + $0x178] sm:$0xff]
    %v1729 = vld [vmem:[#allocation7 + $0x180] sm:$0xff]
    %v1730 = vld [vmem:[#allocation7 + $0x188] sm:$0xff]
    %v1731 = vld [vmem:[#allocation7 + $0x190] sm:$0xff]
    %v1732 = vld [vmem:[#allocation7 + $0x198] sm:$0xff]
    %v1733 = vld [vmem:[#allocation7 + $0x1a0] sm:$0xff]
    %v1734 = vld [vmem:[#allocation7 + $0x1a8] sm:$0xff]
    %v1735 = vld [vmem:[#allocation7 + $0x1b0] sm:$0xff]
    %v1736 = vld [vmem:[#allocation7 + $0x1b8] sm:$0xff]
    %v1737 = vld [vmem:[#allocation7 + $0x1c0] sm:$0xff]
    %v1738 = vld [vmem:[#allocation7 + $0x1c8] sm:$0xff]
    %v1739 = vld [vmem:[#allocation7 + $0x1d0] sm:$0xff]
    %v1740 = vld [vmem:[#allocation7 + $0x1d8] sm:$0xff]
    %v1741 = vld [vmem:[#allocation7 + $0x1e0] sm:$0xff]
    %v1742 = vld [vmem:[#allocation7 + $0x1e8] sm:$0xff]
    %v1743 = vld [vmem:[#allocation7 + $0x1f0] sm:$0xff]
    %v1744 = vld [vmem:[#allocation7 + $0x1f8] sm:$0xff]
    %v1745 = vld [vmem:[#allocation7 + $0x200] sm:$0xff]
    %v1746 = vld [vmem:[#allocation7 + $0x208] sm:$0xff]
    %v1747 = vld [vmem:[#allocation7 + $0x210] sm:$0xff]
    %v1748 = vld [vmem:[#allocation7 + $0x218] sm:$0xff]
    %v1749 = vld [vmem:[#allocation7 + $0x220] sm:$0xff]
    %v1750 = vld [vmem:[#allocation7 + $0x228] sm:$0xff]
    %v1751 = vld [vmem:[#allocation7 + $0x230] sm:$0xff]
    %v1752 = vld [vmem:[#allocation7 + $0x238] sm:$0xff]
    %v1753 = vld [vmem:[#allocation7 + $0x240] sm:$0xff]
    %v1754 = vld [vmem:[#allocation7 + $0x248] sm:$0xff]
    %v1755 = vld [vmem:[#allocation7 + $0x250] sm:$0xff]
    %v1756 = vld [vmem:[#allocation7 + $0x258] sm:$0xff]
    %v1757 = vld [vmem:[#allocation7 + $0x260] sm:$0xff]
    %v1758 = vld [vmem:[#allocation7 + $0x268] sm:$0xff]
    %v1759 = vld [vmem:[#allocation7 + $0x270] sm:$0xff]
    %v1760 = vld [vmem:[#allocation7 + $0x278] sm:$0xff]
    %v1761 = vld [vmem:[#allocation7 + $0x280] sm:$0xff]
    %v1762 = vld [vmem:[#allocation7 + $0x288] sm:$0xff]
    %v1763 = vld [vmem:[#allocation7 + $0x290] sm:$0xff]
    %v1764 = vld [vmem:[#allocation7 + $0x298] sm:$0xff]
    %v1765 = vld [vmem:[#allocation7 + $0x2a0] sm:$0xff]
    %v1766 = vld [vmem:[#allocation7 + $0x2a8] sm:$0xff]
    %v1767 = vld [vmem:[#allocation7 + $0x2b0] sm:$0xff]
    %v1768 = vld [vmem:[#allocation7 + $0x2b8] sm:$0xff]
    %v1769 = vld [vmem:[#allocation7 + $0x2c0] sm:$0xff]
    %v1770 = vld [vmem:[#allocation7 + $0x2c8] sm:$0xff]
    %v1771 = vld [vmem:[#allocation7 + $0x2d0] sm:$0xff]
    %v1772 = vld [vmem:[#allocation7 + $0x2d8] sm:$0xff]
    %v1773 = vld [vmem:[#allocation7 + $0x2e0] sm:$0xff]
    %v1774 = vld [vmem:[#allocation7 + $0x2e8] sm:$0xff]
    %v1775 = vld [vmem:[#allocation7 + $0x2f0] sm:$0xff]
    %v1776 = vld [vmem:[#allocation7 + $0x2f8] sm:$0xff]
    %s1777 = scalar_lea.vmem [#allocation7], 768
    %v1778 = vld [vmem:[%s1777] sm:$0xff]
    %v1779 = vld [vmem:[%s1777 + $0x8] sm:$0xff]
    %v1780 = vld [vmem:[%s1777 + $0x10] sm:$0xff]
    %v1781 = vld [vmem:[%s1777 + $0x18] sm:$0xff]
    %v1782 = vld [vmem:[%s1777 + $0x20] sm:$0xff]
    %v1783 = vld [vmem:[%s1777 + $0x28] sm:$0xff]
    %v1784 = vld [vmem:[%s1777 + $0x30] sm:$0xff]
    %v1785 = vld [vmem:[%s1777 + $0x38] sm:$0xff]
    %v1786 = vld [vmem:[%s1777 + $0x40] sm:$0xff]
    %v1787 = vld [vmem:[%s1777 + $0x48] sm:$0xff]
    %v1788 = vld [vmem:[%s1777 + $0x50] sm:$0xff]
    %v1789 = vld [vmem:[%s1777 + $0x58] sm:$0xff]
    %v1790 = vld [vmem:[%s1777 + $0x60] sm:$0xff]
    %v1791 = vld [vmem:[%s1777 + $0x68] sm:$0xff]
    %v1792 = vld [vmem:[%s1777 + $0x70] sm:$0xff]
    %v1793 = vld [vmem:[%s1777 + $0x78] sm:$0xff]
    %v1794 = vld [vmem:[%s1777 + $0x80] sm:$0xff]
    %v1795 = vld [vmem:[%s1777 + $0x88] sm:$0xff]
    %v1796 = vld [vmem:[%s1777 + $0x90] sm:$0xff]
    %v1797 = vld [vmem:[%s1777 + $0x98] sm:$0xff]
    %v1798 = vld [vmem:[%s1777 + $0xa0] sm:$0xff]
    %v1799 = vld [vmem:[%s1777 + $0xa8] sm:$0xff]
    %v1800 = vld [vmem:[%s1777 + $0xb0] sm:$0xff]
    %v1801 = vld [vmem:[%s1777 + $0xb8] sm:$0xff]
    %v1802 = vld [vmem:[%s1777 + $0xc0] sm:$0xff]
    %v1803 = vld [vmem:[%s1777 + $0xc8] sm:$0xff]
    %v1804 = vld [vmem:[%s1777 + $0xd0] sm:$0xff]
    %v1805 = vld [vmem:[%s1777 + $0xd8] sm:$0xff]
    %v1806 = vld [vmem:[%s1777 + $0xe0] sm:$0xff]
    %v1807 = vld [vmem:[%s1777 + $0xe8] sm:$0xff]
    %v1808 = vld [vmem:[%s1777 + $0xf0] sm:$0xff]
    %v1809 = vld [vmem:[%s1777 + $0xf8] sm:$0xff]
    %v1810 = vld [vmem:[%s1777 + $0x100] sm:$0xff]
    %v1811 = vld [vmem:[%s1777 + $0x108] sm:$0xff]
    %v1812 = vld [vmem:[%s1777 + $0x110] sm:$0xff]
    %v1813 = vld [vmem:[%s1777 + $0x118] sm:$0xff]
    %v1814 = vld [vmem:[%s1777 + $0x120] sm:$0xff]
    %v1815 = vld [vmem:[%s1777 + $0x128] sm:$0xff]
    %v1816 = vld [vmem:[%s1777 + $0x130] sm:$0xff]
    %v1817 = vld [vmem:[%s1777 + $0x138] sm:$0xff]
    %v1818 = vld [vmem:[%s1777 + $0x140] sm:$0xff]
    %v1819 = vld [vmem:[%s1777 + $0x148] sm:$0xff]
    %v1820 = vld [vmem:[%s1777 + $0x150] sm:$0xff]
    %v1821 = vld [vmem:[%s1777 + $0x158] sm:$0xff]
    %v1822 = vld [vmem:[%s1777 + $0x160] sm:$0xff]
    %v1823 = vld [vmem:[%s1777 + $0x168] sm:$0xff]
    %v1824 = vld [vmem:[%s1777 + $0x170] sm:$0xff]
    %v1825 = vld [vmem:[%s1777 + $0x178] sm:$0xff]
    %v1826 = vld [vmem:[%s1777 + $0x180] sm:$0xff]
    %v1827 = vld [vmem:[%s1777 + $0x188] sm:$0xff]
    %v1828 = vld [vmem:[%s1777 + $0x190] sm:$0xff]
    %v1829 = vld [vmem:[%s1777 + $0x198] sm:$0xff]
    %v1830 = vld [vmem:[%s1777 + $0x1a0] sm:$0xff]
    %v1831 = vld [vmem:[%s1777 + $0x1a8] sm:$0xff]
    %v1832 = vld [vmem:[%s1777 + $0x1b0] sm:$0xff]
    %v1833 = vld [vmem:[%s1777 + $0x1b8] sm:$0xff]
    %v1834 = vld [vmem:[%s1777 + $0x1c0] sm:$0xff]
    %v1835 = vld [vmem:[%s1777 + $0x1c8] sm:$0xff]
    %v1836 = vld [vmem:[%s1777 + $0x1d0] sm:$0xff]
    %v1837 = vld [vmem:[%s1777 + $0x1d8] sm:$0xff]
    %v1838 = vld [vmem:[%s1777 + $0x1e0] sm:$0xff]
    %v1839 = vld [vmem:[%s1777 + $0x1e8] sm:$0xff]
    %v1840 = vld [vmem:[%s1777 + $0x1f0] sm:$0xff]
    %v1841 = vld [vmem:[%s1777 + $0x1f8] sm:$0xff]
    %v1842 = vld [vmem:[%s1777 + $0x200] sm:$0xff]
    %v1843 = vld [vmem:[%s1777 + $0x208] sm:$0xff]
    %v1844 = vld [vmem:[%s1777 + $0x210] sm:$0xff]
    %v1845 = vld [vmem:[%s1777 + $0x218] sm:$0xff]
    %v1846 = vld [vmem:[%s1777 + $0x220] sm:$0xff]
    %v1847 = vld [vmem:[%s1777 + $0x228] sm:$0xff]
    %v1848 = vld [vmem:[%s1777 + $0x230] sm:$0xff]
    %v1849 = vld [vmem:[%s1777 + $0x238] sm:$0xff]
    %v1850 = vld [vmem:[%s1777 + $0x240] sm:$0xff]
    %v1851 = vld [vmem:[%s1777 + $0x248] sm:$0xff]
    %v1852 = vld [vmem:[%s1777 + $0x250] sm:$0xff]
    %v1853 = vld [vmem:[%s1777 + $0x258] sm:$0xff]
    %v1854 = vld [vmem:[%s1777 + $0x260] sm:$0xff]
    %v1855 = vld [vmem:[%s1777 + $0x268] sm:$0xff]
    %v1856 = vld [vmem:[%s1777 + $0x270] sm:$0xff]
    %v1857 = vld [vmem:[%s1777 + $0x278] sm:$0xff]
    %v1858 = vld [vmem:[%s1777 + $0x280] sm:$0xff]
    %v1859 = vld [vmem:[%s1777 + $0x288] sm:$0xff]
    %v1860 = vld [vmem:[%s1777 + $0x290] sm:$0xff]
    %v1861 = vld [vmem:[%s1777 + $0x298] sm:$0xff]
    %v1862 = vld [vmem:[%s1777 + $0x2a0] sm:$0xff]
    %v1863 = vld [vmem:[%s1777 + $0x2a8] sm:$0xff]
    %v1864 = vld [vmem:[%s1777 + $0x2b0] sm:$0xff]
    %v1865 = vld [vmem:[%s1777 + $0x2b8] sm:$0xff]
    %v1866 = vld [vmem:[%s1777 + $0x2c0] sm:$0xff]
    %v1867 = vld [vmem:[%s1777 + $0x2c8] sm:$0xff]
    %v1868 = vld [vmem:[%s1777 + $0x2d0] sm:$0xff]
    %v1869 = vld [vmem:[%s1777 + $0x2d8] sm:$0xff]
    %v1870 = vld [vmem:[%s1777 + $0x2e0] sm:$0xff]
    %v1871 = vld [vmem:[%s1777 + $0x2e8] sm:$0xff]
    %v1872 = vld [vmem:[%s1777 + $0x2f0] sm:$0xff]
    %v1873 = vld [vmem:[%s1777 + $0x2f8] sm:$0xff]
    %v1875 = vshrl.u32 %v1678, 16
    %v1877 = vshll.u32 %v1678, 16
    %v1879 = vrot.slane %v1877, 1
    %v1880 = vor.u32 %v1875, %v1879
    %v1882 = vshrl.u32 %v1679, 16
    %v1884 = vshll.u32 %v1679, 16
    %v1886 = vrot.slane %v1884, 1
    %v1887 = vor.u32 %v1882, %v1886
    %v1889 = vshrl.u32 %v1680, 16
    %v1891 = vshll.u32 %v1680, 16
    %v1893 = vrot.slane %v1891, 1
    %v1894 = vor.u32 %v1889, %v1893
    %v1994 = vunpack.c.l.b16 %v1778
    %v1995 = vunpack.c.h.b16 %v1778
    %v1996 = vunpack.c.l.b16 %v1779
    %v1997 = vunpack.c.h.b16 %v1779
    %v1998 = vunpack.c.l.b16 %v1780
    %v1999 = vunpack.c.h.b16 %v1780
    %v2000 = vunpack.c.l.b16 %v1781
    %v2001 = vunpack.c.h.b16 %v1781
    %v2002 = vunpack.c.l.b16 %v1782
    %v2003 = vunpack.c.h.b16 %v1782
    %v2004 = vunpack.c.l.b16 %v1783
    %v2005 = vunpack.c.h.b16 %v1783
    %v2006 = vunpack.c.l.b16 %v1784
    %v2007 = vunpack.c.h.b16 %v1784
    %v2008 = vunpack.c.l.b16 %v1785
    %v2009 = vunpack.c.h.b16 %v1785
    %v2010 = vunpack.c.l.b16 %v1786
    %v2011 = vunpack.c.h.b16 %v1786
    %v2012 = vunpack.c.l.b16 %v1787
    %v2013 = vunpack.c.h.b16 %v1787
    %v2014 = vunpack.c.l.b16 %v1788
    %v2015 = vunpack.c.h.b16 %v1788
    %v2016 = vunpack.c.l.b16 %v1789
    %v2017 = vunpack.c.h.b16 %v1789
    %v2018 = vunpack.c.l.b16 %v1790
    %v2019 = vunpack.c.h.b16 %v1790
    %v2020 = vunpack.c.l.b16 %v1791
    %v2021 = vunpack.c.h.b16 %v1791
    %v2022 = vunpack.c.l.b16 %v1792
    %v2023 = vunpack.c.h.b16 %v1792
    %v2024 = vunpack.c.l.b16 %v1793
    %v2025 = vunpack.c.h.b16 %v1793
    %v2026 = vunpack.c.l.b16 %v1794
    %v2027 = vunpack.c.h.b16 %v1794
    %v2028 = vunpack.c.l.b16 %v1795
    %v2029 = vunpack.c.h.b16 %v1795
    %v2030 = vunpack.c.l.b16 %v1796
    %v2031 = vunpack.c.h.b16 %v1796
    %v2032 = vunpack.c.l.b16 %v1797
    %v2033 = vunpack.c.h.b16 %v1797
    %v2034 = vunpack.c.l.b16 %v1798
    %v2035 = vunpack.c.h.b16 %v1798
    %v2036 = vunpack.c.l.b16 %v1799
    %v2037 = vunpack.c.h.b16 %v1799
    %v2038 = vunpack.c.l.b16 %v1800
    %v2039 = vunpack.c.h.b16 %v1800
    %v2040 = vunpack.c.l.b16 %v1801
    %v2041 = vunpack.c.h.b16 %v1801
    %v2042 = vunpack.c.l.b16 %v1802
    %v2043 = vunpack.c.h.b16 %v1802
    %v2044 = vunpack.c.l.b16 %v1803
    %v2045 = vunpack.c.h.b16 %v1803
    %v2046 = vunpack.c.l.b16 %v1804
    %v2047 = vunpack.c.h.b16 %v1804
    %v2048 = vunpack.c.l.b16 %v1805
    %v2049 = vunpack.c.h.b16 %v1805
    %v2050 = vunpack.c.l.b16 %v1806
    %v2051 = vunpack.c.h.b16 %v1806
    %v2052 = vunpack.c.l.b16 %v1807
    %v2053 = vunpack.c.h.b16 %v1807
    %v2054 = vunpack.c.l.b16 %v1808
    %v2055 = vunpack.c.h.b16 %v1808
    %v2056 = vunpack.c.l.b16 %v1809
    %v2057 = vunpack.c.h.b16 %v1809
    %v2058 = vunpack.c.l.b16 %v1810
    %v2059 = vunpack.c.h.b16 %v1810
    %v2060 = vunpack.c.l.b16 %v1811
    %v2061 = vunpack.c.h.b16 %v1811
    %v2062 = vunpack.c.l.b16 %v1812
    %v2063 = vunpack.c.h.b16 %v1812
    %v2064 = vunpack.c.l.b16 %v1813
    %v2065 = vunpack.c.h.b16 %v1813
    %v2066 = vunpack.c.l.b16 %v1814
    %v2067 = vunpack.c.h.b16 %v1814
    %v2068 = vunpack.c.l.b16 %v1815
    %v2069 = vunpack.c.h.b16 %v1815
    %v2070 = vunpack.c.l.b16 %v1816
    %v2071 = vunpack.c.h.b16 %v1816
    %v2072 = vunpack.c.l.b16 %v1817
    %v2073 = vunpack.c.h.b16 %v1817
    %v2074 = vunpack.c.l.b16 %v1818
    %v2075 = vunpack.c.h.b16 %v1818
    %v2076 = vunpack.c.l.b16 %v1819
    %v2077 = vunpack.c.h.b16 %v1819
    %v2078 = vunpack.c.l.b16 %v1820
    %v2079 = vunpack.c.h.b16 %v1820
    %v2080 = vunpack.c.l.b16 %v1821
    %v2081 = vunpack.c.h.b16 %v1821
    %v2082 = vunpack.c.l.b16 %v1822
    %v2083 = vunpack.c.h.b16 %v1822
    %v2084 = vunpack.c.l.b16 %v1823
    %v2085 = vunpack.c.h.b16 %v1823
    %v2086 = vunpack.c.l.b16 %v1824
    %v2087 = vunpack.c.h.b16 %v1824
    %v2088 = vunpack.c.l.b16 %v1825
    %v2089 = vunpack.c.h.b16 %v1825
    %v2090 = vunpack.c.l.b16 %v1826
    %v2091 = vunpack.c.h.b16 %v1826
    %v2092 = vunpack.c.l.b16 %v1827
    %v2093 = vunpack.c.h.b16 %v1827
    %v2094 = vunpack.c.l.b16 %v1828
    %v2095 = vunpack.c.h.b16 %v1828
    %v2096 = vunpack.c.l.b16 %v1829
    %v2097 = vunpack.c.h.b16 %v1829
    %v2098 = vunpack.c.l.b16 %v1830
    %v2099 = vunpack.c.h.b16 %v1830
    %v2100 = vunpack.c.l.b16 %v1831
    %v2101 = vunpack.c.h.b16 %v1831
    %v2102 = vunpack.c.l.b16 %v1832
    %v2103 = vunpack.c.h.b16 %v1832
    %v2104 = vunpack.c.l.b16 %v1833
    %v2105 = vunpack.c.h.b16 %v1833
    %v2106 = vunpack.c.l.b16 %v1834
    %v2107 = vunpack.c.h.b16 %v1834
    %v2108 = vunpack.c.l.b16 %v1835
    %v2109 = vunpack.c.h.b16 %v1835
    %v2110 = vunpack.c.l.b16 %v1836
    %v2111 = vunpack.c.h.b16 %v1836
    %v2112 = vunpack.c.l.b16 %v1837
    %v2113 = vunpack.c.h.b16 %v1837
    %v2114 = vunpack.c.l.b16 %v1838
    %v2115 = vunpack.c.h.b16 %v1838
    %v2116 = vunpack.c.l.b16 %v1839
    %v2117 = vunpack.c.h.b16 %v1839
    %v2118 = vunpack.c.l.b16 %v1840
    %v2119 = vunpack.c.h.b16 %v1840
    %v2120 = vunpack.c.l.b16 %v1841
    %v2121 = vunpack.c.h.b16 %v1841
    %v2122 = vunpack.c.l.b16 %v1842
    %v2123 = vunpack.c.h.b16 %v1842
    %v2124 = vunpack.c.l.b16 %v1843
    %v2125 = vunpack.c.h.b16 %v1843
    %v2126 = vunpack.c.l.b16 %v1844
    %v2127 = vunpack.c.h.b16 %v1844
    %v2128 = vunpack.c.l.b16 %v1845
    %v2129 = vunpack.c.h.b16 %v1845
    %v2130 = vunpack.c.l.b16 %v1846
    %v2131 = vunpack.c.h.b16 %v1846
    %v2132 = vunpack.c.l.b16 %v1847
    %v2133 = vunpack.c.h.b16 %v1847
    %v2134 = vunpack.c.l.b16 %v1848
    %v2135 = vunpack.c.h.b16 %v1848
    %v2136 = vunpack.c.l.b16 %v1849
    %v2137 = vunpack.c.h.b16 %v1849
    %v2138 = vunpack.c.l.b16 %v1850
    %v2139 = vunpack.c.h.b16 %v1850
    %v2140 = vunpack.c.l.b16 %v1851
    %v2141 = vunpack.c.h.b16 %v1851
    %v2142 = vunpack.c.l.b16 %v1852
    %v2143 = vunpack.c.h.b16 %v1852
    %v2144 = vunpack.c.l.b16 %v1853
    %v2145 = vunpack.c.h.b16 %v1853
    %v2146 = vunpack.c.l.b16 %v1854
    %v2147 = vunpack.c.h.b16 %v1854
    %v2148 = vunpack.c.l.b16 %v1855
    %v2149 = vunpack.c.h.b16 %v1855
    %v2150 = vunpack.c.l.b16 %v1856
    %v2151 = vunpack.c.h.b16 %v1856
    %v2152 = vunpack.c.l.b16 %v1857
    %v2153 = vunpack.c.h.b16 %v1857
    %v2154 = vunpack.c.l.b16 %v1858
    %v2155 = vunpack.c.h.b16 %v1858
    %v2156 = vunpack.c.l.b16 %v1859
    %v2157 = vunpack.c.h.b16 %v1859
    %v2158 = vunpack.c.l.b16 %v1860
    %v2159 = vunpack.c.h.b16 %v1860
    %v2160 = vunpack.c.l.b16 %v1861
    %v2161 = vunpack.c.h.b16 %v1861
    %v2162 = vunpack.c.l.b16 %v1862
    %v2163 = vunpack.c.h.b16 %v1862
    %v2164 = vunpack.c.l.b16 %v1863
    %v2165 = vunpack.c.h.b16 %v1863
    %v2166 = vunpack.c.l.b16 %v1864
    %v2167 = vunpack.c.h.b16 %v1864
    %v2168 = vunpack.c.l.b16 %v1865
    %v2169 = vunpack.c.h.b16 %v1865
    %v2170 = vunpack.c.l.b16 %v1866
    %v2171 = vunpack.c.h.b16 %v1866
    %v2172 = vunpack.c.l.b16 %v1867
    %v2173 = vunpack.c.h.b16 %v1867
    %v2174 = vunpack.c.l.b16 %v1868
    %v2175 = vunpack.c.h.b16 %v1868
    %v2176 = vunpack.c.l.b16 %v1869
    %v2177 = vunpack.c.h.b16 %v1869
    %v2178 = vunpack.c.l.b16 %v1870
    %v2179 = vunpack.c.h.b16 %v1870
    %v2180 = vunpack.c.l.b16 %v1871
    %v2181 = vunpack.c.h.b16 %v1871
    %v2182 = vunpack.c.l.b16 %v1872
    %v2183 = vunpack.c.h.b16 %v1872
    %v2184 = vunpack.c.l.b16 %v1873
    %v2185 = vunpack.c.h.b16 %v1873
    %v2186 = vpack.c.b16 %v1998, %v1994
    %v2187 = vpack.c.b16 %v1999, %v1995
    %v2188 = vpack.c.b16 %v2000, %v1996
    %v2189 = vpack.c.b16 %v2001, %v1997
    %v2190 = vpack.c.b16 %v2006, %v2002
    %v2191 = vpack.c.b16 %v2007, %v2003
    %v2192 = vpack.c.b16 %v2008, %v2004
    %v2193 = vpack.c.b16 %v2009, %v2005
    %v2194 = vpack.c.b16 %v2014, %v2010
    %v2195 = vpack.c.b16 %v2015, %v2011
    %v2196 = vpack.c.b16 %v2016, %v2012
    %v2197 = vpack.c.b16 %v2017, %v2013
    %v2198 = vpack.c.b16 %v2022, %v2018
    %v2199 = vpack.c.b16 %v2023, %v2019
    %v2200 = vpack.c.b16 %v2024, %v2020
    %v2201 = vpack.c.b16 %v2025, %v2021
    %v2202 = vpack.c.b16 %v2030, %v2026
    %v2203 = vpack.c.b16 %v2031, %v2027
    %v2204 = vpack.c.b16 %v2032, %v2028
    %v2205 = vpack.c.b16 %v2033, %v2029
    %v2206 = vpack.c.b16 %v2038, %v2034
    %v2207 = vpack.c.b16 %v2039, %v2035
    %v2208 = vpack.c.b16 %v2040, %v2036
    %v2209 = vpack.c.b16 %v2041, %v2037
    %v2210 = vpack.c.b16 %v2046, %v2042
    %v2211 = vpack.c.b16 %v2047, %v2043
    %v2212 = vpack.c.b16 %v2048, %v2044
    %v2213 = vpack.c.b16 %v2049, %v2045
    %v2214 = vpack.c.b16 %v2054, %v2050
    %v2215 = vpack.c.b16 %v2055, %v2051
    %v2216 = vpack.c.b16 %v2056, %v2052
    %v2217 = vpack.c.b16 %v2057, %v2053
    %v2218 = vpack.c.b16 %v2062, %v2058
    %v2219 = vpack.c.b16 %v2063, %v2059
    %v2220 = vpack.c.b16 %v2064, %v2060
    %v2221 = vpack.c.b16 %v2065, %v2061
    %v2222 = vpack.c.b16 %v2070, %v2066
    %v2223 = vpack.c.b16 %v2071, %v2067
    %v2224 = vpack.c.b16 %v2072, %v2068
    %v2225 = vpack.c.b16 %v2073, %v2069
    %v2226 = vpack.c.b16 %v2078, %v2074
    %v2227 = vpack.c.b16 %v2079, %v2075
    %v2228 = vpack.c.b16 %v2080, %v2076
    %v2229 = vpack.c.b16 %v2081, %v2077
    %v2230 = vpack.c.b16 %v2086, %v2082
    %v2231 = vpack.c.b16 %v2087, %v2083
    %v2232 = vpack.c.b16 %v2088, %v2084
    %v2233 = vpack.c.b16 %v2089, %v2085
    %v2234 = vpack.c.b16 %v2094, %v2090
    %v2235 = vpack.c.b16 %v2095, %v2091
    %v2236 = vpack.c.b16 %v2096, %v2092
    %v2237 = vpack.c.b16 %v2097, %v2093
    %v2238 = vpack.c.b16 %v2102, %v2098
    %v2239 = vpack.c.b16 %v2103, %v2099
    %v2240 = vpack.c.b16 %v2104, %v2100
    %v2241 = vpack.c.b16 %v2105, %v2101
    %v2242 = vpack.c.b16 %v2110, %v2106
    %v2243 = vpack.c.b16 %v2111, %v2107
    %v2244 = vpack.c.b16 %v2112, %v2108
    %v2245 = vpack.c.b16 %v2113, %v2109
    %v2246 = vpack.c.b16 %v2118, %v2114
    %v2247 = vpack.c.b16 %v2119, %v2115
    %v2248 = vpack.c.b16 %v2120, %v2116
    %v2249 = vpack.c.b16 %v2121, %v2117
    %v2250 = vpack.c.b16 %v2126, %v2122
    %v2251 = vpack.c.b16 %v2127, %v2123
    %v2252 = vpack.c.b16 %v2128, %v2124
    %v2253 = vpack.c.b16 %v2129, %v2125
    %v2254 = vpack.c.b16 %v2134, %v2130
    %v2255 = vpack.c.b16 %v2135, %v2131
    %v2256 = vpack.c.b16 %v2136, %v2132
    %v2257 = vpack.c.b16 %v2137, %v2133
    %v2258 = vpack.c.b16 %v2142, %v2138
    %v2259 = vpack.c.b16 %v2143, %v2139
    %v2260 = vpack.c.b16 %v2144, %v2140
    %v2261 = vpack.c.b16 %v2145, %v2141
    %v2262 = vpack.c.b16 %v2150, %v2146
    %v2263 = vpack.c.b16 %v2151, %v2147
    %v2264 = vpack.c.b16 %v2152, %v2148
    %v2265 = vpack.c.b16 %v2153, %v2149
    %v2266 = vpack.c.b16 %v2158, %v2154
    %v2267 = vpack.c.b16 %v2159, %v2155
    %v2268 = vpack.c.b16 %v2160, %v2156
    %v2269 = vpack.c.b16 %v2161, %v2157
    %v2270 = vpack.c.b16 %v2166, %v2162
    %v2271 = vpack.c.b16 %v2167, %v2163
    %v2272 = vpack.c.b16 %v2168, %v2164
    %v2273 = vpack.c.b16 %v2169, %v2165
    %v2274 = vpack.c.b16 %v2174, %v2170
    %v2275 = vpack.c.b16 %v2175, %v2171
    %v2276 = vpack.c.b16 %v2176, %v2172
    %v2277 = vpack.c.b16 %v2177, %v2173
    %v2278 = vpack.c.b16 %v2182, %v2178
    %v2279 = vpack.c.b16 %v2183, %v2179
    %v2280 = vpack.c.b16 %v2184, %v2180
    %v2281 = vpack.c.b16 %v2185, %v2181
    %2378 = vmatprep.subr.bf16.mxu0 %v2187
    %2379 = vmatpush1.bf16.msra.mxu0 %v2186
    %2380 = vmatprep.subr.bf16.mxu0 %v2191
    %2381 = vmatpush1.bf16.msra.mxu0 %v2190
    %2382 = vmatprep.subr.bf16.mxu0 %v2195
    %2383 = vmatpush1.bf16.msra.mxu0 %v2194
    %2384 = vmatprep.subr.bf16.mxu0 %v2199
    %2385 = vmatpush1.bf16.msra.mxu0 %v2198
    %2386 = vmatprep.subr.bf16.mxu0 %v2203
    %2387 = vmatpush1.bf16.msra.mxu0 %v2202
    %2388 = vmatprep.subr.bf16.mxu0 %v2207
    %2389 = vmatpush1.bf16.msra.mxu0 %v2206
    %2390 = vmatprep.subr.bf16.mxu0 %v2211
    %2391 = vmatpush1.bf16.msra.mxu0 %v2210
    %2392 = vmatprep.subr.bf16.mxu0 %v2215
    %2393 = vmatpush1.bf16.msra.mxu0 %v2214
    %2394 = vmatprep.subr.bf16.mxu0 %v2219
    %2395 = vmatpush1.bf16.msra.mxu0 %v2218
    %2396 = vmatprep.subr.bf16.mxu0 %v2223
    %2397 = vmatpush1.bf16.msra.mxu0 %v2222
    %2398 = vmatprep.subr.bf16.mxu0 %v2227
    %2399 = vmatpush1.bf16.msra.mxu0 %v2226
    %2400 = vmatprep.subr.bf16.mxu0 %v2231
    %2401 = vmatpush1.bf16.msra.mxu0 %v2230
    %2402 = vmatprep.subr.bf16.mxu0 %v2235
    %2403 = vmatpush1.bf16.msra.mxu0 %v2234
    %2404 = vmatprep.subr.bf16.mxu0 %v2239
    %2405 = vmatpush1.bf16.msra.mxu0 %v2238
    %2406 = vmatprep.subr.bf16.mxu0 %v2243
    %2407 = vmatpush1.bf16.msra.mxu0 %v2242
    %2408 = vmatprep.subr.bf16.mxu0 %v2247
    %2409 = vmatpush1.bf16.msra.mxu0 %v2246
    %2410 = vmatprep.mubr.bf16.mxu0 %v1887
    %2411 = vmatmul.mubr.bf16.gmra.mrb[0].mxu0 %v1880
    %v2412 = vpop.f32.mrb[0].mxu0
    %v2413 = vadd.f32 0.0, %v2412
    %v2414 = vpop.f32.mrb[0].mxu0
    %v2415 = vadd.f32 0.0, %v2414
    %v2416 = vpop.f32.mrb[0].mxu0
    %v2417 = vpop.f32.mrb[0].mxu0
    %2418 = vdwg.mxu0
    %2419 = vmatprep.subr.bf16.mxu0 %v2251
    %2420 = vmatpush1.bf16.msra.mxu0 %v2250
    %2421 = vmatprep.subr.bf16.mxu0 %v2255
    %2422 = vmatpush1.bf16.msra.mxu0 %v2254
    %2423 = vmatprep.subr.bf16.mxu0 %v2259
    %2424 = vmatpush1.bf16.msra.mxu0 %v2258
    %2425 = vmatprep.subr.bf16.mxu0 %v2263
    %2426 = vmatpush1.bf16.msra.mxu0 %v2262
    %2427 = vmatprep.subr.bf16.mxu0 %v2267
    %2428 = vmatpush1.bf16.msra.mxu0 %v2266
    %2429 = vmatprep.subr.bf16.mxu0 %v2271
    %2430 = vmatpush1.bf16.msra.mxu0 %v2270
    %2431 = vmatprep.subr.bf16.mxu0 %v2275
    %2432 = vmatpush1.bf16.msra.mxu0 %v2274
    %2433 = vmatprep.subr.bf16.mxu0 %v2279
    %2434 = vmatpush1.bf16.msra.mxu0 %v2278
    %2435 = vmatprep.subr.bf16.mxu0 0
    %2436 = vmatpush1.bf16.msra.mxu0 0
    %2437 = vmatprep.subr.bf16.mxu0 0
    %2438 = vmatpush1.bf16.msra.mxu0 0
    %2439 = vmatprep.subr.bf16.mxu0 0
    %2440 = vmatpush1.bf16.msra.mxu0 0
    %2441 = vmatprep.subr.bf16.mxu0 0
    %2442 = vmatpush1.bf16.msra.mxu0 0
    %2443 = vmatprep.subr.bf16.mxu0 0
    %2444 = vmatpush1.bf16.msra.mxu0 0
    %2445 = vmatprep.subr.bf16.mxu0 0
    %2446 = vmatpush1.bf16.msra.mxu0 0
    %2447 = vmatprep.subr.bf16.mxu0 0
    %2448 = vmatpush1.bf16.msra.mxu0 0
    %2449 = vmatprep.subr.bf16.mxu0 0
    %2450 = vmatpush1.bf16.msra.mxu0 0
    %2451 = vmatprep.mubr.bf16.mxu0 0
    %2452 = vmatmul.mubr.bf16.gmra.mrb[0].mxu0 %v1894
    %v2453 = vpop.f32.mrb[0].mxu0
    %v2454 = vadd.f32 %v2413, %v2453
    %v2455 = vpop.f32.mrb[0].mxu0
    %v2456 = vadd.f32 %v2415, %v2455
    %v2457 = vpop.f32.mrb[0].mxu0
    %v2458 = vpop.f32.mrb[0].mxu0
    %2459 = vdwg.mxu0
    %2460 = vmatprep.subr.bf16.mxu0 %v2189
    %2461 = vmatpush1.bf16.msra.mxu0 %v2188
    %2462 = vmatprep.subr.bf16.mxu0 %v2193
    %2463 = vmatpush1.bf16.msra.mxu0 %v2192
    %2464 = vmatprep.subr.bf16.mxu0 %v2197
    %2465 = vmatpush1.bf16.msra.mxu0 %v2196
    %2466 = vmatprep.subr.bf16.mxu0 %v2201
    %2467 = vmatpush1.bf16.msra.mxu0 %v2200
    %2468 = vmatprep.subr.bf16.mxu0 %v2205
    %2469 = vmatpush1.bf16.msra.mxu0 %v2204
    %2470 = vmatprep.subr.bf16.mxu0 %v2209
    %2471 = vmatpush1.bf16.msra.mxu0 %v2208
    %2472 = vmatprep.subr.bf16.mxu0 %v2213
    %2473 = vmatpush1.bf16.msra.mxu0 %v2212
    %2474 = vmatprep.subr.bf16.mxu0 %v2217
    %2475 = vmatpush1.bf16.msra.mxu0 %v2216
    %2476 = vmatprep.subr.bf16.mxu0 %v2221
    %2477 = vmatpush1.bf16.msra.mxu0 %v2220
    %2478 = vmatprep.subr.bf16.mxu0 %v2225
    %2479 = vmatpush1.bf16.msra.mxu0 %v2224
    %2480 = vmatprep.subr.bf16.mxu0 %v2229
    %2481 = vmatpush1.bf16.msra.mxu0 %v2228
    %2482 = vmatprep.subr.bf16.mxu0 %v2233
    %2483 = vmatpush1.bf16.msra.mxu0 %v2232
    %2484 = vmatprep.subr.bf16.mxu0 %v2237
    %2485 = vmatpush1.bf16.msra.mxu0 %v2236
    %2486 = vmatprep.subr.bf16.mxu0 %v2241
    %2487 = vmatpush1.bf16.msra.mxu0 %v2240
    %2488 = vmatprep.subr.bf16.mxu0 %v2245
    %2489 = vmatpush1.bf16.msra.mxu0 %v2244
    %2490 = vmatprep.subr.bf16.mxu0 %v2249
    %2491 = vmatpush1.bf16.msra.mxu0 %v2248
    %2492 = vmatprep.mubr.bf16.mxu0 %v1887
    %2493 = vmatmul.mubr.bf16.gmra.mrb[0].mxu0 %v1880
    %v2494 = vpop.f32.mrb[0].mxu0
    %v2495 = vadd.f32 0.0, %v2494
    %v2496 = vpop.f32.mrb[0].mxu0
    %v2497 = vadd.f32 0.0, %v2496
    %v2498 = vpop.f32.mrb[0].mxu0
    %v2499 = vpop.f32.mrb[0].mxu0
    %2500 = vdwg.mxu0
    %2501 = vmatprep.subr.bf16.mxu0 %v2253
    %2502 = vmatpush1.bf16.msra.mxu0 %v2252
    %2503 = vmatprep.subr.bf16.mxu0 %v2257
    %2504 = vmatpush1.bf16.msra.mxu0 %v2256
    %2505 = vmatprep.subr.bf16.mxu0 %v2261
    %2506 = vmatpush1.bf16.msra.mxu0 %v2260
    %2507 = vmatprep.subr.bf16.mxu0 %v2265
    %2508 = vmatpush1.bf16.msra.mxu0 %v2264
    %2509 = vmatprep.subr.bf16.mxu0 %v2269
    %2510 = vmatpush1.bf16.msra.mxu0 %v2268
    %2511 = vmatprep.subr.bf16.mxu0 %v2273
    %2512 = vmatpush1.bf16.msra.mxu0 %v2272
    %2513 = vmatprep.subr.bf16.mxu0 %v2277
    %2514 = vmatpush1.bf16.msra.mxu0 %v2276
    %2515 = vmatprep.subr.bf16.mxu0 %v2281
    %2516 = vmatpush1.bf16.msra.mxu0 %v2280
    %2517 = vmatprep.subr.bf16.mxu0 0
    %2518 = vmatpush1.bf16.msra.mxu0 0
    %2519 = vmatprep.subr.bf16.mxu0 0
    %2520 = vmatpush1.bf16.msra.mxu0 0
    %2521 = vmatprep.subr.bf16.mxu0 0
    %2522 = vmatpush1.bf16.msra.mxu0 0
    %2523 = vmatprep.subr.bf16.mxu0 0
    %2524 = vmatpush1.bf16.msra.mxu0 0
    %2525 = vmatprep.subr.bf16.mxu0 0
    %2526 = vmatpush1.bf16.msra.mxu0 0
    %2527 = vmatprep.subr.bf16.mxu0 0
    %2528 = vmatpush1.bf16.msra.mxu0 0
    %2529 = vmatprep.subr.bf16.mxu0 0
    %2530 = vmatpush1.bf16.msra.mxu0 0
    %2531 = vmatprep.subr.bf16.mxu0 0
    %2532 = vmatpush1.bf16.msra.mxu0 0
    %2533 = vmatprep.mubr.bf16.mxu0 0
    %2534 = vmatmul.mubr.bf16.gmra.mrb[0].mxu0 %v1894
    %v2535 = vpop.f32.mrb[0].mxu0
    %v2536 = vadd.f32 %v2495, %v2535
    %v2537 = vpop.f32.mrb[0].mxu0
    %v2538 = vadd.f32 %v2497, %v2537
    %v2539 = vpop.f32.mrb[0].mxu0
    %v2540 = vpop.f32.mrb[0].mxu0
    %2541 = vdwg.mxu0
    %v2638 = vunpack.c.l.b16 %v1681
    %v2639 = vunpack.c.h.b16 %v1681
    %v2640 = vunpack.c.l.b16 %v1682
    %v2641 = vunpack.c.h.b16 %v1682
    %v2642 = vunpack.c.l.b16 %v1683
    %v2643 = vunpack.c.h.b16 %v1683
    %v2644 = vunpack.c.l.b16 %v1684
    %v2645 = vunpack.c.h.b16 %v1684
    %v2646 = vunpack.c.l.b16 %v1685
    %v2647 = vunpack.c.h.b16 %v1685
    %v2648 = vunpack.c.l.b16 %v1686
    %v2649 = vunpack.c.h.b16 %v1686
    %v2650 = vunpack.c.l.b16 %v1687
    %v2651 = vunpack.c.h.b16 %v1687
    %v2652 = vunpack.c.l.b16 %v1688
    %v2653 = vunpack.c.h.b16 %v1688
    %v2654 = vunpack.c.l.b16 %v1689
    %v2655 = vunpack.c.h.b16 %v1689
    %v2656 = vunpack.c.l.b16 %v1690
    %v2657 = vunpack.c.h.b16 %v1690
    %v2658 = vunpack.c.l.b16 %v1691
    %v2659 = vunpack.c.h.b16 %v1691
    %v2660 = vunpack.c.l.b16 %v1692
    %v2661 = vunpack.c.h.b16 %v1692
    %v2662 = vunpack.c.l.b16 %v1693
    %v2663 = vunpack.c.h.b16 %v1693
    %v2664 = vunpack.c.l.b16 %v1694
    %v2665 = vunpack.c.h.b16 %v1694
    %v2666 = vunpack.c.l.b16 %v1695
    %v2667 = vunpack.c.h.b16 %v1695
    %v2668 = vunpack.c.l.b16 %v1696
    %v2669 = vunpack.c.h.b16 %v1696
    %v2670 = vunpack.c.l.b16 %v1697
    %v2671 = vunpack.c.h.b16 %v1697
    %v2672 = vunpack.c.l.b16 %v1698
    %v2673 = vunpack.c.h.b16 %v1698
    %v2674 = vunpack.c.l.b16 %v1699
    %v2675 = vunpack.c.h.b16 %v1699
    %v2676 = vunpack.c.l.b16 %v1700
    %v2677 = vunpack.c.h.b16 %v1700
    %v2678 = vunpack.c.l.b16 %v1701
    %v2679 = vunpack.c.h.b16 %v1701
    %v2680 = vunpack.c.l.b16 %v1702
    %v2681 = vunpack.c.h.b16 %v1702
    %v2682 = vunpack.c.l.b16 %v1703
    %v2683 = vunpack.c.h.b16 %v1703
    %v2684 = vunpack.c.l.b16 %v1704
    %v2685 = vunpack.c.h.b16 %v1704
    %v2686 = vunpack.c.l.b16 %v1705
    %v2687 = vunpack.c.h.b16 %v1705
    %v2688 = vunpack.c.l.b16 %v1706
    %v2689 = vunpack.c.h.b16 %v1706
    %v2690 = vunpack.c.l.b16 %v1707
    %v2691 = vunpack.c.h.b16 %v1707
    %v2692 = vunpack.c.l.b16 %v1708
    %v2693 = vunpack.c.h.b16 %v1708
    %v2694 = vunpack.c.l.b16 %v1709
    %v2695 = vunpack.c.h.b16 %v1709
    %v2696 = vunpack.c.l.b16 %v1710
    %v2697 = vunpack.c.h.b16 %v1710
    %v2698 = vunpack.c.l.b16 %v1711
    %v2699 = vunpack.c.h.b16 %v1711
    %v2700 = vunpack.c.l.b16 %v1712
    %v2701 = vunpack.c.h.b16 %v1712
    %v2702 = vunpack.c.l.b16 %v1713
    %v2703 = vunpack.c.h.b16 %v1713
    %v2704 = vunpack.c.l.b16 %v1714
    %v2705 = vunpack.c.h.b16 %v1714
    %v2706 = vunpack.c.l.b16 %v1715
    %v2707 = vunpack.c.h.b16 %v1715
    %v2708 = vunpack.c.l.b16 %v1716
    %v2709 = vunpack.c.h.b16 %v1716
    %v2710 = vunpack.c.l.b16 %v1717
    %v2711 = vunpack.c.h.b16 %v1717
    %v2712 = vunpack.c.l.b16 %v1718
    %v2713 = vunpack.c.h.b16 %v1718
    %v2714 = vunpack.c.l.b16 %v1719
    %v2715 = vunpack.c.h.b16 %v1719
    %v2716 = vunpack.c.l.b16 %v1720
    %v2717 = vunpack.c.h.b16 %v1720
    %v2718 = vunpack.c.l.b16 %v1721
    %v2719 = vunpack.c.h.b16 %v1721
    %v2720 = vunpack.c.l.b16 %v1722
    %v2721 = vunpack.c.h.b16 %v1722
    %v2722 = vunpack.c.l.b16 %v1723
    %v2723 = vunpack.c.h.b16 %v1723
    %v2724 = vunpack.c.l.b16 %v1724
    %v2725 = vunpack.c.h.b16 %v1724
    %v2726 = vunpack.c.l.b16 %v1725
    %v2727 = vunpack.c.h.b16 %v1725
    %v2728 = vunpack.c.l.b16 %v1726
    %v2729 = vunpack.c.h.b16 %v1726
    %v2730 = vunpack.c.l.b16 %v1727
    %v2731 = vunpack.c.h.b16 %v1727
    %v2732 = vunpack.c.l.b16 %v1728
    %v2733 = vunpack.c.h.b16 %v1728
    %v2734 = vunpack.c.l.b16 %v1729
    %v2735 = vunpack.c.h.b16 %v1729
    %v2736 = vunpack.c.l.b16 %v1730
    %v2737 = vunpack.c.h.b16 %v1730
    %v2738 = vunpack.c.l.b16 %v1731
    %v2739 = vunpack.c.h.b16 %v1731
    %v2740 = vunpack.c.l.b16 %v1732
    %v2741 = vunpack.c.h.b16 %v1732
    %v2742 = vunpack.c.l.b16 %v1733
    %v2743 = vunpack.c.h.b16 %v1733
    %v2744 = vunpack.c.l.b16 %v1734
    %v2745 = vunpack.c.h.b16 %v1734
    %v2746 = vunpack.c.l.b16 %v1735
    %v2747 = vunpack.c.h.b16 %v1735
    %v2748 = vunpack.c.l.b16 %v1736
    %v2749 = vunpack.c.h.b16 %v1736
    %v2750 = vunpack.c.l.b16 %v1737
    %v2751 = vunpack.c.h.b16 %v1737
    %v2752 = vunpack.c.l.b16 %v1738
    %v2753 = vunpack.c.h.b16 %v1738
    %v2754 = vunpack.c.l.b16 %v1739
    %v2755 = vunpack.c.h.b16 %v1739
    %v2756 = vunpack.c.l.b16 %v1740
    %v2757 = vunpack.c.h.b16 %v1740
    %v2758 = vunpack.c.l.b16 %v1741
    %v2759 = vunpack.c.h.b16 %v1741
    %v2760 = vunpack.c.l.b16 %v1742
    %v2761 = vunpack.c.h.b16 %v1742
    %v2762 = vunpack.c.l.b16 %v1743
    %v2763 = vunpack.c.h.b16 %v1743
    %v2764 = vunpack.c.l.b16 %v1744
    %v2765 = vunpack.c.h.b16 %v1744
    %v2766 = vunpack.c.l.b16 %v1745
    %v2767 = vunpack.c.h.b16 %v1745
    %v2768 = vunpack.c.l.b16 %v1746
    %v2769 = vunpack.c.h.b16 %v1746
    %v2770 = vunpack.c.l.b16 %v1747
    %v2771 = vunpack.c.h.b16 %v1747
    %v2772 = vunpack.c.l.b16 %v1748
    %v2773 = vunpack.c.h.b16 %v1748
    %v2774 = vunpack.c.l.b16 %v1749
    %v2775 = vunpack.c.h.b16 %v1749
    %v2776 = vunpack.c.l.b16 %v1750
    %v2777 = vunpack.c.h.b16 %v1750
    %v2778 = vunpack.c.l.b16 %v1751
    %v2779 = vunpack.c.h.b16 %v1751
    %v2780 = vunpack.c.l.b16 %v1752
    %v2781 = vunpack.c.h.b16 %v1752
    %v2782 = vunpack.c.l.b16 %v1753
    %v2783 = vunpack.c.h.b16 %v1753
    %v2784 = vunpack.c.l.b16 %v1754
    %v2785 = vunpack.c.h.b16 %v1754
    %v2786 = vunpack.c.l.b16 %v1755
    %v2787 = vunpack.c.h.b16 %v1755
    %v2788 = vunpack.c.l.b16 %v1756
    %v2789 = vunpack.c.h.b16 %v1756
    %v2790 = vunpack.c.l.b16 %v1757
    %v2791 = vunpack.c.h.b16 %v1757
    %v2792 = vunpack.c.l.b16 %v1758
    %v2793 = vunpack.c.h.b16 %v1758
    %v2794 = vunpack.c.l.b16 %v1759
    %v2795 = vunpack.c.h.b16 %v1759
    %v2796 = vunpack.c.l.b16 %v1760
    %v2797 = vunpack.c.h.b16 %v1760
    %v2798 = vunpack.c.l.b16 %v1761
    %v2799 = vunpack.c.h.b16 %v1761
    %v2800 = vunpack.c.l.b16 %v1762
    %v2801 = vunpack.c.h.b16 %v1762
    %v2802 = vunpack.c.l.b16 %v1763
    %v2803 = vunpack.c.h.b16 %v1763
    %v2804 = vunpack.c.l.b16 %v1764
    %v2805 = vunpack.c.h.b16 %v1764
    %v2806 = vunpack.c.l.b16 %v1765
    %v2807 = vunpack.c.h.b16 %v1765
    %v2808 = vunpack.c.l.b16 %v1766
    %v2809 = vunpack.c.h.b16 %v1766
    %v2810 = vunpack.c.l.b16 %v1767
    %v2811 = vunpack.c.h.b16 %v1767
    %v2812 = vunpack.c.l.b16 %v1768
    %v2813 = vunpack.c.h.b16 %v1768
    %v2814 = vunpack.c.l.b16 %v1769
    %v2815 = vunpack.c.h.b16 %v1769
    %v2816 = vunpack.c.l.b16 %v1770
    %v2817 = vunpack.c.h.b16 %v1770
    %v2818 = vunpack.c.l.b16 %v1771
    %v2819 = vunpack.c.h.b16 %v1771
    %v2820 = vunpack.c.l.b16 %v1772
    %v2821 = vunpack.c.h.b16 %v1772
    %v2822 = vunpack.c.l.b16 %v1773
    %v2823 = vunpack.c.h.b16 %v1773
    %v2824 = vunpack.c.l.b16 %v1774
    %v2825 = vunpack.c.h.b16 %v1774
    %v2826 = vunpack.c.l.b16 %v1775
    %v2827 = vunpack.c.h.b16 %v1775
    %v2828 = vunpack.c.l.b16 %v1776
    %v2829 = vunpack.c.h.b16 %v1776
    %v2830 = vpack.c.b16 %v2642, %v2638
    %v2831 = vpack.c.b16 %v2643, %v2639
    %v2832 = vpack.c.b16 %v2644, %v2640
    %v2833 = vpack.c.b16 %v2645, %v2641
    %v2834 = vpack.c.b16 %v2650, %v2646
    %v2835 = vpack.c.b16 %v2651, %v2647
    %v2836 = vpack.c.b16 %v2652, %v2648
    %v2837 = vpack.c.b16 %v2653, %v2649
    %v2838 = vpack.c.b16 %v2658, %v2654
    %v2839 = vpack.c.b16 %v2659, %v2655
    %v2840 = vpack.c.b16 %v2660, %v2656
    %v2841 = vpack.c.b16 %v2661, %v2657
    %v2842 = vpack.c.b16 %v2666, %v2662
    %v2843 = vpack.c.b16 %v2667, %v2663
    %v2844 = vpack.c.b16 %v2668, %v2664
    %v2845 = vpack.c.b16 %v2669, %v2665
    %v2846 = vpack.c.b16 %v2674, %v2670
    %v2847 = vpack.c.b16 %v2675, %v2671
    %v2848 = vpack.c.b16 %v2676, %v2672
    %v2849 = vpack.c.b16 %v2677, %v2673
    %v2850 = vpack.c.b16 %v2682, %v2678
    %v2851 = vpack.c.b16 %v2683, %v2679
    %v2852 = vpack.c.b16 %v2684, %v2680
    %v2853 = vpack.c.b16 %v2685, %v2681
    %v2854 = vpack.c.b16 %v2690, %v2686
    %v2855 = vpack.c.b16 %v2691, %v2687
    %v2856 = vpack.c.b16 %v2692, %v2688
    %v2857 = vpack.c.b16 %v2693, %v2689
    %v2858 = vpack.c.b16 %v2698, %v2694
    %v2859 = vpack.c.b16 %v2699, %v2695
    %v2860 = vpack.c.b16 %v2700, %v2696
    %v2861 = vpack.c.b16 %v2701, %v2697
    %v2862 = vpack.c.b16 %v2706, %v2702
    %v2863 = vpack.c.b16 %v2707, %v2703
    %v2864 = vpack.c.b16 %v2708, %v2704
    %v2865 = vpack.c.b16 %v2709, %v2705
    %v2866 = vpack.c.b16 %v2714, %v2710
    %v2867 = vpack.c.b16 %v2715, %v2711
    %v2868 = vpack.c.b16 %v2716, %v2712
    %v2869 = vpack.c.b16 %v2717, %v2713
    %v2870 = vpack.c.b16 %v2722, %v2718
    %v2871 = vpack.c.b16 %v2723, %v2719
    %v2872 = vpack.c.b16 %v2724, %v2720
    %v2873 = vpack.c.b16 %v2725, %v2721
    %v2874 = vpack.c.b16 %v2730, %v2726
    %v2875 = vpack.c.b16 %v2731, %v2727
    %v2876 = vpack.c.b16 %v2732, %v2728
    %v2877 = vpack.c.b16 %v2733, %v2729
    %v2878 = vpack.c.b16 %v2738, %v2734
    %v2879 = vpack.c.b16 %v2739, %v2735
    %v2880 = vpack.c.b16 %v2740, %v2736
    %v2881 = vpack.c.b16 %v2741, %v2737
    %v2882 = vpack.c.b16 %v2746, %v2742
    %v2883 = vpack.c.b16 %v2747, %v2743
    %v2884 = vpack.c.b16 %v2748, %v2744
    %v2885 = vpack.c.b16 %v2749, %v2745
    %v2886 = vpack.c.b16 %v2754, %v2750
    %v2887 = vpack.c.b16 %v2755, %v2751
    %v2888 = vpack.c.b16 %v2756, %v2752
    %v2889 = vpack.c.b16 %v2757, %v2753
    %v2890 = vpack.c.b16 %v2762, %v2758
    %v2891 = vpack.c.b16 %v2763, %v2759
    %v2892 = vpack.c.b16 %v2764, %v2760
    %v2893 = vpack.c.b16 %v2765, %v2761
    %v2894 = vpack.c.b16 %v2770, %v2766
    %v2895 = vpack.c.b16 %v2771, %v2767
    %v2896 = vpack.c.b16 %v2772, %v2768
    %v2897 = vpack.c.b16 %v2773, %v2769
    %v2898 = vpack.c.b16 %v2778, %v2774
    %v2899 = vpack.c.b16 %v2779, %v2775
    %v2900 = vpack.c.b16 %v2780, %v2776
    %v2901 = vpack.c.b16 %v2781, %v2777
    %v2902 = vpack.c.b16 %v2786, %v2782
    %v2903 = vpack.c.b16 %v2787, %v2783
    %v2904 = vpack.c.b16 %v2788, %v2784
    %v2905 = vpack.c.b16 %v2789, %v2785
    %v2906 = vpack.c.b16 %v2794, %v2790
    %v2907 = vpack.c.b16 %v2795, %v2791
    %v2908 = vpack.c.b16 %v2796, %v2792
    %v2909 = vpack.c.b16 %v2797, %v2793
    %v2910 = vpack.c.b16 %v2802, %v2798
    %v2911 = vpack.c.b16 %v2803, %v2799
    %v2912 = vpack.c.b16 %v2804, %v2800
    %v2913 = vpack.c.b16 %v2805, %v2801
    %v2914 = vpack.c.b16 %v2810, %v2806
    %v2915 = vpack.c.b16 %v2811, %v2807
    %v2916 = vpack.c.b16 %v2812, %v2808
    %v2917 = vpack.c.b16 %v2813, %v2809
    %v2918 = vpack.c.b16 %v2818, %v2814
    %v2919 = vpack.c.b16 %v2819, %v2815
    %v2920 = vpack.c.b16 %v2820, %v2816
    %v2921 = vpack.c.b16 %v2821, %v2817
    %v2922 = vpack.c.b16 %v2826, %v2822
    %v2923 = vpack.c.b16 %v2827, %v2823
    %v2924 = vpack.c.b16 %v2828, %v2824
    %v2925 = vpack.c.b16 %v2829, %v2825
    %3022 = vmatprep.subr.bf16.mxu0 %v2831
    %3023 = vmatpush1.bf16.msra.mxu0 %v2830
    %3024 = vmatprep.subr.bf16.mxu0 %v2835
    %3025 = vmatpush1.bf16.msra.mxu0 %v2834
    %3026 = vmatprep.subr.bf16.mxu0 %v2839
    %3027 = vmatpush1.bf16.msra.mxu0 %v2838
    %3028 = vmatprep.subr.bf16.mxu0 %v2843
    %3029 = vmatpush1.bf16.msra.mxu0 %v2842
    %3030 = vmatprep.subr.bf16.mxu0 %v2847
    %3031 = vmatpush1.bf16.msra.mxu0 %v2846
    %3032 = vmatprep.subr.bf16.mxu0 %v2851
    %3033 = vmatpush1.bf16.msra.mxu0 %v2850
    %3034 = vmatprep.subr.bf16.mxu0 %v2855
    %3035 = vmatpush1.bf16.msra.mxu0 %v2854
    %3036 = vmatprep.subr.bf16.mxu0 %v2859
    %3037 = vmatpush1.bf16.msra.mxu0 %v2858
    %3038 = vmatprep.subr.bf16.mxu0 %v2863
    %3039 = vmatpush1.bf16.msra.mxu0 %v2862
    %3040 = vmatprep.subr.bf16.mxu0 %v2867
    %3041 = vmatpush1.bf16.msra.mxu0 %v2866
    %3042 = vmatprep.subr.bf16.mxu0 %v2871
    %3043 = vmatpush1.bf16.msra.mxu0 %v2870
    %3044 = vmatprep.subr.bf16.mxu0 %v2875
    %3045 = vmatpush1.bf16.msra.mxu0 %v2874
    %3046 = vmatprep.subr.bf16.mxu0 %v2879
    %3047 = vmatpush1.bf16.msra.mxu0 %v2878
    %3048 = vmatprep.subr.bf16.mxu0 %v2883
    %3049 = vmatpush1.bf16.msra.mxu0 %v2882
    %3050 = vmatprep.subr.bf16.mxu0 %v2887
    %3051 = vmatpush1.bf16.msra.mxu0 %v2886
    %3052 = vmatprep.subr.bf16.mxu0 %v2891
    %3053 = vmatpush1.bf16.msra.mxu0 %v2890
    %3054 = vmatprep.mubr.bf16.mxu0 %v1679
    %3055 = vmatmul.mubr.bf16.gmra.mrb[0].mxu0 %v1678
    %v3056 = vpop.f32.mrb[0].mxu0
    %v3057 = vadd.f32 %v2454, %v3056
    %v3058 = vpop.f32.mrb[0].mxu0
    %v3059 = vadd.f32 %v2456, %v3058
    %v3060 = vpop.f32.mrb[0].mxu0
    %v3061 = vpop.f32.mrb[0].mxu0
    %3062 = vdwg.mxu0
    %3063 = vmatprep.subr.bf16.mxu0 %v2895
    %3064 = vmatpush1.bf16.msra.mxu0 %v2894
    %3065 = vmatprep.subr.bf16.mxu0 %v2899
    %3066 = vmatpush1.bf16.msra.mxu0 %v2898
    %3067 = vmatprep.subr.bf16.mxu0 %v2903
    %3068 = vmatpush1.bf16.msra.mxu0 %v2902
    %3069 = vmatprep.subr.bf16.mxu0 %v2907
    %3070 = vmatpush1.bf16.msra.mxu0 %v2906
    %3071 = vmatprep.subr.bf16.mxu0 %v2911
    %3072 = vmatpush1.bf16.msra.mxu0 %v2910
    %3073 = vmatprep.subr.bf16.mxu0 %v2915
    %3074 = vmatpush1.bf16.msra.mxu0 %v2914
    %3075 = vmatprep.subr.bf16.mxu0 %v2919
    %3076 = vmatpush1.bf16.msra.mxu0 %v2918
    %3077 = vmatprep.subr.bf16.mxu0 %v2923
    %3078 = vmatpush1.bf16.msra.mxu0 %v2922
    %3079 = vmatprep.subr.bf16.mxu0 0
    %3080 = vmatpush1.bf16.msra.mxu0 0
    %3081 = vmatprep.subr.bf16.mxu0 0
    %3082 = vmatpush1.bf16.msra.mxu0 0
    %3083 = vmatprep.subr.bf16.mxu0 0
    %3084 = vmatpush1.bf16.msra.mxu0 0
    %3085 = vmatprep.subr.bf16.mxu0 0
    %3086 = vmatpush1.bf16.msra.mxu0 0
    %3087 = vmatprep.subr.bf16.mxu0 0
    %3088 = vmatpush1.bf16.msra.mxu0 0
    %3089 = vmatprep.subr.bf16.mxu0 0
    %3090 = vmatpush1.bf16.msra.mxu0 0
    %3091 = vmatprep.subr.bf16.mxu0 0
    %3092 = vmatpush1.bf16.msra.mxu0 0
    %3093 = vmatprep.subr.bf16.mxu0 0
    %3094 = vmatpush1.bf16.msra.mxu0 0
    %3095 = vmatprep.mubr.bf16.mxu0 0
    %3096 = vmatmul.mubr.bf16.gmra.mrb[0].mxu0 %v1680
    %v3097 = vpop.f32.mrb[0].mxu0
    %v3098 = vadd.f32 %v3057, %v3097
    %v3099 = vpop.f32.mrb[0].mxu0
    %v3100 = vadd.f32 %v3059, %v3099
    %v3101 = vpop.f32.mrb[0].mxu0
    %v3102 = vpop.f32.mrb[0].mxu0
    %3103 = vdwg.mxu0
    %3104 = vmatprep.subr.bf16.mxu0 %v2833
    %3105 = vmatpush1.bf16.msra.mxu0 %v2832
    %3106 = vmatprep.subr.bf16.mxu0 %v2837
    %3107 = vmatpush1.bf16.msra.mxu0 %v2836
    %3108 = vmatprep.subr.bf16.mxu0 %v2841
    %3109 = vmatpush1.bf16.msra.mxu0 %v2840
    %3110 = vmatprep.subr.bf16.mxu0 %v2845
    %3111 = vmatpush1.bf16.msra.mxu0 %v2844
    %3112 = vmatprep.subr.bf16.mxu0 %v2849
    %3113 = vmatpush1.bf16.msra.mxu0 %v2848
    %3114 = vmatprep.subr.bf16.mxu0 %v2853
    %3115 = vmatpush1.bf16.msra.mxu0 %v2852
    %3116 = vmatprep.subr.bf16.mxu0 %v2857
    %3117 = vmatpush1.bf16.msra.mxu0 %v2856
    %3118 = vmatprep.subr.bf16.mxu0 %v2861
    %3119 = vmatpush1.bf16.msra.mxu0 %v2860
    %3120 = vmatprep.subr.bf16.mxu0 %v2865
    %3121 = vmatpush1.bf16.msra.mxu0 %v2864
    %3122 = vmatprep.subr.bf16.mxu0 %v2869
    %3123 = vmatpush1.bf16.msra.mxu0 %v2868
    %3124 = vmatprep.subr.bf16.mxu0 %v2873
    %3125 = vmatpush1.bf16.msra.mxu0 %v2872
    %3126 = vmatprep.subr.bf16.mxu0 %v2877
    %3127 = vmatpush1.bf16.msra.mxu0 %v2876
    %3128 = vmatprep.subr.bf16.mxu0 %v2881
    %3129 = vmatpush1.bf16.msra.mxu0 %v2880
    %3130 = vmatprep.subr.bf16.mxu0 %v2885
    %3131 = vmatpush1.bf16.msra.mxu0 %v2884
    %3132 = vmatprep.subr.bf16.mxu0 %v2889
    %3133 = vmatpush1.bf16.msra.mxu0 %v2888
    %3134 = vmatprep.subr.bf16.mxu0 %v2893
    %3135 = vmatpush1.bf16.msra.mxu0 %v2892
    %3136 = vmatprep.mubr.bf16.mxu0 %v1679
    %3137 = vmatmul.mubr.bf16.gmra.mrb[0].mxu0 %v1678
    %v3138 = vpop.f32.mrb[0].mxu0
    %v3139 = vadd.f32 %v2536, %v3138
    %v3140 = vpop.f32.mrb[0].mxu0
    %v3141 = vadd.f32 %v2538, %v3140
    %v3142 = vpop.f32.mrb[0].mxu0
    %v3143 = vpop.f32.mrb[0].mxu0
    %3144 = vdwg.mxu0
    %3145 = vmatprep.subr.bf16.mxu0 %v2897
    %3146 = vmatpush1.bf16.msra.mxu0 %v2896
    %3147 = vmatprep.subr.bf16.mxu0 %v2901
    %3148 = vmatpush1.bf16.msra.mxu0 %v2900
    %3149 = vmatprep.subr.bf16.mxu0 %v2905
    %3150 = vmatpush1.bf16.msra.mxu0 %v2904
    %3151 = vmatprep.subr.bf16.mxu0 %v2909
    %3152 = vmatpush1.bf16.msra.mxu0 %v2908
    %3153 = vmatprep.subr.bf16.mxu0 %v2913
    %3154 = vmatpush1.bf16.msra.mxu0 %v2912
    %3155 = vmatprep.subr.bf16.mxu0 %v2917
    %3156 = vmatpush1.bf16.msra.mxu0 %v2916
    %3157 = vmatprep.subr.bf16.mxu0 %v2921
    %3158 = vmatpush1.bf16.msra.mxu0 %v2920
    %3159 = vmatprep.subr.bf16.mxu0 %v2925
    %3160 = vmatpush1.bf16.msra.mxu0 %v2924
    %3161 = vmatprep.subr.bf16.mxu0 0
    %3162 = vmatpush1.bf16.msra.mxu0 0
    %3163 = vmatprep.subr.bf16.mxu0 0
    %3164 = vmatpush1.bf16.msra.mxu0 0
    %3165 = vmatprep.subr.bf16.mxu0 0
    %3166 = vmatpush1.bf16.msra.mxu0 0
    %3167 = vmatprep.subr.bf16.mxu0 0
    %3168 = vmatpush1.bf16.msra.mxu0 0
    %3169 = vmatprep.subr.bf16.mxu0 0
    %3170 = vmatpush1.bf16.msra.mxu0 0
    %3171 = vmatprep.subr.bf16.mxu0 0
    %3172 = vmatpush1.bf16.msra.mxu0 0
    %3173 = vmatprep.subr.bf16.mxu0 0
    %3174 = vmatpush1.bf16.msra.mxu0 0
    %3175 = vmatprep.subr.bf16.mxu0 0
    %3176 = vmatpush1.bf16.msra.mxu0 0
    %3177 = vmatprep.mubr.bf16.mxu0 0
    %3178 = vmatmul.mubr.bf16.gmra.mrb[0].mxu0 %v1680
    %v3179 = vpop.f32.mrb[0].mxu0
    %v3180 = vadd.f32 %v3139, %v3179
    %v3181 = vpop.f32.mrb[0].mxu0
    %v3182 = vadd.f32 %v3141, %v3181
    %v3183 = vpop.f32.mrb[0].mxu0
    %v3184 = vpop.f32.mrb[0].mxu0
    %3185 = vdwg.mxu0
    %s3186 = scalar_lea.vmem [#allocation7], 1536
    %v3187 = vld [vmem:[%s3186] sm:$0xff]
    %v3188 = vld [vmem:[%s3186 + $0x8] sm:$0xff]
    %v3189 = vld [vmem:[%s3186 + $0x10] sm:$0xff]
    %v3190 = vld [vmem:[%s3186 + $0x18] sm:$0xff]
    %v3191 = vld [vmem:[%s3186 + $0x20] sm:$0xff]
    %v3192 = vld [vmem:[%s3186 + $0x28] sm:$0xff]
    %v3193 = vld [vmem:[%s3186 + $0x30] sm:$0xff]
    %v3194 = vld [vmem:[%s3186 + $0x38] sm:$0xff]
    %v3195 = vld [vmem:[%s3186 + $0x40] sm:$0xff]
    %v3196 = vld [vmem:[%s3186 + $0x48] sm:$0xff]
    %v3197 = vld [vmem:[%s3186 + $0x50] sm:$0xff]
    %v3198 = vld [vmem:[%s3186 + $0x58] sm:$0xff]
    %v3199 = vld [vmem:[%s3186 + $0x60] sm:$0xff]
    %v3200 = vld [vmem:[%s3186 + $0x68] sm:$0xff]
    %v3201 = vld [vmem:[%s3186 + $0x70] sm:$0xff]
    %v3202 = vld [vmem:[%s3186 + $0x78] sm:$0xff]
    %v3203 = vld [vmem:[%s3186 + $0x80] sm:$0xff]
    %v3204 = vld [vmem:[%s3186 + $0x88] sm:$0xff]
    %v3205 = vld [vmem:[%s3186 + $0x90] sm:$0xff]
    %v3206 = vld [vmem:[%s3186 + $0x98] sm:$0xff]
    %v3207 = vld [vmem:[%s3186 + $0xa0] sm:$0xff]
    %v3208 = vld [vmem:[%s3186 + $0xa8] sm:$0xff]
    %v3209 = vld [vmem:[%s3186 + $0xb0] sm:$0xff]
    %v3210 = vld [vmem:[%s3186 + $0xb8] sm:$0xff]
    %v3211 = vld [vmem:[%s3186 + $0xc0] sm:$0xff]
    %v3212 = vld [vmem:[%s3186 + $0xc8] sm:$0xff]
    %v3213 = vld [vmem:[%s3186 + $0xd0] sm:$0xff]
    %v3214 = vld [vmem:[%s3186 + $0xd8] sm:$0xff]
    %v3215 = vld [vmem:[%s3186 + $0xe0] sm:$0xff]
    %v3216 = vld [vmem:[%s3186 + $0xe8] sm:$0xff]
    %v3217 = vld [vmem:[%s3186 + $0xf0] sm:$0xff]
    %v3218 = vld [vmem:[%s3186 + $0xf8] sm:$0xff]
    %v3219 = vld [vmem:[%s3186 + $0x100] sm:$0xff]
    %v3220 = vld [vmem:[%s3186 + $0x108] sm:$0xff]
    %v3221 = vld [vmem:[%s3186 + $0x110] sm:$0xff]
    %v3222 = vld [vmem:[%s3186 + $0x118] sm:$0xff]
    %v3223 = vld [vmem:[%s3186 + $0x120] sm:$0xff]
    %v3224 = vld [vmem:[%s3186 + $0x128] sm:$0xff]
    %v3225 = vld [vmem:[%s3186 + $0x130] sm:$0xff]
    %v3226 = vld [vmem:[%s3186 + $0x138] sm:$0xff]
    %v3227 = vld [vmem:[%s3186 + $0x140] sm:$0xff]
    %v3228 = vld [vmem:[%s3186 + $0x148] sm:$0xff]
    %v3229 = vld [vmem:[%s3186 + $0x150] sm:$0xff]
    %v3230 = vld [vmem:[%s3186 + $0x158] sm:$0xff]
    %v3231 = vld [vmem:[%s3186 + $0x160] sm:$0xff]
    %v3232 = vld [vmem:[%s3186 + $0x168] sm:$0xff]
    %v3233 = vld [vmem:[%s3186 + $0x170] sm:$0xff]
    %v3234 = vld [vmem:[%s3186 + $0x178] sm:$0xff]
    %v3235 = vld [vmem:[%s3186 + $0x180] sm:$0xff]
    %v3236 = vld [vmem:[%s3186 + $0x188] sm:$0xff]
    %v3237 = vld [vmem:[%s3186 + $0x190] sm:$0xff]
    %v3238 = vld [vmem:[%s3186 + $0x198] sm:$0xff]
    %v3239 = vld [vmem:[%s3186 + $0x1a0] sm:$0xff]
    %v3240 = vld [vmem:[%s3186 + $0x1a8] sm:$0xff]
    %v3241 = vld [vmem:[%s3186 + $0x1b0] sm:$0xff]
    %v3242 = vld [vmem:[%s3186 + $0x1b8] sm:$0xff]
    %v3243 = vld [vmem:[%s3186 + $0x1c0] sm:$0xff]
    %v3244 = vld [vmem:[%s3186 + $0x1c8] sm:$0xff]
    %v3245 = vld [vmem:[%s3186 + $0x1d0] sm:$0xff]
    %v3246 = vld [vmem:[%s3186 + $0x1d8] sm:$0xff]
    %v3247 = vld [vmem:[%s3186 + $0x1e0] sm:$0xff]
    %v3248 = vld [vmem:[%s3186 + $0x1e8] sm:$0xff]
    %v3249 = vld [vmem:[%s3186 + $0x1f0] sm:$0xff]
    %v3250 = vld [vmem:[%s3186 + $0x1f8] sm:$0xff]
    %v3251 = vld [vmem:[%s3186 + $0x200] sm:$0xff]
    %v3252 = vld [vmem:[%s3186 + $0x208] sm:$0xff]
    %v3253 = vld [vmem:[%s3186 + $0x210] sm:$0xff]
    %v3254 = vld [vmem:[%s3186 + $0x218] sm:$0xff]
    %v3255 = vld [vmem:[%s3186 + $0x220] sm:$0xff]
    %v3256 = vld [vmem:[%s3186 + $0x228] sm:$0xff]
    %v3257 = vld [vmem:[%s3186 + $0x230] sm:$0xff]
    %v3258 = vld [vmem:[%s3186 + $0x238] sm:$0xff]
    %v3259 = vld [vmem:[%s3186 + $0x240] sm:$0xff]
    %v3260 = vld [vmem:[%s3186 + $0x248] sm:$0xff]
    %v3261 = vld [vmem:[%s3186 + $0x250] sm:$0xff]
    %v3262 = vld [vmem:[%s3186 + $0x258] sm:$0xff]
    %v3263 = vld [vmem:[%s3186 + $0x260] sm:$0xff]
    %v3264 = vld [vmem:[%s3186 + $0x268] sm:$0xff]
    %v3265 = vld [vmem:[%s3186 + $0x270] sm:$0xff]
    %v3266 = vld [vmem:[%s3186 + $0x278] sm:$0xff]
    %v3267 = vld [vmem:[%s3186 + $0x280] sm:$0xff]
    %v3268 = vld [vmem:[%s3186 + $0x288] sm:$0xff]
    %v3269 = vld [vmem:[%s3186 + $0x290] sm:$0xff]
    %v3270 = vld [vmem:[%s3186 + $0x298] sm:$0xff]
    %v3271 = vld [vmem:[%s3186 + $0x2a0] sm:$0xff]
    %v3272 = vld [vmem:[%s3186 + $0x2a8] sm:$0xff]
    %v3273 = vld [vmem:[%s3186 + $0x2b0] sm:$0xff]
    %v3274 = vld [vmem:[%s3186 + $0x2b8] sm:$0xff]
    %v3275 = vld [vmem:[%s3186 + $0x2c0] sm:$0xff]
    %v3276 = vld [vmem:[%s3186 + $0x2c8] sm:$0xff]
    %v3277 = vld [vmem:[%s3186 + $0x2d0] sm:$0xff]
    %v3278 = vld [vmem:[%s3186 + $0x2d8] sm:$0xff]
    %v3279 = vld [vmem:[%s3186 + $0x2e0] sm:$0xff]
    %v3280 = vld [vmem:[%s3186 + $0x2e8] sm:$0xff]
    %v3281 = vld [vmem:[%s3186 + $0x2f0] sm:$0xff]
    %v3282 = vld [vmem:[%s3186 + $0x2f8] sm:$0xff]
    %v3286 = vrot.slane %v1678, 1
    %v3287 = vrot.slane %v1679, 1
    %v3288 = vrot.slane %v1680, 1
    %v3388 = vunpack.c.l.b16 %v3187
    %v3389 = vunpack.c.h.b16 %v3187
    %v3390 = vunpack.c.l.b16 %v3188
    %v3391 = vunpack.c.h.b16 %v3188
    %v3392 = vunpack.c.l.b16 %v3189
    %v3393 = vunpack.c.h.b16 %v3189
    %v3394 = vunpack.c.l.b16 %v3190
    %v3395 = vunpack.c.h.b16 %v3190
    %v3396 = vunpack.c.l.b16 %v3191
    %v3397 = vunpack.c.h.b16 %v3191
    %v3398 = vunpack.c.l.b16 %v3192
    %v3399 = vunpack.c.h.b16 %v3192
    %v3400 = vunpack.c.l.b16 %v3193
    %v3401 = vunpack.c.h.b16 %v3193
    %v3402 = vunpack.c.l.b16 %v3194
    %v3403 = vunpack.c.h.b16 %v3194
    %v3404 = vunpack.c.l.b16 %v3195
    %v3405 = vunpack.c.h.b16 %v3195
    %v3406 = vunpack.c.l.b16 %v3196
    %v3407 = vunpack.c.h.b16 %v3196
    %v3408 = vunpack.c.l.b16 %v3197
    %v3409 = vunpack.c.h.b16 %v3197
    %v3410 = vunpack.c.l.b16 %v3198
    %v3411 = vunpack.c.h.b16 %v3198
    %v3412 = vunpack.c.l.b16 %v3199
    %v3413 = vunpack.c.h.b16 %v3199
    %v3414 = vunpack.c.l.b16 %v3200
    %v3415 = vunpack.c.h.b16 %v3200
    %v3416 = vunpack.c.l.b16 %v3201
    %v3417 = vunpack.c.h.b16 %v3201
    %v3418 = vunpack.c.l.b16 %v3202
    %v3419 = vunpack.c.h.b16 %v3202
    %v3420 = vunpack.c.l.b16 %v3203
    %v3421 = vunpack.c.h.b16 %v3203
    %v3422 = vunpack.c.l.b16 %v3204
    %v3423 = vunpack.c.h.b16 %v3204
    %v3424 = vunpack.c.l.b16 %v3205
    %v3425 = vunpack.c.h.b16 %v3205
    %v3426 = vunpack.c.l.b16 %v3206
    %v3427 = vunpack.c.h.b16 %v3206
    %v3428 = vunpack.c.l.b16 %v3207
    %v3429 = vunpack.c.h.b16 %v3207
    %v3430 = vunpack.c.l.b16 %v3208
    %v3431 = vunpack.c.h.b16 %v3208
    %v3432 = vunpack.c.l.b16 %v3209
    %v3433 = vunpack.c.h.b16 %v3209
    %v3434 = vunpack.c.l.b16 %v3210
    %v3435 = vunpack.c.h.b16 %v3210
    %v3436 = vunpack.c.l.b16 %v3211
    %v3437 = vunpack.c.h.b16 %v3211
    %v3438 = vunpack.c.l.b16 %v3212
    %v3439 = vunpack.c.h.b16 %v3212
    %v3440 = vunpack.c.l.b16 %v3213
    %v3441 = vunpack.c.h.b16 %v3213
    %v3442 = vunpack.c.l.b16 %v3214
    %v3443 = vunpack.c.h.b16 %v3214
    %v3444 = vunpack.c.l.b16 %v3215
    %v3445 = vunpack.c.h.b16 %v3215
    %v3446 = vunpack.c.l.b16 %v3216
    %v3447 = vunpack.c.h.b16 %v3216
    %v3448 = vunpack.c.l.b16 %v3217
    %v3449 = vunpack.c.h.b16 %v3217
    %v3450 = vunpack.c.l.b16 %v3218
    %v3451 = vunpack.c.h.b16 %v3218
    %v3452 = vunpack.c.l.b16 %v3219
    %v3453 = vunpack.c.h.b16 %v3219
    %v3454 = vunpack.c.l.b16 %v3220
    %v3455 = vunpack.c.h.b16 %v3220
    %v3456 = vunpack.c.l.b16 %v3221
    %v3457 = vunpack.c.h.b16 %v3221
    %v3458 = vunpack.c.l.b16 %v3222
    %v3459 = vunpack.c.h.b16 %v3222
    %v3460 = vunpack.c.l.b16 %v3223
    %v3461 = vunpack.c.h.b16 %v3223
    %v3462 = vunpack.c.l.b16 %v3224
    %v3463 = vunpack.c.h.b16 %v3224
    %v3464 = vunpack.c.l.b16 %v3225
    %v3465 = vunpack.c.h.b16 %v3225
    %v3466 = vunpack.c.l.b16 %v3226
    %v3467 = vunpack.c.h.b16 %v3226
    %v3468 = vunpack.c.l.b16 %v3227
    %v3469 = vunpack.c.h.b16 %v3227
    %v3470 = vunpack.c.l.b16 %v3228
    %v3471 = vunpack.c.h.b16 %v3228
    %v3472 = vunpack.c.l.b16 %v3229
    %v3473 = vunpack.c.h.b16 %v3229
    %v3474 = vunpack.c.l.b16 %v3230
    %v3475 = vunpack.c.h.b16 %v3230
    %v3476 = vunpack.c.l.b16 %v3231
    %v3477 = vunpack.c.h.b16 %v3231
    %v3478 = vunpack.c.l.b16 %v3232
    %v3479 = vunpack.c.h.b16 %v3232
    %v3480 = vunpack.c.l.b16 %v3233
    %v3481 = vunpack.c.h.b16 %v3233
    %v3482 = vunpack.c.l.b16 %v3234
    %v3483 = vunpack.c.h.b16 %v3234
    %v3484 = vunpack.c.l.b16 %v3235
    %v3485 = vunpack.c.h.b16 %v3235
    %v3486 = vunpack.c.l.b16 %v3236
    %v3487 = vunpack.c.h.b16 %v3236
    %v3488 = vunpack.c.l.b16 %v3237
    %v3489 = vunpack.c.h.b16 %v3237
    %v3490 = vunpack.c.l.b16 %v3238
    %v3491 = vunpack.c.h.b16 %v3238
    %v3492 = vunpack.c.l.b16 %v3239
    %v3493 = vunpack.c.h.b16 %v3239
    %v3494 = vunpack.c.l.b16 %v3240
    %v3495 = vunpack.c.h.b16 %v3240
    %v3496 = vunpack.c.l.b16 %v3241
    %v3497 = vunpack.c.h.b16 %v3241
    %v3498 = vunpack.c.l.b16 %v3242
    %v3499 = vunpack.c.h.b16 %v3242
    %v3500 = vunpack.c.l.b16 %v3243
    %v3501 = vunpack.c.h.b16 %v3243
    %v3502 = vunpack.c.l.b16 %v3244
    %v3503 = vunpack.c.h.b16 %v3244
    %v3504 = vunpack.c.l.b16 %v3245
    %v3505 = vunpack.c.h.b16 %v3245
    %v3506 = vunpack.c.l.b16 %v3246
    %v3507 = vunpack.c.h.b16 %v3246
    %v3508 = vunpack.c.l.b16 %v3247
    %v3509 = vunpack.c.h.b16 %v3247
    %v3510 = vunpack.c.l.b16 %v3248
    %v3511 = vunpack.c.h.b16 %v3248
    %v3512 = vunpack.c.l.b16 %v3249
    %v3513 = vunpack.c.h.b16 %v3249
    %v3514 = vunpack.c.l.b16 %v3250
    %v3515 = vunpack.c.h.b16 %v3250
    %v3516 = vunpack.c.l.b16 %v3251
    %v3517 = vunpack.c.h.b16 %v3251
    %v3518 = vunpack.c.l.b16 %v3252
    %v3519 = vunpack.c.h.b16 %v3252
    %v3520 = vunpack.c.l.b16 %v3253
    %v3521 = vunpack.c.h.b16 %v3253
    %v3522 = vunpack.c.l.b16 %v3254
    %v3523 = vunpack.c.h.b16 %v3254
    %v3524 = vunpack.c.l.b16 %v3255
    %v3525 = vunpack.c.h.b16 %v3255
    %v3526 = vunpack.c.l.b16 %v3256
    %v3527 = vunpack.c.h.b16 %v3256
    %v3528 = vunpack.c.l.b16 %v3257
    %v3529 = vunpack.c.h.b16 %v3257
    %v3530 = vunpack.c.l.b16 %v3258
    %v3531 = vunpack.c.h.b16 %v3258
    %v3532 = vunpack.c.l.b16 %v3259
    %v3533 = vunpack.c.h.b16 %v3259
    %v3534 = vunpack.c.l.b16 %v3260
    %v3535 = vunpack.c.h.b16 %v3260
    %v3536 = vunpack.c.l.b16 %v3261
    %v3537 = vunpack.c.h.b16 %v3261
    %v3538 = vunpack.c.l.b16 %v3262
    %v3539 = vunpack.c.h.b16 %v3262
    %v3540 = vunpack.c.l.b16 %v3263
    %v3541 = vunpack.c.h.b16 %v3263
    %v3542 = vunpack.c.l.b16 %v3264
    %v3543 = vunpack.c.h.b16 %v3264
    %v3544 = vunpack.c.l.b16 %v3265
    %v3545 = vunpack.c.h.b16 %v3265
    %v3546 = vunpack.c.l.b16 %v3266
    %v3547 = vunpack.c.h.b16 %v3266
    %v3548 = vunpack.c.l.b16 %v3267
    %v3549 = vunpack.c.h.b16 %v3267
    %v3550 = vunpack.c.l.b16 %v3268
    %v3551 = vunpack.c.h.b16 %v3268
    %v3552 = vunpack.c.l.b16 %v3269
    %v3553 = vunpack.c.h.b16 %v3269
    %v3554 = vunpack.c.l.b16 %v3270
    %v3555 = vunpack.c.h.b16 %v3270
    %v3556 = vunpack.c.l.b16 %v3271
    %v3557 = vunpack.c.h.b16 %v3271
    %v3558 = vunpack.c.l.b16 %v3272
    %v3559 = vunpack.c.h.b16 %v3272
    %v3560 = vunpack.c.l.b16 %v3273
    %v3561 = vunpack.c.h.b16 %v3273
    %v3562 = vunpack.c.l.b16 %v3274
    %v3563 = vunpack.c.h.b16 %v3274
    %v3564 = vunpack.c.l.b16 %v3275
    %v3565 = vunpack.c.h.b16 %v3275
    %v3566 = vunpack.c.l.b16 %v3276
    %v3567 = vunpack.c.h.b16 %v3276
    %v3568 = vunpack.c.l.b16 %v3277
    %v3569 = vunpack.c.h.b16 %v3277
    %v3570 = vunpack.c.l.b16 %v3278
    %v3571 = vunpack.c.h.b16 %v3278
    %v3572 = vunpack.c.l.b16 %v3279
    %v3573 = vunpack.c.h.b16 %v3279
    %v3574 = vunpack.c.l.b16 %v3280
    %v3575 = vunpack.c.h.b16 %v3280
    %v3576 = vunpack.c.l.b16 %v3281
    %v3577 = vunpack.c.h.b16 %v3281
    %v3578 = vunpack.c.l.b16 %v3282
    %v3579 = vunpack.c.h.b16 %v3282
    %v3580 = vpack.c.b16 %v3392, %v3388
    %v3581 = vpack.c.b16 %v3393, %v3389
    %v3582 = vpack.c.b16 %v3394, %v3390
    %v3583 = vpack.c.b16 %v3395, %v3391
    %v3584 = vpack.c.b16 %v3400, %v3396
    %v3585 = vpack.c.b16 %v3401, %v3397
    %v3586 = vpack.c.b16 %v3402, %v3398
    %v3587 = vpack.c.b16 %v3403, %v3399
    %v3588 = vpack.c.b16 %v3408, %v3404
    %v3589 = vpack.c.b16 %v3409, %v3405
    %v3590 = vpack.c.b16 %v3410, %v3406
    %v3591 = vpack.c.b16 %v3411, %v3407
    %v3592 = vpack.c.b16 %v3416, %v3412
    %v3593 = vpack.c.b16 %v3417, %v3413
    %v3594 = vpack.c.b16 %v3418, %v3414
    %v3595 = vpack.c.b16 %v3419, %v3415
    %v3596 = vpack.c.b16 %v3424, %v3420
    %v3597 = vpack.c.b16 %v3425, %v3421
    %v3598 = vpack.c.b16 %v3426, %v3422
    %v3599 = vpack.c.b16 %v3427, %v3423
    %v3600 = vpack.c.b16 %v3432, %v3428
    %v3601 = vpack.c.b16 %v3433, %v3429
    %v3602 = vpack.c.b16 %v3434, %v3430
    %v3603 = vpack.c.b16 %v3435, %v3431
    %v3604 = vpack.c.b16 %v3440, %v3436
    %v3605 = vpack.c.b16 %v3441, %v3437
    %v3606 = vpack.c.b16 %v3442, %v3438
    %v3607 = vpack.c.b16 %v3443, %v3439
    %v3608 = vpack.c.b16 %v3448, %v3444
    %v3609 = vpack.c.b16 %v3449, %v3445
    %v3610 = vpack.c.b16 %v3450, %v3446
    %v3611 = vpack.c.b16 %v3451, %v3447
    %v3612 = vpack.c.b16 %v3456, %v3452
    %v3613 = vpack.c.b16 %v3457, %v3453
    %v3614 = vpack.c.b16 %v3458, %v3454
    %v3615 = vpack.c.b16 %v3459, %v3455
    %v3616 = vpack.c.b16 %v3464, %v3460
    %v3617 = vpack.c.b16 %v3465, %v3461
    %v3618 = vpack.c.b16 %v3466, %v3462
    %v3619 = vpack.c.b16 %v3467, %v3463
    %v3620 = vpack.c.b16 %v3472, %v3468
    %v3621 = vpack.c.b16 %v3473, %v3469
    %v3622 = vpack.c.b16 %v3474, %v3470
    %v3623 = vpack.c.b16 %v3475, %v3471
    %v3624 = vpack.c.b16 %v3480, %v3476
    %v3625 = vpack.c.b16 %v3481, %v3477
    %v3626 = vpack.c.b16 %v3482, %v3478
    %v3627 = vpack.c.b16 %v3483, %v3479
    %v3628 = vpack.c.b16 %v3488, %v3484
    %v3629 = vpack.c.b16 %v3489, %v3485
    %v3630 = vpack.c.b16 %v3490, %v3486
    %v3631 = vpack.c.b16 %v3491, %v3487
    %v3632 = vpack.c.b16 %v3496, %v3492
    %v3633 = vpack.c.b16 %v3497, %v3493
    %v3634 = vpack.c.b16 %v3498, %v3494
    %v3635 = vpack.c.b16 %v3499, %v3495
    %v3636 = vpack.c.b16 %v3504, %v3500
    %v3637 = vpack.c.b16 %v3505, %v3501
    %v3638 = vpack.c.b16 %v3506, %v3502
    %v3639 = vpack.c.b16 %v3507, %v3503
    %v3640 = vpack.c.b16 %v3512, %v3508
    %v3641 = vpack.c.b16 %v3513, %v3509
    %v3642 = vpack.c.b16 %v3514, %v3510
    %v3643 = vpack.c.b16 %v3515, %v3511
    %v3644 = vpack.c.b16 %v3520, %v3516
    %v3645 = vpack.c.b16 %v3521, %v3517
    %v3646 = vpack.c.b16 %v3522, %v3518
    %v3647 = vpack.c.b16 %v3523, %v3519
    %v3648 = vpack.c.b16 %v3528, %v3524
    %v3649 = vpack.c.b16 %v3529, %v3525
    %v3650 = vpack.c.b16 %v3530, %v3526
    %v3651 = vpack.c.b16 %v3531, %v3527
    %v3652 = vpack.c.b16 %v3536, %v3532
    %v3653 = vpack.c.b16 %v3537, %v3533
    %v3654 = vpack.c.b16 %v3538, %v3534
    %v3655 = vpack.c.b16 %v3539, %v3535
    %v3656 = vpack.c.b16 %v3544, %v3540
    %v3657 = vpack.c.b16 %v3545, %v3541
    %v3658 = vpack.c.b16 %v3546, %v3542
    %v3659 = vpack.c.b16 %v3547, %v3543
    %v3660 = vpack.c.b16 %v3552, %v3548
    %v3661 = vpack.c.b16 %v3553, %v3549
    %v3662 = vpack.c.b16 %v3554, %v3550
    %v3663 = vpack.c.b16 %v3555, %v3551
    %v3664 = vpack.c.b16 %v3560, %v3556
    %v3665 = vpack.c.b16 %v3561, %v3557
    %v3666 = vpack.c.b16 %v3562, %v3558
    %v3667 = vpack.c.b16 %v3563, %v3559
    %v3668 = vpack.c.b16 %v3568, %v3564
    %v3669 = vpack.c.b16 %v3569, %v3565
    %v3670 = vpack.c.b16 %v3570, %v3566
    %v3671 = vpack.c.b16 %v3571, %v3567
    %v3672 = vpack.c.b16 %v3576, %v3572
    %v3673 = vpack.c.b16 %v3577, %v3573
    %v3674 = vpack.c.b16 %v3578, %v3574
    %v3675 = vpack.c.b16 %v3579, %v3575
    %3772 = vmatprep.subr.bf16.mxu0 %v3581
    %3773 = vmatpush1.bf16.msra.mxu0 %v3580
    %3774 = vmatprep.subr.bf16.mxu0 %v3585
    %3775 = vmatpush1.bf16.msra.mxu0 %v3584
    %3776 = vmatprep.subr.bf16.mxu0 %v3589
    %3777 = vmatpush1.bf16.msra.mxu0 %v3588
    %3778 = vmatprep.subr.bf16.mxu0 %v3593
    %3779 = vmatpush1.bf16.msra.mxu0 %v3592
    %3780 = vmatprep.subr.bf16.mxu0 %v3597
    %3781 = vmatpush1.bf16.msra.mxu0 %v3596
    %3782 = vmatprep.subr.bf16.mxu0 %v3601
    %3783 = vmatpush1.bf16.msra.mxu0 %v3600
    %3784 = vmatprep.subr.bf16.mxu0 %v3605
    %3785 = vmatpush1.bf16.msra.mxu0 %v3604
    %3786 = vmatprep.subr.bf16.mxu0 %v3609
    %3787 = vmatpush1.bf16.msra.mxu0 %v3608
    %3788 = vmatprep.subr.bf16.mxu0 %v3613
    %3789 = vmatpush1.bf16.msra.mxu0 %v3612
    %3790 = vmatprep.subr.bf16.mxu0 %v3617
    %3791 = vmatpush1.bf16.msra.mxu0 %v3616
    %3792 = vmatprep.subr.bf16.mxu0 %v3621
    %3793 = vmatpush1.bf16.msra.mxu0 %v3620
    %3794 = vmatprep.subr.bf16.mxu0 %v3625
    %3795 = vmatpush1.bf16.msra.mxu0 %v3624
    %3796 = vmatprep.subr.bf16.mxu0 %v3629
    %3797 = vmatpush1.bf16.msra.mxu0 %v3628
    %3798 = vmatprep.subr.bf16.mxu0 %v3633
    %3799 = vmatpush1.bf16.msra.mxu0 %v3632
    %3800 = vmatprep.subr.bf16.mxu0 %v3637
    %3801 = vmatpush1.bf16.msra.mxu0 %v3636
    %3802 = vmatprep.subr.bf16.mxu0 %v3641
    %3803 = vmatpush1.bf16.msra.mxu0 %v3640
    %3804 = vmatprep.mubr.bf16.mxu0 %v3287
    %3805 = vmatmul.mubr.bf16.gmra.mrb[0].mxu0 %v3286
    %v3806 = vpop.f32.mrb[0].mxu0
    %v3807 = vadd.f32 0.0, %v3806
    %v3808 = vpop.f32.mrb[0].mxu0
    %v3809 = vadd.f32 0.0, %v3808
    %v3810 = vpop.f32.mrb[0].mxu0
    %v3811 = vpop.f32.mrb[0].mxu0
    %3812 = vdwg.mxu0
    %3813 = vmatprep.subr.bf16.mxu0 %v3645
    %3814 = vmatpush1.bf16.msra.mxu0 %v3644
    %3815 = vmatprep.subr.bf16.mxu0 %v3649
    %3816 = vmatpush1.bf16.msra.mxu0 %v3648
    %3817 = vmatprep.subr.bf16.mxu0 %v3653
    %3818 = vmatpush1.bf16.msra.mxu0 %v3652
    %3819 = vmatprep.subr.bf16.mxu0 %v3657
    %3820 = vmatpush1.bf16.msra.mxu0 %v3656
    %3821 = vmatprep.subr.bf16.mxu0 %v3661
    %3822 = vmatpush1.bf16.msra.mxu0 %v3660
    %3823 = vmatprep.subr.bf16.mxu0 %v3665
    %3824 = vmatpush1.bf16.msra.mxu0 %v3664
    %3825 = vmatprep.subr.bf16.mxu0 %v3669
    %3826 = vmatpush1.bf16.msra.mxu0 %v3668
    %3827 = vmatprep.subr.bf16.mxu0 %v3673
    %3828 = vmatpush1.bf16.msra.mxu0 %v3672
    %3829 = vmatprep.subr.bf16.mxu0 0
    %3830 = vmatpush1.bf16.msra.mxu0 0
    %3831 = vmatprep.subr.bf16.mxu0 0
    %3832 = vmatpush1.bf16.msra.mxu0 0
    %3833 = vmatprep.subr.bf16.mxu0 0
    %3834 = vmatpush1.bf16.msra.mxu0 0
    %3835 = vmatprep.subr.bf16.mxu0 0
    %3836 = vmatpush1.bf16.msra.mxu0 0
    %3837 = vmatprep.subr.bf16.mxu0 0
    %3838 = vmatpush1.bf16.msra.mxu0 0
    %3839 = vmatprep.subr.bf16.mxu0 0
    %3840 = vmatpush1.bf16.msra.mxu0 0
    %3841 = vmatprep.subr.bf16.mxu0 0
    %3842 = vmatpush1.bf16.msra.mxu0 0
    %3843 = vmatprep.subr.bf16.mxu0 0
    %3844 = vmatpush1.bf16.msra.mxu0 0
    %3845 = vmatprep.mubr.bf16.mxu0 0
    %3846 = vmatmul.mubr.bf16.gmra.mrb[0].mxu0 %v3288
    %v3847 = vpop.f32.mrb[0].mxu0
    %v3848 = vadd.f32 %v3807, %v3847
    %v3849 = vpop.f32.mrb[0].mxu0
    %v3850 = vadd.f32 %v3809, %v3849
    %v3851 = vpop.f32.mrb[0].mxu0
    %v3852 = vpop.f32.mrb[0].mxu0
    %3853 = vdwg.mxu0
    %3854 = vmatprep.subr.bf16.mxu0 %v3583
    %3855 = vmatpush1.bf16.msra.mxu0 %v3582
    %3856 = vmatprep.subr.bf16.mxu0 %v3587
    %3857 = vmatpush1.bf16.msra.mxu0 %v3586
    %3858 = vmatprep.subr.bf16.mxu0 %v3591
    %3859 = vmatpush1.bf16.msra.mxu0 %v3590
    %3860 = vmatprep.subr.bf16.mxu0 %v3595
    %3861 = vmatpush1.bf16.msra.mxu0 %v3594
    %3862 = vmatprep.subr.bf16.mxu0 %v3599
    %3863 = vmatpush1.bf16.msra.mxu0 %v3598
    %3864 = vmatprep.subr.bf16.mxu0 %v3603
    %3865 = vmatpush1.bf16.msra.mxu0 %v3602
    %3866 = vmatprep.subr.bf16.mxu0 %v3607
    %3867 = vmatpush1.bf16.msra.mxu0 %v3606
    %3868 = vmatprep.subr.bf16.mxu0 %v3611
    %3869 = vmatpush1.bf16.msra.mxu0 %v3610
    %3870 = vmatprep.subr.bf16.mxu0 %v3615
    %3871 = vmatpush1.bf16.msra.mxu0 %v3614
    %3872 = vmatprep.subr.bf16.mxu0 %v3619
    %3873 = vmatpush1.bf16.msra.mxu0 %v3618
    %3874 = vmatprep.subr.bf16.mxu0 %v3623
    %3875 = vmatpush1.bf16.msra.mxu0 %v3622
    %3876 = vmatprep.subr.bf16.mxu0 %v3627
    %3877 = vmatpush1.bf16.msra.mxu0 %v3626
    %3878 = vmatprep.subr.bf16.mxu0 %v3631
    %3879 = vmatpush1.bf16.msra.mxu0 %v3630
    %3880 = vmatprep.subr.bf16.mxu0 %v3635
    %3881 = vmatpush1.bf16.msra.mxu0 %v3634
    %3882 = vmatprep.subr.bf16.mxu0 %v3639
    %3883 = vmatpush1.bf16.msra.mxu0 %v3638
    %3884 = vmatprep.subr.bf16.mxu0 %v3643
    %3885 = vmatpush1.bf16.msra.mxu0 %v3642
    %3886 = vmatprep.mubr.bf16.mxu0 %v3287
    %3887 = vmatmul.mubr.bf16.gmra.mrb[0].mxu0 %v3286
    %v3888 = vpop.f32.mrb[0].mxu0
    %v3889 = vadd.f32 0.0, %v3888
    %v3890 = vpop.f32.mrb[0].mxu0
    %v3891 = vadd.f32 0.0, %v3890
    %v3892 = vpop.f32.mrb[0].mxu0
    %v3893 = vpop.f32.mrb[0].mxu0
    %3894 = vdwg.mxu0
    %3895 = vmatprep.subr.bf16.mxu0 %v3647
    %3896 = vmatpush1.bf16.msra.mxu0 %v3646
    %3897 = vmatprep.subr.bf16.mxu0 %v3651
    %3898 = vmatpush1.bf16.msra.mxu0 %v3650
    %3899 = vmatprep.subr.bf16.mxu0 %v3655
    %3900 = vmatpush1.bf16.msra.mxu0 %v3654
    %3901 = vmatprep.subr.bf16.mxu0 %v3659
    %3902 = vmatpush1.bf16.msra.mxu0 %v3658
    %3903 = vmatprep.subr.bf16.mxu0 %v3663
    %3904 = vmatpush1.bf16.msra.mxu0 %v3662
    %3905 = vmatprep.subr.bf16.mxu0 %v3667
    %3906 = vmatpush1.bf16.msra.mxu0 %v3666
    %3907 = vmatprep.subr.bf16.mxu0 %v3671
    %3908 = vmatpush1.bf16.msra.mxu0 %v3670
    %3909 = vmatprep.subr.bf16.mxu0 %v3675
    %3910 = vmatpush1.bf16.msra.mxu0 %v3674
    %3911 = vmatprep.subr.bf16.mxu0 0
    %3912 = vmatpush1.bf16.msra.mxu0 0
    %3913 = vmatprep.subr.bf16.mxu0 0
    %3914 = vmatpush1.bf16.msra.mxu0 0
    %3915 = vmatprep.subr.bf16.mxu0 0
    %3916 = vmatpush1.bf16.msra.mxu0 0
    %3917 = vmatprep.subr.bf16.mxu0 0
    %3918 = vmatpush1.bf16.msra.mxu0 0
    %3919 = vmatprep.subr.bf16.mxu0 0
    %3920 = vmatpush1.bf16.msra.mxu0 0
    %3921 = vmatprep.subr.bf16.mxu0 0
    %3922 = vmatpush1.bf16.msra.mxu0 0
    %3923 = vmatprep.subr.bf16.mxu0 0
    %3924 = vmatpush1.bf16.msra.mxu0 0
    %3925 = vmatprep.subr.bf16.mxu0 0
    %3926 = vmatpush1.bf16.msra.mxu0 0
    %3927 = vmatprep.mubr.bf16.mxu0 0
    %3928 = vmatmul.mubr.bf16.gmra.mrb[0].mxu0 %v3288
    %v3929 = vpop.f32.mrb[0].mxu0
    %v3930 = vadd.f32 %v3889, %v3929
    %v3931 = vpop.f32.mrb[0].mxu0
    %v3932 = vadd.f32 %v3891, %v3931
    %v3933 = vpop.f32.mrb[0].mxu0
    %v3934 = vpop.f32.mrb[0].mxu0
    %3935 = vdwg.mxu0
    %v3936 = vadd.f32 %v3098, %v3848
    %v3937 = vadd.f32 %v3100, %v3850
    %v3938 = vadd.f32 %v3180, %v3930
    %v3939 = vadd.f32 %v3182, %v3932
    %s3940 = scalar_lea.vmem [#allocation7], 2304
    %v3941 = vld [vmem:[%s3940] sm:$0xff]
    %v3942 = vld [vmem:[%s3940 + $0x8] sm:$0xff]
    %v3943 = vld [vmem:[%s3940 + $0x10] sm:$0xff]
    %v3944 = vld [vmem:[%s3940 + $0x18] sm:$0xff]
    %v3945 = vld [vmem:[%s3940 + $0x20] sm:$0xff]
    %v3946 = vld [vmem:[%s3940 + $0x28] sm:$0xff]
    %v3947 = vld [vmem:[%s3940 + $0x30] sm:$0xff]
    %v3948 = vld [vmem:[%s3940 + $0x38] sm:$0xff]
    %v3949 = vld [vmem:[%s3940 + $0x40] sm:$0xff]
    %v3950 = vld [vmem:[%s3940 + $0x48] sm:$0xff]
    %v3951 = vld [vmem:[%s3940 + $0x50] sm:$0xff]
    %v3952 = vld [vmem:[%s3940 + $0x58] sm:$0xff]
    %v3953 = vld [vmem:[%s3940 + $0x60] sm:$0xff]
    %v3954 = vld [vmem:[%s3940 + $0x68] sm:$0xff]
    %v3955 = vld [vmem:[%s3940 + $0x70] sm:$0xff]
    %v3956 = vld [vmem:[%s3940 + $0x78] sm:$0xff]
    %v3957 = vld [vmem:[%s3940 + $0x80] sm:$0xff]
    %v3958 = vld [vmem:[%s3940 + $0x88] sm:$0xff]
    %v3959 = vld [vmem:[%s3940 + $0x90] sm:$0xff]
    %v3960 = vld [vmem:[%s3940 + $0x98] sm:$0xff]
    %v3961 = vld [vmem:[%s3940 + $0xa0] sm:$0xff]
    %v3962 = vld [vmem:[%s3940 + $0xa8] sm:$0xff]
    %v3963 = vld [vmem:[%s3940 + $0xb0] sm:$0xff]
    %v3964 = vld [vmem:[%s3940 + $0xb8] sm:$0xff]
    %v3965 = vld [vmem:[%s3940 + $0xc0] sm:$0xff]
    %v3966 = vld [vmem:[%s3940 + $0xc8] sm:$0xff]
    %v3967 = vld [vmem:[%s3940 + $0xd0] sm:$0xff]
    %v3968 = vld [vmem:[%s3940 + $0xd8] sm:$0xff]
    %v3969 = vld [vmem:[%s3940 + $0xe0] sm:$0xff]
    %v3970 = vld [vmem:[%s3940 + $0xe8] sm:$0xff]
    %v3971 = vld [vmem:[%s3940 + $0xf0] sm:$0xff]
    %v3972 = vld [vmem:[%s3940 + $0xf8] sm:$0xff]
    %v3973 = vld [vmem:[%s3940 + $0x100] sm:$0xff]
    %v3974 = vld [vmem:[%s3940 + $0x108] sm:$0xff]
    %v3975 = vld [vmem:[%s3940 + $0x110] sm:$0xff]
    %v3976 = vld [vmem:[%s3940 + $0x118] sm:$0xff]
    %v3977 = vld [vmem:[%s3940 + $0x120] sm:$0xff]
    %v3978 = vld [vmem:[%s3940 + $0x128] sm:$0xff]
    %v3979 = vld [vmem:[%s3940 + $0x130] sm:$0xff]
    %v3980 = vld [vmem:[%s3940 + $0x138] sm:$0xff]
    %v3981 = vld [vmem:[%s3940 + $0x140] sm:$0xff]
    %v3982 = vld [vmem:[%s3940 + $0x148] sm:$0xff]
    %v3983 = vld [vmem:[%s3940 + $0x150] sm:$0xff]
    %v3984 = vld [vmem:[%s3940 + $0x158] sm:$0xff]
    %v3985 = vld [vmem:[%s3940 + $0x160] sm:$0xff]
    %v3986 = vld [vmem:[%s3940 + $0x168] sm:$0xff]
    %v3987 = vld [vmem:[%s3940 + $0x170] sm:$0xff]
    %v3988 = vld [vmem:[%s3940 + $0x178] sm:$0xff]
    %v3989 = vld [vmem:[%s3940 + $0x180] sm:$0xff]
    %v3990 = vld [vmem:[%s3940 + $0x188] sm:$0xff]
    %v3991 = vld [vmem:[%s3940 + $0x190] sm:$0xff]
    %v3992 = vld [vmem:[%s3940 + $0x198] sm:$0xff]
    %v3993 = vld [vmem:[%s3940 + $0x1a0] sm:$0xff]
    %v3994 = vld [vmem:[%s3940 + $0x1a8] sm:$0xff]
    %v3995 = vld [vmem:[%s3940 + $0x1b0] sm:$0xff]
    %v3996 = vld [vmem:[%s3940 + $0x1b8] sm:$0xff]
    %v3997 = vld [vmem:[%s3940 + $0x1c0] sm:$0xff]
    %v3998 = vld [vmem:[%s3940 + $0x1c8] sm:$0xff]
    %v3999 = vld [vmem:[%s3940 + $0x1d0] sm:$0xff]
    %v4000 = vld [vmem:[%s3940 + $0x1d8] sm:$0xff]
    %v4001 = vld [vmem:[%s3940 + $0x1e0] sm:$0xff]
    %v4002 = vld [vmem:[%s3940 + $0x1e8] sm:$0xff]
    %v4003 = vld [vmem:[%s3940 + $0x1f0] sm:$0xff]
    %v4004 = vld [vmem:[%s3940 + $0x1f8] sm:$0xff]
    %v4005 = vld [vmem:[%s3940 + $0x200] sm:$0xff]
    %v4006 = vld [vmem:[%s3940 + $0x208] sm:$0xff]
    %v4007 = vld [vmem:[%s3940 + $0x210] sm:$0xff]
    %v4008 = vld [vmem:[%s3940 + $0x218] sm:$0xff]
    %v4009 = vld [vmem:[%s3940 + $0x220] sm:$0xff]
    %v4010 = vld [vmem:[%s3940 + $0x228] sm:$0xff]
    %v4011 = vld [vmem:[%s3940 + $0x230] sm:$0xff]
    %v4012 = vld [vmem:[%s3940 + $0x238] sm:$0xff]
    %v4013 = vld [vmem:[%s3940 + $0x240] sm:$0xff]
    %v4014 = vld [vmem:[%s3940 + $0x248] sm:$0xff]
    %v4015 = vld [vmem:[%s3940 + $0x250] sm:$0xff]
    %v4016 = vld [vmem:[%s3940 + $0x258] sm:$0xff]
    %v4017 = vld [vmem:[%s3940 + $0x260] sm:$0xff]
    %v4018 = vld [vmem:[%s3940 + $0x268] sm:$0xff]
    %v4019 = vld [vmem:[%s3940 + $0x270] sm:$0xff]
    %v4020 = vld [vmem:[%s3940 + $0x278] sm:$0xff]
    %v4021 = vld [vmem:[%s3940 + $0x280] sm:$0xff]
    %v4022 = vld [vmem:[%s3940 + $0x288] sm:$0xff]
    %v4023 = vld [vmem:[%s3940 + $0x290] sm:$0xff]
    %v4024 = vld [vmem:[%s3940 + $0x298] sm:$0xff]
    %v4025 = vld [vmem:[%s3940 + $0x2a0] sm:$0xff]
    %v4026 = vld [vmem:[%s3940 + $0x2a8] sm:$0xff]
    %v4027 = vld [vmem:[%s3940 + $0x2b0] sm:$0xff]
    %v4028 = vld [vmem:[%s3940 + $0x2b8] sm:$0xff]
    %v4029 = vld [vmem:[%s3940 + $0x2c0] sm:$0xff]
    %v4030 = vld [vmem:[%s3940 + $0x2c8] sm:$0xff]
    %v4031 = vld [vmem:[%s3940 + $0x2d0] sm:$0xff]
    %v4032 = vld [vmem:[%s3940 + $0x2d8] sm:$0xff]
    %v4033 = vld [vmem:[%s3940 + $0x2e0] sm:$0xff]
    %v4034 = vld [vmem:[%s3940 + $0x2e8] sm:$0xff]
    %v4035 = vld [vmem:[%s3940 + $0x2f0] sm:$0xff]
    %v4036 = vld [vmem:[%s3940 + $0x2f8] sm:$0xff]
    %v4037 = vrot.slane %v1875, 1
    %v4038 = vrot.slane %v1877, 2
    %v4039 = vor.u32 %v4037, %v4038
    %v4040 = vrot.slane %v1882, 1
    %v4041 = vrot.slane %v1884, 2
    %v4042 = vor.u32 %v4040, %v4041
    %v4043 = vrot.slane %v1889, 1
    %v4044 = vrot.slane %v1891, 2
    %v4045 = vor.u32 %v4043, %v4044
    %v4145 = vunpack.c.l.b16 %v3941
    %v4146 = vunpack.c.h.b16 %v3941
    %v4147 = vunpack.c.l.b16 %v3942
    %v4148 = vunpack.c.h.b16 %v3942
    %v4149 = vunpack.c.l.b16 %v3943
    %v4150 = vunpack.c.h.b16 %v3943
    %v4151 = vunpack.c.l.b16 %v3944
    %v4152 = vunpack.c.h.b16 %v3944
    %v4153 = vunpack.c.l.b16 %v3945
    %v4154 = vunpack.c.h.b16 %v3945
    %v4155 = vunpack.c.l.b16 %v3946
    %v4156 = vunpack.c.h.b16 %v3946
    %v4157 = vunpack.c.l.b16 %v3947
    %v4158 = vunpack.c.h.b16 %v3947
    %v4159 = vunpack.c.l.b16 %v3948
    %v4160 = vunpack.c.h.b16 %v3948
    %v4161 = vunpack.c.l.b16 %v3949
    %v4162 = vunpack.c.h.b16 %v3949
    %v4163 = vunpack.c.l.b16 %v3950
    %v4164 = vunpack.c.h.b16 %v3950
    %v4165 = vunpack.c.l.b16 %v3951
    %v4166 = vunpack.c.h.b16 %v3951
    %v4167 = vunpack.c.l.b16 %v3952
    %v4168 = vunpack.c.h.b16 %v3952
    %v4169 = vunpack.c.l.b16 %v3953
    %v4170 = vunpack.c.h.b16 %v3953
    %v4171 = vunpack.c.l.b16 %v3954
    %v4172 = vunpack.c.h.b16 %v3954
    %v4173 = vunpack.c.l.b16 %v3955
    %v4174 = vunpack.c.h.b16 %v3955
    %v4175 = vunpack.c.l.b16 %v3956
    %v4176 = vunpack.c.h.b16 %v3956
    %v4177 = vunpack.c.l.b16 %v3957
    %v4178 = vunpack.c.h.b16 %v3957
    %v4179 = vunpack.c.l.b16 %v3958
    %v4180 = vunpack.c.h.b16 %v3958
    %v4181 = vunpack.c.l.b16 %v3959
    %v4182 = vunpack.c.h.b16 %v3959
    %v4183 = vunpack.c.l.b16 %v3960
    %v4184 = vunpack.c.h.b16 %v3960
    %v4185 = vunpack.c.l.b16 %v3961
    %v4186 = vunpack.c.h.b16 %v3961
    %v4187 = vunpack.c.l.b16 %v3962
    %v4188 = vunpack.c.h.b16 %v3962
    %v4189 = vunpack.c.l.b16 %v3963
    %v4190 = vunpack.c.h.b16 %v3963
    %v4191 = vunpack.c.l.b16 %v3964
    %v4192 = vunpack.c.h.b16 %v3964
    %v4193 = vunpack.c.l.b16 %v3965
    %v4194 = vunpack.c.h.b16 %v3965
    %v4195 = vunpack.c.l.b16 %v3966
    %v4196 = vunpack.c.h.b16 %v3966
    %v4197 = vunpack.c.l.b16 %v3967
    %v4198 = vunpack.c.h.b16 %v3967
    %v4199 = vunpack.c.l.b16 %v3968
    %v4200 = vunpack.c.h.b16 %v3968
    %v4201 = vunpack.c.l.b16 %v3969
    %v4202 = vunpack.c.h.b16 %v3969
    %v4203 = vunpack.c.l.b16 %v3970
    %v4204 = vunpack.c.h.b16 %v3970
    %v4205 = vunpack.c.l.b16 %v3971
    %v4206 = vunpack.c.h.b16 %v3971
    %v4207 = vunpack.c.l.b16 %v3972
    %v4208 = vunpack.c.h.b16 %v3972
    %v4209 = vunpack.c.l.b16 %v3973
    %v4210 = vunpack.c.h.b16 %v3973
    %v4211 = vunpack.c.l.b16 %v3974
    %v4212 = vunpack.c.h.b16 %v3974
    %v4213 = vunpack.c.l.b16 %v3975
    %v4214 = vunpack.c.h.b16 %v3975
    %v4215 = vunpack.c.l.b16 %v3976
    %v4216 = vunpack.c.h.b16 %v3976
    %v4217 = vunpack.c.l.b16 %v3977
    %v4218 = vunpack.c.h.b16 %v3977
    %v4219 = vunpack.c.l.b16 %v3978
    %v4220 = vunpack.c.h.b16 %v3978
    %v4221 = vunpack.c.l.b16 %v3979
    %v4222 = vunpack.c.h.b16 %v3979
    %v4223 = vunpack.c.l.b16 %v3980
    %v4224 = vunpack.c.h.b16 %v3980
    %v4225 = vunpack.c.l.b16 %v3981
    %v4226 = vunpack.c.h.b16 %v3981
    %v4227 = vunpack.c.l.b16 %v3982
    %v4228 = vunpack.c.h.b16 %v3982
    %v4229 = vunpack.c.l.b16 %v3983
    %v4230 = vunpack.c.h.b16 %v3983
    %v4231 = vunpack.c.l.b16 %v3984
    %v4232 = vunpack.c.h.b16 %v3984
    %v4233 = vunpack.c.l.b16 %v3985
    %v4234 = vunpack.c.h.b16 %v3985
    %v4235 = vunpack.c.l.b16 %v3986
    %v4236 = vunpack.c.h.b16 %v3986
    %v4237 = vunpack.c.l.b16 %v3987
    %v4238 = vunpack.c.h.b16 %v3987
    %v4239 = vunpack.c.l.b16 %v3988
    %v4240 = vunpack.c.h.b16 %v3988
    %v4241 = vunpack.c.l.b16 %v3989
    %v4242 = vunpack.c.h.b16 %v3989
    %v4243 = vunpack.c.l.b16 %v3990
    %v4244 = vunpack.c.h.b16 %v3990
    %v4245 = vunpack.c.l.b16 %v3991
    %v4246 = vunpack.c.h.b16 %v3991
    %v4247 = vunpack.c.l.b16 %v3992
    %v4248 = vunpack.c.h.b16 %v3992
    %v4249 = vunpack.c.l.b16 %v3993
    %v4250 = vunpack.c.h.b16 %v3993
    %v4251 = vunpack.c.l.b16 %v3994
    %v4252 = vunpack.c.h.b16 %v3994
    %v4253 = vunpack.c.l.b16 %v3995
    %v4254 = vunpack.c.h.b16 %v3995
    %v4255 = vunpack.c.l.b16 %v3996
    %v4256 = vunpack.c.h.b16 %v3996
    %v4257 = vunpack.c.l.b16 %v3997
    %v4258 = vunpack.c.h.b16 %v3997
    %v4259 = vunpack.c.l.b16 %v3998
    %v4260 = vunpack.c.h.b16 %v3998
    %v4261 = vunpack.c.l.b16 %v3999
    %v4262 = vunpack.c.h.b16 %v3999
    %v4263 = vunpack.c.l.b16 %v4000
    %v4264 = vunpack.c.h.b16 %v4000
    %v4265 = vunpack.c.l.b16 %v4001
    %v4266 = vunpack.c.h.b16 %v4001
    %v4267 = vunpack.c.l.b16 %v4002
    %v4268 = vunpack.c.h.b16 %v4002
    %v4269 = vunpack.c.l.b16 %v4003
    %v4270 = vunpack.c.h.b16 %v4003
    %v4271 = vunpack.c.l.b16 %v4004
    %v4272 = vunpack.c.h.b16 %v4004
    %v4273 = vunpack.c.l.b16 %v4005
    %v4274 = vunpack.c.h.b16 %v4005
    %v4275 = vunpack.c.l.b16 %v4006
    %v4276 = vunpack.c.h.b16 %v4006
    %v4277 = vunpack.c.l.b16 %v4007
    %v4278 = vunpack.c.h.b16 %v4007
    %v4279 = vunpack.c.l.b16 %v4008
    %v4280 = vunpack.c.h.b16 %v4008
    %v4281 = vunpack.c.l.b16 %v4009
    %v4282 = vunpack.c.h.b16 %v4009
    %v4283 = vunpack.c.l.b16 %v4010
    %v4284 = vunpack.c.h.b16 %v4010
    %v4285 = vunpack.c.l.b16 %v4011
    %v4286 = vunpack.c.h.b16 %v4011
    %v4287 = vunpack.c.l.b16 %v4012
    %v4288 = vunpack.c.h.b16 %v4012
    %v4289 = vunpack.c.l.b16 %v4013
    %v4290 = vunpack.c.h.b16 %v4013
    %v4291 = vunpack.c.l.b16 %v4014
    %v4292 = vunpack.c.h.b16 %v4014
    %v4293 = vunpack.c.l.b16 %v4015
    %v4294 = vunpack.c.h.b16 %v4015
    %v4295 = vunpack.c.l.b16 %v4016
    %v4296 = vunpack.c.h.b16 %v4016
    %v4297 = vunpack.c.l.b16 %v4017
    %v4298 = vunpack.c.h.b16 %v4017
    %v4299 = vunpack.c.l.b16 %v4018
    %v4300 = vunpack.c.h.b16 %v4018
    %v4301 = vunpack.c.l.b16 %v4019
    %v4302 = vunpack.c.h.b16 %v4019
    %v4303 = vunpack.c.l.b16 %v4020
    %v4304 = vunpack.c.h.b16 %v4020
    %v4305 = vunpack.c.l.b16 %v4021
    %v4306 = vunpack.c.h.b16 %v4021
    %v4307 = vunpack.c.l.b16 %v4022
    %v4308 = vunpack.c.h.b16 %v4022
    %v4309 = vunpack.c.l.b16 %v4023
    %v4310 = vunpack.c.h.b16 %v4023
    %v4311 = vunpack.c.l.b16 %v4024
    %v4312 = vunpack.c.h.b16 %v4024
    %v4313 = vunpack.c.l.b16 %v4025
    %v4314 = vunpack.c.h.b16 %v4025
    %v4315 = vunpack.c.l.b16 %v4026
    %v4316 = vunpack.c.h.b16 %v4026
    %v4317 = vunpack.c.l.b16 %v4027
    %v4318 = vunpack.c.h.b16 %v4027
    %v4319 = vunpack.c.l.b16 %v4028
    %v4320 = vunpack.c.h.b16 %v4028
    %v4321 = vunpack.c.l.b16 %v4029
    %v4322 = vunpack.c.h.b16 %v4029
    %v4323 = vunpack.c.l.b16 %v4030
    %v4324 = vunpack.c.h.b16 %v4030
    %v4325 = vunpack.c.l.b16 %v4031
    %v4326 = vunpack.c.h.b16 %v4031
    %v4327 = vunpack.c.l.b16 %v4032
    %v4328 = vunpack.c.h.b16 %v4032
    %v4329 = vunpack.c.l.b16 %v4033
    %v4330 = vunpack.c.h.b16 %v4033
    %v4331 = vunpack.c.l.b16 %v4034
    %v4332 = vunpack.c.h.b16 %v4034
    %v4333 = vunpack.c.l.b16 %v4035
    %v4334 = vunpack.c.h.b16 %v4035
    %v4335 = vunpack.c.l.b16 %v4036
    %v4336 = vunpack.c.h.b16 %v4036
    %v4337 = vpack.c.b16 %v4149, %v4145
    %v4338 = vpack.c.b16 %v4150, %v4146
    %v4339 = vpack.c.b16 %v4151, %v4147
    %v4340 = vpack.c.b16 %v4152, %v4148
    %v4341 = vpack.c.b16 %v4157, %v4153
    %v4342 = vpack.c.b16 %v4158, %v4154
    %v4343 = vpack.c.b16 %v4159, %v4155
    %v4344 = vpack.c.b16 %v4160, %v4156
    %v4345 = vpack.c.b16 %v4165, %v4161
    %v4346 = vpack.c.b16 %v4166, %v4162
    %v4347 = vpack.c.b16 %v4167, %v4163
    %v4348 = vpack.c.b16 %v4168, %v4164
    %v4349 = vpack.c.b16 %v4173, %v4169
    %v4350 = vpack.c.b16 %v4174, %v4170
    %v4351 = vpack.c.b16 %v4175, %v4171
    %v4352 = vpack.c.b16 %v4176, %v4172
    %v4353 = vpack.c.b16 %v4181, %v4177
    %v4354 = vpack.c.b16 %v4182, %v4178
    %v4355 = vpack.c.b16 %v4183, %v4179
    %v4356 = vpack.c.b16 %v4184, %v4180
    %v4357 = vpack.c.b16 %v4189, %v4185
    %v4358 = vpack.c.b16 %v4190, %v4186
    %v4359 = vpack.c.b16 %v4191, %v4187
    %v4360 = vpack.c.b16 %v4192, %v4188
    %v4361 = vpack.c.b16 %v4197, %v4193
    %v4362 = vpack.c.b16 %v4198, %v4194
    %v4363 = vpack.c.b16 %v4199, %v4195
    %v4364 = vpack.c.b16 %v4200, %v4196
    %v4365 = vpack.c.b16 %v4205, %v4201
    %v4366 = vpack.c.b16 %v4206, %v4202
    %v4367 = vpack.c.b16 %v4207, %v4203
    %v4368 = vpack.c.b16 %v4208, %v4204
    %v4369 = vpack.c.b16 %v4213, %v4209
    %v4370 = vpack.c.b16 %v4214, %v4210
    %v4371 = vpack.c.b16 %v4215, %v4211
    %v4372 = vpack.c.b16 %v4216, %v4212
    %v4373 = vpack.c.b16 %v4221, %v4217
    %v4374 = vpack.c.b16 %v4222, %v4218
    %v4375 = vpack.c.b16 %v4223, %v4219
    %v4376 = vpack.c.b16 %v4224, %v4220
    %v4377 = vpack.c.b16 %v4229, %v4225
    %v4378 = vpack.c.b16 %v4230, %v4226
    %v4379 = vpack.c.b16 %v4231, %v4227
    %v4380 = vpack.c.b16 %v4232, %v4228
    %v4381 = vpack.c.b16 %v4237, %v4233
    %v4382 = vpack.c.b16 %v4238, %v4234
    %v4383 = vpack.c.b16 %v4239, %v4235
    %v4384 = vpack.c.b16 %v4240, %v4236
    %v4385 = vpack.c.b16 %v4245, %v4241
    %v4386 = vpack.c.b16 %v4246, %v4242
    %v4387 = vpack.c.b16 %v4247, %v4243
    %v4388 = vpack.c.b16 %v4248, %v4244
    %v4389 = vpack.c.b16 %v4253, %v4249
    %v4390 = vpack.c.b16 %v4254, %v4250
    %v4391 = vpack.c.b16 %v4255, %v4251
    %v4392 = vpack.c.b16 %v4256, %v4252
    %v4393 = vpack.c.b16 %v4261, %v4257
    %v4394 = vpack.c.b16 %v4262, %v4258
    %v4395 = vpack.c.b16 %v4263, %v4259
    %v4396 = vpack.c.b16 %v4264, %v4260
    %v4397 = vpack.c.b16 %v4269, %v4265
    %v4398 = vpack.c.b16 %v4270, %v4266
    %v4399 = vpack.c.b16 %v4271, %v4267
    %v4400 = vpack.c.b16 %v4272, %v4268
    %v4401 = vpack.c.b16 %v4277, %v4273
    %v4402 = vpack.c.b16 %v4278, %v4274
    %v4403 = vpack.c.b16 %v4279, %v4275
    %v4404 = vpack.c.b16 %v4280, %v4276
    %v4405 = vpack.c.b16 %v4285, %v4281
    %v4406 = vpack.c.b16 %v4286, %v4282
    %v4407 = vpack.c.b16 %v4287, %v4283
    %v4408 = vpack.c.b16 %v4288, %v4284
    %v4409 = vpack.c.b16 %v4293, %v4289
    %v4410 = vpack.c.b16 %v4294, %v4290
    %v4411 = vpack.c.b16 %v4295, %v4291
    %v4412 = vpack.c.b16 %v4296, %v4292
    %v4413 = vpack.c.b16 %v4301, %v4297
    %v4414 = vpack.c.b16 %v4302, %v4298
    %v4415 = vpack.c.b16 %v4303, %v4299
    %v4416 = vpack.c.b16 %v4304, %v4300
    %v4417 = vpack.c.b16 %v4309, %v4305
    %v4418 = vpack.c.b16 %v4310, %v4306
    %v4419 = vpack.c.b16 %v4311, %v4307
    %v4420 = vpack.c.b16 %v4312, %v4308
    %v4421 = vpack.c.b16 %v4317, %v4313
    %v4422 = vpack.c.b16 %v4318, %v4314
    %v4423 = vpack.c.b16 %v4319, %v4315
    %v4424 = vpack.c.b16 %v4320, %v4316
    %v4425 = vpack.c.b16 %v4325, %v4321
    %v4426 = vpack.c.b16 %v4326, %v4322
    %v4427 = vpack.c.b16 %v4327, %v4323
    %v4428 = vpack.c.b16 %v4328, %v4324
    %v4429 = vpack.c.b16 %v4333, %v4329
    %v4430 = vpack.c.b16 %v4334, %v4330
    %v4431 = vpack.c.b16 %v4335, %v4331
    %v4432 = vpack.c.b16 %v4336, %v4332
    %4529 = vmatprep.subr.bf16.mxu0 %v4338
    %4530 = vmatpush1.bf16.msra.mxu0 %v4337
    %4531 = vmatprep.subr.bf16.mxu0 %v4342
    %4532 = vmatpush1.bf16.msra.mxu0 %v4341
    %4533 = vmatprep.subr.bf16.mxu0 %v4346
    %4534 = vmatpush1.bf16.msra.mxu0 %v4345
    %4535 = vmatprep.subr.bf16.mxu0 %v4350
    %4536 = vmatpush1.bf16.msra.mxu0 %v4349
    %4537 = vmatprep.subr.bf16.mxu0 %v4354
    %4538 = vmatpush1.bf16.msra.mxu0 %v4353
    %4539 = vmatprep.subr.bf16.mxu0 %v4358
    %4540 = vmatpush1.bf16.msra.mxu0 %v4357
    %4541 = vmatprep.subr.bf16.mxu0 %v4362
    %4542 = vmatpush1.bf16.msra.mxu0 %v4361
    %4543 = vmatprep.subr.bf16.mxu0 %v4366
    %4544 = vmatpush1.bf16.msra.mxu0 %v4365
    %4545 = vmatprep.subr.bf16.mxu0 %v4370
    %4546 = vmatpush1.bf16.msra.mxu0 %v4369
    %4547 = vmatprep.subr.bf16.mxu0 %v4374
    %4548 = vmatpush1.bf16.msra.mxu0 %v4373
    %4549 = vmatprep.subr.bf16.mxu0 %v4378
    %4550 = vmatpush1.bf16.msra.mxu0 %v4377
    %4551 = vmatprep.subr.bf16.mxu0 %v4382
    %4552 = vmatpush1.bf16.msra.mxu0 %v4381
    %4553 = vmatprep.subr.bf16.mxu0 %v4386
    %4554 = vmatpush1.bf16.msra.mxu0 %v4385
    %4555 = vmatprep.subr.bf16.mxu0 %v4390
    %4556 = vmatpush1.bf16.msra.mxu0 %v4389
    %4557 = vmatprep.subr.bf16.mxu0 %v4394
    %4558 = vmatpush1.bf16.msra.mxu0 %v4393
    %4559 = vmatprep.subr.bf16.mxu0 %v4398
    %4560 = vmatpush1.bf16.msra.mxu0 %v4397
    %4561 = vmatprep.mubr.bf16.mxu0 %v4042
    %4562 = vmatmul.mubr.bf16.gmra.mrb[0].mxu0 %v4039
    %v4563 = vpop.f32.mrb[0].mxu0
    %v4564 = vadd.f32 0.0, %v4563
    %v4565 = vpop.f32.mrb[0].mxu0
    %v4566 = vadd.f32 0.0, %v4565
    %v4567 = vpop.f32.mrb[0].mxu0
    %v4568 = vpop.f32.mrb[0].mxu0
    %4569 = vdwg.mxu0
    %4570 = vmatprep.subr.bf16.mxu0 %v4402
    %4571 = vmatpush1.bf16.msra.mxu0 %v4401
    %4572 = vmatprep.subr.bf16.mxu0 %v4406
    %4573 = vmatpush1.bf16.msra.mxu0 %v4405
    %4574 = vmatprep.subr.bf16.mxu0 %v4410
    %4575 = vmatpush1.bf16.msra.mxu0 %v4409
    %4576 = vmatprep.subr.bf16.mxu0 %v4414
    %4577 = vmatpush1.bf16.msra.mxu0 %v4413
    %4578 = vmatprep.subr.bf16.mxu0 %v4418
    %4579 = vmatpush1.bf16.msra.mxu0 %v4417
    %4580 = vmatprep.subr.bf16.mxu0 %v4422
    %4581 = vmatpush1.bf16.msra.mxu0 %v4421
    %4582 = vmatprep.subr.bf16.mxu0 %v4426
    %4583 = vmatpush1.bf16.msra.mxu0 %v4425
    %4584 = vmatprep.subr.bf16.mxu0 %v4430
    %4585 = vmatpush1.bf16.msra.mxu0 %v4429
    %4586 = vmatprep.subr.bf16.mxu0 0
    %4587 = vmatpush1.bf16.msra.mxu0 0
    %4588 = vmatprep.subr.bf16.mxu0 0
    %4589 = vmatpush1.bf16.msra.mxu0 0
    %4590 = vmatprep.subr.bf16.mxu0 0
    %4591 = vmatpush1.bf16.msra.mxu0 0
    %4592 = vmatprep.subr.bf16.mxu0 0
    %4593 = vmatpush1.bf16.msra.mxu0 0
    %4594 = vmatprep.subr.bf16.mxu0 0
    %4595 = vmatpush1.bf16.msra.mxu0 0
    %4596 = vmatprep.subr.bf16.mxu0 0
    %4597 = vmatpush1.bf16.msra.mxu0 0
    %4598 = vmatprep.subr.bf16.mxu0 0
    %4599 = vmatpush1.bf16.msra.mxu0 0
    %4600 = vmatprep.subr.bf16.mxu0 0
    %4601 = vmatpush1.bf16.msra.mxu0 0
    %4602 = vmatprep.mubr.bf16.mxu0 0
    %4603 = vmatmul.mubr.bf16.gmra.mrb[0].mxu0 %v4045
    %v4604 = vpop.f32.mrb[0].mxu0
    %v4605 = vadd.f32 %v4564, %v4604
    %v4606 = vpop.f32.mrb[0].mxu0
    %v4607 = vadd.f32 %v4566, %v4606
    %v4608 = vpop.f32.mrb[0].mxu0
    %v4609 = vpop.f32.mrb[0].mxu0
    %4610 = vdwg.mxu0
    %4611 = vmatprep.subr.bf16.mxu0 %v4340
    %4612 = vmatpush1.bf16.msra.mxu0 %v4339
    %4613 = vmatprep.subr.bf16.mxu0 %v4344
    %4614 = vmatpush1.bf16.msra.mxu0 %v4343
    %4615 = vmatprep.subr.bf16.mxu0 %v4348
    %4616 = vmatpush1.bf16.msra.mxu0 %v4347
    %4617 = vmatprep.subr.bf16.mxu0 %v4352
    %4618 = vmatpush1.bf16.msra.mxu0 %v4351
    %4619 = vmatprep.subr.bf16.mxu0 %v4356
    %4620 = vmatpush1.bf16.msra.mxu0 %v4355
    %4621 = vmatprep.subr.bf16.mxu0 %v4360
    %4622 = vmatpush1.bf16.msra.mxu0 %v4359
    %4623 = vmatprep.subr.bf16.mxu0 %v4364
    %4624 = vmatpush1.bf16.msra.mxu0 %v4363
    %4625 = vmatprep.subr.bf16.mxu0 %v4368
    %4626 = vmatpush1.bf16.msra.mxu0 %v4367
    %4627 = vmatprep.subr.bf16.mxu0 %v4372
    %4628 = vmatpush1.bf16.msra.mxu0 %v4371
    %4629 = vmatprep.subr.bf16.mxu0 %v4376
    %4630 = vmatpush1.bf16.msra.mxu0 %v4375
    %4631 = vmatprep.subr.bf16.mxu0 %v4380
    %4632 = vmatpush1.bf16.msra.mxu0 %v4379
    %4633 = vmatprep.subr.bf16.mxu0 %v4384
    %4634 = vmatpush1.bf16.msra.mxu0 %v4383
    %4635 = vmatprep.subr.bf16.mxu0 %v4388
    %4636 = vmatpush1.bf16.msra.mxu0 %v4387
    %4637 = vmatprep.subr.bf16.mxu0 %v4392
    %4638 = vmatpush1.bf16.msra.mxu0 %v4391
    %4639 = vmatprep.subr.bf16.mxu0 %v4396
    %4640 = vmatpush1.bf16.msra.mxu0 %v4395
    %4641 = vmatprep.subr.bf16.mxu0 %v4400
    %4642 = vmatpush1.bf16.msra.mxu0 %v4399
    %4643 = vmatprep.mubr.bf16.mxu0 %v4042
    %4644 = vmatmul.mubr.bf16.gmra.mrb[0].mxu0 %v4039
    %v4645 = vpop.f32.mrb[0].mxu0
    %v4646 = vadd.f32 0.0, %v4645
    %v4647 = vpop.f32.mrb[0].mxu0
    %v4648 = vadd.f32 0.0, %v4647
    %v4649 = vpop.f32.mrb[0].mxu0
    %v4650 = vpop.f32.mrb[0].mxu0
    %4651 = vdwg.mxu0
    %4652 = vmatprep.subr.bf16.mxu0 %v4404
    %4653 = vmatpush1.bf16.msra.mxu0 %v4403
    %4654 = vmatprep.subr.bf16.mxu0 %v4408
    %4655 = vmatpush1.bf16.msra.mxu0 %v4407
    %4656 = vmatprep.subr.bf16.mxu0 %v4412
    %4657 = vmatpush1.bf16.msra.mxu0 %v4411
    %4658 = vmatprep.subr.bf16.mxu0 %v4416
    %4659 = vmatpush1.bf16.msra.mxu0 %v4415
    %4660 = vmatprep.subr.bf16.mxu0 %v4420
    %4661 = vmatpush1.bf16.msra.mxu0 %v4419
    %4662 = vmatprep.subr.bf16.mxu0 %v4424
    %4663 = vmatpush1.bf16.msra.mxu0 %v4423
    %4664 = vmatprep.subr.bf16.mxu0 %v4428
    %4665 = vmatpush1.bf16.msra.mxu0 %v4427
    %4666 = vmatprep.subr.bf16.mxu0 %v4432
    %4667 = vmatpush1.bf16.msra.mxu0 %v4431
    %4668 = vmatprep.subr.bf16.mxu0 0
    %4669 = vmatpush1.bf16.msra.mxu0 0
    %4670 = vmatprep.subr.bf16.mxu0 0
    %4671 = vmatpush1.bf16.msra.mxu0 0
    %4672 = vmatprep.subr.bf16.mxu0 0
    %4673 = vmatpush1.bf16.msra.mxu0 0
    %4674 = vmatprep.subr.bf16.mxu0 0
    %4675 = vmatpush1.bf16.msra.mxu0 0
    %4676 = vmatprep.subr.bf16.mxu0 0
    %4677 = vmatpush1.bf16.msra.mxu0 0
    %4678 = vmatprep.subr.bf16.mxu0 0
    %4679 = vmatpush1.bf16.msra.mxu0 0
    %4680 = vmatprep.subr.bf16.mxu0 0
    %4681 = vmatpush1.bf16.msra.mxu0 0
    %4682 = vmatprep.subr.bf16.mxu0 0
    %4683 = vmatpush1.bf16.msra.mxu0 0
    %4684 = vmatprep.mubr.bf16.mxu0 0
    %4685 = vmatmul.mubr.bf16.gmra.mrb[0].mxu0 %v4045
    %v4686 = vpop.f32.mrb[0].mxu0
    %v4687 = vadd.f32 %v4646, %v4686
    %v4688 = vpop.f32.mrb[0].mxu0
    %v4689 = vadd.f32 %v4648, %v4688
    %v4690 = vpop.f32.mrb[0].mxu0
    %v4691 = vpop.f32.mrb[0].mxu0
    %4692 = vdwg.mxu0
    %v4693 = vadd.f32 %v3936, %v4605
    %v4694 = vadd.f32 %v3937, %v4607
    %v4695 = vadd.f32 %v3938, %v4687
    %v4696 = vadd.f32 %v3939, %v4689
    %s4697 = scalar_lea.vmem [#allocation7], 3072
    %v4698 = vld [vmem:[%s4697] sm:$0xff]
    %v4699 = vld [vmem:[%s4697 + $0x8] sm:$0xff]
    %v4700 = vld [vmem:[%s4697 + $0x10] sm:$0xff]
    %v4701 = vld [vmem:[%s4697 + $0x18] sm:$0xff]
    %v4702 = vld [vmem:[%s4697 + $0x20] sm:$0xff]
    %v4703 = vld [vmem:[%s4697 + $0x28] sm:$0xff]
    %v4704 = vld [vmem:[%s4697 + $0x30] sm:$0xff]
    %v4705 = vld [vmem:[%s4697 + $0x38] sm:$0xff]
    %v4706 = vld [vmem:[%s4697 + $0x40] sm:$0xff]
    %v4707 = vld [vmem:[%s4697 + $0x48] sm:$0xff]
    %v4708 = vld [vmem:[%s4697 + $0x50] sm:$0xff]
    %v4709 = vld [vmem:[%s4697 + $0x58] sm:$0xff]
    %v4710 = vld [vmem:[%s4697 + $0x60] sm:$0xff]
    %v4711 = vld [vmem:[%s4697 + $0x68] sm:$0xff]
    %v4712 = vld [vmem:[%s4697 + $0x70] sm:$0xff]
    %v4713 = vld [vmem:[%s4697 + $0x78] sm:$0xff]
    %v4714 = vld [vmem:[%s4697 + $0x80] sm:$0xff]
    %v4715 = vld [vmem:[%s4697 + $0x88] sm:$0xff]
    %v4716 = vld [vmem:[%s4697 + $0x90] sm:$0xff]
    %v4717 = vld [vmem:[%s4697 + $0x98] sm:$0xff]
    %v4718 = vld [vmem:[%s4697 + $0xa0] sm:$0xff]
    %v4719 = vld [vmem:[%s4697 + $0xa8] sm:$0xff]
    %v4720 = vld [vmem:[%s4697 + $0xb0] sm:$0xff]
    %v4721 = vld [vmem:[%s4697 + $0xb8] sm:$0xff]
    %v4722 = vld [vmem:[%s4697 + $0xc0] sm:$0xff]
    %v4723 = vld [vmem:[%s4697 + $0xc8] sm:$0xff]
    %v4724 = vld [vmem:[%s4697 + $0xd0] sm:$0xff]
    %v4725 = vld [vmem:[%s4697 + $0xd8] sm:$0xff]
    %v4726 = vld [vmem:[%s4697 + $0xe0] sm:$0xff]
    %v4727 = vld [vmem:[%s4697 + $0xe8] sm:$0xff]
    %v4728 = vld [vmem:[%s4697 + $0xf0] sm:$0xff]
    %v4729 = vld [vmem:[%s4697 + $0xf8] sm:$0xff]
    %v4730 = vld [vmem:[%s4697 + $0x100] sm:$0xff]
    %v4731 = vld [vmem:[%s4697 + $0x108] sm:$0xff]
    %v4732 = vld [vmem:[%s4697 + $0x110] sm:$0xff]
    %v4733 = vld [vmem:[%s4697 + $0x118] sm:$0xff]
    %v4734 = vld [vmem:[%s4697 + $0x120] sm:$0xff]
    %v4735 = vld [vmem:[%s4697 + $0x128] sm:$0xff]
    %v4736 = vld [vmem:[%s4697 + $0x130] sm:$0xff]
    %v4737 = vld [vmem:[%s4697 + $0x138] sm:$0xff]
    %v4738 = vld [vmem:[%s4697 + $0x140] sm:$0xff]
    %v4739 = vld [vmem:[%s4697 + $0x148] sm:$0xff]
    %v4740 = vld [vmem:[%s4697 + $0x150] sm:$0xff]
    %v4741 = vld [vmem:[%s4697 + $0x158] sm:$0xff]
    %v4742 = vld [vmem:[%s4697 + $0x160] sm:$0xff]
    %v4743 = vld [vmem:[%s4697 + $0x168] sm:$0xff]
    %v4744 = vld [vmem:[%s4697 + $0x170] sm:$0xff]
    %v4745 = vld [vmem:[%s4697 + $0x178] sm:$0xff]
    %v4746 = vld [vmem:[%s4697 + $0x180] sm:$0xff]
    %v4747 = vld [vmem:[%s4697 + $0x188] sm:$0xff]
    %v4748 = vld [vmem:[%s4697 + $0x190] sm:$0xff]
    %v4749 = vld [vmem:[%s4697 + $0x198] sm:$0xff]
    %v4750 = vld [vmem:[%s4697 + $0x1a0] sm:$0xff]
    %v4751 = vld [vmem:[%s4697 + $0x1a8] sm:$0xff]
    %v4752 = vld [vmem:[%s4697 + $0x1b0] sm:$0xff]
    %v4753 = vld [vmem:[%s4697 + $0x1b8] sm:$0xff]
    %v4754 = vld [vmem:[%s4697 + $0x1c0] sm:$0xff]
    %v4755 = vld [vmem:[%s4697 + $0x1c8] sm:$0xff]
    %v4756 = vld [vmem:[%s4697 + $0x1d0] sm:$0xff]
    %v4757 = vld [vmem:[%s4697 + $0x1d8] sm:$0xff]
    %v4758 = vld [vmem:[%s4697 + $0x1e0] sm:$0xff]
    %v4759 = vld [vmem:[%s4697 + $0x1e8] sm:$0xff]
    %v4760 = vld [vmem:[%s4697 + $0x1f0] sm:$0xff]
    %v4761 = vld [vmem:[%s4697 + $0x1f8] sm:$0xff]
    %v4762 = vld [vmem:[%s4697 + $0x200] sm:$0xff]
    %v4763 = vld [vmem:[%s4697 + $0x208] sm:$0xff]
    %v4764 = vld [vmem:[%s4697 + $0x210] sm:$0xff]
    %v4765 = vld [vmem:[%s4697 + $0x218] sm:$0xff]
    %v4766 = vld [vmem:[%s4697 + $0x220] sm:$0xff]
    %v4767 = vld [vmem:[%s4697 + $0x228] sm:$0xff]
    %v4768 = vld [vmem:[%s4697 + $0x230] sm:$0xff]
    %v4769 = vld [vmem:[%s4697 + $0x238] sm:$0xff]
    %v4770 = vld [vmem:[%s4697 + $0x240] sm:$0xff]
    %v4771 = vld [vmem:[%s4697 + $0x248] sm:$0xff]
    %v4772 = vld [vmem:[%s4697 + $0x250] sm:$0xff]
    %v4773 = vld [vmem:[%s4697 + $0x258] sm:$0xff]
    %v4774 = vld [vmem:[%s4697 + $0x260] sm:$0xff]
    %v4775 = vld [vmem:[%s4697 + $0x268] sm:$0xff]
    %v4776 = vld [vmem:[%s4697 + $0x270] sm:$0xff]
    %v4777 = vld [vmem:[%s4697 + $0x278] sm:$0xff]
    %v4778 = vld [vmem:[%s4697 + $0x280] sm:$0xff]
    %v4779 = vld [vmem:[%s4697 + $0x288] sm:$0xff]
    %v4780 = vld [vmem:[%s4697 + $0x290] sm:$0xff]
    %v4781 = vld [vmem:[%s4697 + $0x298] sm:$0xff]
    %v4782 = vld [vmem:[%s4697 + $0x2a0] sm:$0xff]
    %v4783 = vld [vmem:[%s4697 + $0x2a8] sm:$0xff]
    %v4784 = vld [vmem:[%s4697 + $0x2b0] sm:$0xff]
    %v4785 = vld [vmem:[%s4697 + $0x2b8] sm:$0xff]
    %v4786 = vld [vmem:[%s4697 + $0x2c0] sm:$0xff]
    %v4787 = vld [vmem:[%s4697 + $0x2c8] sm:$0xff]
    %v4788 = vld [vmem:[%s4697 + $0x2d0] sm:$0xff]
    %v4789 = vld [vmem:[%s4697 + $0x2d8] sm:$0xff]
    %v4790 = vld [vmem:[%s4697 + $0x2e0] sm:$0xff]
    %v4791 = vld [vmem:[%s4697 + $0x2e8] sm:$0xff]
    %v4792 = vld [vmem:[%s4697 + $0x2f0] sm:$0xff]
    %v4793 = vld [vmem:[%s4697 + $0x2f8] sm:$0xff]
    %v4794 = vrot.slane %v1678, 2
    %v4795 = vrot.slane %v1679, 2
    %v4796 = vrot.slane %v1680, 2
    %v4896 = vunpack.c.l.b16 %v4698
    %v4897 = vunpack.c.h.b16 %v4698
    %v4898 = vunpack.c.l.b16 %v4699
    %v4899 = vunpack.c.h.b16 %v4699
    %v4900 = vunpack.c.l.b16 %v4700
    %v4901 = vunpack.c.h.b16 %v4700
    %v4902 = vunpack.c.l.b16 %v4701
    %v4903 = vunpack.c.h.b16 %v4701
    %v4904 = vunpack.c.l.b16 %v4702
    %v4905 = vunpack.c.h.b16 %v4702
    %v4906 = vunpack.c.l.b16 %v4703
    %v4907 = vunpack.c.h.b16 %v4703
    %v4908 = vunpack.c.l.b16 %v4704
    %v4909 = vunpack.c.h.b16 %v4704
    %v4910 = vunpack.c.l.b16 %v4705
    %v4911 = vunpack.c.h.b16 %v4705
    %v4912 = vunpack.c.l.b16 %v4706
    %v4913 = vunpack.c.h.b16 %v4706
    %v4914 = vunpack.c.l.b16 %v4707
    %v4915 = vunpack.c.h.b16 %v4707
    %v4916 = vunpack.c.l.b16 %v4708
    %v4917 = vunpack.c.h.b16 %v4708
    %v4918 = vunpack.c.l.b16 %v4709
    %v4919 = vunpack.c.h.b16 %v4709
    %v4920 = vunpack.c.l.b16 %v4710
    %v4921 = vunpack.c.h.b16 %v4710
    %v4922 = vunpack.c.l.b16 %v4711
    %v4923 = vunpack.c.h.b16 %v4711
    %v4924 = vunpack.c.l.b16 %v4712
    %v4925 = vunpack.c.h.b16 %v4712
    %v4926 = vunpack.c.l.b16 %v4713
    %v4927 = vunpack.c.h.b16 %v4713
    %v4928 = vunpack.c.l.b16 %v4714
    %v4929 = vunpack.c.h.b16 %v4714
    %v4930 = vunpack.c.l.b16 %v4715
    %v4931 = vunpack.c.h.b16 %v4715
    %v4932 = vunpack.c.l.b16 %v4716
    %v4933 = vunpack.c.h.b16 %v4716
    %v4934 = vunpack.c.l.b16 %v4717
    %v4935 = vunpack.c.h.b16 %v4717
    %v4936 = vunpack.c.l.b16 %v4718
    %v4937 = vunpack.c.h.b16 %v4718
    %v4938 = vunpack.c.l.b16 %v4719
    %v4939 = vunpack.c.h.b16 %v4719
    %v4940 = vunpack.c.l.b16 %v4720
    %v4941 = vunpack.c.h.b16 %v4720
    %v4942 = vunpack.c.l.b16 %v4721
    %v4943 = vunpack.c.h.b16 %v4721
    %v4944 = vunpack.c.l.b16 %v4722
    %v4945 = vunpack.c.h.b16 %v4722
    %v4946 = vunpack.c.l.b16 %v4723
    %v4947 = vunpack.c.h.b16 %v4723
    %v4948 = vunpack.c.l.b16 %v4724
    %v4949 = vunpack.c.h.b16 %v4724
    %v4950 = vunpack.c.l.b16 %v4725
    %v4951 = vunpack.c.h.b16 %v4725
    %v4952 = vunpack.c.l.b16 %v4726
    %v4953 = vunpack.c.h.b16 %v4726
    %v4954 = vunpack.c.l.b16 %v4727
    %v4955 = vunpack.c.h.b16 %v4727
    %v4956 = vunpack.c.l.b16 %v4728
    %v4957 = vunpack.c.h.b16 %v4728
    %v4958 = vunpack.c.l.b16 %v4729
    %v4959 = vunpack.c.h.b16 %v4729
    %v4960 = vunpack.c.l.b16 %v4730
    %v4961 = vunpack.c.h.b16 %v4730
    %v4962 = vunpack.c.l.b16 %v4731
    %v4963 = vunpack.c.h.b16 %v4731
    %v4964 = vunpack.c.l.b16 %v4732
    %v4965 = vunpack.c.h.b16 %v4732
    %v4966 = vunpack.c.l.b16 %v4733
    %v4967 = vunpack.c.h.b16 %v4733
    %v4968 = vunpack.c.l.b16 %v4734
    %v4969 = vunpack.c.h.b16 %v4734
    %v4970 = vunpack.c.l.b16 %v4735
    %v4971 = vunpack.c.h.b16 %v4735
    %v4972 = vunpack.c.l.b16 %v4736
    %v4973 = vunpack.c.h.b16 %v4736
    %v4974 = vunpack.c.l.b16 %v4737
    %v4975 = vunpack.c.h.b16 %v4737
    %v4976 = vunpack.c.l.b16 %v4738
    %v4977 = vunpack.c.h.b16 %v4738
    %v4978 = vunpack.c.l.b16 %v4739
    %v4979 = vunpack.c.h.b16 %v4739
    %v4980 = vunpack.c.l.b16 %v4740
    %v4981 = vunpack.c.h.b16 %v4740
    %v4982 = vunpack.c.l.b16 %v4741
    %v4983 = vunpack.c.h.b16 %v4741
    %v4984 = vunpack.c.l.b16 %v4742
    %v4985 = vunpack.c.h.b16 %v4742
    %v4986 = vunpack.c.l.b16 %v4743
    %v4987 = vunpack.c.h.b16 %v4743
    %v4988 = vunpack.c.l.b16 %v4744
    %v4989 = vunpack.c.h.b16 %v4744
    %v4990 = vunpack.c.l.b16 %v4745
    %v4991 = vunpack.c.h.b16 %v4745
    %v4992 = vunpack.c.l.b16 %v4746
    %v4993 = vunpack.c.h.b16 %v4746
    %v4994 = vunpack.c.l.b16 %v4747
    %v4995 = vunpack.c.h.b16 %v4747
    %v4996 = vunpack.c.l.b16 %v4748
    %v4997 = vunpack.c.h.b16 %v4748
    %v4998 = vunpack.c.l.b16 %v4749
    %v4999 = vunpack.c.h.b16 %v4749
    %v5000 = vunpack.c.l.b16 %v4750
    %v5001 = vunpack.c.h.b16 %v4750
    %v5002 = vunpack.c.l.b16 %v4751
    %v5003 = vunpack.c.h.b16 %v4751
    %v5004 = vunpack.c.l.b16 %v4752
    %v5005 = vunpack.c.h.b16 %v4752
    %v5006 = vunpack.c.l.b16 %v4753
    %v5007 = vunpack.c.h.b16 %v4753
    %v5008 = vunpack.c.l.b16 %v4754
    %v5009 = vunpack.c.h.b16 %v4754
    %v5010 = vunpack.c.l.b16 %v4755
    %v5011 = vunpack.c.h.b16 %v4755
    %v5012 = vunpack.c.l.b16 %v4756
    %v5013 = vunpack.c.h.b16 %v4756
    %v5014 = vunpack.c.l.b16 %v4757
    %v5015 = vunpack.c.h.b16 %v4757
    %v5016 = vunpack.c.l.b16 %v4758
    %v5017 = vunpack.c.h.b16 %v4758
    %v5018 = vunpack.c.l.b16 %v4759
    %v5019 = vunpack.c.h.b16 %v4759
    %v5020 = vunpack.c.l.b16 %v4760
    %v5021 = vunpack.c.h.b16 %v4760
    %v5022 = vunpack.c.l.b16 %v4761
    %v5023 = vunpack.c.h.b16 %v4761
    %v5024 = vunpack.c.l.b16 %v4762
    %v5025 = vunpack.c.h.b16 %v4762
    %v5026 = vunpack.c.l.b16 %v4763
    %v5027 = vunpack.c.h.b16 %v4763
    %v5028 = vunpack.c.l.b16 %v4764
    %v5029 = vunpack.c.h.b16 %v4764
    %v5030 = vunpack.c.l.b16 %v4765
    %v5031 = vunpack.c.h.b16 %v4765
    %v5032 = vunpack.c.l.b16 %v4766
    %v5033 = vunpack.c.h.b16 %v4766
    %v5034 = vunpack.c.l.b16 %v4767
    %v5035 = vunpack.c.h.b16 %v4767
    %v5036 = vunpack.c.l.b16 %v4768
    %v5037 = vunpack.c.h.b16 %v4768
    %v5038 = vunpack.c.l.b16 %v4769
    %v5039 = vunpack.c.h.b16 %v4769
    %v5040 = vunpack.c.l.b16 %v4770
    %v5041 = vunpack.c.h.b16 %v4770
    %v5042 = vunpack.c.l.b16 %v4771
    %v5043 = vunpack.c.h.b16 %v4771
    %v5044 = vunpack.c.l.b16 %v4772
    %v5045 = vunpack.c.h.b16 %v4772
    %v5046 = vunpack.c.l.b16 %v4773
    %v5047 = vunpack.c.h.b16 %v4773
    %v5048 = vunpack.c.l.b16 %v4774
    %v5049 = vunpack.c.h.b16 %v4774
    %v5050 = vunpack.c.l.b16 %v4775
    %v5051 = vunpack.c.h.b16 %v4775
    %v5052 = vunpack.c.l.b16 %v4776
    %v5053 = vunpack.c.h.b16 %v4776
    %v5054 = vunpack.c.l.b16 %v4777
    %v5055 = vunpack.c.h.b16 %v4777
    %v5056 = vunpack.c.l.b16 %v4778
    %v5057 = vunpack.c.h.b16 %v4778
    %v5058 = vunpack.c.l.b16 %v4779
    %v5059 = vunpack.c.h.b16 %v4779
    %v5060 = vunpack.c.l.b16 %v4780
    %v5061 = vunpack.c.h.b16 %v4780
    %v5062 = vunpack.c.l.b16 %v4781
    %v5063 = vunpack.c.h.b16 %v4781
    %v5064 = vunpack.c.l.b16 %v4782
    %v5065 = vunpack.c.h.b16 %v4782
    %v5066 = vunpack.c.l.b16 %v4783
    %v5067 = vunpack.c.h.b16 %v4783
    %v5068 = vunpack.c.l.b16 %v4784
    %v5069 = vunpack.c.h.b16 %v4784
    %v5070 = vunpack.c.l.b16 %v4785
    %v5071 = vunpack.c.h.b16 %v4785
    %v5072 = vunpack.c.l.b16 %v4786
    %v5073 = vunpack.c.h.b16 %v4786
    %v5074 = vunpack.c.l.b16 %v4787
    %v5075 = vunpack.c.h.b16 %v4787
    %v5076 = vunpack.c.l.b16 %v4788
    %v5077 = vunpack.c.h.b16 %v4788
    %v5078 = vunpack.c.l.b16 %v4789
    %v5079 = vunpack.c.h.b16 %v4789
    %v5080 = vunpack.c.l.b16 %v4790
    %v5081 = vunpack.c.h.b16 %v4790
    %v5082 = vunpack.c.l.b16 %v4791
    %v5083 = vunpack.c.h.b16 %v4791
    %v5084 = vunpack.c.l.b16 %v4792
    %v5085 = vunpack.c.h.b16 %v4792
    %v5086 = vunpack.c.l.b16 %v4793
    %v5087 = vunpack.c.h.b16 %v4793
    %v5088 = vpack.c.b16 %v4900, %v4896
    %v5089 = vpack.c.b16 %v4901, %v4897
    %v5090 = vpack.c.b16 %v4902, %v4898
    %v5091 = vpack.c.b16 %v4903, %v4899
    %v5092 = vpack.c.b16 %v4908, %v4904
    %v5093 = vpack.c.b16 %v4909, %v4905
    %v5094 = vpack.c.b16 %v4910, %v4906
    %v5095 = vpack.c.b16 %v4911, %v4907
    %v5096 = vpack.c.b16 %v4916, %v4912
    %v5097 = vpack.c.b16 %v4917, %v4913
    %v5098 = vpack.c.b16 %v4918, %v4914
    %v5099 = vpack.c.b16 %v4919, %v4915
    %v5100 = vpack.c.b16 %v4924, %v4920
    %v5101 = vpack.c.b16 %v4925, %v4921
    %v5102 = vpack.c.b16 %v4926, %v4922
    %v5103 = vpack.c.b16 %v4927, %v4923
    %v5104 = vpack.c.b16 %v4932, %v4928
    %v5105 = vpack.c.b16 %v4933, %v4929
    %v5106 = vpack.c.b16 %v4934, %v4930
    %v5107 = vpack.c.b16 %v4935, %v4931
    %v5108 = vpack.c.b16 %v4940, %v4936
    %v5109 = vpack.c.b16 %v4941, %v4937
    %v5110 = vpack.c.b16 %v4942, %v4938
    %v5111 = vpack.c.b16 %v4943, %v4939
    %v5112 = vpack.c.b16 %v4948, %v4944
    %v5113 = vpack.c.b16 %v4949, %v4945
    %v5114 = vpack.c.b16 %v4950, %v4946
    %v5115 = vpack.c.b16 %v4951, %v4947
    %v5116 = vpack.c.b16 %v4956, %v4952
    %v5117 = vpack.c.b16 %v4957, %v4953
    %v5118 = vpack.c.b16 %v4958, %v4954
    %v5119 = vpack.c.b16 %v4959, %v4955
    %v5120 = vpack.c.b16 %v4964, %v4960
    %v5121 = vpack.c.b16 %v4965, %v4961
    %v5122 = vpack.c.b16 %v4966, %v4962
    %v5123 = vpack.c.b16 %v4967, %v4963
    %v5124 = vpack.c.b16 %v4972, %v4968
    %v5125 = vpack.c.b16 %v4973, %v4969
    %v5126 = vpack.c.b16 %v4974, %v4970
    %v5127 = vpack.c.b16 %v4975, %v4971
    %v5128 = vpack.c.b16 %v4980, %v4976
    %v5129 = vpack.c.b16 %v4981, %v4977
    %v5130 = vpack.c.b16 %v4982, %v4978
    %v5131 = vpack.c.b16 %v4983, %v4979
    %v5132 = vpack.c.b16 %v4988, %v4984
    %v5133 = vpack.c.b16 %v4989, %v4985
    %v5134 = vpack.c.b16 %v4990, %v4986
    %v5135 = vpack.c.b16 %v4991, %v4987
    %v5136 = vpack.c.b16 %v4996, %v4992
    %v5137 = vpack.c.b16 %v4997, %v4993
    %v5138 = vpack.c.b16 %v4998, %v4994
    %v5139 = vpack.c.b16 %v4999, %v4995
    %v5140 = vpack.c.b16 %v5004, %v5000
    %v5141 = vpack.c.b16 %v5005, %v5001
    %v5142 = vpack.c.b16 %v5006, %v5002
    %v5143 = vpack.c.b16 %v5007, %v5003
    %v5144 = vpack.c.b16 %v5012, %v5008
    %v5145 = vpack.c.b16 %v5013, %v5009
    %v5146 = vpack.c.b16 %v5014, %v5010
    %v5147 = vpack.c.b16 %v5015, %v5011
    %v5148 = vpack.c.b16 %v5020, %v5016
    %v5149 = vpack.c.b16 %v5021, %v5017
    %v5150 = vpack.c.b16 %v5022, %v5018
    %v5151 = vpack.c.b16 %v5023, %v5019
    %v5152 = vpack.c.b16 %v5028, %v5024
    %v5153 = vpack.c.b16 %v5029, %v5025
    %v5154 = vpack.c.b16 %v5030, %v5026
    %v5155 = vpack.c.b16 %v5031, %v5027
    %v5156 = vpack.c.b16 %v5036, %v5032
    %v5157 = vpack.c.b16 %v5037, %v5033
    %v5158 = vpack.c.b16 %v5038, %v5034
    %v5159 = vpack.c.b16 %v5039, %v5035
    %v5160 = vpack.c.b16 %v5044, %v5040
    %v5161 = vpack.c.b16 %v5045, %v5041
    %v5162 = vpack.c.b16 %v5046, %v5042
    %v5163 = vpack.c.b16 %v5047, %v5043
    %v5164 = vpack.c.b16 %v5052, %v5048
    %v5165 = vpack.c.b16 %v5053, %v5049
    %v5166 = vpack.c.b16 %v5054, %v5050
    %v5167 = vpack.c.b16 %v5055, %v5051
    %v5168 = vpack.c.b16 %v5060, %v5056
    %v5169 = vpack.c.b16 %v5061, %v5057
    %v5170 = vpack.c.b16 %v5062, %v5058
    %v5171 = vpack.c.b16 %v5063, %v5059
    %v5172 = vpack.c.b16 %v5068, %v5064
    %v5173 = vpack.c.b16 %v5069, %v5065
    %v5174 = vpack.c.b16 %v5070, %v5066
    %v5175 = vpack.c.b16 %v5071, %v5067
    %v5176 = vpack.c.b16 %v5076, %v5072
    %v5177 = vpack.c.b16 %v5077, %v5073
    %v5178 = vpack.c.b16 %v5078, %v5074
    %v5179 = vpack.c.b16 %v5079, %v5075
    %v5180 = vpack.c.b16 %v5084, %v5080
    %v5181 = vpack.c.b16 %v5085, %v5081
    %v5182 = vpack.c.b16 %v5086, %v5082
    %v5183 = vpack.c.b16 %v5087, %v5083
    %5280 = vmatprep.subr.bf16.mxu0 %v5089
    %5281 = vmatpush1.bf16.msra.mxu0 %v5088
    %5282 = vmatprep.subr.bf16.mxu0 %v5093
    %5283 = vmatpush1.bf16.msra.mxu0 %v5092
    %5284 = vmatprep.subr.bf16.mxu0 %v5097
    %5285 = vmatpush1.bf16.msra.mxu0 %v5096
    %5286 = vmatprep.subr.bf16.mxu0 %v5101
    %5287 = vmatpush1.bf16.msra.mxu0 %v5100
    %5288 = vmatprep.subr.bf16.mxu0 %v5105
    %5289 = vmatpush1.bf16.msra.mxu0 %v5104
    %5290 = vmatprep.subr.bf16.mxu0 %v5109
    %5291 = vmatpush1.bf16.msra.mxu0 %v5108
    %5292 = vmatprep.subr.bf16.mxu0 %v5113
    %5293 = vmatpush1.bf16.msra.mxu0 %v5112
    %5294 = vmatprep.subr.bf16.mxu0 %v5117
    %5295 = vmatpush1.bf16.msra.mxu0 %v5116
    %5296 = vmatprep.subr.bf16.mxu0 %v5121
    %5297 = vmatpush1.bf16.msra.mxu0 %v5120
    %5298 = vmatprep.subr.bf16.mxu0 %v5125
    %5299 = vmatpush1.bf16.msra.mxu0 %v5124
    %5300 = vmatprep.subr.bf16.mxu0 %v5129
    %5301 = vmatpush1.bf16.msra.mxu0 %v5128
    %5302 = vmatprep.subr.bf16.mxu0 %v5133
    %5303 = vmatpush1.bf16.msra.mxu0 %v5132
    %5304 = vmatprep.subr.bf16.mxu0 %v5137
    %5305 = vmatpush1.bf16.msra.mxu0 %v5136
    %5306 = vmatprep.subr.bf16.mxu0 %v5141
    %5307 = vmatpush1.bf16.msra.mxu0 %v5140
    %5308 = vmatprep.subr.bf16.mxu0 %v5145
    %5309 = vmatpush1.bf16.msra.mxu0 %v5144
    %5310 = vmatprep.subr.bf16.mxu0 %v5149
    %5311 = vmatpush1.bf16.msra.mxu0 %v5148
    %5312 = vmatprep.mubr.bf16.mxu0 %v4795
    %5313 = vmatmul.mubr.bf16.gmra.mrb[0].mxu0 %v4794
    %v5314 = vpop.f32.mrb[0].mxu0
    %v5315 = vadd.f32 0.0, %v5314
    %v5316 = vpop.f32.mrb[0].mxu0
    %v5317 = vadd.f32 0.0, %v5316
    %v5318 = vpop.f32.mrb[0].mxu0
    %v5319 = vpop.f32.mrb[0].mxu0
    %5320 = vdwg.mxu0
    %5321 = vmatprep.subr.bf16.mxu0 %v5153
    %5322 = vmatpush1.bf16.msra.mxu0 %v5152
    %5323 = vmatprep.subr.bf16.mxu0 %v5157
    %5324 = vmatpush1.bf16.msra.mxu0 %v5156
    %5325 = vmatprep.subr.bf16.mxu0 %v5161
    %5326 = vmatpush1.bf16.msra.mxu0 %v5160
    %5327 = vmatprep.subr.bf16.mxu0 %v5165
    %5328 = vmatpush1.bf16.msra.mxu0 %v5164
    %5329 = vmatprep.subr.bf16.mxu0 %v5169
    %5330 = vmatpush1.bf16.msra.mxu0 %v5168
    %5331 = vmatprep.subr.bf16.mxu0 %v5173
    %5332 = vmatpush1.bf16.msra.mxu0 %v5172
    %5333 = vmatprep.subr.bf16.mxu0 %v5177
    %5334 = vmatpush1.bf16.msra.mxu0 %v5176
    %5335 = vmatprep.subr.bf16.mxu0 %v5181
    %5336 = vmatpush1.bf16.msra.mxu0 %v5180
    %5337 = vmatprep.subr.bf16.mxu0 0
    %5338 = vmatpush1.bf16.msra.mxu0 0
    %5339 = vmatprep.subr.bf16.mxu0 0
    %5340 = vmatpush1.bf16.msra.mxu0 0
    %5341 = vmatprep.subr.bf16.mxu0 0
    %5342 = vmatpush1.bf16.msra.mxu0 0
    %5343 = vmatprep.subr.bf16.mxu0 0
    %5344 = vmatpush1.bf16.msra.mxu0 0
    %5345 = vmatprep.subr.bf16.mxu0 0
    %5346 = vmatpush1.bf16.msra.mxu0 0
    %5347 = vmatprep.subr.bf16.mxu0 0
    %5348 = vmatpush1.bf16.msra.mxu0 0
    %5349 = vmatprep.subr.bf16.mxu0 0
    %5350 = vmatpush1.bf16.msra.mxu0 0
    %5351 = vmatprep.subr.bf16.mxu0 0
    %5352 = vmatpush1.bf16.msra.mxu0 0
    %5353 = vmatprep.mubr.bf16.mxu0 0
    %5354 = vmatmul.mubr.bf16.gmra.mrb[0].mxu0 %v4796
    %v5355 = vpop.f32.mrb[0].mxu0
    %v5356 = vadd.f32 %v5315, %v5355
    %v5357 = vpop.f32.mrb[0].mxu0
    %v5358 = vadd.f32 %v5317, %v5357
    %v5359 = vpop.f32.mrb[0].mxu0
    %v5360 = vpop.f32.mrb[0].mxu0
    %5361 = vdwg.mxu0
    %5362 = vmatprep.subr.bf16.mxu0 %v5091
    %5363 = vmatpush1.bf16.msra.mxu0 %v5090
    %5364 = vmatprep.subr.bf16.mxu0 %v5095
    %5365 = vmatpush1.bf16.msra.mxu0 %v5094
    %5366 = vmatprep.subr.bf16.mxu0 %v5099
    %5367 = vmatpush1.bf16.msra.mxu0 %v5098
    %5368 = vmatprep.subr.bf16.mxu0 %v5103
    %5369 = vmatpush1.bf16.msra.mxu0 %v5102
    %5370 = vmatprep.subr.bf16.mxu0 %v5107
    %5371 = vmatpush1.bf16.msra.mxu0 %v5106
    %5372 = vmatprep.subr.bf16.mxu0 %v5111
    %5373 = vmatpush1.bf16.msra.mxu0 %v5110
    %5374 = vmatprep.subr.bf16.mxu0 %v5115
    %5375 = vmatpush1.bf16.msra.mxu0 %v5114
    %5376 = vmatprep.subr.bf16.mxu0 %v5119
    %5377 = vmatpush1.bf16.msra.mxu0 %v5118
    %5378 = vmatprep.subr.bf16.mxu0 %v5123
    %5379 = vmatpush1.bf16.msra.mxu0 %v5122
    %5380 = vmatprep.subr.bf16.mxu0 %v5127
    %5381 = vmatpush1.bf16.msra.mxu0 %v5126
    %5382 = vmatprep.subr.bf16.mxu0 %v5131
    %5383 = vmatpush1.bf16.msra.mxu0 %v5130
    %5384 = vmatprep.subr.bf16.mxu0 %v5135
    %5385 = vmatpush1.bf16.msra.mxu0 %v5134
    %5386 = vmatprep.subr.bf16.mxu0 %v5139
    %5387 = vmatpush1.bf16.msra.mxu0 %v5138
    %5388 = vmatprep.subr.bf16.mxu0 %v5143
    %5389 = vmatpush1.bf16.msra.mxu0 %v5142
    %5390 = vmatprep.subr.bf16.mxu0 %v5147
    %5391 = vmatpush1.bf16.msra.mxu0 %v5146
    %5392 = vmatprep.subr.bf16.mxu0 %v5151
    %5393 = vmatpush1.bf16.msra.mxu0 %v5150
    %5394 = vmatprep.mubr.bf16.mxu0 %v4795
    %5395 = vmatmul.mubr.bf16.gmra.mrb[0].mxu0 %v4794
    %v5396 = vpop.f32.mrb[0].mxu0
    %v5397 = vadd.f32 0.0, %v5396
    %v5398 = vpop.f32.mrb[0].mxu0
    %v5399 = vadd.f32 0.0, %v5398
    %v5400 = vpop.f32.mrb[0].mxu0
    %v5401 = vpop.f32.mrb[0].mxu0
    %5402 = vdwg.mxu0
    %5403 = vmatprep.subr.bf16.mxu0 %v5155
    %5404 = vmatpush1.bf16.msra.mxu0 %v5154
    %5405 = vmatprep.subr.bf16.mxu0 %v5159
    %5406 = vmatpush1.bf16.msra.mxu0 %v5158
    %5407 = vmatprep.subr.bf16.mxu0 %v5163
    %5408 = vmatpush1.bf16.msra.mxu0 %v5162
    %5409 = vmatprep.subr.bf16.mxu0 %v5167
    %5410 = vmatpush1.bf16.msra.mxu0 %v5166
    %5411 = vmatprep.subr.bf16.mxu0 %v5171
    %5412 = vmatpush1.bf16.msra.mxu0 %v5170
    %5413 = vmatprep.subr.bf16.mxu0 %v5175
    %5414 = vmatpush1.bf16.msra.mxu0 %v5174
    %5415 = vmatprep.subr.bf16.mxu0 %v5179
    %5416 = vmatpush1.bf16.msra.mxu0 %v5178
    %5417 = vmatprep.subr.bf16.mxu0 %v5183
    %5418 = vmatpush1.bf16.msra.mxu0 %v5182
    %5419 = vmatprep.subr.bf16.mxu0 0
    %5420 = vmatpush1.bf16.msra.mxu0 0
    %5421 = vmatprep.subr.bf16.mxu0 0
    %5422 = vmatpush1.bf16.msra.mxu0 0
    %5423 = vmatprep.subr.bf16.mxu0 0
    %5424 = vmatpush1.bf16.msra.mxu0 0
    %5425 = vmatprep.subr.bf16.mxu0 0
    %5426 = vmatpush1.bf16.msra.mxu0 0
    %5427 = vmatprep.subr.bf16.mxu0 0
    %5428 = vmatpush1.bf16.msra.mxu0 0
    %5429 = vmatprep.subr.bf16.mxu0 0
    %5430 = vmatpush1.bf16.msra.mxu0 0
    %5431 = vmatprep.subr.bf16.mxu0 0
    %5432 = vmatpush1.bf16.msra.mxu0 0
    %5433 = vmatprep.subr.bf16.mxu0 0
    %5434 = vmatpush1.bf16.msra.mxu0 0
    %5435 = vmatprep.mubr.bf16.mxu0 0
    %5436 = vmatmul.mubr.bf16.gmra.mrb[0].mxu0 %v4796
    %v5437 = vpop.f32.mrb[0].mxu0
    %v5438 = vadd.f32 %v5397, %v5437
    %v5439 = vpop.f32.mrb[0].mxu0
    %v5440 = vadd.f32 %v5399, %v5439
    %v5441 = vpop.f32.mrb[0].mxu0
    %v5442 = vpop.f32.mrb[0].mxu0
    %5443 = vdwg.mxu0
    %v5444 = vadd.f32 %v4693, %v5356
    %v5445 = vadd.f32 %v4694, %v5358
    %v5446 = vadd.f32 %v4695, %v5438
    %v5447 = vadd.f32 %v4696, %v5440
    %v5448 = vld [vmem:[#allocation8] sm:$0xf]
    %v5450 = vlaneseq
    %v5451 = vshrl.u32 %v5450, 7
    %v5452 = vsub.s32 0, %v5451
    %v5453 = vrot.slane %v5448, %v5452
    %v5454 = vlaneseq
    %v5455 = vshrl.u32 %v5454, 7
    %v5456 = vsub.s32 1, %v5455
    %v5457 = vrot.slane %v5448, %v5456
    %v5458 = vlaneseq
    %v5459 = vshrl.u32 %v5458, 7
    %v5460 = vsub.s32 2, %v5459
    %v5461 = vrot.slane %v5448, %v5460
    %v5462 = vlaneseq
    %v5463 = vshrl.u32 %v5462, 7
    %v5464 = vsub.s32 3, %v5463
    %v5465 = vrot.slane %v5448, %v5464
    %v5470 = vadd.f32 %v5444, %v5453
    %v5471 = vadd.f32 %v5445, %v5457
    %v5472 = vadd.f32 %v5446, %v5461
    %v5473 = vadd.f32 %v5447, %v5465
    %v5474 = vmax.f32 %v5470, %v5472
    %v5475 = vmax.f32 %v5471, %v5473
    %v5478 = vrot.slane %v5474, 1
    %v5479 = vrot.slane %v5475, 1
    %v5482 = vmax.f32 %v5474, %v5478
    %v5483 = vmax.f32 %v5475, %v5479
    %v5486 = vrot.slane %v5482, 2
    %v5487 = vrot.slane %v5483, 2
    %v5490 = vrot.slane %v5482, 4
    %v5491 = vrot.slane %v5483, 4
    %v5494 = vrot.slane %v5482, 6
    %v5495 = vrot.slane %v5483, 6
    %v5498 = vpack.c.bf16 %v5482, %v5482
    %v5499 = vpack.c.bf16 %v5483, %v5483
    %v5500 = vpack.c.bf16 %v5486, %v5486
    %v5501 = vpack.c.bf16 %v5487, %v5487
    %v5502 = vpack.c.bf16 %v5490, %v5490
    %v5503 = vpack.c.bf16 %v5491, %v5491
    %v5504 = vpack.c.bf16 %v5494, %v5494
    %v5505 = vpack.c.bf16 %v5495, %v5495
    %s5506 = scalar_lea.vmem %s0, 16
    %v5507 = vld [vmem:[%s5506] sm:$0xf]
    %v5508 = vld [vmem:[%s5506 + $0x4] sm:$0xf]
    %v5509 = vld [vmem:[%s5506 + $0x8] sm:$0xf]
    %v5510 = vld [vmem:[%s5506 + $0xc] sm:$0x1]
    %v5515 = vunpack.c.l.b16 %v5507
    %v5516 = vunpack.c.l.b16 %v5508
    %v5517 = vunpack.c.l.b16 %v5509
    %v5518 = vunpack.c.l.b16 %v5510
    %v5519 = vpack.c.b16 %v5516, %v5515
    %v5520 = vpack.c.b16 %v5518, %v5517
    %v5522 = vshrl.u32 %v5519, 16
    %v5524 = vshll.u32 %v5519, 16
    %v5526 = vrot.slane %v5524, 1
    %v5527 = vor.u32 %v5522, %v5526
    %v5529 = vshll.u32 %v5520, 16
    %v5531 = vrot.slane %v5529, 1
    %v5532 = vsel %vm174, %v5527, %v5531
    %v5533 = vshrl.u32 %v5520, 16
    %v5535 = vor.u32 %v5533, %v5531
    %v5537 = vsel %vm244, %v5532, 0
    %v5540 = vsel %vm244, %v5535, 0
    %5542 = vmatprep.subr.bf16.mxu0 %v227
    %5543 = vmatpush1.bf16.msra.mxu0 %v226
    %5544 = vmatprep.subr.bf16.mxu0 %v256
    %5545 = vmatpush1.bf16.msra.mxu0 %v253
    %5546 = vmatprep.subr.bf16.mxu0 0
    %5547 = vmatpush1.bf16.msra.mxu0 0
    %5548 = vmatprep.subr.bf16.mxu0 0
    %5549 = vmatpush1.bf16.msra.mxu0 0
    %5550 = vmatprep.subr.bf16.mxu0 0
    %5551 = vmatpush1.bf16.msra.mxu0 0
    %5552 = vmatprep.subr.bf16.mxu0 0
    %5553 = vmatpush1.bf16.msra.mxu0 0
    %5554 = vmatprep.subr.bf16.mxu0 0
    %5555 = vmatpush1.bf16.msra.mxu0 0
    %5556 = vmatprep.subr.bf16.mxu0 0
    %5557 = vmatpush1.bf16.msra.mxu0 0
    %5558 = vmatprep.subr.bf16.mxu0 0
    %5559 = vmatpush1.bf16.msra.mxu0 0
    %5560 = vmatprep.subr.bf16.mxu0 0
    %5561 = vmatpush1.bf16.msra.mxu0 0
    %5562 = vmatprep.subr.bf16.mxu0 0
    %5563 = vmatpush1.bf16.msra.mxu0 0
    %5564 = vmatprep.subr.bf16.mxu0 0
    %5565 = vmatpush1.bf16.msra.mxu0 0
    %5566 = vmatprep.subr.bf16.mxu0 0
    %5567 = vmatpush1.bf16.msra.mxu0 0
    %5568 = vmatprep.subr.bf16.mxu0 0
    %5569 = vmatpush1.bf16.msra.mxu0 0
    %5570 = vmatprep.subr.bf16.mxu0 0
    %5571 = vmatpush1.bf16.msra.mxu0 0
    %5572 = vmatprep.subr.bf16.mxu0 0
    %5573 = vmatpush1.bf16.msra.mxu0 0
    %5574 = vmatprep.mubr.bf16.mxu0 0
    %5575 = vmatmul.mubr.bf16.gmra.mrb[0].mxu0 %v5537
    %v5576 = vpop.f32.mrb[0].mxu0
    %v5577 = vadd.f32 0.0, %v5576
    %v5578 = vpop.f32.mrb[0].mxu0
    %v5579 = vadd.f32 0.0, %v5578
    %v5580 = vpop.f32.mrb[0].mxu0
    %v5581 = vadd.f32 0.0, %v5580
    %v5582 = vpop.f32.mrb[0].mxu0
    %v5583 = vadd.f32 0.0, %v5582
    %5584 = vmatprep.mubr.bf16.mxu0 0
    %5585 = vmatmul.mubr.bf16.gmra.mrb[0].mxu0 %v5540
    %v5586 = vpop.f32.mrb[0].mxu0
    %v5587 = vadd.f32 0.0, %v5586
    %v5588 = vpop.f32.mrb[0].mxu0
    %v5589 = vadd.f32 0.0, %v5588
    %v5590 = vpop.f32.mrb[0].mxu0
    %v5591 = vpop.f32.mrb[0].mxu0
    %5592 = vdwg.mxu0
    %5593 = vmatprep.subr.bf16.mxu0 %v229
    %5594 = vmatpush1.bf16.msra.mxu0 %v228
    %5595 = vmatprep.subr.bf16.mxu0 %v262
    %5596 = vmatpush1.bf16.msra.mxu0 %v259
    %5597 = vmatprep.subr.bf16.mxu0 0
    %5598 = vmatpush1.bf16.msra.mxu0 0
    %5599 = vmatprep.subr.bf16.mxu0 0
    %5600 = vmatpush1.bf16.msra.mxu0 0
    %5601 = vmatprep.subr.bf16.mxu0 0
    %5602 = vmatpush1.bf16.msra.mxu0 0
    %5603 = vmatprep.subr.bf16.mxu0 0
    %5604 = vmatpush1.bf16.msra.mxu0 0
    %5605 = vmatprep.subr.bf16.mxu0 0
    %5606 = vmatpush1.bf16.msra.mxu0 0
    %5607 = vmatprep.subr.bf16.mxu0 0
    %5608 = vmatpush1.bf16.msra.mxu0 0
    %5609 = vmatprep.subr.bf16.mxu0 0
    %5610 = vmatpush1.bf16.msra.mxu0 0
    %5611 = vmatprep.subr.bf16.mxu0 0
    %5612 = vmatpush1.bf16.msra.mxu0 0
    %5613 = vmatprep.subr.bf16.mxu0 0
    %5614 = vmatpush1.bf16.msra.mxu0 0
    %5615 = vmatprep.subr.bf16.mxu0 0
    %5616 = vmatpush1.bf16.msra.mxu0 0
    %5617 = vmatprep.subr.bf16.mxu0 0
    %5618 = vmatpush1.bf16.msra.mxu0 0
    %5619 = vmatprep.subr.bf16.mxu0 0
    %5620 = vmatpush1.bf16.msra.mxu0 0
    %5621 = vmatprep.subr.bf16.mxu0 0
    %5622 = vmatpush1.bf16.msra.mxu0 0
    %5623 = vmatprep.subr.bf16.mxu0 0
    %5624 = vmatpush1.bf16.msra.mxu0 0
    %5625 = vmatprep.mubr.bf16.mxu0 0
    %5626 = vmatmul.mubr.bf16.gmra.mrb[0].mxu0 %v5537
    %v5627 = vpop.f32.mrb[0].mxu0
    %v5628 = vadd.f32 0.0, %v5627
    %v5629 = vpop.f32.mrb[0].mxu0
    %v5630 = vadd.f32 0.0, %v5629
    %v5631 = vpop.f32.mrb[0].mxu0
    %v5632 = vadd.f32 0.0, %v5631
    %v5633 = vpop.f32.mrb[0].mxu0
    %v5634 = vadd.f32 0.0, %v5633
    %5635 = vmatprep.mubr.bf16.mxu0 0
    %5636 = vmatmul.mubr.bf16.gmra.mrb[0].mxu0 %v5540
    %v5637 = vpop.f32.mrb[0].mxu0
    %v5638 = vadd.f32 0.0, %v5637
    %v5639 = vpop.f32.mrb[0].mxu0
    %v5640 = vadd.f32 0.0, %v5639
    %v5641 = vpop.f32.mrb[0].mxu0
    %v5642 = vpop.f32.mrb[0].mxu0
    %5643 = vdwg.mxu0
    %5644 = vmatprep.subr.bf16.mxu0 %v231
    %5645 = vmatpush1.bf16.msra.mxu0 %v230
    %5646 = vmatprep.subr.bf16.mxu0 %v268
    %5647 = vmatpush1.bf16.msra.mxu0 %v265
    %5648 = vmatprep.subr.bf16.mxu0 0
    %5649 = vmatpush1.bf16.msra.mxu0 0
    %5650 = vmatprep.subr.bf16.mxu0 0
    %5651 = vmatpush1.bf16.msra.mxu0 0
    %5652 = vmatprep.subr.bf16.mxu0 0
    %5653 = vmatpush1.bf16.msra.mxu0 0
    %5654 = vmatprep.subr.bf16.mxu0 0
    %5655 = vmatpush1.bf16.msra.mxu0 0
    %5656 = vmatprep.subr.bf16.mxu0 0
    %5657 = vmatpush1.bf16.msra.mxu0 0
    %5658 = vmatprep.subr.bf16.mxu0 0
    %5659 = vmatpush1.bf16.msra.mxu0 0
    %5660 = vmatprep.subr.bf16.mxu0 0
    %5661 = vmatpush1.bf16.msra.mxu0 0
    %5662 = vmatprep.subr.bf16.mxu0 0
    %5663 = vmatpush1.bf16.msra.mxu0 0
    %5664 = vmatprep.subr.bf16.mxu0 0
    %5665 = vmatpush1.bf16.msra.mxu0 0
    %5666 = vmatprep.subr.bf16.mxu0 0
    %5667 = vmatpush1.bf16.msra.mxu0 0
    %5668 = vmatprep.subr.bf16.mxu0 0
    %5669 = vmatpush1.bf16.msra.mxu0 0
    %5670 = vmatprep.subr.bf16.mxu0 0
    %5671 = vmatpush1.bf16.msra.mxu0 0
    %5672 = vmatprep.subr.bf16.mxu0 0
    %5673 = vmatpush1.bf16.msra.mxu0 0
    %5674 = vmatprep.subr.bf16.mxu0 0
    %5675 = vmatpush1.bf16.msra.mxu0 0
    %5676 = vmatprep.mubr.bf16.mxu0 0
    %5677 = vmatmul.mubr.bf16.gmra.mrb[0].mxu0 %v5537
    %v5678 = vpop.f32.mrb[0].mxu0
    %v5679 = vadd.f32 0.0, %v5678
    %v5680 = vpop.f32.mrb[0].mxu0
    %v5681 = vadd.f32 0.0, %v5680
    %v5682 = vpop.f32.mrb[0].mxu0
    %v5683 = vadd.f32 0.0, %v5682
    %v5684 = vpop.f32.mrb[0].mxu0
    %v5685 = vadd.f32 0.0, %v5684
    %5686 = vmatprep.mubr.bf16.mxu0 0
    %5687 = vmatmul.mubr.bf16.gmra.mrb[0].mxu0 %v5540
    %v5688 = vpop.f32.mrb[0].mxu0
    %v5689 = vadd.f32 0.0, %v5688
    %v5690 = vpop.f32.mrb[0].mxu0
    %v5691 = vadd.f32 0.0, %v5690
    %v5692 = vpop.f32.mrb[0].mxu0
    %v5693 = vpop.f32.mrb[0].mxu0
    %5694 = vdwg.mxu0
    %v5695 = vpack.c.b16 %v5517, %v5517
    %v5696 = vsel %vm244, %v5519, 0
    %v5699 = vsel %vm244, %v5695, 0
    %5701 = vmatprep.subr.bf16.mxu0 %v461
    %5702 = vmatpush1.bf16.msra.mxu0 %v460
    %5703 = vmatprep.subr.bf16.mxu0 %v487
    %5704 = vmatpush1.bf16.msra.mxu0 %v484
    %5705 = vmatprep.subr.bf16.mxu0 0
    %5706 = vmatpush1.bf16.msra.mxu0 0
    %5707 = vmatprep.subr.bf16.mxu0 0
    %5708 = vmatpush1.bf16.msra.mxu0 0
    %5709 = vmatprep.subr.bf16.mxu0 0
    %5710 = vmatpush1.bf16.msra.mxu0 0
    %5711 = vmatprep.subr.bf16.mxu0 0
    %5712 = vmatpush1.bf16.msra.mxu0 0
    %5713 = vmatprep.subr.bf16.mxu0 0
    %5714 = vmatpush1.bf16.msra.mxu0 0
    %5715 = vmatprep.subr.bf16.mxu0 0
    %5716 = vmatpush1.bf16.msra.mxu0 0
    %5717 = vmatprep.subr.bf16.mxu0 0
    %5718 = vmatpush1.bf16.msra.mxu0 0
    %5719 = vmatprep.subr.bf16.mxu0 0
    %5720 = vmatpush1.bf16.msra.mxu0 0
    %5721 = vmatprep.subr.bf16.mxu0 0
    %5722 = vmatpush1.bf16.msra.mxu0 0
    %5723 = vmatprep.subr.bf16.mxu0 0
    %5724 = vmatpush1.bf16.msra.mxu0 0
    %5725 = vmatprep.subr.bf16.mxu0 0
    %5726 = vmatpush1.bf16.msra.mxu0 0
    %5727 = vmatprep.subr.bf16.mxu0 0
    %5728 = vmatpush1.bf16.msra.mxu0 0
    %5729 = vmatprep.subr.bf16.mxu0 0
    %5730 = vmatpush1.bf16.msra.mxu0 0
    %5731 = vmatprep.subr.bf16.mxu0 0
    %5732 = vmatpush1.bf16.msra.mxu0 0
    %5733 = vmatprep.mubr.bf16.mxu0 0
    %5734 = vmatmul.mubr.bf16.gmra.mrb[0].mxu0 %v5696
    %v5735 = vpop.f32.mrb[0].mxu0
    %v5736 = vadd.f32 %v5577, %v5735
    %v5737 = vpop.f32.mrb[0].mxu0
    %v5738 = vadd.f32 %v5579, %v5737
    %v5739 = vpop.f32.mrb[0].mxu0
    %v5740 = vadd.f32 %v5581, %v5739
    %v5741 = vpop.f32.mrb[0].mxu0
    %v5742 = vadd.f32 %v5583, %v5741
    %5743 = vmatprep.mubr.bf16.mxu0 0
    %5744 = vmatmul.mubr.bf16.gmra.mrb[0].mxu0 %v5699
    %v5745 = vpop.f32.mrb[0].mxu0
    %v5746 = vadd.f32 %v5587, %v5745
    %v5747 = vpop.f32.mrb[0].mxu0
    %v5748 = vadd.f32 %v5589, %v5747
    %v5749 = vpop.f32.mrb[0].mxu0
    %v5750 = vpop.f32.mrb[0].mxu0
    %5751 = vdwg.mxu0
    %5752 = vmatprep.subr.bf16.mxu0 %v463
    %5753 = vmatpush1.bf16.msra.mxu0 %v462
    %5754 = vmatprep.subr.bf16.mxu0 %v493
    %5755 = vmatpush1.bf16.msra.mxu0 %v490
    %5756 = vmatprep.subr.bf16.mxu0 0
    %5757 = vmatpush1.bf16.msra.mxu0 0
    %5758 = vmatprep.subr.bf16.mxu0 0
    %5759 = vmatpush1.bf16.msra.mxu0 0
    %5760 = vmatprep.subr.bf16.mxu0 0
    %5761 = vmatpush1.bf16.msra.mxu0 0
    %5762 = vmatprep.subr.bf16.mxu0 0
    %5763 = vmatpush1.bf16.msra.mxu0 0
    %5764 = vmatprep.subr.bf16.mxu0 0
    %5765 = vmatpush1.bf16.msra.mxu0 0
    %5766 = vmatprep.subr.bf16.mxu0 0
    %5767 = vmatpush1.bf16.msra.mxu0 0
    %5768 = vmatprep.subr.bf16.mxu0 0
    %5769 = vmatpush1.bf16.msra.mxu0 0
    %5770 = vmatprep.subr.bf16.mxu0 0
    %5771 = vmatpush1.bf16.msra.mxu0 0
    %5772 = vmatprep.subr.bf16.mxu0 0
    %5773 = vmatpush1.bf16.msra.mxu0 0
    %5774 = vmatprep.subr.bf16.mxu0 0
    %5775 = vmatpush1.bf16.msra.mxu0 0
    %5776 = vmatprep.subr.bf16.mxu0 0
    %5777 = vmatpush1.bf16.msra.mxu0 0
    %5778 = vmatprep.subr.bf16.mxu0 0
    %5779 = vmatpush1.bf16.msra.mxu0 0
    %5780 = vmatprep.subr.bf16.mxu0 0
    %5781 = vmatpush1.bf16.msra.mxu0 0
    %5782 = vmatprep.subr.bf16.mxu0 0
    %5783 = vmatpush1.bf16.msra.mxu0 0
    %5784 = vmatprep.mubr.bf16.mxu0 0
    %5785 = vmatmul.mubr.bf16.gmra.mrb[0].mxu0 %v5696
    %v5786 = vpop.f32.mrb[0].mxu0
    %v5787 = vadd.f32 %v5628, %v5786
    %v5788 = vpop.f32.mrb[0].mxu0
    %v5789 = vadd.f32 %v5630, %v5788
    %v5790 = vpop.f32.mrb[0].mxu0
    %v5791 = vadd.f32 %v5632, %v5790
    %v5792 = vpop.f32.mrb[0].mxu0
    %v5793 = vadd.f32 %v5634, %v5792
    %5794 = vmatprep.mubr.bf16.mxu0 0
    %5795 = vmatmul.mubr.bf16.gmra.mrb[0].mxu0 %v5699
    %v5796 = vpop.f32.mrb[0].mxu0
    %v5797 = vadd.f32 %v5638, %v5796
    %v5798 = vpop.f32.mrb[0].mxu0
    %v5799 = vadd.f32 %v5640, %v5798
    %v5800 = vpop.f32.mrb[0].mxu0
    %v5801 = vpop.f32.mrb[0].mxu0
    %5802 = vdwg.mxu0
    %5803 = vmatprep.subr.bf16.mxu0 %v465
    %5804 = vmatpush1.bf16.msra.mxu0 %v464
    %5805 = vmatprep.subr.bf16.mxu0 %v499
    %5806 = vmatpush1.bf16.msra.mxu0 %v496
    %5807 = vmatprep.subr.bf16.mxu0 0
    %5808 = vmatpush1.bf16.msra.mxu0 0
    %5809 = vmatprep.subr.bf16.mxu0 0
    %5810 = vmatpush1.bf16.msra.mxu0 0
    %5811 = vmatprep.subr.bf16.mxu0 0
    %5812 = vmatpush1.bf16.msra.mxu0 0
    %5813 = vmatprep.subr.bf16.mxu0 0
    %5814 = vmatpush1.bf16.msra.mxu0 0
    %5815 = vmatprep.subr.bf16.mxu0 0
    %5816 = vmatpush1.bf16.msra.mxu0 0
    %5817 = vmatprep.subr.bf16.mxu0 0
    %5818 = vmatpush1.bf16.msra.mxu0 0
    %5819 = vmatprep.subr.bf16.mxu0 0
    %5820 = vmatpush1.bf16.msra.mxu0 0
    %5821 = vmatprep.subr.bf16.mxu0 0
    %5822 = vmatpush1.bf16.msra.mxu0 0
    %5823 = vmatprep.subr.bf16.mxu0 0
    %5824 = vmatpush1.bf16.msra.mxu0 0
    %5825 = vmatprep.subr.bf16.mxu0 0
    %5826 = vmatpush1.bf16.msra.mxu0 0
    %5827 = vmatprep.subr.bf16.mxu0 0
    %5828 = vmatpush1.bf16.msra.mxu0 0
    %5829 = vmatprep.subr.bf16.mxu0 0
    %5830 = vmatpush1.bf16.msra.mxu0 0
    %5831 = vmatprep.subr.bf16.mxu0 0
    %5832 = vmatpush1.bf16.msra.mxu0 0
    %5833 = vmatprep.subr.bf16.mxu0 0
    %5834 = vmatpush1.bf16.msra.mxu0 0
    %5835 = vmatprep.mubr.bf16.mxu0 0
    %5836 = vmatmul.mubr.bf16.gmra.mrb[0].mxu0 %v5696
    %v5837 = vpop.f32.mrb[0].mxu0
    %v5838 = vadd.f32 %v5679, %v5837
    %v5839 = vpop.f32.mrb[0].mxu0
    %v5840 = vadd.f32 %v5681, %v5839
    %v5841 = vpop.f32.mrb[0].mxu0
    %v5842 = vadd.f32 %v5683, %v5841
    %v5843 = vpop.f32.mrb[0].mxu0
    %v5844 = vadd.f32 %v5685, %v5843
    %5845 = vmatprep.mubr.bf16.mxu0 0
    %5846 = vmatmul.mubr.bf16.gmra.mrb[0].mxu0 %v5699
    %v5847 = vpop.f32.mrb[0].mxu0
    %v5848 = vadd.f32 %v5689, %v5847
    %v5849 = vpop.f32.mrb[0].mxu0
    %v5850 = vadd.f32 %v5691, %v5849
    %v5851 = vpop.f32.mrb[0].mxu0
    %v5852 = vpop.f32.mrb[0].mxu0
    %5853 = vdwg.mxu0
    %v5854 = vld [vmem:[%s5506] sm:$0xe]
    %v5856 = vunpack.c.l.b16 %v5854
    %v5857 = vpack.c.b16 %v5516, %v5856
    %v5858 = vrot.slane %v5857, 1
    %v5859 = vrot.slane %v5520, 1
    %v5860 = vsel %vm671, %v5858, %v5859
    %v5862 = vsel %vm244, %v5860, 0
    %v5865 = vsel %vm244, %v5859, 0
    %5867 = vmatprep.subr.bf16.mxu0 %v712
    %5868 = vmatpush1.bf16.msra.mxu0 %v711
    %5869 = vmatprep.subr.bf16.mxu0 %v739
    %5870 = vmatpush1.bf16.msra.mxu0 %v736
    %5871 = vmatprep.subr.bf16.mxu0 0
    %5872 = vmatpush1.bf16.msra.mxu0 0
    %5873 = vmatprep.subr.bf16.mxu0 0
    %5874 = vmatpush1.bf16.msra.mxu0 0
    %5875 = vmatprep.subr.bf16.mxu0 0
    %5876 = vmatpush1.bf16.msra.mxu0 0
    %5877 = vmatprep.subr.bf16.mxu0 0
    %5878 = vmatpush1.bf16.msra.mxu0 0
    %5879 = vmatprep.subr.bf16.mxu0 0
    %5880 = vmatpush1.bf16.msra.mxu0 0
    %5881 = vmatprep.subr.bf16.mxu0 0
    %5882 = vmatpush1.bf16.msra.mxu0 0
    %5883 = vmatprep.subr.bf16.mxu0 0
    %5884 = vmatpush1.bf16.msra.mxu0 0
    %5885 = vmatprep.subr.bf16.mxu0 0
    %5886 = vmatpush1.bf16.msra.mxu0 0
    %5887 = vmatprep.subr.bf16.mxu0 0
    %5888 = vmatpush1.bf16.msra.mxu0 0
    %5889 = vmatprep.subr.bf16.mxu0 0
    %5890 = vmatpush1.bf16.msra.mxu0 0
    %5891 = vmatprep.subr.bf16.mxu0 0
    %5892 = vmatpush1.bf16.msra.mxu0 0
    %5893 = vmatprep.subr.bf16.mxu0 0
    %5894 = vmatpush1.bf16.msra.mxu0 0
    %5895 = vmatprep.subr.bf16.mxu0 0
    %5896 = vmatpush1.bf16.msra.mxu0 0
    %5897 = vmatprep.subr.bf16.mxu0 0
    %5898 = vmatpush1.bf16.msra.mxu0 0
    %5899 = vmatprep.mubr.bf16.mxu0 0
    %5900 = vmatmul.mubr.bf16.gmra.mrb[0].mxu0 %v5862
    %v5901 = vpop.f32.mrb[0].mxu0
    %v5902 = vadd.f32 0.0, %v5901
    %v5903 = vpop.f32.mrb[0].mxu0
    %v5904 = vadd.f32 0.0, %v5903
    %v5905 = vpop.f32.mrb[0].mxu0
    %v5906 = vadd.f32 0.0, %v5905
    %v5907 = vpop.f32.mrb[0].mxu0
    %v5908 = vadd.f32 0.0, %v5907
    %5909 = vmatprep.mubr.bf16.mxu0 0
    %5910 = vmatmul.mubr.bf16.gmra.mrb[0].mxu0 %v5865
    %v5911 = vpop.f32.mrb[0].mxu0
    %v5912 = vadd.f32 0.0, %v5911
    %v5913 = vpop.f32.mrb[0].mxu0
    %v5914 = vadd.f32 0.0, %v5913
    %v5915 = vpop.f32.mrb[0].mxu0
    %v5916 = vpop.f32.mrb[0].mxu0
    %5917 = vdwg.mxu0
    %5918 = vmatprep.subr.bf16.mxu0 %v714
    %5919 = vmatpush1.bf16.msra.mxu0 %v713
    %5920 = vmatprep.subr.bf16.mxu0 %v745
    %5921 = vmatpush1.bf16.msra.mxu0 %v742
    %5922 = vmatprep.subr.bf16.mxu0 0
    %5923 = vmatpush1.bf16.msra.mxu0 0
    %5924 = vmatprep.subr.bf16.mxu0 0
    %5925 = vmatpush1.bf16.msra.mxu0 0
    %5926 = vmatprep.subr.bf16.mxu0 0
    %5927 = vmatpush1.bf16.msra.mxu0 0
    %5928 = vmatprep.subr.bf16.mxu0 0
    %5929 = vmatpush1.bf16.msra.mxu0 0
    %5930 = vmatprep.subr.bf16.mxu0 0
    %5931 = vmatpush1.bf16.msra.mxu0 0
    %5932 = vmatprep.subr.bf16.mxu0 0
    %5933 = vmatpush1.bf16.msra.mxu0 0
    %5934 = vmatprep.subr.bf16.mxu0 0
    %5935 = vmatpush1.bf16.msra.mxu0 0
    %5936 = vmatprep.subr.bf16.mxu0 0
    %5937 = vmatpush1.bf16.msra.mxu0 0
    %5938 = vmatprep.subr.bf16.mxu0 0
    %5939 = vmatpush1.bf16.msra.mxu0 0
    %5940 = vmatprep.subr.bf16.mxu0 0
    %5941 = vmatpush1.bf16.msra.mxu0 0
    %5942 = vmatprep.subr.bf16.mxu0 0
    %5943 = vmatpush1.bf16.msra.mxu0 0
    %5944 = vmatprep.subr.bf16.mxu0 0
    %5945 = vmatpush1.bf16.msra.mxu0 0
    %5946 = vmatprep.subr.bf16.mxu0 0
    %5947 = vmatpush1.bf16.msra.mxu0 0
    %5948 = vmatprep.subr.bf16.mxu0 0
    %5949 = vmatpush1.bf16.msra.mxu0 0
    %5950 = vmatprep.mubr.bf16.mxu0 0
    %5951 = vmatmul.mubr.bf16.gmra.mrb[0].mxu0 %v5862
    %v5952 = vpop.f32.mrb[0].mxu0
    %v5953 = vadd.f32 0.0, %v5952
    %v5954 = vpop.f32.mrb[0].mxu0
    %v5955 = vadd.f32 0.0, %v5954
    %v5956 = vpop.f32.mrb[0].mxu0
    %v5957 = vadd.f32 0.0, %v5956
    %v5958 = vpop.f32.mrb[0].mxu0
    %v5959 = vadd.f32 0.0, %v5958
    %5960 = vmatprep.mubr.bf16.mxu0 0
    %5961 = vmatmul.mubr.bf16.gmra.mrb[0].mxu0 %v5865
    %v5962 = vpop.f32.mrb[0].mxu0
    %v5963 = vadd.f32 0.0, %v5962
    %v5964 = vpop.f32.mrb[0].mxu0
    %v5965 = vadd.f32 0.0, %v5964
    %v5966 = vpop.f32.mrb[0].mxu0
    %v5967 = vpop.f32.mrb[0].mxu0
    %5968 = vdwg.mxu0
    %5969 = vmatprep.subr.bf16.mxu0 %v716
    %5970 = vmatpush1.bf16.msra.mxu0 %v715
    %5971 = vmatprep.subr.bf16.mxu0 %v751
    %5972 = vmatpush1.bf16.msra.mxu0 %v748
    %5973 = vmatprep.subr.bf16.mxu0 0
    %5974 = vmatpush1.bf16.msra.mxu0 0
    %5975 = vmatprep.subr.bf16.mxu0 0
    %5976 = vmatpush1.bf16.msra.mxu0 0
    %5977 = vmatprep.subr.bf16.mxu0 0
    %5978 = vmatpush1.bf16.msra.mxu0 0
    %5979 = vmatprep.subr.bf16.mxu0 0
    %5980 = vmatpush1.bf16.msra.mxu0 0
    %5981 = vmatprep.subr.bf16.mxu0 0
    %5982 = vmatpush1.bf16.msra.mxu0 0
    %5983 = vmatprep.subr.bf16.mxu0 0
    %5984 = vmatpush1.bf16.msra.mxu0 0
    %5985 = vmatprep.subr.bf16.mxu0 0
    %5986 = vmatpush1.bf16.msra.mxu0 0
    %5987 = vmatprep.subr.bf16.mxu0 0
    %5988 = vmatpush1.bf16.msra.mxu0 0
    %5989 = vmatprep.subr.bf16.mxu0 0
    %5990 = vmatpush1.bf16.msra.mxu0 0
    %5991 = vmatprep.subr.bf16.mxu0 0
    %5992 = vmatpush1.bf16.msra.mxu0 0
    %5993 = vmatprep.subr.bf16.mxu0 0
    %5994 = vmatpush1.bf16.msra.mxu0 0
    %5995 = vmatprep.subr.bf16.mxu0 0
    %5996 = vmatpush1.bf16.msra.mxu0 0
    %5997 = vmatprep.subr.bf16.mxu0 0
    %5998 = vmatpush1.bf16.msra.mxu0 0
    %5999 = vmatprep.subr.bf16.mxu0 0
    %6000 = vmatpush1.bf16.msra.mxu0 0
    %6001 = vmatprep.mubr.bf16.mxu0 0
    %6002 = vmatmul.mubr.bf16.gmra.mrb[0].mxu0 %v5862
    %v6003 = vpop.f32.mrb[0].mxu0
    %v6004 = vadd.f32 0.0, %v6003
    %v6005 = vpop.f32.mrb[0].mxu0
    %v6006 = vadd.f32 0.0, %v6005
    %v6007 = vpop.f32.mrb[0].mxu0
    %v6008 = vadd.f32 0.0, %v6007
    %v6009 = vpop.f32.mrb[0].mxu0
    %v6010 = vadd.f32 0.0, %v6009
    %6011 = vmatprep.mubr.bf16.mxu0 0
    %6012 = vmatmul.mubr.bf16.gmra.mrb[0].mxu0 %v5865
    %v6013 = vpop.f32.mrb[0].mxu0
    %v6014 = vadd.f32 0.0, %v6013
    %v6015 = vpop.f32.mrb[0].mxu0
    %v6016 = vadd.f32 0.0, %v6015
    %v6017 = vpop.f32.mrb[0].mxu0
    %v6018 = vpop.f32.mrb[0].mxu0
    %6019 = vdwg.mxu0
    %v6020 = vadd.f32 %v5736, %v5902
    %v6021 = vadd.f32 %v5738, %v5904
    %v6022 = vadd.f32 %v5787, %v5953
    %v6023 = vadd.f32 %v5789, %v5955
    %v6024 = vadd.f32 %v5838, %v6004
    %v6025 = vadd.f32 %v5840, %v6006
    %v6026 = vadd.f32 %v5740, %v5906
    %v6027 = vadd.f32 %v5742, %v5908
    %v6028 = vadd.f32 %v5791, %v5957
    %v6029 = vadd.f32 %v5793, %v5959
    %v6030 = vadd.f32 %v5842, %v6008
    %v6031 = vadd.f32 %v5844, %v6010
    %v6032 = vadd.f32 %v5746, %v5912
    %v6033 = vadd.f32 %v5748, %v5914
    %v6034 = vadd.f32 %v5797, %v5963
    %v6035 = vadd.f32 %v5799, %v5965
    %v6036 = vadd.f32 %v5848, %v6014
    %v6037 = vadd.f32 %v5850, %v6016
    %v6038 = vld [vmem:[%s5506 + $0xc] sm:$0x3]
    %v6040 = vunpack.c.l.b16 %v6038
    %v6041 = vpack.c.b16 %v6040, %v5517
    %v6043 = vshrl.u32 %v5857, 16
    %v6045 = vrot.slane %v6043, 1
    %v6046 = vshll.u32 %v5857, 16
    %v6048 = vrot.slane %v6046, 2
    %v6049 = vor.u32 %v6045, %v6048
    %v6051 = vshrl.u32 %v6041, 16
    %v6053 = vrot.slane %v6051, 1
    %v6054 = vshll.u32 %v6041, 16
    %v6056 = vrot.slane %v6054, 2
    %v6057 = vor.u32 %v6053, %v6056
    %v6058 = vsel %vm941, %v6049, %v6057
    %v6060 = vsel %vm244, %v6058, 0
    %v6063 = vsel %vm244, %v6057, 0
    %6065 = vmatprep.subr.bf16.mxu0 %v996
    %6066 = vmatpush1.bf16.msra.mxu0 %v995
    %6067 = vmatprep.subr.bf16.mxu0 %v1023
    %6068 = vmatpush1.bf16.msra.mxu0 %v1020
    %6069 = vmatprep.subr.bf16.mxu0 0
    %6070 = vmatpush1.bf16.msra.mxu0 0
    %6071 = vmatprep.subr.bf16.mxu0 0
    %6072 = vmatpush1.bf16.msra.mxu0 0
    %6073 = vmatprep.subr.bf16.mxu0 0
    %6074 = vmatpush1.bf16.msra.mxu0 0
    %6075 = vmatprep.subr.bf16.mxu0 0
    %6076 = vmatpush1.bf16.msra.mxu0 0
    %6077 = vmatprep.subr.bf16.mxu0 0
    %6078 = vmatpush1.bf16.msra.mxu0 0
    %6079 = vmatprep.subr.bf16.mxu0 0
    %6080 = vmatpush1.bf16.msra.mxu0 0
    %6081 = vmatprep.subr.bf16.mxu0 0
    %6082 = vmatpush1.bf16.msra.mxu0 0
    %6083 = vmatprep.subr.bf16.mxu0 0
    %6084 = vmatpush1.bf16.msra.mxu0 0
    %6085 = vmatprep.subr.bf16.mxu0 0
    %6086 = vmatpush1.bf16.msra.mxu0 0
    %6087 = vmatprep.subr.bf16.mxu0 0
    %6088 = vmatpush1.bf16.msra.mxu0 0
    %6089 = vmatprep.subr.bf16.mxu0 0
    %6090 = vmatpush1.bf16.msra.mxu0 0
    %6091 = vmatprep.subr.bf16.mxu0 0
    %6092 = vmatpush1.bf16.msra.mxu0 0
    %6093 = vmatprep.subr.bf16.mxu0 0
    %6094 = vmatpush1.bf16.msra.mxu0 0
    %6095 = vmatprep.subr.bf16.mxu0 0
    %6096 = vmatpush1.bf16.msra.mxu0 0
    %6097 = vmatprep.mubr.bf16.mxu0 0
    %6098 = vmatmul.mubr.bf16.gmra.mrb[0].mxu0 %v6060
    %v6099 = vpop.f32.mrb[0].mxu0
    %v6100 = vadd.f32 0.0, %v6099
    %v6101 = vpop.f32.mrb[0].mxu0
    %v6102 = vadd.f32 0.0, %v6101
    %v6103 = vpop.f32.mrb[0].mxu0
    %v6104 = vadd.f32 0.0, %v6103
    %v6105 = vpop.f32.mrb[0].mxu0
    %v6106 = vadd.f32 0.0, %v6105
    %6107 = vmatprep.mubr.bf16.mxu0 0
    %6108 = vmatmul.mubr.bf16.gmra.mrb[0].mxu0 %v6063
    %v6109 = vpop.f32.mrb[0].mxu0
    %v6110 = vadd.f32 0.0, %v6109
    %v6111 = vpop.f32.mrb[0].mxu0
    %v6112 = vadd.f32 0.0, %v6111
    %v6113 = vpop.f32.mrb[0].mxu0
    %v6114 = vpop.f32.mrb[0].mxu0
    %6115 = vdwg.mxu0
    %6116 = vmatprep.subr.bf16.mxu0 %v998
    %6117 = vmatpush1.bf16.msra.mxu0 %v997
    %6118 = vmatprep.subr.bf16.mxu0 %v1029
    %6119 = vmatpush1.bf16.msra.mxu0 %v1026
    %6120 = vmatprep.subr.bf16.mxu0 0
    %6121 = vmatpush1.bf16.msra.mxu0 0
    %6122 = vmatprep.subr.bf16.mxu0 0
    %6123 = vmatpush1.bf16.msra.mxu0 0
    %6124 = vmatprep.subr.bf16.mxu0 0
    %6125 = vmatpush1.bf16.msra.mxu0 0
    %6126 = vmatprep.subr.bf16.mxu0 0
    %6127 = vmatpush1.bf16.msra.mxu0 0
    %6128 = vmatprep.subr.bf16.mxu0 0
    %6129 = vmatpush1.bf16.msra.mxu0 0
    %6130 = vmatprep.subr.bf16.mxu0 0
    %6131 = vmatpush1.bf16.msra.mxu0 0
    %6132 = vmatprep.subr.bf16.mxu0 0
    %6133 = vmatpush1.bf16.msra.mxu0 0
    %6134 = vmatprep.subr.bf16.mxu0 0
    %6135 = vmatpush1.bf16.msra.mxu0 0
    %6136 = vmatprep.subr.bf16.mxu0 0
    %6137 = vmatpush1.bf16.msra.mxu0 0
    %6138 = vmatprep.subr.bf16.mxu0 0
    %6139 = vmatpush1.bf16.msra.mxu0 0
    %6140 = vmatprep.subr.bf16.mxu0 0
    %6141 = vmatpush1.bf16.msra.mxu0 0
    %6142 = vmatprep.subr.bf16.mxu0 0
    %6143 = vmatpush1.bf16.msra.mxu0 0
    %6144 = vmatprep.subr.bf16.mxu0 0
    %6145 = vmatpush1.bf16.msra.mxu0 0
    %6146 = vmatprep.subr.bf16.mxu0 0
    %6147 = vmatpush1.bf16.msra.mxu0 0
    %6148 = vmatprep.mubr.bf16.mxu0 0
    %6149 = vmatmul.mubr.bf16.gmra.mrb[0].mxu0 %v6060
    %v6150 = vpop.f32.mrb[0].mxu0
    %v6151 = vadd.f32 0.0, %v6150
    %v6152 = vpop.f32.mrb[0].mxu0
    %v6153 = vadd.f32 0.0, %v6152
    %v6154 = vpop.f32.mrb[0].mxu0
    %v6155 = vadd.f32 0.0, %v6154
    %v6156 = vpop.f32.mrb[0].mxu0
    %v6157 = vadd.f32 0.0, %v6156
    %6158 = vmatprep.mubr.bf16.mxu0 0
    %6159 = vmatmul.mubr.bf16.gmra.mrb[0].mxu0 %v6063
    %v6160 = vpop.f32.mrb[0].mxu0
    %v6161 = vadd.f32 0.0, %v6160
    %v6162 = vpop.f32.mrb[0].mxu0
    %v6163 = vadd.f32 0.0, %v6162
    %v6164 = vpop.f32.mrb[0].mxu0
    %v6165 = vpop.f32.mrb[0].mxu0
    %6166 = vdwg.mxu0
    %6167 = vmatprep.subr.bf16.mxu0 %v1000
    %6168 = vmatpush1.bf16.msra.mxu0 %v999
    %6169 = vmatprep.subr.bf16.mxu0 %v1035
    %6170 = vmatpush1.bf16.msra.mxu0 %v1032
    %6171 = vmatprep.subr.bf16.mxu0 0
    %6172 = vmatpush1.bf16.msra.mxu0 0
    %6173 = vmatprep.subr.bf16.mxu0 0
    %6174 = vmatpush1.bf16.msra.mxu0 0
    %6175 = vmatprep.subr.bf16.mxu0 0
    %6176 = vmatpush1.bf16.msra.mxu0 0
    %6177 = vmatprep.subr.bf16.mxu0 0
    %6178 = vmatpush1.bf16.msra.mxu0 0
    %6179 = vmatprep.subr.bf16.mxu0 0
    %6180 = vmatpush1.bf16.msra.mxu0 0
    %6181 = vmatprep.subr.bf16.mxu0 0
    %6182 = vmatpush1.bf16.msra.mxu0 0
    %6183 = vmatprep.subr.bf16.mxu0 0
    %6184 = vmatpush1.bf16.msra.mxu0 0
    %6185 = vmatprep.subr.bf16.mxu0 0
    %6186 = vmatpush1.bf16.msra.mxu0 0
    %6187 = vmatprep.subr.bf16.mxu0 0
    %6188 = vmatpush1.bf16.msra.mxu0 0
    %6189 = vmatprep.subr.bf16.mxu0 0
    %6190 = vmatpush1.bf16.msra.mxu0 0
    %6191 = vmatprep.subr.bf16.mxu0 0
    %6192 = vmatpush1.bf16.msra.mxu0 0
    %6193 = vmatprep.subr.bf16.mxu0 0
    %6194 = vmatpush1.bf16.msra.mxu0 0
    %6195 = vmatprep.subr.bf16.mxu0 0
    %6196 = vmatpush1.bf16.msra.mxu0 0
    %6197 = vmatprep.subr.bf16.mxu0 0
    %6198 = vmatpush1.bf16.msra.mxu0 0
    %6199 = vmatprep.mubr.bf16.mxu0 0
    %6200 = vmatmul.mubr.bf16.gmra.mrb[0].mxu0 %v6060
    %v6201 = vpop.f32.mrb[0].mxu0
    %v6202 = vadd.f32 0.0, %v6201
    %v6203 = vpop.f32.mrb[0].mxu0
    %v6204 = vadd.f32 0.0, %v6203
    %v6205 = vpop.f32.mrb[0].mxu0
    %v6206 = vadd.f32 0.0, %v6205
    %v6207 = vpop.f32.mrb[0].mxu0
    %v6208 = vadd.f32 0.0, %v6207
    %6209 = vmatprep.mubr.bf16.mxu0 0
    %6210 = vmatmul.mubr.bf16.gmra.mrb[0].mxu0 %v6063
    %v6211 = vpop.f32.mrb[0].mxu0
    %v6212 = vadd.f32 0.0, %v6211
    %v6213 = vpop.f32.mrb[0].mxu0
    %v6214 = vadd.f32 0.0, %v6213
    %v6215 = vpop.f32.mrb[0].mxu0
    %v6216 = vpop.f32.mrb[0].mxu0
    %6217 = vdwg.mxu0
    %v6218 = vadd.f32 %v6020, %v6100
    %v6219 = vadd.f32 %v6021, %v6102
    %v6220 = vadd.f32 %v6022, %v6151
    %v6221 = vadd.f32 %v6023, %v6153
    %v6222 = vadd.f32 %v6024, %v6202
    %v6223 = vadd.f32 %v6025, %v6204
    %v6224 = vadd.f32 %v6026, %v6104
    %v6225 = vadd.f32 %v6027, %v6106
    %v6226 = vadd.f32 %v6028, %v6155
    %v6227 = vadd.f32 %v6029, %v6157
    %v6228 = vadd.f32 %v6030, %v6206
    %v6229 = vadd.f32 %v6031, %v6208
    %v6230 = vadd.f32 %v6032, %v6110
    %v6231 = vadd.f32 %v6033, %v6112
    %v6232 = vadd.f32 %v6034, %v6161
    %v6233 = vadd.f32 %v6035, %v6163
    %v6234 = vadd.f32 %v6036, %v6212
    %v6235 = vadd.f32 %v6037, %v6214
    %v6236 = vld [vmem:[%s5506] sm:$0xc]
    %v6238 = vunpack.c.l.b16 %v6236
    %v6239 = vpack.c.b16 %v5516, %v6238
    %v6240 = vrot.slane %v6239, 2
    %v6241 = vrot.slane %v6041, 2
    %v6242 = vsel %vm1225, %v6240, %v6241
    %v6244 = vsel %vm244, %v6242, 0
    %v6247 = vsel %vm244, %v6241, 0
    %6249 = vmatprep.subr.bf16.mxu0 %v1266
    %6250 = vmatpush1.bf16.msra.mxu0 %v1265
    %6251 = vmatprep.subr.bf16.mxu0 %v1293
    %6252 = vmatpush1.bf16.msra.mxu0 %v1290
    %6253 = vmatprep.subr.bf16.mxu0 0
    %6254 = vmatpush1.bf16.msra.mxu0 0
    %6255 = vmatprep.subr.bf16.mxu0 0
    %6256 = vmatpush1.bf16.msra.mxu0 0
    %6257 = vmatprep.subr.bf16.mxu0 0
    %6258 = vmatpush1.bf16.msra.mxu0 0
    %6259 = vmatprep.subr.bf16.mxu0 0
    %6260 = vmatpush1.bf16.msra.mxu0 0
    %6261 = vmatprep.subr.bf16.mxu0 0
    %6262 = vmatpush1.bf16.msra.mxu0 0
    %6263 = vmatprep.subr.bf16.mxu0 0
    %6264 = vmatpush1.bf16.msra.mxu0 0
    %6265 = vmatprep.subr.bf16.mxu0 0
    %6266 = vmatpush1.bf16.msra.mxu0 0
    %6267 = vmatprep.subr.bf16.mxu0 0
    %6268 = vmatpush1.bf16.msra.mxu0 0
    %6269 = vmatprep.subr.bf16.mxu0 0
    %6270 = vmatpush1.bf16.msra.mxu0 0
    %6271 = vmatprep.subr.bf16.mxu0 0
    %6272 = vmatpush1.bf16.msra.mxu0 0
    %6273 = vmatprep.subr.bf16.mxu0 0
    %6274 = vmatpush1.bf16.msra.mxu0 0
    %6275 = vmatprep.subr.bf16.mxu0 0
    %6276 = vmatpush1.bf16.msra.mxu0 0
    %6277 = vmatprep.subr.bf16.mxu0 0
    %6278 = vmatpush1.bf16.msra.mxu0 0
    %6279 = vmatprep.subr.bf16.mxu0 0
    %6280 = vmatpush1.bf16.msra.mxu0 0
    %6281 = vmatprep.mubr.bf16.mxu0 0
    %6282 = vmatmul.mubr.bf16.gmra.mrb[0].mxu0 %v6244
    %v6283 = vpop.f32.mrb[0].mxu0
    %v6284 = vadd.f32 0.0, %v6283
    %v6285 = vpop.f32.mrb[0].mxu0
    %v6286 = vadd.f32 0.0, %v6285
    %v6287 = vpop.f32.mrb[0].mxu0
    %v6288 = vadd.f32 0.0, %v6287
    %v6289 = vpop.f32.mrb[0].mxu0
    %v6290 = vadd.f32 0.0, %v6289
    %6291 = vmatprep.mubr.bf16.mxu0 0
    %6292 = vmatmul.mubr.bf16.gmra.mrb[0].mxu0 %v6247
    %v6293 = vpop.f32.mrb[0].mxu0
    %v6294 = vadd.f32 0.0, %v6293
    %v6295 = vpop.f32.mrb[0].mxu0
    %v6296 = vadd.f32 0.0, %v6295
    %v6297 = vpop.f32.mrb[0].mxu0
    %v6298 = vpop.f32.mrb[0].mxu0
    %6299 = vdwg.mxu0
    %6300 = vmatprep.subr.bf16.mxu0 %v1268
    %6301 = vmatpush1.bf16.msra.mxu0 %v1267
    %6302 = vmatprep.subr.bf16.mxu0 %v1299
    %6303 = vmatpush1.bf16.msra.mxu0 %v1296
    %6304 = vmatprep.subr.bf16.mxu0 0
    %6305 = vmatpush1.bf16.msra.mxu0 0
    %6306 = vmatprep.subr.bf16.mxu0 0
    %6307 = vmatpush1.bf16.msra.mxu0 0
    %6308 = vmatprep.subr.bf16.mxu0 0
    %6309 = vmatpush1.bf16.msra.mxu0 0
    %6310 = vmatprep.subr.bf16.mxu0 0
    %6311 = vmatpush1.bf16.msra.mxu0 0
    %6312 = vmatprep.subr.bf16.mxu0 0
    %6313 = vmatpush1.bf16.msra.mxu0 0
    %6314 = vmatprep.subr.bf16.mxu0 0
    %6315 = vmatpush1.bf16.msra.mxu0 0
    %6316 = vmatprep.subr.bf16.mxu0 0
    %6317 = vmatpush1.bf16.msra.mxu0 0
    %6318 = vmatprep.subr.bf16.mxu0 0
    %6319 = vmatpush1.bf16.msra.mxu0 0
    %6320 = vmatprep.subr.bf16.mxu0 0
    %6321 = vmatpush1.bf16.msra.mxu0 0
    %6322 = vmatprep.subr.bf16.mxu0 0
    %6323 = vmatpush1.bf16.msra.mxu0 0
    %6324 = vmatprep.subr.bf16.mxu0 0
    %6325 = vmatpush1.bf16.msra.mxu0 0
    %6326 = vmatprep.subr.bf16.mxu0 0
    %6327 = vmatpush1.bf16.msra.mxu0 0
    %6328 = vmatprep.subr.bf16.mxu0 0
    %6329 = vmatpush1.bf16.msra.mxu0 0
    %6330 = vmatprep.subr.bf16.mxu0 0
    %6331 = vmatpush1.bf16.msra.mxu0 0
    %6332 = vmatprep.mubr.bf16.mxu0 0
    %6333 = vmatmul.mubr.bf16.gmra.mrb[0].mxu0 %v6244
    %v6334 = vpop.f32.mrb[0].mxu0
    %v6335 = vadd.f32 0.0, %v6334
    %v6336 = vpop.f32.mrb[0].mxu0
    %v6337 = vadd.f32 0.0, %v6336
    %v6338 = vpop.f32.mrb[0].mxu0
    %v6339 = vadd.f32 0.0, %v6338
    %v6340 = vpop.f32.mrb[0].mxu0
    %v6341 = vadd.f32 0.0, %v6340
    %6342 = vmatprep.mubr.bf16.mxu0 0
    %6343 = vmatmul.mubr.bf16.gmra.mrb[0].mxu0 %v6247
    %v6344 = vpop.f32.mrb[0].mxu0
    %v6345 = vadd.f32 0.0, %v6344
    %v6346 = vpop.f32.mrb[0].mxu0
    %v6347 = vadd.f32 0.0, %v6346
    %v6348 = vpop.f32.mrb[0].mxu0
    %v6349 = vpop.f32.mrb[0].mxu0
    %6350 = vdwg.mxu0
    %6351 = vmatprep.subr.bf16.mxu0 %v1270
    %6352 = vmatpush1.bf16.msra.mxu0 %v1269
    %6353 = vmatprep.subr.bf16.mxu0 %v1305
    %6354 = vmatpush1.bf16.msra.mxu0 %v1302
    %6355 = vmatprep.subr.bf16.mxu0 0
    %6356 = vmatpush1.bf16.msra.mxu0 0
    %6357 = vmatprep.subr.bf16.mxu0 0
    %6358 = vmatpush1.bf16.msra.mxu0 0
    %6359 = vmatprep.subr.bf16.mxu0 0
    %6360 = vmatpush1.bf16.msra.mxu0 0
    %6361 = vmatprep.subr.bf16.mxu0 0
    %6362 = vmatpush1.bf16.msra.mxu0 0
    %6363 = vmatprep.subr.bf16.mxu0 0
    %6364 = vmatpush1.bf16.msra.mxu0 0
    %6365 = vmatprep.subr.bf16.mxu0 0
    %6366 = vmatpush1.bf16.msra.mxu0 0
    %6367 = vmatprep.subr.bf16.mxu0 0
    %6368 = vmatpush1.bf16.msra.mxu0 0
    %6369 = vmatprep.subr.bf16.mxu0 0
    %6370 = vmatpush1.bf16.msra.mxu0 0
    %6371 = vmatprep.subr.bf16.mxu0 0
    %6372 = vmatpush1.bf16.msra.mxu0 0
    %6373 = vmatprep.subr.bf16.mxu0 0
    %6374 = vmatpush1.bf16.msra.mxu0 0
    %6375 = vmatprep.subr.bf16.mxu0 0
    %6376 = vmatpush1.bf16.msra.mxu0 0
    %6377 = vmatprep.subr.bf16.mxu0 0
    %6378 = vmatpush1.bf16.msra.mxu0 0
    %6379 = vmatprep.subr.bf16.mxu0 0
    %6380 = vmatpush1.bf16.msra.mxu0 0
    %6381 = vmatprep.subr.bf16.mxu0 0
    %6382 = vmatpush1.bf16.msra.mxu0 0
    %6383 = vmatprep.mubr.bf16.mxu0 0
    %6384 = vmatmul.mubr.bf16.gmra.mrb[0].mxu0 %v6244
    %v6385 = vpop.f32.mrb[0].mxu0
    %v6386 = vadd.f32 0.0, %v6385
    %v6387 = vpop.f32.mrb[0].mxu0
    %v6388 = vadd.f32 0.0, %v6387
    %v6389 = vpop.f32.mrb[0].mxu0
    %v6390 = vadd.f32 0.0, %v6389
    %v6391 = vpop.f32.mrb[0].mxu0
    %v6392 = vadd.f32 0.0, %v6391
    %6393 = vmatprep.mubr.bf16.mxu0 0
    %6394 = vmatmul.mubr.bf16.gmra.mrb[0].mxu0 %v6247
    %v6395 = vpop.f32.mrb[0].mxu0
    %v6396 = vadd.f32 0.0, %v6395
    %v6397 = vpop.f32.mrb[0].mxu0
    %v6398 = vadd.f32 0.0, %v6397
    %v6399 = vpop.f32.mrb[0].mxu0
    %v6400 = vpop.f32.mrb[0].mxu0
    %6401 = vdwg.mxu0
    %v6402 = vadd.f32 %v6218, %v6284
    %v6403 = vadd.f32 %v6219, %v6286
    %v6404 = vadd.f32 %v6220, %v6335
    %v6405 = vadd.f32 %v6221, %v6337
    %v6406 = vadd.f32 %v6222, %v6386
    %v6407 = vadd.f32 %v6223, %v6388
    %v6408 = vadd.f32 %v6224, %v6288
    %v6409 = vadd.f32 %v6225, %v6290
    %v6410 = vadd.f32 %v6226, %v6339
    %v6411 = vadd.f32 %v6227, %v6341
    %v6412 = vadd.f32 %v6228, %v6390
    %v6413 = vadd.f32 %v6229, %v6392
    %v6414 = vadd.f32 %v6230, %v6294
    %v6415 = vadd.f32 %v6231, %v6296
    %v6416 = vadd.f32 %v6232, %v6345
    %v6417 = vadd.f32 %v6233, %v6347
    %v6418 = vadd.f32 %v6234, %v6396
    %v6419 = vadd.f32 %v6235, %v6398
    %v6420 = vadd.f32 %v6402, %v1483
    %v6421 = vadd.f32 %v6403, %v1487
    %v6422 = vadd.f32 %v6404, %v1491
    %v6423 = vadd.f32 %v6405, %v1495
    %v6424 = vadd.f32 %v6406, %v1499
    %v6425 = vadd.f32 %v6407, %v1503
    %v6426 = vadd.f32 %v6408, %v1483
    %v6427 = vadd.f32 %v6409, %v1487
    %v6428 = vadd.f32 %v6410, %v1491
    %v6429 = vadd.f32 %v6411, %v1495
    %v6430 = vadd.f32 %v6412, %v1499
    %v6431 = vadd.f32 %v6413, %v1503
    %v6432 = vadd.f32 %v6414, %v1483
    %v6433 = vadd.f32 %v6415, %v1487
    %v6434 = vadd.f32 %v6416, %v1491
    %v6435 = vadd.f32 %v6417, %v1495
    %v6436 = vadd.f32 %v6418, %v1499
    %v6437 = vadd.f32 %v6419, %v1503
    %v6438 = vmax.f32 %v6420, %v6423
    %v6439 = vmax.f32 %v6421, %v6424
    %v6440 = vmax.f32 %v6422, %v6425
    %v6441 = vmax.f32 %v6426, %v6429
    %v6442 = vmax.f32 %v6427, %v6430
    %v6443 = vmax.f32 %v6428, %v6431
    %v6444 = vmax.f32 %v6432, %v6435
    %v6445 = vmax.f32 %v6433, %v6436
    %v6446 = vmax.f32 %v6434, %v6437
    %v6450 = vrot.slane %v6438, 1
    %v6451 = vrot.slane %v6439, 1
    %v6452 = vrot.slane %v6440, 1
    %v6456 = vmax.f32 %v6438, %v6450
    %v6457 = vmax.f32 %v6439, %v6451
    %v6458 = vmax.f32 %v6440, %v6452
    %v6462 = vrot.slane %v6441, 1
    %v6463 = vrot.slane %v6442, 1
    %v6464 = vrot.slane %v6443, 1
    %v6468 = vmax.f32 %v6441, %v6462
    %v6469 = vmax.f32 %v6442, %v6463
    %v6470 = vmax.f32 %v6443, %v6464
    %v6474 = vrot.slane %v6444, 1
    %v6475 = vrot.slane %v6445, 1
    %v6476 = vrot.slane %v6446, 1
    %v6480 = vmax.f32 %v6444, %v6474
    %v6481 = vmax.f32 %v6445, %v6475
    %v6482 = vmax.f32 %v6446, %v6476
    %v6486 = vrot.slane %v6456, 1
    %v6487 = vrot.slane %v6457, 1
    %v6488 = vrot.slane %v6458, 1
    %v6492 = vrot.slane %v6456, 2
    %v6493 = vrot.slane %v6457, 2
    %v6494 = vrot.slane %v6458, 2
    %v6498 = vrot.slane %v6456, 3
    %v6499 = vrot.slane %v6457, 3
    %v6500 = vrot.slane %v6458, 3
    %v6507 = vrot.slane %v6468, 4
    %v6508 = vrot.slane %v6469, 4
    %v6509 = vrot.slane %v6470, 4
    %v6513 = vrot.slane %v6468, 5
    %v6514 = vrot.slane %v6469, 5
    %v6515 = vrot.slane %v6470, 5
    %v6519 = vrot.slane %v6468, 6
    %v6520 = vrot.slane %v6469, 6
    %v6521 = vrot.slane %v6470, 6
    %v6525 = vrot.slane %v6468, 7
    %v6526 = vrot.slane %v6469, 7
    %v6527 = vrot.slane %v6470, 7
    %v6534 = vrot.slane %v6480, 1
    %v6535 = vrot.slane %v6481, 1
    %v6536 = vrot.slane %v6482, 1
    %v6540 = vrot.slane %v6480, 2
    %v6541 = vrot.slane %v6481, 2
    %v6542 = vrot.slane %v6482, 2
    %v6546 = vrot.slane %v6480, 3
    %v6547 = vrot.slane %v6481, 3
    %v6548 = vrot.slane %v6482, 3
    %v6552 = vsel %vm1642, %v6456, %v6486
    %v6553 = vsel %vm1642, %v6457, %v6487
    %v6554 = vsel %vm1642, %v6458, %v6488
    %v6555 = vsel %vm1646, %v6552, %v6492
    %v6556 = vsel %vm1646, %v6553, %v6493
    %v6557 = vsel %vm1646, %v6554, %v6494
    %v6558 = vsel %vm1650, %v6555, %v6498
    %v6559 = vsel %vm1650, %v6556, %v6499
    %v6560 = vsel %vm1650, %v6557, %v6500
    %v6561 = vsel %vm1654, %v6558, %v6507
    %v6562 = vsel %vm1654, %v6559, %v6508
    %v6563 = vsel %vm1654, %v6560, %v6509
    %v6564 = vsel %vm1658, %v6561, %v6513
    %v6565 = vsel %vm1658, %v6562, %v6514
    %v6566 = vsel %vm1658, %v6563, %v6515
    %v6567 = vsel %vm251, %v6564, %v6519
    %v6568 = vsel %vm251, %v6565, %v6520
    %v6569 = vsel %vm251, %v6566, %v6521
    %v6570 = vsel %vm1665, %v6567, %v6525
    %v6571 = vsel %vm1665, %v6568, %v6526
    %v6572 = vsel %vm1665, %v6569, %v6527
    %v6573 = vsel %vm1642, %v6480, %v6534
    %v6574 = vsel %vm1642, %v6481, %v6535
    %v6575 = vsel %vm1642, %v6482, %v6536
    %v6576 = vsel %vm1646, %v6573, %v6540
    %v6577 = vsel %vm1646, %v6574, %v6541
    %v6578 = vsel %vm1646, %v6575, %v6542
    %v6579 = vsel %vm1650, %v6576, %v6546
    %v6580 = vsel %vm1650, %v6577, %v6547
    %v6581 = vsel %vm1650, %v6578, %v6548
    %v6582 = vpack.c.bf16 %v6579, %v6570
    %v6583 = vpack.c.bf16 %v6580, %v6571
    %v6584 = vpack.c.bf16 %v6581, %v6572
    %v6586 = vshrl.u32 %v6582, 16
    %v6588 = vshll.u32 %v6582, 16
    %v6590 = vrot.slane %v6588, 1
    %v6591 = vor.u32 %v6586, %v6590
    %v6593 = vshrl.u32 %v6583, 16
    %v6595 = vshll.u32 %v6583, 16
    %v6597 = vrot.slane %v6595, 1
    %v6598 = vor.u32 %v6593, %v6597
    %v6600 = vshrl.u32 %v6584, 16
    %v6602 = vshll.u32 %v6584, 16
    %v6604 = vrot.slane %v6602, 1
    %v6605 = vor.u32 %v6600, %v6604
    %6609 = vmatprep.subr.bf16.mxu0 %v2187
    %6610 = vmatpush1.bf16.msra.mxu0 %v2186
    %6611 = vmatprep.subr.bf16.mxu0 %v2191
    %6612 = vmatpush1.bf16.msra.mxu0 %v2190
    %6613 = vmatprep.subr.bf16.mxu0 %v2195
    %6614 = vmatpush1.bf16.msra.mxu0 %v2194
    %6615 = vmatprep.subr.bf16.mxu0 %v2199
    %6616 = vmatpush1.bf16.msra.mxu0 %v2198
    %6617 = vmatprep.subr.bf16.mxu0 %v2203
    %6618 = vmatpush1.bf16.msra.mxu0 %v2202
    %6619 = vmatprep.subr.bf16.mxu0 %v2207
    %6620 = vmatpush1.bf16.msra.mxu0 %v2206
    %6621 = vmatprep.subr.bf16.mxu0 %v2211
    %6622 = vmatpush1.bf16.msra.mxu0 %v2210
    %6623 = vmatprep.subr.bf16.mxu0 %v2215
    %6624 = vmatpush1.bf16.msra.mxu0 %v2214
    %6625 = vmatprep.subr.bf16.mxu0 %v2219
    %6626 = vmatpush1.bf16.msra.mxu0 %v2218
    %6627 = vmatprep.subr.bf16.mxu0 %v2223
    %6628 = vmatpush1.bf16.msra.mxu0 %v2222
    %6629 = vmatprep.subr.bf16.mxu0 %v2227
    %6630 = vmatpush1.bf16.msra.mxu0 %v2226
    %6631 = vmatprep.subr.bf16.mxu0 %v2231
    %6632 = vmatpush1.bf16.msra.mxu0 %v2230
    %6633 = vmatprep.subr.bf16.mxu0 %v2235
    %6634 = vmatpush1.bf16.msra.mxu0 %v2234
    %6635 = vmatprep.subr.bf16.mxu0 %v2239
    %6636 = vmatpush1.bf16.msra.mxu0 %v2238
    %6637 = vmatprep.subr.bf16.mxu0 %v2243
    %6638 = vmatpush1.bf16.msra.mxu0 %v2242
    %6639 = vmatprep.subr.bf16.mxu0 %v2247
    %6640 = vmatpush1.bf16.msra.mxu0 %v2246
    %6641 = vmatprep.mubr.bf16.mxu0 %v6598
    %6642 = vmatmul.mubr.bf16.gmra.mrb[0].mxu0 %v6591
    %v6643 = vpop.f32.mrb[0].mxu0
    %v6644 = vadd.f32 0.0, %v6643
    %v6645 = vpop.f32.mrb[0].mxu0
    %v6646 = vadd.f32 0.0, %v6645
    %v6647 = vpop.f32.mrb[0].mxu0
    %v6648 = vpop.f32.mrb[0].mxu0
    %6649 = vdwg.mxu0
    %6650 = vmatprep.subr.bf16.mxu0 %v2251
    %6651 = vmatpush1.bf16.msra.mxu0 %v2250
    %6652 = vmatprep.subr.bf16.mxu0 %v2255
    %6653 = vmatpush1.bf16.msra.mxu0 %v2254
    %6654 = vmatprep.subr.bf16.mxu0 %v2259
    %6655 = vmatpush1.bf16.msra.mxu0 %v2258
    %6656 = vmatprep.subr.bf16.mxu0 %v2263
    %6657 = vmatpush1.bf16.msra.mxu0 %v2262
    %6658 = vmatprep.subr.bf16.mxu0 %v2267
    %6659 = vmatpush1.bf16.msra.mxu0 %v2266
    %6660 = vmatprep.subr.bf16.mxu0 %v2271
    %6661 = vmatpush1.bf16.msra.mxu0 %v2270
    %6662 = vmatprep.subr.bf16.mxu0 %v2275
    %6663 = vmatpush1.bf16.msra.mxu0 %v2274
    %6664 = vmatprep.subr.bf16.mxu0 %v2279
    %6665 = vmatpush1.bf16.msra.mxu0 %v2278
    %6666 = vmatprep.subr.bf16.mxu0 0
    %6667 = vmatpush1.bf16.msra.mxu0 0
    %6668 = vmatprep.subr.bf16.mxu0 0
    %6669 = vmatpush1.bf16.msra.mxu0 0
    %6670 = vmatprep.subr.bf16.mxu0 0
    %6671 = vmatpush1.bf16.msra.mxu0 0
    %6672 = vmatprep.subr.bf16.mxu0 0
    %6673 = vmatpush1.bf16.msra.mxu0 0
    %6674 = vmatprep.subr.bf16.mxu0 0
    %6675 = vmatpush1.bf16.msra.mxu0 0
    %6676 = vmatprep.subr.bf16.mxu0 0
    %6677 = vmatpush1.bf16.msra.mxu0 0
    %6678 = vmatprep.subr.bf16.mxu0 0
    %6679 = vmatpush1.bf16.msra.mxu0 0
    %6680 = vmatprep.subr.bf16.mxu0 0
    %6681 = vmatpush1.bf16.msra.mxu0 0
    %6682 = vmatprep.mubr.bf16.mxu0 0
    %6683 = vmatmul.mubr.bf16.gmra.mrb[0].mxu0 %v6605
    %v6684 = vpop.f32.mrb[0].mxu0
    %v6685 = vadd.f32 %v6644, %v6684
    %v6686 = vpop.f32.mrb[0].mxu0
    %v6687 = vadd.f32 %v6646, %v6686
    %v6688 = vpop.f32.mrb[0].mxu0
    %v6689 = vpop.f32.mrb[0].mxu0
    %6690 = vdwg.mxu0
    %6691 = vmatprep.subr.bf16.mxu0 %v2189
    %6692 = vmatpush1.bf16.msra.mxu0 %v2188
    %6693 = vmatprep.subr.bf16.mxu0 %v2193
    %6694 = vmatpush1.bf16.msra.mxu0 %v2192
    %6695 = vmatprep.subr.bf16.mxu0 %v2197
    %6696 = vmatpush1.bf16.msra.mxu0 %v2196
    %6697 = vmatprep.subr.bf16.mxu0 %v2201
    %6698 = vmatpush1.bf16.msra.mxu0 %v2200
    %6699 = vmatprep.subr.bf16.mxu0 %v2205
    %6700 = vmatpush1.bf16.msra.mxu0 %v2204
    %6701 = vmatprep.subr.bf16.mxu0 %v2209
    %6702 = vmatpush1.bf16.msra.mxu0 %v2208
    %6703 = vmatprep.subr.bf16.mxu0 %v2213
    %6704 = vmatpush1.bf16.msra.mxu0 %v2212
    %6705 = vmatprep.subr.bf16.mxu0 %v2217
    %6706 = vmatpush1.bf16.msra.mxu0 %v2216
    %6707 = vmatprep.subr.bf16.mxu0 %v2221
    %6708 = vmatpush1.bf16.msra.mxu0 %v2220
    %6709 = vmatprep.subr.bf16.mxu0 %v2225
    %6710 = vmatpush1.bf16.msra.mxu0 %v2224
    %6711 = vmatprep.subr.bf16.mxu0 %v2229
    %6712 = vmatpush1.bf16.msra.mxu0 %v2228
    %6713 = vmatprep.subr.bf16.mxu0 %v2233
    %6714 = vmatpush1.bf16.msra.mxu0 %v2232
    %6715 = vmatprep.subr.bf16.mxu0 %v2237
    %6716 = vmatpush1.bf16.msra.mxu0 %v2236
    %6717 = vmatprep.subr.bf16.mxu0 %v2241
    %6718 = vmatpush1.bf16.msra.mxu0 %v2240
    %6719 = vmatprep.subr.bf16.mxu0 %v2245
    %6720 = vmatpush1.bf16.msra.mxu0 %v2244
    %6721 = vmatprep.subr.bf16.mxu0 %v2249
    %6722 = vmatpush1.bf16.msra.mxu0 %v2248
    %6723 = vmatprep.mubr.bf16.mxu0 %v6598
    %6724 = vmatmul.mubr.bf16.gmra.mrb[0].mxu0 %v6591
    %v6725 = vpop.f32.mrb[0].mxu0
    %v6726 = vadd.f32 0.0, %v6725
    %v6727 = vpop.f32.mrb[0].mxu0
    %v6728 = vadd.f32 0.0, %v6727
    %v6729 = vpop.f32.mrb[0].mxu0
    %v6730 = vpop.f32.mrb[0].mxu0
    %6731 = vdwg.mxu0
    %6732 = vmatprep.subr.bf16.mxu0 %v2253
    %6733 = vmatpush1.bf16.msra.mxu0 %v2252
    %6734 = vmatprep.subr.bf16.mxu0 %v2257
    %6735 = vmatpush1.bf16.msra.mxu0 %v2256
    %6736 = vmatprep.subr.bf16.mxu0 %v2261
    %6737 = vmatpush1.bf16.msra.mxu0 %v2260
    %6738 = vmatprep.subr.bf16.mxu0 %v2265
    %6739 = vmatpush1.bf16.msra.mxu0 %v2264
    %6740 = vmatprep.subr.bf16.mxu0 %v2269
    %6741 = vmatpush1.bf16.msra.mxu0 %v2268
    %6742 = vmatprep.subr.bf16.mxu0 %v2273
    %6743 = vmatpush1.bf16.msra.mxu0 %v2272
    %6744 = vmatprep.subr.bf16.mxu0 %v2277
    %6745 = vmatpush1.bf16.msra.mxu0 %v2276
    %6746 = vmatprep.subr.bf16.mxu0 %v2281
    %6747 = vmatpush1.bf16.msra.mxu0 %v2280
    %6748 = vmatprep.subr.bf16.mxu0 0
    %6749 = vmatpush1.bf16.msra.mxu0 0
    %6750 = vmatprep.subr.bf16.mxu0 0
    %6751 = vmatpush1.bf16.msra.mxu0 0
    %6752 = vmatprep.subr.bf16.mxu0 0
    %6753 = vmatpush1.bf16.msra.mxu0 0
    %6754 = vmatprep.subr.bf16.mxu0 0
    %6755 = vmatpush1.bf16.msra.mxu0 0
    %6756 = vmatprep.subr.bf16.mxu0 0
    %6757 = vmatpush1.bf16.msra.mxu0 0
    %6758 = vmatprep.subr.bf16.mxu0 0
    %6759 = vmatpush1.bf16.msra.mxu0 0
    %6760 = vmatprep.subr.bf16.mxu0 0
    %6761 = vmatpush1.bf16.msra.mxu0 0
    %6762 = vmatprep.subr.bf16.mxu0 0
    %6763 = vmatpush1.bf16.msra.mxu0 0
    %6764 = vmatprep.mubr.bf16.mxu0 0
    %6765 = vmatmul.mubr.bf16.gmra.mrb[0].mxu0 %v6605
    %v6766 = vpop.f32.mrb[0].mxu0
    %v6767 = vadd.f32 %v6726, %v6766
    %v6768 = vpop.f32.mrb[0].mxu0
    %v6769 = vadd.f32 %v6728, %v6768
    %v6770 = vpop.f32.mrb[0].mxu0
    %v6771 = vpop.f32.mrb[0].mxu0
    %6772 = vdwg.mxu0
    %6773 = vmatprep.subr.bf16.mxu0 %v2831
    %6774 = vmatpush1.bf16.msra.mxu0 %v2830
    %6775 = vmatprep.subr.bf16.mxu0 %v2835
    %6776 = vmatpush1.bf16.msra.mxu0 %v2834
    %6777 = vmatprep.subr.bf16.mxu0 %v2839
    %6778 = vmatpush1.bf16.msra.mxu0 %v2838
    %6779 = vmatprep.subr.bf16.mxu0 %v2843
    %6780 = vmatpush1.bf16.msra.mxu0 %v2842
    %6781 = vmatprep.subr.bf16.mxu0 %v2847
    %6782 = vmatpush1.bf16.msra.mxu0 %v2846
    %6783 = vmatprep.subr.bf16.mxu0 %v2851
    %6784 = vmatpush1.bf16.msra.mxu0 %v2850
    %6785 = vmatprep.subr.bf16.mxu0 %v2855
    %6786 = vmatpush1.bf16.msra.mxu0 %v2854
    %6787 = vmatprep.subr.bf16.mxu0 %v2859
    %6788 = vmatpush1.bf16.msra.mxu0 %v2858
    %6789 = vmatprep.subr.bf16.mxu0 %v2863
    %6790 = vmatpush1.bf16.msra.mxu0 %v2862
    %6791 = vmatprep.subr.bf16.mxu0 %v2867
    %6792 = vmatpush1.bf16.msra.mxu0 %v2866
    %6793 = vmatprep.subr.bf16.mxu0 %v2871
    %6794 = vmatpush1.bf16.msra.mxu0 %v2870
    %6795 = vmatprep.subr.bf16.mxu0 %v2875
    %6796 = vmatpush1.bf16.msra.mxu0 %v2874
    %6797 = vmatprep.subr.bf16.mxu0 %v2879
    %6798 = vmatpush1.bf16.msra.mxu0 %v2878
    %6799 = vmatprep.subr.bf16.mxu0 %v2883
    %6800 = vmatpush1.bf16.msra.mxu0 %v2882
    %6801 = vmatprep.subr.bf16.mxu0 %v2887
    %6802 = vmatpush1.bf16.msra.mxu0 %v2886
    %6803 = vmatprep.subr.bf16.mxu0 %v2891
    %6804 = vmatpush1.bf16.msra.mxu0 %v2890
    %6805 = vmatprep.mubr.bf16.mxu0 %v6583
    %6806 = vmatmul.mubr.bf16.gmra.mrb[0].mxu0 %v6582
    %v6807 = vpop.f32.mrb[0].mxu0
    %v6808 = vadd.f32 %v6685, %v6807
    %v6809 = vpop.f32.mrb[0].mxu0
    %v6810 = vadd.f32 %v6687, %v6809
    %v6811 = vpop.f32.mrb[0].mxu0
    %v6812 = vpop.f32.mrb[0].mxu0
    %6813 = vdwg.mxu0
    %6814 = vmatprep.subr.bf16.mxu0 %v2895
    %6815 = vmatpush1.bf16.msra.mxu0 %v2894
    %6816 = vmatprep.subr.bf16.mxu0 %v2899
    %6817 = vmatpush1.bf16.msra.mxu0 %v2898
    %6818 = vmatprep.subr.bf16.mxu0 %v2903
    %6819 = vmatpush1.bf16.msra.mxu0 %v2902
    %6820 = vmatprep.subr.bf16.mxu0 %v2907
    %6821 = vmatpush1.bf16.msra.mxu0 %v2906
    %6822 = vmatprep.subr.bf16.mxu0 %v2911
    %6823 = vmatpush1.bf16.msra.mxu0 %v2910
    %6824 = vmatprep.subr.bf16.mxu0 %v2915
    %6825 = vmatpush1.bf16.msra.mxu0 %v2914
    %6826 = vmatprep.subr.bf16.mxu0 %v2919
    %6827 = vmatpush1.bf16.msra.mxu0 %v2918
    %6828 = vmatprep.subr.bf16.mxu0 %v2923
    %6829 = vmatpush1.bf16.msra.mxu0 %v2922
    %6830 = vmatprep.subr.bf16.mxu0 0
    %6831 = vmatpush1.bf16.msra.mxu0 0
    %6832 = vmatprep.subr.bf16.mxu0 0
    %6833 = vmatpush1.bf16.msra.mxu0 0
    %6834 = vmatprep.subr.bf16.mxu0 0
    %6835 = vmatpush1.bf16.msra.mxu0 0
    %6836 = vmatprep.subr.bf16.mxu0 0
    %6837 = vmatpush1.bf16.msra.mxu0 0
    %6838 = vmatprep.subr.bf16.mxu0 0
    %6839 = vmatpush1.bf16.msra.mxu0 0
    %6840 = vmatprep.subr.bf16.mxu0 0
    %6841 = vmatpush1.bf16.msra.mxu0 0
    %6842 = vmatprep.subr.bf16.mxu0 0
    %6843 = vmatpush1.bf16.msra.mxu0 0
    %6844 = vmatprep.subr.bf16.mxu0 0
    %6845 = vmatpush1.bf16.msra.mxu0 0
    %6846 = vmatprep.mubr.bf16.mxu0 0
    %6847 = vmatmul.mubr.bf16.gmra.mrb[0].mxu0 %v6584
    %v6848 = vpop.f32.mrb[0].mxu0
    %v6849 = vadd.f32 %v6808, %v6848
    %v6850 = vpop.f32.mrb[0].mxu0
    %v6851 = vadd.f32 %v6810, %v6850
    %v6852 = vpop.f32.mrb[0].mxu0
    %v6853 = vpop.f32.mrb[0].mxu0
    %6854 = vdwg.mxu0
    %6855 = vmatprep.subr.bf16.mxu0 %v2833
    %6856 = vmatpush1.bf16.msra.mxu0 %v2832
    %6857 = vmatprep.subr.bf16.mxu0 %v2837
    %6858 = vmatpush1.bf16.msra.mxu0 %v2836
    %6859 = vmatprep.subr.bf16.mxu0 %v2841
    %6860 = vmatpush1.bf16.msra.mxu0 %v2840
    %6861 = vmatprep.subr.bf16.mxu0 %v2845
    %6862 = vmatpush1.bf16.msra.mxu0 %v2844
    %6863 = vmatprep.subr.bf16.mxu0 %v2849
    %6864 = vmatpush1.bf16.msra.mxu0 %v2848
    %6865 = vmatprep.subr.bf16.mxu0 %v2853
    %6866 = vmatpush1.bf16.msra.mxu0 %v2852
    %6867 = vmatprep.subr.bf16.mxu0 %v2857
    %6868 = vmatpush1.bf16.msra.mxu0 %v2856
    %6869 = vmatprep.subr.bf16.mxu0 %v2861
    %6870 = vmatpush1.bf16.msra.mxu0 %v2860
    %6871 = vmatprep.subr.bf16.mxu0 %v2865
    %6872 = vmatpush1.bf16.msra.mxu0 %v2864
    %6873 = vmatprep.subr.bf16.mxu0 %v2869
    %6874 = vmatpush1.bf16.msra.mxu0 %v2868
    %6875 = vmatprep.subr.bf16.mxu0 %v2873
    %6876 = vmatpush1.bf16.msra.mxu0 %v2872
    %6877 = vmatprep.subr.bf16.mxu0 %v2877
    %6878 = vmatpush1.bf16.msra.mxu0 %v2876
    %6879 = vmatprep.subr.bf16.mxu0 %v2881
    %6880 = vmatpush1.bf16.msra.mxu0 %v2880
    %6881 = vmatprep.subr.bf16.mxu0 %v2885
    %6882 = vmatpush1.bf16.msra.mxu0 %v2884
    %6883 = vmatprep.subr.bf16.mxu0 %v2889
    %6884 = vmatpush1.bf16.msra.mxu0 %v2888
    %6885 = vmatprep.subr.bf16.mxu0 %v2893
    %6886 = vmatpush1.bf16.msra.mxu0 %v2892
    %6887 = vmatprep.mubr.bf16.mxu0 %v6583
    %6888 = vmatmul.mubr.bf16.gmra.mrb[0].mxu0 %v6582
    %v6889 = vpop.f32.mrb[0].mxu0
    %v6890 = vadd.f32 %v6767, %v6889
    %v6891 = vpop.f32.mrb[0].mxu0
    %v6892 = vadd.f32 %v6769, %v6891
    %v6893 = vpop.f32.mrb[0].mxu0
    %v6894 = vpop.f32.mrb[0].mxu0
    %6895 = vdwg.mxu0
    %6896 = vmatprep.subr.bf16.mxu0 %v2897
    %6897 = vmatpush1.bf16.msra.mxu0 %v2896
    %6898 = vmatprep.subr.bf16.mxu0 %v2901
    %6899 = vmatpush1.bf16.msra.mxu0 %v2900
    %6900 = vmatprep.subr.bf16.mxu0 %v2905
    %6901 = vmatpush1.bf16.msra.mxu0 %v2904
    %6902 = vmatprep.subr.bf16.mxu0 %v2909
    %6903 = vmatpush1.bf16.msra.mxu0 %v2908
    %6904 = vmatprep.subr.bf16.mxu0 %v2913
    %6905 = vmatpush1.bf16.msra.mxu0 %v2912
    %6906 = vmatprep.subr.bf16.mxu0 %v2917
    %6907 = vmatpush1.bf16.msra.mxu0 %v2916
    %6908 = vmatprep.subr.bf16.mxu0 %v2921
    %6909 = vmatpush1.bf16.msra.mxu0 %v2920
    %6910 = vmatprep.subr.bf16.mxu0 %v2925
    %6911 = vmatpush1.bf16.msra.mxu0 %v2924
    %6912 = vmatprep.subr.bf16.mxu0 0
    %6913 = vmatpush1.bf16.msra.mxu0 0
    %6914 = vmatprep.subr.bf16.mxu0 0
    %6915 = vmatpush1.bf16.msra.mxu0 0
    %6916 = vmatprep.subr.bf16.mxu0 0
    %6917 = vmatpush1.bf16.msra.mxu0 0
    %6918 = vmatprep.subr.bf16.mxu0 0
    %6919 = vmatpush1.bf16.msra.mxu0 0
    %6920 = vmatprep.subr.bf16.mxu0 0
    %6921 = vmatpush1.bf16.msra.mxu0 0
    %6922 = vmatprep.subr.bf16.mxu0 0
    %6923 = vmatpush1.bf16.msra.mxu0 0
    %6924 = vmatprep.subr.bf16.mxu0 0
    %6925 = vmatpush1.bf16.msra.mxu0 0
    %6926 = vmatprep.subr.bf16.mxu0 0
    %6927 = vmatpush1.bf16.msra.mxu0 0
    %6928 = vmatprep.mubr.bf16.mxu0 0
    %6929 = vmatmul.mubr.bf16.gmra.mrb[0].mxu0 %v6584
    %v6930 = vpop.f32.mrb[0].mxu0
    %v6931 = vadd.f32 %v6890, %v6930
    %v6932 = vpop.f32.mrb[0].mxu0
    %v6933 = vadd.f32 %v6892, %v6932
    %v6934 = vpop.f32.mrb[0].mxu0
    %v6935 = vpop.f32.mrb[0].mxu0
    %6936 = vdwg.mxu0
    %v6940 = vrot.slane %v6582, 1
    %v6941 = vrot.slane %v6583, 1
    %v6942 = vrot.slane %v6584, 1
    %6946 = vmatprep.subr.bf16.mxu0 %v3581
    %6947 = vmatpush1.bf16.msra.mxu0 %v3580
    %6948 = vmatprep.subr.bf16.mxu0 %v3585
    %6949 = vmatpush1.bf16.msra.mxu0 %v3584
    %6950 = vmatprep.subr.bf16.mxu0 %v3589
    %6951 = vmatpush1.bf16.msra.mxu0 %v3588
    %6952 = vmatprep.subr.bf16.mxu0 %v3593
    %6953 = vmatpush1.bf16.msra.mxu0 %v3592
    %6954 = vmatprep.subr.bf16.mxu0 %v3597
    %6955 = vmatpush1.bf16.msra.mxu0 %v3596
    %6956 = vmatprep.subr.bf16.mxu0 %v3601
    %6957 = vmatpush1.bf16.msra.mxu0 %v3600
    %6958 = vmatprep.subr.bf16.mxu0 %v3605
    %6959 = vmatpush1.bf16.msra.mxu0 %v3604
    %6960 = vmatprep.subr.bf16.mxu0 %v3609
    %6961 = vmatpush1.bf16.msra.mxu0 %v3608
    %6962 = vmatprep.subr.bf16.mxu0 %v3613
    %6963 = vmatpush1.bf16.msra.mxu0 %v3612
    %6964 = vmatprep.subr.bf16.mxu0 %v3617
    %6965 = vmatpush1.bf16.msra.mxu0 %v3616
    %6966 = vmatprep.subr.bf16.mxu0 %v3621
    %6967 = vmatpush1.bf16.msra.mxu0 %v3620
    %6968 = vmatprep.subr.bf16.mxu0 %v3625
    %6969 = vmatpush1.bf16.msra.mxu0 %v3624
    %6970 = vmatprep.subr.bf16.mxu0 %v3629
    %6971 = vmatpush1.bf16.msra.mxu0 %v3628
    %6972 = vmatprep.subr.bf16.mxu0 %v3633
    %6973 = vmatpush1.bf16.msra.mxu0 %v3632
    %6974 = vmatprep.subr.bf16.mxu0 %v3637
    %6975 = vmatpush1.bf16.msra.mxu0 %v3636
    %6976 = vmatprep.subr.bf16.mxu0 %v3641
    %6977 = vmatpush1.bf16.msra.mxu0 %v3640
    %6978 = vmatprep.mubr.bf16.mxu0 %v6941
    %6979 = vmatmul.mubr.bf16.gmra.mrb[0].mxu0 %v6940
    %v6980 = vpop.f32.mrb[0].mxu0
    %v6981 = vadd.f32 0.0, %v6980
    %v6982 = vpop.f32.mrb[0].mxu0
    %v6983 = vadd.f32 0.0, %v6982
    %v6984 = vpop.f32.mrb[0].mxu0
    %v6985 = vpop.f32.mrb[0].mxu0
    %6986 = vdwg.mxu0
    %6987 = vmatprep.subr.bf16.mxu0 %v3645
    %6988 = vmatpush1.bf16.msra.mxu0 %v3644
    %6989 = vmatprep.subr.bf16.mxu0 %v3649
    %6990 = vmatpush1.bf16.msra.mxu0 %v3648
    %6991 = vmatprep.subr.bf16.mxu0 %v3653
    %6992 = vmatpush1.bf16.msra.mxu0 %v3652
    %6993 = vmatprep.subr.bf16.mxu0 %v3657
    %6994 = vmatpush1.bf16.msra.mxu0 %v3656
    %6995 = vmatprep.subr.bf16.mxu0 %v3661
    %6996 = vmatpush1.bf16.msra.mxu0 %v3660
    %6997 = vmatprep.subr.bf16.mxu0 %v3665
    %6998 = vmatpush1.bf16.msra.mxu0 %v3664
    %6999 = vmatprep.subr.bf16.mxu0 %v3669
    %7000 = vmatpush1.bf16.msra.mxu0 %v3668
    %7001 = vmatprep.subr.bf16.mxu0 %v3673
    %7002 = vmatpush1.bf16.msra.mxu0 %v3672
    %7003 = vmatprep.subr.bf16.mxu0 0
    %7004 = vmatpush1.bf16.msra.mxu0 0
    %7005 = vmatprep.subr.bf16.mxu0 0
    %7006 = vmatpush1.bf16.msra.mxu0 0
    %7007 = vmatprep.subr.bf16.mxu0 0
    %7008 = vmatpush1.bf16.msra.mxu0 0
    %7009 = vmatprep.subr.bf16.mxu0 0
    %7010 = vmatpush1.bf16.msra.mxu0 0
    %7011 = vmatprep.subr.bf16.mxu0 0
    %7012 = vmatpush1.bf16.msra.mxu0 0
    %7013 = vmatprep.subr.bf16.mxu0 0
    %7014 = vmatpush1.bf16.msra.mxu0 0
    %7015 = vmatprep.subr.bf16.mxu0 0
    %7016 = vmatpush1.bf16.msra.mxu0 0
    %7017 = vmatprep.subr.bf16.mxu0 0
    %7018 = vmatpush1.bf16.msra.mxu0 0
    %7019 = vmatprep.mubr.bf16.mxu0 0
    %7020 = vmatmul.mubr.bf16.gmra.mrb[0].mxu0 %v6942
    %v7021 = vpop.f32.mrb[0].mxu0
    %v7022 = vadd.f32 %v6981, %v7021
    %v7023 = vpop.f32.mrb[0].mxu0
    %v7024 = vadd.f32 %v6983, %v7023
    %v7025 = vpop.f32.mrb[0].mxu0
    %v7026 = vpop.f32.mrb[0].mxu0
    %7027 = vdwg.mxu0
    %7028 = vmatprep.subr.bf16.mxu0 %v3583
    %7029 = vmatpush1.bf16.msra.mxu0 %v3582
    %7030 = vmatprep.subr.bf16.mxu0 %v3587
    %7031 = vmatpush1.bf16.msra.mxu0 %v3586
    %7032 = vmatprep.subr.bf16.mxu0 %v3591
    %7033 = vmatpush1.bf16.msra.mxu0 %v3590
    %7034 = vmatprep.subr.bf16.mxu0 %v3595
    %7035 = vmatpush1.bf16.msra.mxu0 %v3594
    %7036 = vmatprep.subr.bf16.mxu0 %v3599
    %7037 = vmatpush1.bf16.msra.mxu0 %v3598
    %7038 = vmatprep.subr.bf16.mxu0 %v3603
    %7039 = vmatpush1.bf16.msra.mxu0 %v3602
    %7040 = vmatprep.subr.bf16.mxu0 %v3607
    %7041 = vmatpush1.bf16.msra.mxu0 %v3606
    %7042 = vmatprep.subr.bf16.mxu0 %v3611
    %7043 = vmatpush1.bf16.msra.mxu0 %v3610
    %7044 = vmatprep.subr.bf16.mxu0 %v3615
    %7045 = vmatpush1.bf16.msra.mxu0 %v3614
    %7046 = vmatprep.subr.bf16.mxu0 %v3619
    %7047 = vmatpush1.bf16.msra.mxu0 %v3618
    %7048 = vmatprep.subr.bf16.mxu0 %v3623
    %7049 = vmatpush1.bf16.msra.mxu0 %v3622
    %7050 = vmatprep.subr.bf16.mxu0 %v3627
    %7051 = vmatpush1.bf16.msra.mxu0 %v3626
    %7052 = vmatprep.subr.bf16.mxu0 %v3631
    %7053 = vmatpush1.bf16.msra.mxu0 %v3630
    %7054 = vmatprep.subr.bf16.mxu0 %v3635
    %7055 = vmatpush1.bf16.msra.mxu0 %v3634
    %7056 = vmatprep.subr.bf16.mxu0 %v3639
    %7057 = vmatpush1.bf16.msra.mxu0 %v3638
    %7058 = vmatprep.subr.bf16.mxu0 %v3643
    %7059 = vmatpush1.bf16.msra.mxu0 %v3642
    %7060 = vmatprep.mubr.bf16.mxu0 %v6941
    %7061 = vmatmul.mubr.bf16.gmra.mrb[0].mxu0 %v6940
    %v7062 = vpop.f32.mrb[0].mxu0
    %v7063 = vadd.f32 0.0, %v7062
    %v7064 = vpop.f32.mrb[0].mxu0
    %v7065 = vadd.f32 0.0, %v7064
    %v7066 = vpop.f32.mrb[0].mxu0
    %v7067 = vpop.f32.mrb[0].mxu0
    %7068 = vdwg.mxu0
    %7069 = vmatprep.subr.bf16.mxu0 %v3647
    %7070 = vmatpush1.bf16.msra.mxu0 %v3646
    %7071 = vmatprep.subr.bf16.mxu0 %v3651
    %7072 = vmatpush1.bf16.msra.mxu0 %v3650
    %7073 = vmatprep.subr.bf16.mxu0 %v3655
    %7074 = vmatpush1.bf16.msra.mxu0 %v3654
    %7075 = vmatprep.subr.bf16.mxu0 %v3659
    %7076 = vmatpush1.bf16.msra.mxu0 %v3658
    %7077 = vmatprep.subr.bf16.mxu0 %v3663
    %7078 = vmatpush1.bf16.msra.mxu0 %v3662
    %7079 = vmatprep.subr.bf16.mxu0 %v3667
    %7080 = vmatpush1.bf16.msra.mxu0 %v3666
    %7081 = vmatprep.subr.bf16.mxu0 %v3671
    %7082 = vmatpush1.bf16.msra.mxu0 %v3670
    %7083 = vmatprep.subr.bf16.mxu0 %v3675
    %7084 = vmatpush1.bf16.msra.mxu0 %v3674
    %7085 = vmatprep.subr.bf16.mxu0 0
    %7086 = vmatpush1.bf16.msra.mxu0 0
    %7087 = vmatprep.subr.bf16.mxu0 0
    %7088 = vmatpush1.bf16.msra.mxu0 0
    %7089 = vmatprep.subr.bf16.mxu0 0
    %7090 = vmatpush1.bf16.msra.mxu0 0
    %7091 = vmatprep.subr.bf16.mxu0 0
    %7092 = vmatpush1.bf16.msra.mxu0 0
    %7093 = vmatprep.subr.bf16.mxu0 0
    %7094 = vmatpush1.bf16.msra.mxu0 0
    %7095 = vmatprep.subr.bf16.mxu0 0
    %7096 = vmatpush1.bf16.msra.mxu0 0
    %7097 = vmatprep.subr.bf16.mxu0 0
    %7098 = vmatpush1.bf16.msra.mxu0 0
    %7099 = vmatprep.subr.bf16.mxu0 0
    %7100 = vmatpush1.bf16.msra.mxu0 0
    %7101 = vmatprep.mubr.bf16.mxu0 0
    %7102 = vmatmul.mubr.bf16.gmra.mrb[0].mxu0 %v6942
    %v7103 = vpop.f32.mrb[0].mxu0
    %v7104 = vadd.f32 %v7063, %v7103
    %v7105 = vpop.f32.mrb[0].mxu0
    %v7106 = vadd.f32 %v7065, %v7105
    %v7107 = vpop.f32.mrb[0].mxu0
    %v7108 = vpop.f32.mrb[0].mxu0
    %7109 = vdwg.mxu0
    %v7110 = vadd.f32 %v6849, %v7022
    %v7111 = vadd.f32 %v6851, %v7024
    %v7112 = vadd.f32 %v6931, %v7104
    %v7113 = vadd.f32 %v6933, %v7106
    %v7114 = vrot.slane %v6586, 1
    %v7115 = vrot.slane %v6588, 2
    %v7116 = vor.u32 %v7114, %v7115
    %v7117 = vrot.slane %v6593, 1
    %v7118 = vrot.slane %v6595, 2
    %v7119 = vor.u32 %v7117, %v7118
    %v7120 = vrot.slane %v6600, 1
    %v7121 = vrot.slane %v6602, 2
    %v7122 = vor.u32 %v7120, %v7121
    %7126 = vmatprep.subr.bf16.mxu0 %v4338
    %7127 = vmatpush1.bf16.msra.mxu0 %v4337
    %7128 = vmatprep.subr.bf16.mxu0 %v4342
    %7129 = vmatpush1.bf16.msra.mxu0 %v4341
    %7130 = vmatprep.subr.bf16.mxu0 %v4346
    %7131 = vmatpush1.bf16.msra.mxu0 %v4345
    %7132 = vmatprep.subr.bf16.mxu0 %v4350
    %7133 = vmatpush1.bf16.msra.mxu0 %v4349
    %7134 = vmatprep.subr.bf16.mxu0 %v4354
    %7135 = vmatpush1.bf16.msra.mxu0 %v4353
    %7136 = vmatprep.subr.bf16.mxu0 %v4358
    %7137 = vmatpush1.bf16.msra.mxu0 %v4357
    %7138 = vmatprep.subr.bf16.mxu0 %v4362
    %7139 = vmatpush1.bf16.msra.mxu0 %v4361
    %7140 = vmatprep.subr.bf16.mxu0 %v4366
    %7141 = vmatpush1.bf16.msra.mxu0 %v4365
    %7142 = vmatprep.subr.bf16.mxu0 %v4370
    %7143 = vmatpush1.bf16.msra.mxu0 %v4369
    %7144 = vmatprep.subr.bf16.mxu0 %v4374
    %7145 = vmatpush1.bf16.msra.mxu0 %v4373
    %7146 = vmatprep.subr.bf16.mxu0 %v4378
    %7147 = vmatpush1.bf16.msra.mxu0 %v4377
    %7148 = vmatprep.subr.bf16.mxu0 %v4382
    %7149 = vmatpush1.bf16.msra.mxu0 %v4381
    %7150 = vmatprep.subr.bf16.mxu0 %v4386
    %7151 = vmatpush1.bf16.msra.mxu0 %v4385
    %7152 = vmatprep.subr.bf16.mxu0 %v4390
    %7153 = vmatpush1.bf16.msra.mxu0 %v4389
    %7154 = vmatprep.subr.bf16.mxu0 %v4394
    %7155 = vmatpush1.bf16.msra.mxu0 %v4393
    %7156 = vmatprep.subr.bf16.mxu0 %v4398
    %7157 = vmatpush1.bf16.msra.mxu0 %v4397
    %7158 = vmatprep.mubr.bf16.mxu0 %v7119
    %7159 = vmatmul.mubr.bf16.gmra.mrb[0].mxu0 %v7116
    %v7160 = vpop.f32.mrb[0].mxu0
    %v7161 = vadd.f32 0.0, %v7160
    %v7162 = vpop.f32.mrb[0].mxu0
    %v7163 = vadd.f32 0.0, %v7162
    %v7164 = vpop.f32.mrb[0].mxu0
    %v7165 = vpop.f32.mrb[0].mxu0
    %7166 = vdwg.mxu0
    %7167 = vmatprep.subr.bf16.mxu0 %v4402
    %7168 = vmatpush1.bf16.msra.mxu0 %v4401
    %7169 = vmatprep.subr.bf16.mxu0 %v4406
    %7170 = vmatpush1.bf16.msra.mxu0 %v4405
    %7171 = vmatprep.subr.bf16.mxu0 %v4410
    %7172 = vmatpush1.bf16.msra.mxu0 %v4409
    %7173 = vmatprep.subr.bf16.mxu0 %v4414
    %7174 = vmatpush1.bf16.msra.mxu0 %v4413
    %7175 = vmatprep.subr.bf16.mxu0 %v4418
    %7176 = vmatpush1.bf16.msra.mxu0 %v4417
    %7177 = vmatprep.subr.bf16.mxu0 %v4422
    %7178 = vmatpush1.bf16.msra.mxu0 %v4421
    %7179 = vmatprep.subr.bf16.mxu0 %v4426
    %7180 = vmatpush1.bf16.msra.mxu0 %v4425
    %7181 = vmatprep.subr.bf16.mxu0 %v4430
    %7182 = vmatpush1.bf16.msra.mxu0 %v4429
    %7183 = vmatprep.subr.bf16.mxu0 0
    %7184 = vmatpush1.bf16.msra.mxu0 0
    %7185 = vmatprep.subr.bf16.mxu0 0
    %7186 = vmatpush1.bf16.msra.mxu0 0
    %7187 = vmatprep.subr.bf16.mxu0 0
    %7188 = vmatpush1.bf16.msra.mxu0 0
    %7189 = vmatprep.subr.bf16.mxu0 0
    %7190 = vmatpush1.bf16.msra.mxu0 0
    %7191 = vmatprep.subr.bf16.mxu0 0
    %7192 = vmatpush1.bf16.msra.mxu0 0
    %7193 = vmatprep.subr.bf16.mxu0 0
    %7194 = vmatpush1.bf16.msra.mxu0 0
    %7195 = vmatprep.subr.bf16.mxu0 0
    %7196 = vmatpush1.bf16.msra.mxu0 0
    %7197 = vmatprep.subr.bf16.mxu0 0
    %7198 = vmatpush1.bf16.msra.mxu0 0
    %7199 = vmatprep.mubr.bf16.mxu0 0
    %7200 = vmatmul.mubr.bf16.gmra.mrb[0].mxu0 %v7122
    %v7201 = vpop.f32.mrb[0].mxu0
    %v7202 = vadd.f32 %v7161, %v7201
    %v7203 = vpop.f32.mrb[0].mxu0
    %v7204 = vadd.f32 %v7163, %v7203
    %v7205 = vpop.f32.mrb[0].mxu0
    %v7206 = vpop.f32.mrb[0].mxu0
    %7207 = vdwg.mxu0
    %7208 = vmatprep.subr.bf16.mxu0 %v4340
    %7209 = vmatpush1.bf16.msra.mxu0 %v4339
    %7210 = vmatprep.subr.bf16.mxu0 %v4344
    %7211 = vmatpush1.bf16.msra.mxu0 %v4343
    %7212 = vmatprep.subr.bf16.mxu0 %v4348
    %7213 = vmatpush1.bf16.msra.mxu0 %v4347
    %7214 = vmatprep.subr.bf16.mxu0 %v4352
    %7215 = vmatpush1.bf16.msra.mxu0 %v4351
    %7216 = vmatprep.subr.bf16.mxu0 %v4356
    %7217 = vmatpush1.bf16.msra.mxu0 %v4355
    %7218 = vmatprep.subr.bf16.mxu0 %v4360
    %7219 = vmatpush1.bf16.msra.mxu0 %v4359
    %7220 = vmatprep.subr.bf16.mxu0 %v4364
    %7221 = vmatpush1.bf16.msra.mxu0 %v4363
    %7222 = vmatprep.subr.bf16.mxu0 %v4368
    %7223 = vmatpush1.bf16.msra.mxu0 %v4367
    %7224 = vmatprep.subr.bf16.mxu0 %v4372
    %7225 = vmatpush1.bf16.msra.mxu0 %v4371
    %7226 = vmatprep.subr.bf16.mxu0 %v4376
    %7227 = vmatpush1.bf16.msra.mxu0 %v4375
    %7228 = vmatprep.subr.bf16.mxu0 %v4380
    %7229 = vmatpush1.bf16.msra.mxu0 %v4379
    %7230 = vmatprep.subr.bf16.mxu0 %v4384
    %7231 = vmatpush1.bf16.msra.mxu0 %v4383
    %7232 = vmatprep.subr.bf16.mxu0 %v4388
    %7233 = vmatpush1.bf16.msra.mxu0 %v4387
    %7234 = vmatprep.subr.bf16.mxu0 %v4392
    %7235 = vmatpush1.bf16.msra.mxu0 %v4391
    %7236 = vmatprep.subr.bf16.mxu0 %v4396
    %7237 = vmatpush1.bf16.msra.mxu0 %v4395
    %7238 = vmatprep.subr.bf16.mxu0 %v4400
    %7239 = vmatpush1.bf16.msra.mxu0 %v4399
    %7240 = vmatprep.mubr.bf16.mxu0 %v7119
    %7241 = vmatmul.mubr.bf16.gmra.mrb[0].mxu0 %v7116
    %v7242 = vpop.f32.mrb[0].mxu0
    %v7243 = vadd.f32 0.0, %v7242
    %v7244 = vpop.f32.mrb[0].mxu0
    %v7245 = vadd.f32 0.0, %v7244
    %v7246 = vpop.f32.mrb[0].mxu0
    %v7247 = vpop.f32.mrb[0].mxu0
    %7248 = vdwg.mxu0
    %7249 = vmatprep.subr.bf16.mxu0 %v4404
    %7250 = vmatpush1.bf16.msra.mxu0 %v4403
    %7251 = vmatprep.subr.bf16.mxu0 %v4408
    %7252 = vmatpush1.bf16.msra.mxu0 %v4407
    %7253 = vmatprep.subr.bf16.mxu0 %v4412
    %7254 = vmatpush1.bf16.msra.mxu0 %v4411
    %7255 = vmatprep.subr.bf16.mxu0 %v4416
    %7256 = vmatpush1.bf16.msra.mxu0 %v4415
    %7257 = vmatprep.subr.bf16.mxu0 %v4420
    %7258 = vmatpush1.bf16.msra.mxu0 %v4419
    %7259 = vmatprep.subr.bf16.mxu0 %v4424
    %7260 = vmatpush1.bf16.msra.mxu0 %v4423
    %7261 = vmatprep.subr.bf16.mxu0 %v4428
    %7262 = vmatpush1.bf16.msra.mxu0 %v4427
    %7263 = vmatprep.subr.bf16.mxu0 %v4432
    %7264 = vmatpush1.bf16.msra.mxu0 %v4431
    %7265 = vmatprep.subr.bf16.mxu0 0
    %7266 = vmatpush1.bf16.msra.mxu0 0
    %7267 = vmatprep.subr.bf16.mxu0 0
    %7268 = vmatpush1.bf16.msra.mxu0 0
    %7269 = vmatprep.subr.bf16.mxu0 0
    %7270 = vmatpush1.bf16.msra.mxu0 0
    %7271 = vmatprep.subr.bf16.mxu0 0
    %7272 = vmatpush1.bf16.msra.mxu0 0
    %7273 = vmatprep.subr.bf16.mxu0 0
    %7274 = vmatpush1.bf16.msra.mxu0 0
    %7275 = vmatprep.subr.bf16.mxu0 0
    %7276 = vmatpush1.bf16.msra.mxu0 0
    %7277 = vmatprep.subr.bf16.mxu0 0
    %7278 = vmatpush1.bf16.msra.mxu0 0
    %7279 = vmatprep.subr.bf16.mxu0 0
    %7280 = vmatpush1.bf16.msra.mxu0 0
    %7281 = vmatprep.mubr.bf16.mxu0 0
    %7282 = vmatmul.mubr.bf16.gmra.mrb[0].mxu0 %v7122
    %v7283 = vpop.f32.mrb[0].mxu0
    %v7284 = vadd.f32 %v7243, %v7283
    %v7285 = vpop.f32.mrb[0].mxu0
    %v7286 = vadd.f32 %v7245, %v7285
    %v7287 = vpop.f32.mrb[0].mxu0
    %v7288 = vpop.f32.mrb[0].mxu0
    %7289 = vdwg.mxu0
    %v7290 = vadd.f32 %v7110, %v7202
    %v7291 = vadd.f32 %v7111, %v7204
    %v7292 = vadd.f32 %v7112, %v7284
    %v7293 = vadd.f32 %v7113, %v7286
    %v7294 = vrot.slane %v6582, 2
    %v7295 = vrot.slane %v6583, 2
    %v7296 = vrot.slane %v6584, 2
    %7300 = vmatprep.subr.bf16.mxu0 %v5089
    %7301 = vmatpush1.bf16.msra.mxu0 %v5088
    %7302 = vmatprep.subr.bf16.mxu0 %v5093
    %7303 = vmatpush1.bf16.msra.mxu0 %v5092
    %7304 = vmatprep.subr.bf16.mxu0 %v5097
    %7305 = vmatpush1.bf16.msra.mxu0 %v5096
    %7306 = vmatprep.subr.bf16.mxu0 %v5101
    %7307 = vmatpush1.bf16.msra.mxu0 %v5100
    %7308 = vmatprep.subr.bf16.mxu0 %v5105
    %7309 = vmatpush1.bf16.msra.mxu0 %v5104
    %7310 = vmatprep.subr.bf16.mxu0 %v5109
    %7311 = vmatpush1.bf16.msra.mxu0 %v5108
    %7312 = vmatprep.subr.bf16.mxu0 %v5113
    %7313 = vmatpush1.bf16.msra.mxu0 %v5112
    %7314 = vmatprep.subr.bf16.mxu0 %v5117
    %7315 = vmatpush1.bf16.msra.mxu0 %v5116
    %7316 = vmatprep.subr.bf16.mxu0 %v5121
    %7317 = vmatpush1.bf16.msra.mxu0 %v5120
    %7318 = vmatprep.subr.bf16.mxu0 %v5125
    %7319 = vmatpush1.bf16.msra.mxu0 %v5124
    %7320 = vmatprep.subr.bf16.mxu0 %v5129
    %7321 = vmatpush1.bf16.msra.mxu0 %v5128
    %7322 = vmatprep.subr.bf16.mxu0 %v5133
    %7323 = vmatpush1.bf16.msra.mxu0 %v5132
    %7324 = vmatprep.subr.bf16.mxu0 %v5137
    %7325 = vmatpush1.bf16.msra.mxu0 %v5136
    %7326 = vmatprep.subr.bf16.mxu0 %v5141
    %7327 = vmatpush1.bf16.msra.mxu0 %v5140
    %7328 = vmatprep.subr.bf16.mxu0 %v5145
    %7329 = vmatpush1.bf16.msra.mxu0 %v5144
    %7330 = vmatprep.subr.bf16.mxu0 %v5149
    %7331 = vmatpush1.bf16.msra.mxu0 %v5148
    %7332 = vmatprep.mubr.bf16.mxu0 %v7295
    %7333 = vmatmul.mubr.bf16.gmra.mrb[0].mxu0 %v7294
    %v7334 = vpop.f32.mrb[0].mxu0
    %v7335 = vadd.f32 0.0, %v7334
    %v7336 = vpop.f32.mrb[0].mxu0
    %v7337 = vadd.f32 0.0, %v7336
    %v7338 = vpop.f32.mrb[0].mxu0
    %v7339 = vpop.f32.mrb[0].mxu0
    %7340 = vdwg.mxu0
    %7341 = vmatprep.subr.bf16.mxu0 %v5153
    %7342 = vmatpush1.bf16.msra.mxu0 %v5152
    %7343 = vmatprep.subr.bf16.mxu0 %v5157
    %7344 = vmatpush1.bf16.msra.mxu0 %v5156
    %7345 = vmatprep.subr.bf16.mxu0 %v5161
    %7346 = vmatpush1.bf16.msra.mxu0 %v5160
    %7347 = vmatprep.subr.bf16.mxu0 %v5165
    %7348 = vmatpush1.bf16.msra.mxu0 %v5164
    %7349 = vmatprep.subr.bf16.mxu0 %v5169
    %7350 = vmatpush1.bf16.msra.mxu0 %v5168
    %7351 = vmatprep.subr.bf16.mxu0 %v5173
    %7352 = vmatpush1.bf16.msra.mxu0 %v5172
    %7353 = vmatprep.subr.bf16.mxu0 %v5177
    %7354 = vmatpush1.bf16.msra.mxu0 %v5176
    %7355 = vmatprep.subr.bf16.mxu0 %v5181
    %7356 = vmatpush1.bf16.msra.mxu0 %v5180
    %7357 = vmatprep.subr.bf16.mxu0 0
    %7358 = vmatpush1.bf16.msra.mxu0 0
    %7359 = vmatprep.subr.bf16.mxu0 0
    %7360 = vmatpush1.bf16.msra.mxu0 0
    %7361 = vmatprep.subr.bf16.mxu0 0
    %7362 = vmatpush1.bf16.msra.mxu0 0
    %7363 = vmatprep.subr.bf16.mxu0 0
    %7364 = vmatpush1.bf16.msra.mxu0 0
    %7365 = vmatprep.subr.bf16.mxu0 0
    %7366 = vmatpush1.bf16.msra.mxu0 0
    %7367 = vmatprep.subr.bf16.mxu0 0
    %7368 = vmatpush1.bf16.msra.mxu0 0
    %7369 = vmatprep.subr.bf16.mxu0 0
    %7370 = vmatpush1.bf16.msra.mxu0 0
    %7371 = vmatprep.subr.bf16.mxu0 0
    %7372 = vmatpush1.bf16.msra.mxu0 0
    %7373 = vmatprep.mubr.bf16.mxu0 0
    %7374 = vmatmul.mubr.bf16.gmra.mrb[0].mxu0 %v7296
    %v7375 = vpop.f32.mrb[0].mxu0
    %v7376 = vadd.f32 %v7335, %v7375
    %v7377 = vpop.f32.mrb[0].mxu0
    %v7378 = vadd.f32 %v7337, %v7377
    %v7379 = vpop.f32.mrb[0].mxu0
    %v7380 = vpop.f32.mrb[0].mxu0
    %7381 = vdwg.mxu0
    %7382 = vmatprep.subr.bf16.mxu0 %v5091
    %7383 = vmatpush1.bf16.msra.mxu0 %v5090
    %7384 = vmatprep.subr.bf16.mxu0 %v5095
    %7385 = vmatpush1.bf16.msra.mxu0 %v5094
    %7386 = vmatprep.subr.bf16.mxu0 %v5099
    %7387 = vmatpush1.bf16.msra.mxu0 %v5098
    %7388 = vmatprep.subr.bf16.mxu0 %v5103
    %7389 = vmatpush1.bf16.msra.mxu0 %v5102
    %7390 = vmatprep.subr.bf16.mxu0 %v5107
    %7391 = vmatpush1.bf16.msra.mxu0 %v5106
    %7392 = vmatprep.subr.bf16.mxu0 %v5111
    %7393 = vmatpush1.bf16.msra.mxu0 %v5110
    %7394 = vmatprep.subr.bf16.mxu0 %v5115
    %7395 = vmatpush1.bf16.msra.mxu0 %v5114
    %7396 = vmatprep.subr.bf16.mxu0 %v5119
    %7397 = vmatpush1.bf16.msra.mxu0 %v5118
    %7398 = vmatprep.subr.bf16.mxu0 %v5123
    %7399 = vmatpush1.bf16.msra.mxu0 %v5122
    %7400 = vmatprep.subr.bf16.mxu0 %v5127
    %7401 = vmatpush1.bf16.msra.mxu0 %v5126
    %7402 = vmatprep.subr.bf16.mxu0 %v5131
    %7403 = vmatpush1.bf16.msra.mxu0 %v5130
    %7404 = vmatprep.subr.bf16.mxu0 %v5135
    %7405 = vmatpush1.bf16.msra.mxu0 %v5134
    %7406 = vmatprep.subr.bf16.mxu0 %v5139
    %7407 = vmatpush1.bf16.msra.mxu0 %v5138
    %7408 = vmatprep.subr.bf16.mxu0 %v5143
    %7409 = vmatpush1.bf16.msra.mxu0 %v5142
    %7410 = vmatprep.subr.bf16.mxu0 %v5147
    %7411 = vmatpush1.bf16.msra.mxu0 %v5146
    %7412 = vmatprep.subr.bf16.mxu0 %v5151
    %7413 = vmatpush1.bf16.msra.mxu0 %v5150
    %7414 = vmatprep.mubr.bf16.mxu0 %v7295
    %7415 = vmatmul.mubr.bf16.gmra.mrb[0].mxu0 %v7294
    %v7416 = vpop.f32.mrb[0].mxu0
    %v7417 = vadd.f32 0.0, %v7416
    %v7418 = vpop.f32.mrb[0].mxu0
    %v7419 = vadd.f32 0.0, %v7418
    %v7420 = vpop.f32.mrb[0].mxu0
    %v7421 = vpop.f32.mrb[0].mxu0
    %7422 = vdwg.mxu0
    %7423 = vmatprep.subr.bf16.mxu0 %v5155
    %7424 = vmatpush1.bf16.msra.mxu0 %v5154
    %7425 = vmatprep.subr.bf16.mxu0 %v5159
    %7426 = vmatpush1.bf16.msra.mxu0 %v5158
    %7427 = vmatprep.subr.bf16.mxu0 %v5163
    %7428 = vmatpush1.bf16.msra.mxu0 %v5162
    %7429 = vmatprep.subr.bf16.mxu0 %v5167
    %7430 = vmatpush1.bf16.msra.mxu0 %v5166
    %7431 = vmatprep.subr.bf16.mxu0 %v5171
    %7432 = vmatpush1.bf16.msra.mxu0 %v5170
    %7433 = vmatprep.subr.bf16.mxu0 %v5175
    %7434 = vmatpush1.bf16.msra.mxu0 %v5174
    %7435 = vmatprep.subr.bf16.mxu0 %v5179
    %7436 = vmatpush1.bf16.msra.mxu0 %v5178
    %7437 = vmatprep.subr.bf16.mxu0 %v5183
    %7438 = vmatpush1.bf16.msra.mxu0 %v5182
    %7439 = vmatprep.subr.bf16.mxu0 0
    %7440 = vmatpush1.bf16.msra.mxu0 0
    %7441 = vmatprep.subr.bf16.mxu0 0
    %7442 = vmatpush1.bf16.msra.mxu0 0
    %7443 = vmatprep.subr.bf16.mxu0 0
    %7444 = vmatpush1.bf16.msra.mxu0 0
    %7445 = vmatprep.subr.bf16.mxu0 0
    %7446 = vmatpush1.bf16.msra.mxu0 0
    %7447 = vmatprep.subr.bf16.mxu0 0
    %7448 = vmatpush1.bf16.msra.mxu0 0
    %7449 = vmatprep.subr.bf16.mxu0 0
    %7450 = vmatpush1.bf16.msra.mxu0 0
    %7451 = vmatprep.subr.bf16.mxu0 0
    %7452 = vmatpush1.bf16.msra.mxu0 0
    %7453 = vmatprep.subr.bf16.mxu0 0
    %7454 = vmatpush1.bf16.msra.mxu0 0
    %7455 = vmatprep.mubr.bf16.mxu0 0
    %7456 = vmatmul.mubr.bf16.gmra.mrb[0].mxu0 %v7296
    %v7457 = vpop.f32.mrb[0].mxu0
    %v7458 = vadd.f32 %v7417, %v7457
    %v7459 = vpop.f32.mrb[0].mxu0
    %v7460 = vadd.f32 %v7419, %v7459
    %v7461 = vpop.f32.mrb[0].mxu0
    %v7462 = vpop.f32.mrb[0].mxu0
    %7463 = vdwg.mxu0
    %v7464 = vadd.f32 %v7290, %v7376
    %v7465 = vadd.f32 %v7291, %v7378
    %v7466 = vadd.f32 %v7292, %v7458
    %v7467 = vadd.f32 %v7293, %v7460
    %v7468 = vadd.f32 %v7464, %v5453
    %v7469 = vadd.f32 %v7465, %v5457
    %v7470 = vadd.f32 %v7466, %v5461
    %v7471 = vadd.f32 %v7467, %v5465
    %v7472 = vmax.f32 %v7468, %v7470
    %v7473 = vmax.f32 %v7469, %v7471
    %v7476 = vrot.slane %v7472, 1
    %v7477 = vrot.slane %v7473, 1
    %v7480 = vmax.f32 %v7472, %v7476
    %v7481 = vmax.f32 %v7473, %v7477
    %v7484 = vrot.slane %v7480, 2
    %v7485 = vrot.slane %v7481, 2
    %v7488 = vrot.slane %v7480, 4
    %v7489 = vrot.slane %v7481, 4
    %v7492 = vrot.slane %v7480, 6
    %v7493 = vrot.slane %v7481, 6
    %v7496 = vpack.c.bf16 %v7480, %v7480
    %v7497 = vpack.c.bf16 %v7481, %v7481
    %v7498 = vpack.c.bf16 %v7484, %v7484
    %v7499 = vpack.c.bf16 %v7485, %v7485
    %v7500 = vpack.c.bf16 %v7488, %v7488
    %v7501 = vpack.c.bf16 %v7489, %v7489
    %v7502 = vpack.c.bf16 %v7492, %v7492
    %v7503 = vpack.c.bf16 %v7493, %v7493
    %v7505 = vshll.u32 %v7496, 16
    %v7508 = vshll.u32 %v7497, 16
    %v7511 = vshll.u32 %v7498, 16
    %v7514 = vshll.u32 %v7499, 16
    %v7517 = vshll.u32 %v7500, 16
    %v7520 = vshll.u32 %v7501, 16
    %v7523 = vshll.u32 %v7502, 16
    %v7526 = vshll.u32 %v7503, 16
    %vm7536 = vcmask 1040384
    %vm7537 = vsmask.f32 256
    %vm7538 = vmand %vm7536, %vm7537
    %v7539 = vsel %vm7538, %v5498, %v7505
    %v7540 = vsel %vm7538, %v5499, %v7508
    %v7541 = vsel %vm7538, %v5500, %v7511
    %v7542 = vsel %vm7538, %v5501, %v7514
    %v7543 = vsel %vm7538, %v5502, %v7517
    %v7544 = vsel %vm7538, %v5503, %v7520
    %v7545 = vsel %vm7538, %v5504, %v7523
    %v7546 = vsel %vm7538, %v5505, %v7526
    %v7547 = vld [vmem:[#allocation10] sm:$0xff]
    %v7548 = vld [vmem:[#allocation10 + $0x8] sm:$0xff]
    %v7549 = vld [vmem:[#allocation10 + $0x10] sm:$0xff]
    %v7550 = vld [vmem:[#allocation10 + $0x18] sm:$0xff]
    %v7551 = vld [vmem:[#allocation10 + $0x20] sm:$0xff]
    %v7552 = vld [vmem:[#allocation10 + $0x28] sm:$0xff]
    %v7553 = vld [vmem:[#allocation10 + $0x30] sm:$0xff]
    %v7554 = vld [vmem:[#allocation10 + $0x38] sm:$0xff]
    %v7555 = vld [vmem:[#allocation10 + $0x40] sm:$0xff]
    %v7556 = vld [vmem:[#allocation10 + $0x48] sm:$0xff]
    %v7557 = vld [vmem:[#allocation10 + $0x50] sm:$0xff]
    %v7558 = vld [vmem:[#allocation10 + $0x58] sm:$0xff]
    %v7559 = vld [vmem:[#allocation10 + $0x60] sm:$0xff]
    %v7560 = vld [vmem:[#allocation10 + $0x68] sm:$0xff]
    %v7561 = vld [vmem:[#allocation10 + $0x70] sm:$0xff]
    %v7562 = vld [vmem:[#allocation10 + $0x78] sm:$0xff]
    %v7563 = vld [vmem:[#allocation10 + $0x80] sm:$0xff]
    %v7564 = vld [vmem:[#allocation10 + $0x88] sm:$0xff]
    %v7565 = vld [vmem:[#allocation10 + $0x90] sm:$0xff]
    %v7566 = vld [vmem:[#allocation10 + $0x98] sm:$0xff]
    %v7567 = vld [vmem:[#allocation10 + $0xa0] sm:$0xff]
    %v7568 = vld [vmem:[#allocation10 + $0xa8] sm:$0xff]
    %v7569 = vld [vmem:[#allocation10 + $0xb0] sm:$0xff]
    %v7570 = vld [vmem:[#allocation10 + $0xb8] sm:$0xff]
    %v7571 = vld [vmem:[#allocation10 + $0xc0] sm:$0xff]
    %v7572 = vld [vmem:[#allocation10 + $0xc8] sm:$0xff]
    %v7573 = vld [vmem:[#allocation10 + $0xd0] sm:$0xff]
    %v7574 = vld [vmem:[#allocation10 + $0xd8] sm:$0xff]
    %v7575 = vld [vmem:[#allocation10 + $0xe0] sm:$0xff]
    %v7576 = vld [vmem:[#allocation10 + $0xe8] sm:$0xff]
    %v7577 = vld [vmem:[#allocation10 + $0xf0] sm:$0xff]
    %v7578 = vld [vmem:[#allocation10 + $0xf8] sm:$0xff]
    %v7579 = vld [vmem:[#allocation10 + $0x100] sm:$0xff]
    %v7580 = vld [vmem:[#allocation10 + $0x108] sm:$0xff]
    %v7581 = vld [vmem:[#allocation10 + $0x110] sm:$0xff]
    %v7582 = vld [vmem:[#allocation10 + $0x118] sm:$0xff]
    %v7583 = vld [vmem:[#allocation10 + $0x120] sm:$0xff]
    %v7584 = vld [vmem:[#allocation10 + $0x128] sm:$0xff]
    %v7585 = vld [vmem:[#allocation10 + $0x130] sm:$0xff]
    %v7586 = vld [vmem:[#allocation10 + $0x138] sm:$0xff]
    %v7587 = vld [vmem:[#allocation10 + $0x140] sm:$0xff]
    %v7588 = vld [vmem:[#allocation10 + $0x148] sm:$0xff]
    %v7589 = vld [vmem:[#allocation10 + $0x150] sm:$0xff]
    %v7590 = vld [vmem:[#allocation10 + $0x158] sm:$0xff]
    %v7591 = vld [vmem:[#allocation10 + $0x160] sm:$0xff]
    %v7592 = vld [vmem:[#allocation10 + $0x168] sm:$0xff]
    %v7593 = vld [vmem:[#allocation10 + $0x170] sm:$0xff]
    %v7594 = vld [vmem:[#allocation10 + $0x178] sm:$0xff]
    %v7595 = vld [vmem:[#allocation10 + $0x180] sm:$0xff]
    %v7596 = vld [vmem:[#allocation10 + $0x188] sm:$0xff]
    %v7597 = vld [vmem:[#allocation10 + $0x190] sm:$0xff]
    %v7598 = vld [vmem:[#allocation10 + $0x198] sm:$0xff]
    %v7599 = vld [vmem:[#allocation10 + $0x1a0] sm:$0xff]
    %v7600 = vld [vmem:[#allocation10 + $0x1a8] sm:$0xff]
    %v7601 = vld [vmem:[#allocation10 + $0x1b0] sm:$0xff]
    %v7602 = vld [vmem:[#allocation10 + $0x1b8] sm:$0xff]
    %v7603 = vld [vmem:[#allocation10 + $0x1c0] sm:$0xff]
    %v7604 = vld [vmem:[#allocation10 + $0x1c8] sm:$0xff]
    %v7605 = vld [vmem:[#allocation10 + $0x1d0] sm:$0xff]
    %v7606 = vld [vmem:[#allocation10 + $0x1d8] sm:$0xff]
    %v7607 = vld [vmem:[#allocation10 + $0x1e0] sm:$0xff]
    %v7608 = vld [vmem:[#allocation10 + $0x1e8] sm:$0xff]
    %v7609 = vld [vmem:[#allocation10 + $0x1f0] sm:$0xff]
    %v7610 = vld [vmem:[#allocation10 + $0x1f8] sm:$0xff]
    %v7611 = vld [vmem:[#allocation10 + $0x200] sm:$0xff]
    %v7612 = vld [vmem:[#allocation10 + $0x208] sm:$0xff]
    %v7613 = vld [vmem:[#allocation10 + $0x210] sm:$0xff]
    %v7614 = vld [vmem:[#allocation10 + $0x218] sm:$0xff]
    %v7615 = vld [vmem:[#allocation10 + $0x220] sm:$0xff]
    %v7616 = vld [vmem:[#allocation10 + $0x228] sm:$0xff]
    %v7617 = vld [vmem:[#allocation10 + $0x230] sm:$0xff]
    %v7618 = vld [vmem:[#allocation10 + $0x238] sm:$0xff]
    %v7619 = vld [vmem:[#allocation10 + $0x240] sm:$0xff]
    %v7620 = vld [vmem:[#allocation10 + $0x248] sm:$0xff]
    %v7621 = vld [vmem:[#allocation10 + $0x250] sm:$0xff]
    %v7622 = vld [vmem:[#allocation10 + $0x258] sm:$0xff]
    %v7623 = vld [vmem:[#allocation10 + $0x260] sm:$0xff]
    %v7624 = vld [vmem:[#allocation10 + $0x268] sm:$0xff]
    %v7625 = vld [vmem:[#allocation10 + $0x270] sm:$0xff]
    %v7626 = vld [vmem:[#allocation10 + $0x278] sm:$0xff]
    %v7627 = vld [vmem:[#allocation10 + $0x280] sm:$0xff]
    %v7628 = vld [vmem:[#allocation10 + $0x288] sm:$0xff]
    %v7629 = vld [vmem:[#allocation10 + $0x290] sm:$0xff]
    %v7630 = vld [vmem:[#allocation10 + $0x298] sm:$0xff]
    %v7631 = vld [vmem:[#allocation10 + $0x2a0] sm:$0xff]
    %v7632 = vld [vmem:[#allocation10 + $0x2a8] sm:$0xff]
    %v7633 = vld [vmem:[#allocation10 + $0x2b0] sm:$0xff]
    %v7634 = vld [vmem:[#allocation10 + $0x2b8] sm:$0xff]
    %v7635 = vld [vmem:[#allocation10 + $0x2c0] sm:$0xff]
    %v7636 = vld [vmem:[#allocation10 + $0x2c8] sm:$0xff]
    %v7637 = vld [vmem:[#allocation10 + $0x2d0] sm:$0xff]
    %v7638 = vld [vmem:[#allocation10 + $0x2d8] sm:$0xff]
    %v7639 = vld [vmem:[#allocation10 + $0x2e0] sm:$0xff]
    %v7640 = vld [vmem:[#allocation10 + $0x2e8] sm:$0xff]
    %v7641 = vld [vmem:[#allocation10 + $0x2f0] sm:$0xff]
    %v7642 = vld [vmem:[#allocation10 + $0x2f8] sm:$0xff]
    %v7643 = vld [vmem:[#allocation10 + $0x300] sm:$0xff]
    %v7644 = vld [vmem:[#allocation10 + $0x308] sm:$0xff]
    %v7645 = vld [vmem:[#allocation10 + $0x310] sm:$0xff]
    %v7646 = vld [vmem:[#allocation10 + $0x318] sm:$0xff]
    %v7647 = vld [vmem:[#allocation10 + $0x320] sm:$0xff]
    %v7648 = vld [vmem:[#allocation10 + $0x328] sm:$0xff]
    %v7649 = vld [vmem:[#allocation10 + $0x330] sm:$0xff]
    %v7650 = vld [vmem:[#allocation10 + $0x338] sm:$0xff]
    %v7651 = vld [vmem:[#allocation10 + $0x340] sm:$0xff]
    %v7652 = vld [vmem:[#allocation10 + $0x348] sm:$0xff]
    %v7653 = vld [vmem:[#allocation10 + $0x350] sm:$0xff]
    %v7654 = vld [vmem:[#allocation10 + $0x358] sm:$0xff]
    %v7655 = vld [vmem:[#allocation10 + $0x360] sm:$0xff]
    %v7656 = vld [vmem:[#allocation10 + $0x368] sm:$0xff]
    %v7657 = vld [vmem:[#allocation10 + $0x370] sm:$0xff]
    %v7658 = vld [vmem:[#allocation10 + $0x378] sm:$0xff]
    %v7659 = vld [vmem:[#allocation10 + $0x380] sm:$0xff]
    %v7660 = vld [vmem:[#allocation10 + $0x388] sm:$0xff]
    %v7661 = vld [vmem:[#allocation10 + $0x390] sm:$0xff]
    %v7662 = vld [vmem:[#allocation10 + $0x398] sm:$0xff]
    %v7663 = vld [vmem:[#allocation10 + $0x3a0] sm:$0xff]
    %v7664 = vld [vmem:[#allocation10 + $0x3a8] sm:$0xff]
    %v7665 = vld [vmem:[#allocation10 + $0x3b0] sm:$0xff]
    %v7666 = vld [vmem:[#allocation10 + $0x3b8] sm:$0xff]
    %v7667 = vld [vmem:[#allocation10 + $0x3c0] sm:$0xff]
    %v7668 = vld [vmem:[#allocation10 + $0x3c8] sm:$0xff]
    %v7669 = vld [vmem:[#allocation10 + $0x3d0] sm:$0xff]
    %v7670 = vld [vmem:[#allocation10 + $0x3d8] sm:$0xff]
    %v7671 = vld [vmem:[#allocation10 + $0x3e0] sm:$0xff]
    %v7672 = vld [vmem:[#allocation10 + $0x3e8] sm:$0xff]
    %v7673 = vld [vmem:[#allocation10 + $0x3f0] sm:$0xff]
    %v7674 = vld [vmem:[#allocation10 + $0x3f8] sm:$0xff]
    %v7675 = vld [vmem:[#allocation10 + $0x400] sm:$0xff]
    %v7676 = vld [vmem:[#allocation10 + $0x408] sm:$0xff]
    %v7677 = vld [vmem:[#allocation10 + $0x410] sm:$0xff]
    %v7678 = vld [vmem:[#allocation10 + $0x418] sm:$0xff]
    %v7679 = vld [vmem:[#allocation10 + $0x420] sm:$0xff]
    %v7680 = vld [vmem:[#allocation10 + $0x428] sm:$0xff]
    %v7681 = vld [vmem:[#allocation10 + $0x430] sm:$0xff]
    %v7682 = vld [vmem:[#allocation10 + $0x438] sm:$0xff]
    %v7683 = vld [vmem:[#allocation10 + $0x440] sm:$0xff]
    %v7684 = vld [vmem:[#allocation10 + $0x448] sm:$0xff]
    %v7685 = vld [vmem:[#allocation10 + $0x450] sm:$0xff]
    %v7686 = vld [vmem:[#allocation10 + $0x458] sm:$0xff]
    %v7687 = vld [vmem:[#allocation10 + $0x460] sm:$0xff]
    %v7688 = vld [vmem:[#allocation10 + $0x468] sm:$0xff]
    %v7689 = vld [vmem:[#allocation10 + $0x470] sm:$0xff]
    %v7690 = vld [vmem:[#allocation10 + $0x478] sm:$0xff]
    %v7691 = vld [vmem:[#allocation10 + $0x480] sm:$0xff]
    %v7692 = vld [vmem:[#allocation10 + $0x488] sm:$0xff]
    %v7693 = vld [vmem:[#allocation10 + $0x490] sm:$0xff]
    %v7694 = vld [vmem:[#allocation10 + $0x498] sm:$0xff]
    %v7695 = vld [vmem:[#allocation10 + $0x4a0] sm:$0xff]
    %v7696 = vld [vmem:[#allocation10 + $0x4a8] sm:$0xff]
    %v7697 = vld [vmem:[#allocation10 + $0x4b0] sm:$0xff]
    %v7698 = vld [vmem:[#allocation10 + $0x4b8] sm:$0xff]
    %v7699 = vld [vmem:[#allocation10 + $0x4c0] sm:$0xff]
    %v7700 = vld [vmem:[#allocation10 + $0x4c8] sm:$0xff]
    %v7701 = vld [vmem:[#allocation10 + $0x4d0] sm:$0xff]
    %v7702 = vld [vmem:[#allocation10 + $0x4d8] sm:$0xff]
    %v7703 = vld [vmem:[#allocation10 + $0x4e0] sm:$0xff]
    %v7704 = vld [vmem:[#allocation10 + $0x4e8] sm:$0xff]
    %v7705 = vld [vmem:[#allocation10 + $0x4f0] sm:$0xff]
    %v7706 = vld [vmem:[#allocation10 + $0x4f8] sm:$0xff]
    %v7707 = vld [vmem:[#allocation10 + $0x500] sm:$0xff]
    %v7708 = vld [vmem:[#allocation10 + $0x508] sm:$0xff]
    %v7709 = vld [vmem:[#allocation10 + $0x510] sm:$0xff]
    %v7710 = vld [vmem:[#allocation10 + $0x518] sm:$0xff]
    %v7711 = vld [vmem:[#allocation10 + $0x520] sm:$0xff]
    %v7712 = vld [vmem:[#allocation10 + $0x528] sm:$0xff]
    %v7713 = vld [vmem:[#allocation10 + $0x530] sm:$0xff]
    %v7714 = vld [vmem:[#allocation10 + $0x538] sm:$0xff]
    %v7715 = vld [vmem:[#allocation10 + $0x540] sm:$0xff]
    %v7716 = vld [vmem:[#allocation10 + $0x548] sm:$0xff]
    %v7717 = vld [vmem:[#allocation10 + $0x550] sm:$0xff]
    %v7718 = vld [vmem:[#allocation10 + $0x558] sm:$0xff]
    %v7719 = vld [vmem:[#allocation10 + $0x560] sm:$0xff]
    %v7720 = vld [vmem:[#allocation10 + $0x568] sm:$0xff]
    %v7721 = vld [vmem:[#allocation10 + $0x570] sm:$0xff]
    %v7722 = vld [vmem:[#allocation10 + $0x578] sm:$0xff]
    %v7723 = vld [vmem:[#allocation10 + $0x580] sm:$0xff]
    %v7724 = vld [vmem:[#allocation10 + $0x588] sm:$0xff]
    %v7725 = vld [vmem:[#allocation10 + $0x590] sm:$0xff]
    %v7726 = vld [vmem:[#allocation10 + $0x598] sm:$0xff]
    %v7727 = vld [vmem:[#allocation10 + $0x5a0] sm:$0xff]
    %v7728 = vld [vmem:[#allocation10 + $0x5a8] sm:$0xff]
    %v7729 = vld [vmem:[#allocation10 + $0x5b0] sm:$0xff]
    %v7730 = vld [vmem:[#allocation10 + $0x5b8] sm:$0xff]
    %v7731 = vld [vmem:[#allocation10 + $0x5c0] sm:$0xff]
    %v7732 = vld [vmem:[#allocation10 + $0x5c8] sm:$0xff]
    %v7733 = vld [vmem:[#allocation10 + $0x5d0] sm:$0xff]
    %v7734 = vld [vmem:[#allocation10 + $0x5d8] sm:$0xff]
    %v7735 = vld [vmem:[#allocation10 + $0x5e0] sm:$0xff]
    %v7736 = vld [vmem:[#allocation10 + $0x5e8] sm:$0xff]
    %v7737 = vld [vmem:[#allocation10 + $0x5f0] sm:$0xff]
    %v7738 = vld [vmem:[#allocation10 + $0x5f8] sm:$0xff]
    %v7739 = vld [vmem:[#allocation10 + $0x600] sm:$0xff]
    %v7740 = vld [vmem:[#allocation10 + $0x608] sm:$0xff]
    %v7741 = vld [vmem:[#allocation10 + $0x610] sm:$0xff]
    %v7742 = vld [vmem:[#allocation10 + $0x618] sm:$0xff]
    %v7743 = vld [vmem:[#allocation10 + $0x620] sm:$0xff]
    %v7744 = vld [vmem:[#allocation10 + $0x628] sm:$0xff]
    %v7745 = vld [vmem:[#allocation10 + $0x630] sm:$0xff]
    %v7746 = vld [vmem:[#allocation10 + $0x638] sm:$0xff]
    %v7747 = vld [vmem:[#allocation10 + $0x640] sm:$0xff]
    %v7748 = vld [vmem:[#allocation10 + $0x648] sm:$0xff]
    %v7749 = vld [vmem:[#allocation10 + $0x650] sm:$0xff]
    %v7750 = vld [vmem:[#allocation10 + $0x658] sm:$0xff]
    %v7751 = vld [vmem:[#allocation10 + $0x660] sm:$0xff]
    %v7752 = vld [vmem:[#allocation10 + $0x668] sm:$0xff]
    %v7753 = vld [vmem:[#allocation10 + $0x670] sm:$0xff]
    %v7754 = vld [vmem:[#allocation10 + $0x678] sm:$0xff]
    %v7755 = vld [vmem:[#allocation10 + $0x680] sm:$0xff]
    %v7756 = vld [vmem:[#allocation10 + $0x688] sm:$0xff]
    %v7757 = vld [vmem:[#allocation10 + $0x690] sm:$0xff]
    %v7758 = vld [vmem:[#allocation10 + $0x698] sm:$0xff]
    %v7759 = vld [vmem:[#allocation10 + $0x6a0] sm:$0xff]
    %v7760 = vld [vmem:[#allocation10 + $0x6a8] sm:$0xff]
    %v7761 = vld [vmem:[#allocation10 + $0x6b0] sm:$0xff]
    %v7762 = vld [vmem:[#allocation10 + $0x6b8] sm:$0xff]
    %v7763 = vld [vmem:[#allocation10 + $0x6c0] sm:$0xff]
    %v7764 = vld [vmem:[#allocation10 + $0x6c8] sm:$0xff]
    %v7765 = vld [vmem:[#allocation10 + $0x6d0] sm:$0xff]
    %v7766 = vld [vmem:[#allocation10 + $0x6d8] sm:$0xff]
    %v7767 = vld [vmem:[#allocation10 + $0x6e0] sm:$0xff]
    %v7768 = vld [vmem:[#allocation10 + $0x6e8] sm:$0xff]
    %v7769 = vld [vmem:[#allocation10 + $0x6f0] sm:$0xff]
    %v7770 = vld [vmem:[#allocation10 + $0x6f8] sm:$0xff]
    %v7771 = vld [vmem:[#allocation10 + $0x700] sm:$0xff]
    %v7772 = vld [vmem:[#allocation10 + $0x708] sm:$0xff]
    %v7773 = vld [vmem:[#allocation10 + $0x710] sm:$0xff]
    %v7774 = vld [vmem:[#allocation10 + $0x718] sm:$0xff]
    %v7775 = vld [vmem:[#allocation10 + $0x720] sm:$0xff]
    %v7776 = vld [vmem:[#allocation10 + $0x728] sm:$0xff]
    %v7777 = vld [vmem:[#allocation10 + $0x730] sm:$0xff]
    %v7778 = vld [vmem:[#allocation10 + $0x738] sm:$0xff]
    %v7779 = vld [vmem:[#allocation10 + $0x740] sm:$0xff]
    %v7780 = vld [vmem:[#allocation10 + $0x748] sm:$0xff]
    %v7781 = vld [vmem:[#allocation10 + $0x750] sm:$0xff]
    %v7782 = vld [vmem:[#allocation10 + $0x758] sm:$0xff]
    %v7783 = vld [vmem:[#allocation10 + $0x760] sm:$0xff]
    %v7784 = vld [vmem:[#allocation10 + $0x768] sm:$0xff]
    %v7785 = vld [vmem:[#allocation10 + $0x770] sm:$0xff]
    %v7786 = vld [vmem:[#allocation10 + $0x778] sm:$0xff]
    %v7787 = vld [vmem:[#allocation10 + $0x780] sm:$0xff]
    %v7788 = vld [vmem:[#allocation10 + $0x788] sm:$0xff]
    %v7789 = vld [vmem:[#allocation10 + $0x790] sm:$0xff]
    %v7790 = vld [vmem:[#allocation10 + $0x798] sm:$0xff]
    %v7791 = vld [vmem:[#allocation10 + $0x7a0] sm:$0xff]
    %v7792 = vld [vmem:[#allocation10 + $0x7a8] sm:$0xff]
    %v7793 = vld [vmem:[#allocation10 + $0x7b0] sm:$0xff]
    %v7794 = vld [vmem:[#allocation10 + $0x7b8] sm:$0xff]
    %v7795 = vld [vmem:[#allocation10 + $0x7c0] sm:$0xff]
    %v7796 = vld [vmem:[#allocation10 + $0x7c8] sm:$0xff]
    %v7797 = vld [vmem:[#allocation10 + $0x7d0] sm:$0xff]
    %v7798 = vld [vmem:[#allocation10 + $0x7d8] sm:$0xff]
    %v7799 = vld [vmem:[#allocation10 + $0x7e0] sm:$0xff]
    %v7800 = vld [vmem:[#allocation10 + $0x7e8] sm:$0xff]
    %v7801 = vld [vmem:[#allocation10 + $0x7f0] sm:$0xff]
    %v7802 = vld [vmem:[#allocation10 + $0x7f8] sm:$0xff]
    %v7803 = vld [vmem:[#allocation11] sm:$0xf]
    %v7805 = vlaneseq
    %v7806 = vshrl.u32 %v7805, 7
    %v7807 = vsub.s32 0, %v7806
    %v7808 = vrot.slane %v7803, %v7807
    %v7809 = vlaneseq
    %v7810 = vshrl.u32 %v7809, 7
    %v7811 = vsub.s32 1, %v7810
    %v7812 = vrot.slane %v7803, %v7811
    %v7813 = vlaneseq
    %v7814 = vshrl.u32 %v7813, 7
    %v7815 = vsub.s32 2, %v7814
    %v7816 = vrot.slane %v7803, %v7815
    %v7817 = vlaneseq
    %v7818 = vshrl.u32 %v7817, 7
    %v7819 = vsub.s32 3, %v7818
    %v7820 = vrot.slane %v7803, %v7819
    %v8081 = vunpack.c.l.b16 %v7547
    %v8082 = vunpack.c.h.b16 %v7547
    %v8083 = vunpack.c.l.b16 %v7548
    %v8084 = vunpack.c.h.b16 %v7548
    %v8085 = vunpack.c.l.b16 %v7549
    %v8086 = vunpack.c.h.b16 %v7549
    %v8087 = vunpack.c.l.b16 %v7550
    %v8088 = vunpack.c.h.b16 %v7550
    %v8089 = vunpack.c.l.b16 %v7551
    %v8090 = vunpack.c.h.b16 %v7551
    %v8091 = vunpack.c.l.b16 %v7552
    %v8092 = vunpack.c.h.b16 %v7552
    %v8093 = vunpack.c.l.b16 %v7553
    %v8094 = vunpack.c.h.b16 %v7553
    %v8095 = vunpack.c.l.b16 %v7554
    %v8096 = vunpack.c.h.b16 %v7554
    %v8097 = vunpack.c.l.b16 %v7555
    %v8098 = vunpack.c.h.b16 %v7555
    %v8099 = vunpack.c.l.b16 %v7556
    %v8100 = vunpack.c.h.b16 %v7556
    %v8101 = vunpack.c.l.b16 %v7557
    %v8102 = vunpack.c.h.b16 %v7557
    %v8103 = vunpack.c.l.b16 %v7558
    %v8104 = vunpack.c.h.b16 %v7558
    %v8105 = vunpack.c.l.b16 %v7559
    %v8106 = vunpack.c.h.b16 %v7559
    %v8107 = vunpack.c.l.b16 %v7560
    %v8108 = vunpack.c.h.b16 %v7560
    %v8109 = vunpack.c.l.b16 %v7561
    %v8110 = vunpack.c.h.b16 %v7561
    %v8111 = vunpack.c.l.b16 %v7562
    %v8112 = vunpack.c.h.b16 %v7562
    %v8113 = vunpack.c.l.b16 %v7563
    %v8114 = vunpack.c.h.b16 %v7563
    %v8115 = vunpack.c.l.b16 %v7564
    %v8116 = vunpack.c.h.b16 %v7564
    %v8117 = vunpack.c.l.b16 %v7565
    %v8118 = vunpack.c.h.b16 %v7565
    %v8119 = vunpack.c.l.b16 %v7566
    %v8120 = vunpack.c.h.b16 %v7566
    %v8121 = vunpack.c.l.b16 %v7567
    %v8122 = vunpack.c.h.b16 %v7567
    %v8123 = vunpack.c.l.b16 %v7568
    %v8124 = vunpack.c.h.b16 %v7568
    %v8125 = vunpack.c.l.b16 %v7569
    %v8126 = vunpack.c.h.b16 %v7569
    %v8127 = vunpack.c.l.b16 %v7570
    %v8128 = vunpack.c.h.b16 %v7570
    %v8129 = vunpack.c.l.b16 %v7571
    %v8130 = vunpack.c.h.b16 %v7571
    %v8131 = vunpack.c.l.b16 %v7572
    %v8132 = vunpack.c.h.b16 %v7572
    %v8133 = vunpack.c.l.b16 %v7573
    %v8134 = vunpack.c.h.b16 %v7573
    %v8135 = vunpack.c.l.b16 %v7574
    %v8136 = vunpack.c.h.b16 %v7574
    %v8137 = vunpack.c.l.b16 %v7575
    %v8138 = vunpack.c.h.b16 %v7575
    %v8139 = vunpack.c.l.b16 %v7576
    %v8140 = vunpack.c.h.b16 %v7576
    %v8141 = vunpack.c.l.b16 %v7577
    %v8142 = vunpack.c.h.b16 %v7577
    %v8143 = vunpack.c.l.b16 %v7578
    %v8144 = vunpack.c.h.b16 %v7578
    %v8145 = vunpack.c.l.b16 %v7579
    %v8146 = vunpack.c.h.b16 %v7579
    %v8147 = vunpack.c.l.b16 %v7580
    %v8148 = vunpack.c.h.b16 %v7580
    %v8149 = vunpack.c.l.b16 %v7581
    %v8150 = vunpack.c.h.b16 %v7581
    %v8151 = vunpack.c.l.b16 %v7582
    %v8152 = vunpack.c.h.b16 %v7582
    %v8153 = vunpack.c.l.b16 %v7583
    %v8154 = vunpack.c.h.b16 %v7583
    %v8155 = vunpack.c.l.b16 %v7584
    %v8156 = vunpack.c.h.b16 %v7584
    %v8157 = vunpack.c.l.b16 %v7585
    %v8158 = vunpack.c.h.b16 %v7585
    %v8159 = vunpack.c.l.b16 %v7586
    %v8160 = vunpack.c.h.b16 %v7586
    %v8161 = vunpack.c.l.b16 %v7587
    %v8162 = vunpack.c.h.b16 %v7587
    %v8163 = vunpack.c.l.b16 %v7588
    %v8164 = vunpack.c.h.b16 %v7588
    %v8165 = vunpack.c.l.b16 %v7589
    %v8166 = vunpack.c.h.b16 %v7589
    %v8167 = vunpack.c.l.b16 %v7590
    %v8168 = vunpack.c.h.b16 %v7590
    %v8169 = vunpack.c.l.b16 %v7591
    %v8170 = vunpack.c.h.b16 %v7591
    %v8171 = vunpack.c.l.b16 %v7592
    %v8172 = vunpack.c.h.b16 %v7592
    %v8173 = vunpack.c.l.b16 %v7593
    %v8174 = vunpack.c.h.b16 %v7593
    %v8175 = vunpack.c.l.b16 %v7594
    %v8176 = vunpack.c.h.b16 %v7594
    %v8177 = vunpack.c.l.b16 %v7595
    %v8178 = vunpack.c.h.b16 %v7595
    %v8179 = vunpack.c.l.b16 %v7596
    %v8180 = vunpack.c.h.b16 %v7596
    %v8181 = vunpack.c.l.b16 %v7597
    %v8182 = vunpack.c.h.b16 %v7597
    %v8183 = vunpack.c.l.b16 %v7598
    %v8184 = vunpack.c.h.b16 %v7598
    %v8185 = vunpack.c.l.b16 %v7599
    %v8186 = vunpack.c.h.b16 %v7599
    %v8187 = vunpack.c.l.b16 %v7600
    %v8188 = vunpack.c.h.b16 %v7600
    %v8189 = vunpack.c.l.b16 %v7601
    %v8190 = vunpack.c.h.b16 %v7601
    %v8191 = vunpack.c.l.b16 %v7602
    %v8192 = vunpack.c.h.b16 %v7602
    %v8193 = vunpack.c.l.b16 %v7603
    %v8194 = vunpack.c.h.b16 %v7603
    %v8195 = vunpack.c.l.b16 %v7604
    %v8196 = vunpack.c.h.b16 %v7604
    %v8197 = vunpack.c.l.b16 %v7605
    %v8198 = vunpack.c.h.b16 %v7605
    %v8199 = vunpack.c.l.b16 %v7606
    %v8200 = vunpack.c.h.b16 %v7606
    %v8201 = vunpack.c.l.b16 %v7607
    %v8202 = vunpack.c.h.b16 %v7607
    %v8203 = vunpack.c.l.b16 %v7608
    %v8204 = vunpack.c.h.b16 %v7608
    %v8205 = vunpack.c.l.b16 %v7609
    %v8206 = vunpack.c.h.b16 %v7609
    %v8207 = vunpack.c.l.b16 %v7610
    %v8208 = vunpack.c.h.b16 %v7610
    %v8209 = vunpack.c.l.b16 %v7611
    %v8210 = vunpack.c.h.b16 %v7611
    %v8211 = vunpack.c.l.b16 %v7612
    %v8212 = vunpack.c.h.b16 %v7612
    %v8213 = vunpack.c.l.b16 %v7613
    %v8214 = vunpack.c.h.b16 %v7613
    %v8215 = vunpack.c.l.b16 %v7614
    %v8216 = vunpack.c.h.b16 %v7614
    %v8217 = vunpack.c.l.b16 %v7615
    %v8218 = vunpack.c.h.b16 %v7615
    %v8219 = vunpack.c.l.b16 %v7616
    %v8220 = vunpack.c.h.b16 %v7616
    %v8221 = vunpack.c.l.b16 %v7617
    %v8222 = vunpack.c.h.b16 %v7617
    %v8223 = vunpack.c.l.b16 %v7618
    %v8224 = vunpack.c.h.b16 %v7618
    %v8225 = vunpack.c.l.b16 %v7619
    %v8226 = vunpack.c.h.b16 %v7619
    %v8227 = vunpack.c.l.b16 %v7620
    %v8228 = vunpack.c.h.b16 %v7620
    %v8229 = vunpack.c.l.b16 %v7621
    %v8230 = vunpack.c.h.b16 %v7621
    %v8231 = vunpack.c.l.b16 %v7622
    %v8232 = vunpack.c.h.b16 %v7622
    %v8233 = vunpack.c.l.b16 %v7623
    %v8234 = vunpack.c.h.b16 %v7623
    %v8235 = vunpack.c.l.b16 %v7624
    %v8236 = vunpack.c.h.b16 %v7624
    %v8237 = vunpack.c.l.b16 %v7625
    %v8238 = vunpack.c.h.b16 %v7625
    %v8239 = vunpack.c.l.b16 %v7626
    %v8240 = vunpack.c.h.b16 %v7626
    %v8241 = vunpack.c.l.b16 %v7627
    %v8242 = vunpack.c.h.b16 %v7627
    %v8243 = vunpack.c.l.b16 %v7628
    %v8244 = vunpack.c.h.b16 %v7628
    %v8245 = vunpack.c.l.b16 %v7629
    %v8246 = vunpack.c.h.b16 %v7629
    %v8247 = vunpack.c.l.b16 %v7630
    %v8248 = vunpack.c.h.b16 %v7630
    %v8249 = vunpack.c.l.b16 %v7631
    %v8250 = vunpack.c.h.b16 %v7631
    %v8251 = vunpack.c.l.b16 %v7632
    %v8252 = vunpack.c.h.b16 %v7632
    %v8253 = vunpack.c.l.b16 %v7633
    %v8254 = vunpack.c.h.b16 %v7633
    %v8255 = vunpack.c.l.b16 %v7634
    %v8256 = vunpack.c.h.b16 %v7634
    %v8257 = vunpack.c.l.b16 %v7635
    %v8258 = vunpack.c.h.b16 %v7635
    %v8259 = vunpack.c.l.b16 %v7636
    %v8260 = vunpack.c.h.b16 %v7636
    %v8261 = vunpack.c.l.b16 %v7637
    %v8262 = vunpack.c.h.b16 %v7637
    %v8263 = vunpack.c.l.b16 %v7638
    %v8264 = vunpack.c.h.b16 %v7638
    %v8265 = vunpack.c.l.b16 %v7639
    %v8266 = vunpack.c.h.b16 %v7639
    %v8267 = vunpack.c.l.b16 %v7640
    %v8268 = vunpack.c.h.b16 %v7640
    %v8269 = vunpack.c.l.b16 %v7641
    %v8270 = vunpack.c.h.b16 %v7641
    %v8271 = vunpack.c.l.b16 %v7642
    %v8272 = vunpack.c.h.b16 %v7642
    %v8273 = vunpack.c.l.b16 %v7643
    %v8274 = vunpack.c.h.b16 %v7643
    %v8275 = vunpack.c.l.b16 %v7644
    %v8276 = vunpack.c.h.b16 %v7644
    %v8277 = vunpack.c.l.b16 %v7645
    %v8278 = vunpack.c.h.b16 %v7645
    %v8279 = vunpack.c.l.b16 %v7646
    %v8280 = vunpack.c.h.b16 %v7646
    %v8281 = vunpack.c.l.b16 %v7647
    %v8282 = vunpack.c.h.b16 %v7647
    %v8283 = vunpack.c.l.b16 %v7648
    %v8284 = vunpack.c.h.b16 %v7648
    %v8285 = vunpack.c.l.b16 %v7649
    %v8286 = vunpack.c.h.b16 %v7649
    %v8287 = vunpack.c.l.b16 %v7650
    %v8288 = vunpack.c.h.b16 %v7650
    %v8289 = vunpack.c.l.b16 %v7651
    %v8290 = vunpack.c.h.b16 %v7651
    %v8291 = vunpack.c.l.b16 %v7652
    %v8292 = vunpack.c.h.b16 %v7652
    %v8293 = vunpack.c.l.b16 %v7653
    %v8294 = vunpack.c.h.b16 %v7653
    %v8295 = vunpack.c.l.b16 %v7654
    %v8296 = vunpack.c.h.b16 %v7654
    %v8297 = vunpack.c.l.b16 %v7655
    %v8298 = vunpack.c.h.b16 %v7655
    %v8299 = vunpack.c.l.b16 %v7656
    %v8300 = vunpack.c.h.b16 %v7656
    %v8301 = vunpack.c.l.b16 %v7657
    %v8302 = vunpack.c.h.b16 %v7657
    %v8303 = vunpack.c.l.b16 %v7658
    %v8304 = vunpack.c.h.b16 %v7658
    %v8305 = vunpack.c.l.b16 %v7659
    %v8306 = vunpack.c.h.b16 %v7659
    %v8307 = vunpack.c.l.b16 %v7660
    %v8308 = vunpack.c.h.b16 %v7660
    %v8309 = vunpack.c.l.b16 %v7661
    %v8310 = vunpack.c.h.b16 %v7661
    %v8311 = vunpack.c.l.b16 %v7662
    %v8312 = vunpack.c.h.b16 %v7662
    %v8313 = vunpack.c.l.b16 %v7663
    %v8314 = vunpack.c.h.b16 %v7663
    %v8315 = vunpack.c.l.b16 %v7664
    %v8316 = vunpack.c.h.b16 %v7664
    %v8317 = vunpack.c.l.b16 %v7665
    %v8318 = vunpack.c.h.b16 %v7665
    %v8319 = vunpack.c.l.b16 %v7666
    %v8320 = vunpack.c.h.b16 %v7666
    %v8321 = vunpack.c.l.b16 %v7667
    %v8322 = vunpack.c.h.b16 %v7667
    %v8323 = vunpack.c.l.b16 %v7668
    %v8324 = vunpack.c.h.b16 %v7668
    %v8325 = vunpack.c.l.b16 %v7669
    %v8326 = vunpack.c.h.b16 %v7669
    %v8327 = vunpack.c.l.b16 %v7670
    %v8328 = vunpack.c.h.b16 %v7670
    %v8329 = vunpack.c.l.b16 %v7671
    %v8330 = vunpack.c.h.b16 %v7671
    %v8331 = vunpack.c.l.b16 %v7672
    %v8332 = vunpack.c.h.b16 %v7672
    %v8333 = vunpack.c.l.b16 %v7673
    %v8334 = vunpack.c.h.b16 %v7673
    %v8335 = vunpack.c.l.b16 %v7674
    %v8336 = vunpack.c.h.b16 %v7674
    %v8337 = vunpack.c.l.b16 %v7675
    %v8338 = vunpack.c.h.b16 %v7675
    %v8339 = vunpack.c.l.b16 %v7676
    %v8340 = vunpack.c.h.b16 %v7676
    %v8341 = vunpack.c.l.b16 %v7677
    %v8342 = vunpack.c.h.b16 %v7677
    %v8343 = vunpack.c.l.b16 %v7678
    %v8344 = vunpack.c.h.b16 %v7678
    %v8345 = vunpack.c.l.b16 %v7679
    %v8346 = vunpack.c.h.b16 %v7679
    %v8347 = vunpack.c.l.b16 %v7680
    %v8348 = vunpack.c.h.b16 %v7680
    %v8349 = vunpack.c.l.b16 %v7681
    %v8350 = vunpack.c.h.b16 %v7681
    %v8351 = vunpack.c.l.b16 %v7682
    %v8352 = vunpack.c.h.b16 %v7682
    %v8353 = vunpack.c.l.b16 %v7683
    %v8354 = vunpack.c.h.b16 %v7683
    %v8355 = vunpack.c.l.b16 %v7684
    %v8356 = vunpack.c.h.b16 %v7684
    %v8357 = vunpack.c.l.b16 %v7685
    %v8358 = vunpack.c.h.b16 %v7685
    %v8359 = vunpack.c.l.b16 %v7686
    %v8360 = vunpack.c.h.b16 %v7686
    %v8361 = vunpack.c.l.b16 %v7687
    %v8362 = vunpack.c.h.b16 %v7687
    %v8363 = vunpack.c.l.b16 %v7688
    %v8364 = vunpack.c.h.b16 %v7688
    %v8365 = vunpack.c.l.b16 %v7689
    %v8366 = vunpack.c.h.b16 %v7689
    %v8367 = vunpack.c.l.b16 %v7690
    %v8368 = vunpack.c.h.b16 %v7690
    %v8369 = vunpack.c.l.b16 %v7691
    %v8370 = vunpack.c.h.b16 %v7691
    %v8371 = vunpack.c.l.b16 %v7692
    %v8372 = vunpack.c.h.b16 %v7692
    %v8373 = vunpack.c.l.b16 %v7693
    %v8374 = vunpack.c.h.b16 %v7693
    %v8375 = vunpack.c.l.b16 %v7694
    %v8376 = vunpack.c.h.b16 %v7694
    %v8377 = vunpack.c.l.b16 %v7695
    %v8378 = vunpack.c.h.b16 %v7695
    %v8379 = vunpack.c.l.b16 %v7696
    %v8380 = vunpack.c.h.b16 %v7696
    %v8381 = vunpack.c.l.b16 %v7697
    %v8382 = vunpack.c.h.b16 %v7697
    %v8383 = vunpack.c.l.b16 %v7698
    %v8384 = vunpack.c.h.b16 %v7698
    %v8385 = vunpack.c.l.b16 %v7699
    %v8386 = vunpack.c.h.b16 %v7699
    %v8387 = vunpack.c.l.b16 %v7700
    %v8388 = vunpack.c.h.b16 %v7700
    %v8389 = vunpack.c.l.b16 %v7701
    %v8390 = vunpack.c.h.b16 %v7701
    %v8391 = vunpack.c.l.b16 %v7702
    %v8392 = vunpack.c.h.b16 %v7702
    %v8393 = vunpack.c.l.b16 %v7703
    %v8394 = vunpack.c.h.b16 %v7703
    %v8395 = vunpack.c.l.b16 %v7704
    %v8396 = vunpack.c.h.b16 %v7704
    %v8397 = vunpack.c.l.b16 %v7705
    %v8398 = vunpack.c.h.b16 %v7705
    %v8399 = vunpack.c.l.b16 %v7706
    %v8400 = vunpack.c.h.b16 %v7706
    %v8401 = vunpack.c.l.b16 %v7707
    %v8402 = vunpack.c.h.b16 %v7707
    %v8403 = vunpack.c.l.b16 %v7708
    %v8404 = vunpack.c.h.b16 %v7708
    %v8405 = vunpack.c.l.b16 %v7709
    %v8406 = vunpack.c.h.b16 %v7709
    %v8407 = vunpack.c.l.b16 %v7710
    %v8408 = vunpack.c.h.b16 %v7710
    %v8409 = vunpack.c.l.b16 %v7711
    %v8410 = vunpack.c.h.b16 %v7711
    %v8411 = vunpack.c.l.b16 %v7712
    %v8412 = vunpack.c.h.b16 %v7712
    %v8413 = vunpack.c.l.b16 %v7713
    %v8414 = vunpack.c.h.b16 %v7713
    %v8415 = vunpack.c.l.b16 %v7714
    %v8416 = vunpack.c.h.b16 %v7714
    %v8417 = vunpack.c.l.b16 %v7715
    %v8418 = vunpack.c.h.b16 %v7715
    %v8419 = vunpack.c.l.b16 %v7716
    %v8420 = vunpack.c.h.b16 %v7716
    %v8421 = vunpack.c.l.b16 %v7717
    %v8422 = vunpack.c.h.b16 %v7717
    %v8423 = vunpack.c.l.b16 %v7718
    %v8424 = vunpack.c.h.b16 %v7718
    %v8425 = vunpack.c.l.b16 %v7719
    %v8426 = vunpack.c.h.b16 %v7719
    %v8427 = vunpack.c.l.b16 %v7720
    %v8428 = vunpack.c.h.b16 %v7720
    %v8429 = vunpack.c.l.b16 %v7721
    %v8430 = vunpack.c.h.b16 %v7721
    %v8431 = vunpack.c.l.b16 %v7722
    %v8432 = vunpack.c.h.b16 %v7722
    %v8433 = vunpack.c.l.b16 %v7723
    %v8434 = vunpack.c.h.b16 %v7723
    %v8435 = vunpack.c.l.b16 %v7724
    %v8436 = vunpack.c.h.b16 %v7724
    %v8437 = vunpack.c.l.b16 %v7725
    %v8438 = vunpack.c.h.b16 %v7725
    %v8439 = vunpack.c.l.b16 %v7726
    %v8440 = vunpack.c.h.b16 %v7726
    %v8441 = vunpack.c.l.b16 %v7727
    %v8442 = vunpack.c.h.b16 %v7727
    %v8443 = vunpack.c.l.b16 %v7728
    %v8444 = vunpack.c.h.b16 %v7728
    %v8445 = vunpack.c.l.b16 %v7729
    %v8446 = vunpack.c.h.b16 %v7729
    %v8447 = vunpack.c.l.b16 %v7730
    %v8448 = vunpack.c.h.b16 %v7730
    %v8449 = vunpack.c.l.b16 %v7731
    %v8450 = vunpack.c.h.b16 %v7731
    %v8451 = vunpack.c.l.b16 %v7732
    %v8452 = vunpack.c.h.b16 %v7732
    %v8453 = vunpack.c.l.b16 %v7733
    %v8454 = vunpack.c.h.b16 %v7733
    %v8455 = vunpack.c.l.b16 %v7734
    %v8456 = vunpack.c.h.b16 %v7734
    %v8457 = vunpack.c.l.b16 %v7735
    %v8458 = vunpack.c.h.b16 %v7735
    %v8459 = vunpack.c.l.b16 %v7736
    %v8460 = vunpack.c.h.b16 %v7736
    %v8461 = vunpack.c.l.b16 %v7737
    %v8462 = vunpack.c.h.b16 %v7737
    %v8463 = vunpack.c.l.b16 %v7738
    %v8464 = vunpack.c.h.b16 %v7738
    %v8465 = vunpack.c.l.b16 %v7739
    %v8466 = vunpack.c.h.b16 %v7739
    %v8467 = vunpack.c.l.b16 %v7740
    %v8468 = vunpack.c.h.b16 %v7740
    %v8469 = vunpack.c.l.b16 %v7741
    %v8470 = vunpack.c.h.b16 %v7741
    %v8471 = vunpack.c.l.b16 %v7742
    %v8472 = vunpack.c.h.b16 %v7742
    %v8473 = vunpack.c.l.b16 %v7743
    %v8474 = vunpack.c.h.b16 %v7743
    %v8475 = vunpack.c.l.b16 %v7744
    %v8476 = vunpack.c.h.b16 %v7744
    %v8477 = vunpack.c.l.b16 %v7745
    %v8478 = vunpack.c.h.b16 %v7745
    %v8479 = vunpack.c.l.b16 %v7746
    %v8480 = vunpack.c.h.b16 %v7746
    %v8481 = vunpack.c.l.b16 %v7747
    %v8482 = vunpack.c.h.b16 %v7747
    %v8483 = vunpack.c.l.b16 %v7748
    %v8484 = vunpack.c.h.b16 %v7748
    %v8485 = vunpack.c.l.b16 %v7749
    %v8486 = vunpack.c.h.b16 %v7749
    %v8487 = vunpack.c.l.b16 %v7750
    %v8488 = vunpack.c.h.b16 %v7750
    %v8489 = vunpack.c.l.b16 %v7751
    %v8490 = vunpack.c.h.b16 %v7751
    %v8491 = vunpack.c.l.b16 %v7752
    %v8492 = vunpack.c.h.b16 %v7752
    %v8493 = vunpack.c.l.b16 %v7753
    %v8494 = vunpack.c.h.b16 %v7753
    %v8495 = vunpack.c.l.b16 %v7754
    %v8496 = vunpack.c.h.b16 %v7754
    %v8497 = vunpack.c.l.b16 %v7755
    %v8498 = vunpack.c.h.b16 %v7755
    %v8499 = vunpack.c.l.b16 %v7756
    %v8500 = vunpack.c.h.b16 %v7756
    %v8501 = vunpack.c.l.b16 %v7757
    %v8502 = vunpack.c.h.b16 %v7757
    %v8503 = vunpack.c.l.b16 %v7758
    %v8504 = vunpack.c.h.b16 %v7758
    %v8505 = vunpack.c.l.b16 %v7759
    %v8506 = vunpack.c.h.b16 %v7759
    %v8507 = vunpack.c.l.b16 %v7760
    %v8508 = vunpack.c.h.b16 %v7760
    %v8509 = vunpack.c.l.b16 %v7761
    %v8510 = vunpack.c.h.b16 %v7761
    %v8511 = vunpack.c.l.b16 %v7762
    %v8512 = vunpack.c.h.b16 %v7762
    %v8513 = vunpack.c.l.b16 %v7763
    %v8514 = vunpack.c.h.b16 %v7763
    %v8515 = vunpack.c.l.b16 %v7764
    %v8516 = vunpack.c.h.b16 %v7764
    %v8517 = vunpack.c.l.b16 %v7765
    %v8518 = vunpack.c.h.b16 %v7765
    %v8519 = vunpack.c.l.b16 %v7766
    %v8520 = vunpack.c.h.b16 %v7766
    %v8521 = vunpack.c.l.b16 %v7767
    %v8522 = vunpack.c.h.b16 %v7767
    %v8523 = vunpack.c.l.b16 %v7768
    %v8524 = vunpack.c.h.b16 %v7768
    %v8525 = vunpack.c.l.b16 %v7769
    %v8526 = vunpack.c.h.b16 %v7769
    %v8527 = vunpack.c.l.b16 %v7770
    %v8528 = vunpack.c.h.b16 %v7770
    %v8529 = vunpack.c.l.b16 %v7771
    %v8530 = vunpack.c.h.b16 %v7771
    %v8531 = vunpack.c.l.b16 %v7772
    %v8532 = vunpack.c.h.b16 %v7772
    %v8533 = vunpack.c.l.b16 %v7773
    %v8534 = vunpack.c.h.b16 %v7773
    %v8535 = vunpack.c.l.b16 %v7774
    %v8536 = vunpack.c.h.b16 %v7774
    %v8537 = vunpack.c.l.b16 %v7775
    %v8538 = vunpack.c.h.b16 %v7775
    %v8539 = vunpack.c.l.b16 %v7776
    %v8540 = vunpack.c.h.b16 %v7776
    %v8541 = vunpack.c.l.b16 %v7777
    %v8542 = vunpack.c.h.b16 %v7777
    %v8543 = vunpack.c.l.b16 %v7778
    %v8544 = vunpack.c.h.b16 %v7778
    %v8545 = vunpack.c.l.b16 %v7779
    %v8546 = vunpack.c.h.b16 %v7779
    %v8547 = vunpack.c.l.b16 %v7780
    %v8548 = vunpack.c.h.b16 %v7780
    %v8549 = vunpack.c.l.b16 %v7781
    %v8550 = vunpack.c.h.b16 %v7781
    %v8551 = vunpack.c.l.b16 %v7782
    %v8552 = vunpack.c.h.b16 %v7782
    %v8553 = vunpack.c.l.b16 %v7783
    %v8554 = vunpack.c.h.b16 %v7783
    %v8555 = vunpack.c.l.b16 %v7784
    %v8556 = vunpack.c.h.b16 %v7784
    %v8557 = vunpack.c.l.b16 %v7785
    %v8558 = vunpack.c.h.b16 %v7785
    %v8559 = vunpack.c.l.b16 %v7786
    %v8560 = vunpack.c.h.b16 %v7786
    %v8561 = vunpack.c.l.b16 %v7787
    %v8562 = vunpack.c.h.b16 %v7787
    %v8563 = vunpack.c.l.b16 %v7788
    %v8564 = vunpack.c.h.b16 %v7788
    %v8565 = vunpack.c.l.b16 %v7789
    %v8566 = vunpack.c.h.b16 %v7789
    %v8567 = vunpack.c.l.b16 %v7790
    %v8568 = vunpack.c.h.b16 %v7790
    %v8569 = vunpack.c.l.b16 %v7791
    %v8570 = vunpack.c.h.b16 %v7791
    %v8571 = vunpack.c.l.b16 %v7792
    %v8572 = vunpack.c.h.b16 %v7792
    %v8573 = vunpack.c.l.b16 %v7793
    %v8574 = vunpack.c.h.b16 %v7793
    %v8575 = vunpack.c.l.b16 %v7794
    %v8576 = vunpack.c.h.b16 %v7794
    %v8577 = vunpack.c.l.b16 %v7795
    %v8578 = vunpack.c.h.b16 %v7795
    %v8579 = vunpack.c.l.b16 %v7796
    %v8580 = vunpack.c.h.b16 %v7796
    %v8581 = vunpack.c.l.b16 %v7797
    %v8582 = vunpack.c.h.b16 %v7797
    %v8583 = vunpack.c.l.b16 %v7798
    %v8584 = vunpack.c.h.b16 %v7798
    %v8585 = vunpack.c.l.b16 %v7799
    %v8586 = vunpack.c.h.b16 %v7799
    %v8587 = vunpack.c.l.b16 %v7800
    %v8588 = vunpack.c.h.b16 %v7800
    %v8589 = vunpack.c.l.b16 %v7801
    %v8590 = vunpack.c.h.b16 %v7801
    %v8591 = vunpack.c.l.b16 %v7802
    %v8592 = vunpack.c.h.b16 %v7802
    %v8593 = vpack.c.b16 %v8085, %v8081
    %v8594 = vpack.c.b16 %v8086, %v8082
    %v8595 = vpack.c.b16 %v8087, %v8083
    %v8596 = vpack.c.b16 %v8088, %v8084
    %v8597 = vpack.c.b16 %v8093, %v8089
    %v8598 = vpack.c.b16 %v8094, %v8090
    %v8599 = vpack.c.b16 %v8095, %v8091
    %v8600 = vpack.c.b16 %v8096, %v8092
    %v8601 = vpack.c.b16 %v8101, %v8097
    %v8602 = vpack.c.b16 %v8102, %v8098
    %v8603 = vpack.c.b16 %v8103, %v8099
    %v8604 = vpack.c.b16 %v8104, %v8100
    %v8605 = vpack.c.b16 %v8109, %v8105
    %v8606 = vpack.c.b16 %v8110, %v8106
    %v8607 = vpack.c.b16 %v8111, %v8107
    %v8608 = vpack.c.b16 %v8112, %v8108
    %v8609 = vpack.c.b16 %v8117, %v8113
    %v8610 = vpack.c.b16 %v8118, %v8114
    %v8611 = vpack.c.b16 %v8119, %v8115
    %v8612 = vpack.c.b16 %v8120, %v8116
    %v8613 = vpack.c.b16 %v8125, %v8121
    %v8614 = vpack.c.b16 %v8126, %v8122
    %v8615 = vpack.c.b16 %v8127, %v8123
    %v8616 = vpack.c.b16 %v8128, %v8124
    %v8617 = vpack.c.b16 %v8133, %v8129
    %v8618 = vpack.c.b16 %v8134, %v8130
    %v8619 = vpack.c.b16 %v8135, %v8131
    %v8620 = vpack.c.b16 %v8136, %v8132
    %v8621 = vpack.c.b16 %v8141, %v8137
    %v8622 = vpack.c.b16 %v8142, %v8138
    %v8623 = vpack.c.b16 %v8143, %v8139
    %v8624 = vpack.c.b16 %v8144, %v8140
    %v8625 = vpack.c.b16 %v8149, %v8145
    %v8626 = vpack.c.b16 %v8150, %v8146
    %v8627 = vpack.c.b16 %v8151, %v8147
    %v8628 = vpack.c.b16 %v8152, %v8148
    %v8629 = vpack.c.b16 %v8157, %v8153
    %v8630 = vpack.c.b16 %v8158, %v8154
    %v8631 = vpack.c.b16 %v8159, %v8155
    %v8632 = vpack.c.b16 %v8160, %v8156
    %v8633 = vpack.c.b16 %v8165, %v8161
    %v8634 = vpack.c.b16 %v8166, %v8162
    %v8635 = vpack.c.b16 %v8167, %v8163
    %v8636 = vpack.c.b16 %v8168, %v8164
    %v8637 = vpack.c.b16 %v8173, %v8169
    %v8638 = vpack.c.b16 %v8174, %v8170
    %v8639 = vpack.c.b16 %v8175, %v8171
    %v8640 = vpack.c.b16 %v8176, %v8172
    %v8641 = vpack.c.b16 %v8181, %v8177
    %v8642 = vpack.c.b16 %v8182, %v8178
    %v8643 = vpack.c.b16 %v8183, %v8179
    %v8644 = vpack.c.b16 %v8184, %v8180
    %v8645 = vpack.c.b16 %v8189, %v8185
    %v8646 = vpack.c.b16 %v8190, %v8186
    %v8647 = vpack.c.b16 %v8191, %v8187
    %v8648 = vpack.c.b16 %v8192, %v8188
    %v8649 = vpack.c.b16 %v8197, %v8193
    %v8650 = vpack.c.b16 %v8198, %v8194
    %v8651 = vpack.c.b16 %v8199, %v8195
    %v8652 = vpack.c.b16 %v8200, %v8196
    %v8653 = vpack.c.b16 %v8205, %v8201
    %v8654 = vpack.c.b16 %v8206, %v8202
    %v8655 = vpack.c.b16 %v8207, %v8203
    %v8656 = vpack.c.b16 %v8208, %v8204
    %v8657 = vpack.c.b16 %v8213, %v8209
    %v8658 = vpack.c.b16 %v8214, %v8210
    %v8659 = vpack.c.b16 %v8215, %v8211
    %v8660 = vpack.c.b16 %v8216, %v8212
    %v8661 = vpack.c.b16 %v8221, %v8217
    %v8662 = vpack.c.b16 %v8222, %v8218
    %v8663 = vpack.c.b16 %v8223, %v8219
    %v8664 = vpack.c.b16 %v8224, %v8220
    %v8665 = vpack.c.b16 %v8229, %v8225
    %v8666 = vpack.c.b16 %v8230, %v8226
    %v8667 = vpack.c.b16 %v8231, %v8227
    %v8668 = vpack.c.b16 %v8232, %v8228
    %v8669 = vpack.c.b16 %v8237, %v8233
    %v8670 = vpack.c.b16 %v8238, %v8234
    %v8671 = vpack.c.b16 %v8239, %v8235
    %v8672 = vpack.c.b16 %v8240, %v8236
    %v8673 = vpack.c.b16 %v8245, %v8241
    %v8674 = vpack.c.b16 %v8246, %v8242
    %v8675 = vpack.c.b16 %v8247, %v8243
    %v8676 = vpack.c.b16 %v8248, %v8244
    %v8677 = vpack.c.b16 %v8253, %v8249
    %v8678 = vpack.c.b16 %v8254, %v8250
    %v8679 = vpack.c.b16 %v8255, %v8251
    %v8680 = vpack.c.b16 %v8256, %v8252
    %v8681 = vpack.c.b16 %v8261, %v8257
    %v8682 = vpack.c.b16 %v8262, %v8258
    %v8683 = vpack.c.b16 %v8263, %v8259
    %v8684 = vpack.c.b16 %v8264, %v8260
    %v8685 = vpack.c.b16 %v8269, %v8265
    %v8686 = vpack.c.b16 %v8270, %v8266
    %v8687 = vpack.c.b16 %v8271, %v8267
    %v8688 = vpack.c.b16 %v8272, %v8268
    %v8689 = vpack.c.b16 %v8277, %v8273
    %v8690 = vpack.c.b16 %v8278, %v8274
    %v8691 = vpack.c.b16 %v8279, %v8275
    %v8692 = vpack.c.b16 %v8280, %v8276
    %v8693 = vpack.c.b16 %v8285, %v8281
    %v8694 = vpack.c.b16 %v8286, %v8282
    %v8695 = vpack.c.b16 %v8287, %v8283
    %v8696 = vpack.c.b16 %v8288, %v8284
    %v8697 = vpack.c.b16 %v8293, %v8289
    %v8698 = vpack.c.b16 %v8294, %v8290
    %v8699 = vpack.c.b16 %v8295, %v8291
    %v8700 = vpack.c.b16 %v8296, %v8292
    %v8701 = vpack.c.b16 %v8301, %v8297
    %v8702 = vpack.c.b16 %v8302, %v8298
    %v8703 = vpack.c.b16 %v8303, %v8299
    %v8704 = vpack.c.b16 %v8304, %v8300
    %v8705 = vpack.c.b16 %v8309, %v8305
    %v8706 = vpack.c.b16 %v8310, %v8306
    %v8707 = vpack.c.b16 %v8311, %v8307
    %v8708 = vpack.c.b16 %v8312, %v8308
    %v8709 = vpack.c.b16 %v8317, %v8313
    %v8710 = vpack.c.b16 %v8318, %v8314
    %v8711 = vpack.c.b16 %v8319, %v8315
    %v8712 = vpack.c.b16 %v8320, %v8316
    %v8713 = vpack.c.b16 %v8325, %v8321
    %v8714 = vpack.c.b16 %v8326, %v8322
    %v8715 = vpack.c.b16 %v8327, %v8323
    %v8716 = vpack.c.b16 %v8328, %v8324
    %v8717 = vpack.c.b16 %v8333, %v8329
    %v8718 = vpack.c.b16 %v8334, %v8330
    %v8719 = vpack.c.b16 %v8335, %v8331
    %v8720 = vpack.c.b16 %v8336, %v8332
    %v8721 = vpack.c.b16 %v8341, %v8337
    %v8722 = vpack.c.b16 %v8342, %v8338
    %v8723 = vpack.c.b16 %v8343, %v8339
    %v8724 = vpack.c.b16 %v8344, %v8340
    %v8725 = vpack.c.b16 %v8349, %v8345
    %v8726 = vpack.c.b16 %v8350, %v8346
    %v8727 = vpack.c.b16 %v8351, %v8347
    %v8728 = vpack.c.b16 %v8352, %v8348
    %v8729 = vpack.c.b16 %v8357, %v8353
    %v8730 = vpack.c.b16 %v8358, %v8354
    %v8731 = vpack.c.b16 %v8359, %v8355
    %v8732 = vpack.c.b16 %v8360, %v8356
    %v8733 = vpack.c.b16 %v8365, %v8361
    %v8734 = vpack.c.b16 %v8366, %v8362
    %v8735 = vpack.c.b16 %v8367, %v8363
    %v8736 = vpack.c.b16 %v8368, %v8364
    %v8737 = vpack.c.b16 %v8373, %v8369
    %v8738 = vpack.c.b16 %v8374, %v8370
    %v8739 = vpack.c.b16 %v8375, %v8371
    %v8740 = vpack.c.b16 %v8376, %v8372
    %v8741 = vpack.c.b16 %v8381, %v8377
    %v8742 = vpack.c.b16 %v8382, %v8378
    %v8743 = vpack.c.b16 %v8383, %v8379
    %v8744 = vpack.c.b16 %v8384, %v8380
    %v8745 = vpack.c.b16 %v8389, %v8385
    %v8746 = vpack.c.b16 %v8390, %v8386
    %v8747 = vpack.c.b16 %v8391, %v8387
    %v8748 = vpack.c.b16 %v8392, %v8388
    %v8749 = vpack.c.b16 %v8397, %v8393
    %v8750 = vpack.c.b16 %v8398, %v8394
    %v8751 = vpack.c.b16 %v8399, %v8395
    %v8752 = vpack.c.b16 %v8400, %v8396
    %v8753 = vpack.c.b16 %v8405, %v8401
    %v8754 = vpack.c.b16 %v8406, %v8402
    %v8755 = vpack.c.b16 %v8407, %v8403
    %v8756 = vpack.c.b16 %v8408, %v8404
    %v8757 = vpack.c.b16 %v8413, %v8409
    %v8758 = vpack.c.b16 %v8414, %v8410
    %v8759 = vpack.c.b16 %v8415, %v8411
    %v8760 = vpack.c.b16 %v8416, %v8412
    %v8761 = vpack.c.b16 %v8421, %v8417
    %v8762 = vpack.c.b16 %v8422, %v8418
    %v8763 = vpack.c.b16 %v8423, %v8419
    %v8764 = vpack.c.b16 %v8424, %v8420
    %v8765 = vpack.c.b16 %v8429, %v8425
    %v8766 = vpack.c.b16 %v8430, %v8426
    %v8767 = vpack.c.b16 %v8431, %v8427
    %v8768 = vpack.c.b16 %v8432, %v8428
    %v8769 = vpack.c.b16 %v8437, %v8433
    %v8770 = vpack.c.b16 %v8438, %v8434
    %v8771 = vpack.c.b16 %v8439, %v8435
    %v8772 = vpack.c.b16 %v8440, %v8436
    %v8773 = vpack.c.b16 %v8445, %v8441
    %v8774 = vpack.c.b16 %v8446, %v8442
    %v8775 = vpack.c.b16 %v8447, %v8443
    %v8776 = vpack.c.b16 %v8448, %v8444
    %v8777 = vpack.c.b16 %v8453, %v8449
    %v8778 = vpack.c.b16 %v8454, %v8450
    %v8779 = vpack.c.b16 %v8455, %v8451
    %v8780 = vpack.c.b16 %v8456, %v8452
    %v8781 = vpack.c.b16 %v8461, %v8457
    %v8782 = vpack.c.b16 %v8462, %v8458
    %v8783 = vpack.c.b16 %v8463, %v8459
    %v8784 = vpack.c.b16 %v8464, %v8460
    %v8785 = vpack.c.b16 %v8469, %v8465
    %v8786 = vpack.c.b16 %v8470, %v8466
    %v8787 = vpack.c.b16 %v8471, %v8467
    %v8788 = vpack.c.b16 %v8472, %v8468
    %v8789 = vpack.c.b16 %v8477, %v8473
    %v8790 = vpack.c.b16 %v8478, %v8474
    %v8791 = vpack.c.b16 %v8479, %v8475
    %v8792 = vpack.c.b16 %v8480, %v8476
    %v8793 = vpack.c.b16 %v8485, %v8481
    %v8794 = vpack.c.b16 %v8486, %v8482
    %v8795 = vpack.c.b16 %v8487, %v8483
    %v8796 = vpack.c.b16 %v8488, %v8484
    %v8797 = vpack.c.b16 %v8493, %v8489
    %v8798 = vpack.c.b16 %v8494, %v8490
    %v8799 = vpack.c.b16 %v8495, %v8491
    %v8800 = vpack.c.b16 %v8496, %v8492
    %v8801 = vpack.c.b16 %v8501, %v8497
    %v8802 = vpack.c.b16 %v8502, %v8498
    %v8803 = vpack.c.b16 %v8503, %v8499
    %v8804 = vpack.c.b16 %v8504, %v8500
    %v8805 = vpack.c.b16 %v8509, %v8505
    %v8806 = vpack.c.b16 %v8510, %v8506
    %v8807 = vpack.c.b16 %v8511, %v8507
    %v8808 = vpack.c.b16 %v8512, %v8508
    %v8809 = vpack.c.b16 %v8517, %v8513
    %v8810 = vpack.c.b16 %v8518, %v8514
    %v8811 = vpack.c.b16 %v8519, %v8515
    %v8812 = vpack.c.b16 %v8520, %v8516
    %v8813 = vpack.c.b16 %v8525, %v8521
    %v8814 = vpack.c.b16 %v8526, %v8522
    %v8815 = vpack.c.b16 %v8527, %v8523
    %v8816 = vpack.c.b16 %v8528, %v8524
    %v8817 = vpack.c.b16 %v8533, %v8529
    %v8818 = vpack.c.b16 %v8534, %v8530
    %v8819 = vpack.c.b16 %v8535, %v8531
    %v8820 = vpack.c.b16 %v8536, %v8532
    %v8821 = vpack.c.b16 %v8541, %v8537
    %v8822 = vpack.c.b16 %v8542, %v8538
    %v8823 = vpack.c.b16 %v8543, %v8539
    %v8824 = vpack.c.b16 %v8544, %v8540
    %v8825 = vpack.c.b16 %v8549, %v8545
    %v8826 = vpack.c.b16 %v8550, %v8546
    %v8827 = vpack.c.b16 %v8551, %v8547
    %v8828 = vpack.c.b16 %v8552, %v8548
    %v8829 = vpack.c.b16 %v8557, %v8553
    %v8830 = vpack.c.b16 %v8558, %v8554
    %v8831 = vpack.c.b16 %v8559, %v8555
    %v8832 = vpack.c.b16 %v8560, %v8556
    %v8833 = vpack.c.b16 %v8565, %v8561
    %v8834 = vpack.c.b16 %v8566, %v8562
    %v8835 = vpack.c.b16 %v8567, %v8563
    %v8836 = vpack.c.b16 %v8568, %v8564
    %v8837 = vpack.c.b16 %v8573, %v8569
    %v8838 = vpack.c.b16 %v8574, %v8570
    %v8839 = vpack.c.b16 %v8575, %v8571
    %v8840 = vpack.c.b16 %v8576, %v8572
    %v8841 = vpack.c.b16 %v8581, %v8577
    %v8842 = vpack.c.b16 %v8582, %v8578
    %v8843 = vpack.c.b16 %v8583, %v8579
    %v8844 = vpack.c.b16 %v8584, %v8580
    %v8845 = vpack.c.b16 %v8589, %v8585
    %v8846 = vpack.c.b16 %v8590, %v8586
    %v8847 = vpack.c.b16 %v8591, %v8587
    %v8848 = vpack.c.b16 %v8592, %v8588
    %9105 = vmatprep.subr.bf16.mxu0 %v8594
    %9106 = vmatpush1.bf16.msra.mxu0 %v8593
    %9107 = vmatprep.subr.bf16.mxu0 %v8598
    %9108 = vmatpush1.bf16.msra.mxu0 %v8597
    %9109 = vmatprep.subr.bf16.mxu0 %v8602
    %9110 = vmatpush1.bf16.msra.mxu0 %v8601
    %9111 = vmatprep.subr.bf16.mxu0 %v8606
    %9112 = vmatpush1.bf16.msra.mxu0 %v8605
    %9113 = vmatprep.subr.bf16.mxu0 %v8610
    %9114 = vmatpush1.bf16.msra.mxu0 %v8609
    %9115 = vmatprep.subr.bf16.mxu0 %v8614
    %9116 = vmatpush1.bf16.msra.mxu0 %v8613
    %9117 = vmatprep.subr.bf16.mxu0 %v8618
    %9118 = vmatpush1.bf16.msra.mxu0 %v8617
    %9119 = vmatprep.subr.bf16.mxu0 %v8622
    %9120 = vmatpush1.bf16.msra.mxu0 %v8621
    %9121 = vmatprep.subr.bf16.mxu0 %v8626
    %9122 = vmatpush1.bf16.msra.mxu0 %v8625
    %9123 = vmatprep.subr.bf16.mxu0 %v8630
    %9124 = vmatpush1.bf16.msra.mxu0 %v8629
    %9125 = vmatprep.subr.bf16.mxu0 %v8634
    %9126 = vmatpush1.bf16.msra.mxu0 %v8633
    %9127 = vmatprep.subr.bf16.mxu0 %v8638
    %9128 = vmatpush1.bf16.msra.mxu0 %v8637
    %9129 = vmatprep.subr.bf16.mxu0 %v8642
    %9130 = vmatpush1.bf16.msra.mxu0 %v8641
    %9131 = vmatprep.subr.bf16.mxu0 %v8646
    %9132 = vmatpush1.bf16.msra.mxu0 %v8645
    %9133 = vmatprep.subr.bf16.mxu0 %v8650
    %9134 = vmatpush1.bf16.msra.mxu0 %v8649
    %9135 = vmatprep.subr.bf16.mxu0 %v8654
    %9136 = vmatpush1.bf16.msra.mxu0 %v8653
    %9137 = vmatprep.mubr.bf16.mxu0 %v7540
    %9138 = vmatmul.mubr.bf16.gmra.mrb[0].mxu0 %v7539
    %v9139 = vpop.f32.mrb[0].mxu0
    %v9140 = vadd.f32 %v7808, %v9139
    %v9141 = vpop.f32.mrb[0].mxu0
    %v9142 = vadd.f32 %v7812, %v9141
    %v9143 = vpop.f32.mrb[0].mxu0
    %v9144 = vpop.f32.mrb[0].mxu0
    %9145 = vdwg.mxu0
    %9146 = vmatprep.subr.bf16.mxu0 %v8658
    %9147 = vmatpush1.bf16.msra.mxu0 %v8657
    %9148 = vmatprep.subr.bf16.mxu0 %v8662
    %9149 = vmatpush1.bf16.msra.mxu0 %v8661
    %9150 = vmatprep.subr.bf16.mxu0 %v8666
    %9151 = vmatpush1.bf16.msra.mxu0 %v8665
    %9152 = vmatprep.subr.bf16.mxu0 %v8670
    %9153 = vmatpush1.bf16.msra.mxu0 %v8669
    %9154 = vmatprep.subr.bf16.mxu0 %v8674
    %9155 = vmatpush1.bf16.msra.mxu0 %v8673
    %9156 = vmatprep.subr.bf16.mxu0 %v8678
    %9157 = vmatpush1.bf16.msra.mxu0 %v8677
    %9158 = vmatprep.subr.bf16.mxu0 %v8682
    %9159 = vmatpush1.bf16.msra.mxu0 %v8681
    %9160 = vmatprep.subr.bf16.mxu0 %v8686
    %9161 = vmatpush1.bf16.msra.mxu0 %v8685
    %9162 = vmatprep.subr.bf16.mxu0 %v8690
    %9163 = vmatpush1.bf16.msra.mxu0 %v8689
    %9164 = vmatprep.subr.bf16.mxu0 %v8694
    %9165 = vmatpush1.bf16.msra.mxu0 %v8693
    %9166 = vmatprep.subr.bf16.mxu0 %v8698
    %9167 = vmatpush1.bf16.msra.mxu0 %v8697
    %9168 = vmatprep.subr.bf16.mxu0 %v8702
    %9169 = vmatpush1.bf16.msra.mxu0 %v8701
    %9170 = vmatprep.subr.bf16.mxu0 %v8706
    %9171 = vmatpush1.bf16.msra.mxu0 %v8705
    %9172 = vmatprep.subr.bf16.mxu0 %v8710
    %9173 = vmatpush1.bf16.msra.mxu0 %v8709
    %9174 = vmatprep.subr.bf16.mxu0 %v8714
    %9175 = vmatpush1.bf16.msra.mxu0 %v8713
    %9176 = vmatprep.subr.bf16.mxu0 %v8718
    %9177 = vmatpush1.bf16.msra.mxu0 %v8717
    %9178 = vmatprep.mubr.bf16.mxu0 %v7542
    %9179 = vmatmul.mubr.bf16.gmra.mrb[0].mxu0 %v7541
    %v9180 = vpop.f32.mrb[0].mxu0
    %v9181 = vadd.f32 %v9140, %v9180
    %v9182 = vpop.f32.mrb[0].mxu0
    %v9183 = vadd.f32 %v9142, %v9182
    %v9184 = vpop.f32.mrb[0].mxu0
    %v9185 = vpop.f32.mrb[0].mxu0
    %9186 = vdwg.mxu0
    %9187 = vmatprep.subr.bf16.mxu0 %v8722
    %9188 = vmatpush1.bf16.msra.mxu0 %v8721
    %9189 = vmatprep.subr.bf16.mxu0 %v8726
    %9190 = vmatpush1.bf16.msra.mxu0 %v8725
    %9191 = vmatprep.subr.bf16.mxu0 %v8730
    %9192 = vmatpush1.bf16.msra.mxu0 %v8729
    %9193 = vmatprep.subr.bf16.mxu0 %v8734
    %9194 = vmatpush1.bf16.msra.mxu0 %v8733
    %9195 = vmatprep.subr.bf16.mxu0 %v8738
    %9196 = vmatpush1.bf16.msra.mxu0 %v8737
    %9197 = vmatprep.subr.bf16.mxu0 %v8742
    %9198 = vmatpush1.bf16.msra.mxu0 %v8741
    %9199 = vmatprep.subr.bf16.mxu0 %v8746
    %9200 = vmatpush1.bf16.msra.mxu0 %v8745
    %9201 = vmatprep.subr.bf16.mxu0 %v8750
    %9202 = vmatpush1.bf16.msra.mxu0 %v8749
    %9203 = vmatprep.subr.bf16.mxu0 %v8754
    %9204 = vmatpush1.bf16.msra.mxu0 %v8753
    %9205 = vmatprep.subr.bf16.mxu0 %v8758
    %9206 = vmatpush1.bf16.msra.mxu0 %v8757
    %9207 = vmatprep.subr.bf16.mxu0 %v8762
    %9208 = vmatpush1.bf16.msra.mxu0 %v8761
    %9209 = vmatprep.subr.bf16.mxu0 %v8766
    %9210 = vmatpush1.bf16.msra.mxu0 %v8765
    %9211 = vmatprep.subr.bf16.mxu0 %v8770
    %9212 = vmatpush1.bf16.msra.mxu0 %v8769
    %9213 = vmatprep.subr.bf16.mxu0 %v8774
    %9214 = vmatpush1.bf16.msra.mxu0 %v8773
    %9215 = vmatprep.subr.bf16.mxu0 %v8778
    %9216 = vmatpush1.bf16.msra.mxu0 %v8777
    %9217 = vmatprep.subr.bf16.mxu0 %v8782
    %9218 = vmatpush1.bf16.msra.mxu0 %v8781
    %9219 = vmatprep.mubr.bf16.mxu0 %v7544
    %9220 = vmatmul.mubr.bf16.gmra.mrb[0].mxu0 %v7543
    %v9221 = vpop.f32.mrb[0].mxu0
    %v9222 = vadd.f32 %v9181, %v9221
    %v9223 = vpop.f32.mrb[0].mxu0
    %v9224 = vadd.f32 %v9183, %v9223
    %v9225 = vpop.f32.mrb[0].mxu0
    %v9226 = vpop.f32.mrb[0].mxu0
    %9227 = vdwg.mxu0
    %9228 = vmatprep.subr.bf16.mxu0 %v8786
    %9229 = vmatpush1.bf16.msra.mxu0 %v8785
    %9230 = vmatprep.subr.bf16.mxu0 %v8790
    %9231 = vmatpush1.bf16.msra.mxu0 %v8789
    %9232 = vmatprep.subr.bf16.mxu0 %v8794
    %9233 = vmatpush1.bf16.msra.mxu0 %v8793
    %9234 = vmatprep.subr.bf16.mxu0 %v8798
    %9235 = vmatpush1.bf16.msra.mxu0 %v8797
    %9236 = vmatprep.subr.bf16.mxu0 %v8802
    %9237 = vmatpush1.bf16.msra.mxu0 %v8801
    %9238 = vmatprep.subr.bf16.mxu0 %v8806
    %9239 = vmatpush1.bf16.msra.mxu0 %v8805
    %9240 = vmatprep.subr.bf16.mxu0 %v8810
    %9241 = vmatpush1.bf16.msra.mxu0 %v8809
    %9242 = vmatprep.subr.bf16.mxu0 %v8814
    %9243 = vmatpush1.bf16.msra.mxu0 %v8813
    %9244 = vmatprep.subr.bf16.mxu0 %v8818
    %9245 = vmatpush1.bf16.msra.mxu0 %v8817
    %9246 = vmatprep.subr.bf16.mxu0 %v8822
    %9247 = vmatpush1.bf16.msra.mxu0 %v8821
    %9248 = vmatprep.subr.bf16.mxu0 %v8826
    %9249 = vmatpush1.bf16.msra.mxu0 %v8825
    %9250 = vmatprep.subr.bf16.mxu0 %v8830
    %9251 = vmatpush1.bf16.msra.mxu0 %v8829
    %9252 = vmatprep.subr.bf16.mxu0 %v8834
    %9253 = vmatpush1.bf16.msra.mxu0 %v8833
    %9254 = vmatprep.subr.bf16.mxu0 %v8838
    %9255 = vmatpush1.bf16.msra.mxu0 %v8837
    %9256 = vmatprep.subr.bf16.mxu0 %v8842
    %9257 = vmatpush1.bf16.msra.mxu0 %v8841
    %9258 = vmatprep.subr.bf16.mxu0 %v8846
    %9259 = vmatpush1.bf16.msra.mxu0 %v8845
    %9260 = vmatprep.mubr.bf16.mxu0 %v7546
    %9261 = vmatmul.mubr.bf16.gmra.mrb[0].mxu0 %v7545
    %v9262 = vpop.f32.mrb[0].mxu0
    %v9263 = vadd.f32 %v9222, %v9262
    %v9264 = vpop.f32.mrb[0].mxu0
    %v9265 = vadd.f32 %v9224, %v9264
    %v9266 = vpop.f32.mrb[0].mxu0
    %v9267 = vpop.f32.mrb[0].mxu0
    %9268 = vdwg.mxu0
    %9269 = vmatprep.subr.bf16.mxu0 %v8596
    %9270 = vmatpush1.bf16.msra.mxu0 %v8595
    %9271 = vmatprep.subr.bf16.mxu0 %v8600
    %9272 = vmatpush1.bf16.msra.mxu0 %v8599
    %9273 = vmatprep.subr.bf16.mxu0 %v8604
    %9274 = vmatpush1.bf16.msra.mxu0 %v8603
    %9275 = vmatprep.subr.bf16.mxu0 %v8608
    %9276 = vmatpush1.bf16.msra.mxu0 %v8607
    %9277 = vmatprep.subr.bf16.mxu0 %v8612
    %9278 = vmatpush1.bf16.msra.mxu0 %v8611
    %9279 = vmatprep.subr.bf16.mxu0 %v8616
    %9280 = vmatpush1.bf16.msra.mxu0 %v8615
    %9281 = vmatprep.subr.bf16.mxu0 %v8620
    %9282 = vmatpush1.bf16.msra.mxu0 %v8619
    %9283 = vmatprep.subr.bf16.mxu0 %v8624
    %9284 = vmatpush1.bf16.msra.mxu0 %v8623
    %9285 = vmatprep.subr.bf16.mxu0 %v8628
    %9286 = vmatpush1.bf16.msra.mxu0 %v8627
    %9287 = vmatprep.subr.bf16.mxu0 %v8632
    %9288 = vmatpush1.bf16.msra.mxu0 %v8631
    %9289 = vmatprep.subr.bf16.mxu0 %v8636
    %9290 = vmatpush1.bf16.msra.mxu0 %v8635
    %9291 = vmatprep.subr.bf16.mxu0 %v8640
    %9292 = vmatpush1.bf16.msra.mxu0 %v8639
    %9293 = vmatprep.subr.bf16.mxu0 %v8644
    %9294 = vmatpush1.bf16.msra.mxu0 %v8643
    %9295 = vmatprep.subr.bf16.mxu0 %v8648
    %9296 = vmatpush1.bf16.msra.mxu0 %v8647
    %9297 = vmatprep.subr.bf16.mxu0 %v8652
    %9298 = vmatpush1.bf16.msra.mxu0 %v8651
    %9299 = vmatprep.subr.bf16.mxu0 %v8656
    %9300 = vmatpush1.bf16.msra.mxu0 %v8655
    %9301 = vmatprep.mubr.bf16.mxu0 %v7540
    %9302 = vmatmul.mubr.bf16.gmra.mrb[0].mxu0 %v7539
    %v9303 = vpop.f32.mrb[0].mxu0
    %v9304 = vadd.f32 %v7816, %v9303
    %v9305 = vpop.f32.mrb[0].mxu0
    %v9306 = vadd.f32 %v7820, %v9305
    %v9307 = vpop.f32.mrb[0].mxu0
    %v9308 = vpop.f32.mrb[0].mxu0
    %9309 = vdwg.mxu0
    %9310 = vmatprep.subr.bf16.mxu0 %v8660
    %9311 = vmatpush1.bf16.msra.mxu0 %v8659
    %9312 = vmatprep.subr.bf16.mxu0 %v8664
    %9313 = vmatpush1.bf16.msra.mxu0 %v8663
    %9314 = vmatprep.subr.bf16.mxu0 %v8668
    %9315 = vmatpush1.bf16.msra.mxu0 %v8667
    %9316 = vmatprep.subr.bf16.mxu0 %v8672
    %9317 = vmatpush1.bf16.msra.mxu0 %v8671
    %9318 = vmatprep.subr.bf16.mxu0 %v8676
    %9319 = vmatpush1.bf16.msra.mxu0 %v8675
    %9320 = vmatprep.subr.bf16.mxu0 %v8680
    %9321 = vmatpush1.bf16.msra.mxu0 %v8679
    %9322 = vmatprep.subr.bf16.mxu0 %v8684
    %9323 = vmatpush1.bf16.msra.mxu0 %v8683
    %9324 = vmatprep.subr.bf16.mxu0 %v8688
    %9325 = vmatpush1.bf16.msra.mxu0 %v8687
    %9326 = vmatprep.subr.bf16.mxu0 %v8692
    %9327 = vmatpush1.bf16.msra.mxu0 %v8691
    %9328 = vmatprep.subr.bf16.mxu0 %v8696
    %9329 = vmatpush1.bf16.msra.mxu0 %v8695
    %9330 = vmatprep.subr.bf16.mxu0 %v8700
    %9331 = vmatpush1.bf16.msra.mxu0 %v8699
    %9332 = vmatprep.subr.bf16.mxu0 %v8704
    %9333 = vmatpush1.bf16.msra.mxu0 %v8703
    %9334 = vmatprep.subr.bf16.mxu0 %v8708
    %9335 = vmatpush1.bf16.msra.mxu0 %v8707
    %9336 = vmatprep.subr.bf16.mxu0 %v8712
    %9337 = vmatpush1.bf16.msra.mxu0 %v8711
    %9338 = vmatprep.subr.bf16.mxu0 %v8716
    %9339 = vmatpush1.bf16.msra.mxu0 %v8715
    %9340 = vmatprep.subr.bf16.mxu0 %v8720
    %9341 = vmatpush1.bf16.msra.mxu0 %v8719
    %9342 = vmatprep.mubr.bf16.mxu0 %v7542
    %9343 = vmatmul.mubr.bf16.gmra.mrb[0].mxu0 %v7541
    %v9344 = vpop.f32.mrb[0].mxu0
    %v9345 = vadd.f32 %v9304, %v9344
    %v9346 = vpop.f32.mrb[0].mxu0
    %v9347 = vadd.f32 %v9306, %v9346
    %v9348 = vpop.f32.mrb[0].mxu0
    %v9349 = vpop.f32.mrb[0].mxu0
    %9350 = vdwg.mxu0
    %9351 = vmatprep.subr.bf16.mxu0 %v8724
    %9352 = vmatpush1.bf16.msra.mxu0 %v8723
    %9353 = vmatprep.subr.bf16.mxu0 %v8728
    %9354 = vmatpush1.bf16.msra.mxu0 %v8727
    %9355 = vmatprep.subr.bf16.mxu0 %v8732
    %9356 = vmatpush1.bf16.msra.mxu0 %v8731
    %9357 = vmatprep.subr.bf16.mxu0 %v8736
    %9358 = vmatpush1.bf16.msra.mxu0 %v8735
    %9359 = vmatprep.subr.bf16.mxu0 %v8740
    %9360 = vmatpush1.bf16.msra.mxu0 %v8739
    %9361 = vmatprep.subr.bf16.mxu0 %v8744
    %9362 = vmatpush1.bf16.msra.mxu0 %v8743
    %9363 = vmatprep.subr.bf16.mxu0 %v8748
    %9364 = vmatpush1.bf16.msra.mxu0 %v8747
    %9365 = vmatprep.subr.bf16.mxu0 %v8752
    %9366 = vmatpush1.bf16.msra.mxu0 %v8751
    %9367 = vmatprep.subr.bf16.mxu0 %v8756
    %9368 = vmatpush1.bf16.msra.mxu0 %v8755
    %9369 = vmatprep.subr.bf16.mxu0 %v8760
    %9370 = vmatpush1.bf16.msra.mxu0 %v8759
    %9371 = vmatprep.subr.bf16.mxu0 %v8764
    %9372 = vmatpush1.bf16.msra.mxu0 %v8763
    %9373 = vmatprep.subr.bf16.mxu0 %v8768
    %9374 = vmatpush1.bf16.msra.mxu0 %v8767
    %9375 = vmatprep.subr.bf16.mxu0 %v8772
    %9376 = vmatpush1.bf16.msra.mxu0 %v8771
    %9377 = vmatprep.subr.bf16.mxu0 %v8776
    %9378 = vmatpush1.bf16.msra.mxu0 %v8775
    %9379 = vmatprep.subr.bf16.mxu0 %v8780
    %9380 = vmatpush1.bf16.msra.mxu0 %v8779
    %9381 = vmatprep.subr.bf16.mxu0 %v8784
    %9382 = vmatpush1.bf16.msra.mxu0 %v8783
    %9383 = vmatprep.mubr.bf16.mxu0 %v7544
    %9384 = vmatmul.mubr.bf16.gmra.mrb[0].mxu0 %v7543
    %v9385 = vpop.f32.mrb[0].mxu0
    %v9386 = vadd.f32 %v9345, %v9385
    %v9387 = vpop.f32.mrb[0].mxu0
    %v9388 = vadd.f32 %v9347, %v9387
    %v9389 = vpop.f32.mrb[0].mxu0
    %v9390 = vpop.f32.mrb[0].mxu0
    %9391 = vdwg.mxu0
    %9392 = vmatprep.subr.bf16.mxu0 %v8788
    %9393 = vmatpush1.bf16.msra.mxu0 %v8787
    %9394 = vmatprep.subr.bf16.mxu0 %v8792
    %9395 = vmatpush1.bf16.msra.mxu0 %v8791
    %9396 = vmatprep.subr.bf16.mxu0 %v8796
    %9397 = vmatpush1.bf16.msra.mxu0 %v8795
    %9398 = vmatprep.subr.bf16.mxu0 %v8800
    %9399 = vmatpush1.bf16.msra.mxu0 %v8799
    %9400 = vmatprep.subr.bf16.mxu0 %v8804
    %9401 = vmatpush1.bf16.msra.mxu0 %v8803
    %9402 = vmatprep.subr.bf16.mxu0 %v8808
    %9403 = vmatpush1.bf16.msra.mxu0 %v8807
    %9404 = vmatprep.subr.bf16.mxu0 %v8812
    %9405 = vmatpush1.bf16.msra.mxu0 %v8811
    %9406 = vmatprep.subr.bf16.mxu0 %v8816
    %9407 = vmatpush1.bf16.msra.mxu0 %v8815
    %9408 = vmatprep.subr.bf16.mxu0 %v8820
    %9409 = vmatpush1.bf16.msra.mxu0 %v8819
    %9410 = vmatprep.subr.bf16.mxu0 %v8824
    %9411 = vmatpush1.bf16.msra.mxu0 %v8823
    %9412 = vmatprep.subr.bf16.mxu0 %v8828
    %9413 = vmatpush1.bf16.msra.mxu0 %v8827
    %9414 = vmatprep.subr.bf16.mxu0 %v8832
    %9415 = vmatpush1.bf16.msra.mxu0 %v8831
    %9416 = vmatprep.subr.bf16.mxu0 %v8836
    %9417 = vmatpush1.bf16.msra.mxu0 %v8835
    %9418 = vmatprep.subr.bf16.mxu0 %v8840
    %9419 = vmatpush1.bf16.msra.mxu0 %v8839
    %9420 = vmatprep.subr.bf16.mxu0 %v8844
    %9421 = vmatpush1.bf16.msra.mxu0 %v8843
    %9422 = vmatprep.subr.bf16.mxu0 %v8848
    %9423 = vmatpush1.bf16.msra.mxu0 %v8847
    %9424 = vmatprep.mubr.bf16.mxu0 %v7546
    %9425 = vmatmul.mubr.bf16.gmra.mrb[0].mxu0 %v7545
    %v9426 = vpop.f32.mrb[0].mxu0
    %v9427 = vadd.f32 %v9386, %v9426
    %v9428 = vpop.f32.mrb[0].mxu0
    %v9429 = vadd.f32 %v9388, %v9428
    %v9430 = vpop.f32.mrb[0].mxu0
    %v9431 = vpop.f32.mrb[0].mxu0
    %9432 = vdwg.mxu0
    %v9433 = vmax.f32 %v9263, 0.0
    %v9434 = vmax.f32 %v9265, 0.0
    %v9435 = vmax.f32 %v9427, 0.0
    %v9436 = vmax.f32 %v9429, 0.0
    %v9437 = vpack.c.bf16 %v9433, %v9433
    %v9438 = vpack.c.bf16 %v9434, %v9434
    %v9439 = vpack.c.bf16 %v9435, %v9435
    %v9440 = vpack.c.bf16 %v9436, %v9436
    %v9441 = vld [vmem:[#allocation13] sm:$0xf]
    %v9442 = vld [vmem:[#allocation13 + $0x4] sm:$0xf]
    %v9443 = vld [vmem:[#allocation13 + $0x8] sm:$0xf]
    %v9444 = vld [vmem:[#allocation13 + $0xc] sm:$0xf]
    %v9445 = vld [vmem:[#allocation13 + $0x10] sm:$0xf]
    %v9446 = vld [vmem:[#allocation13 + $0x14] sm:$0xf]
    %v9447 = vld [vmem:[#allocation13 + $0x18] sm:$0xf]
    %v9448 = vld [vmem:[#allocation13 + $0x1c] sm:$0xf]
    %v9449 = vld [vmem:[#allocation13 + $0x20] sm:$0xf]
    %v9450 = vld [vmem:[#allocation13 + $0x24] sm:$0xf]
    %v9451 = vld [vmem:[#allocation13 + $0x28] sm:$0xf]
    %v9452 = vld [vmem:[#allocation13 + $0x2c] sm:$0xf]
    %v9453 = vld [vmem:[#allocation13 + $0x30] sm:$0xf]
    %v9454 = vld [vmem:[#allocation13 + $0x34] sm:$0xf]
    %v9455 = vld [vmem:[#allocation13 + $0x38] sm:$0xf]
    %v9456 = vld [vmem:[#allocation13 + $0x3c] sm:$0xf]
    %v9457 = vld [vmem:[#allocation13 + $0x40] sm:$0xf]
    %v9458 = vld [vmem:[#allocation13 + $0x44] sm:$0xf]
    %v9459 = vld [vmem:[#allocation13 + $0x48] sm:$0xf]
    %v9460 = vld [vmem:[#allocation13 + $0x4c] sm:$0xf]
    %v9461 = vld [vmem:[#allocation13 + $0x50] sm:$0xf]
    %v9462 = vld [vmem:[#allocation13 + $0x54] sm:$0xf]
    %v9463 = vld [vmem:[#allocation13 + $0x58] sm:$0xf]
    %v9464 = vld [vmem:[#allocation13 + $0x5c] sm:$0xf]
    %v9465 = vld [vmem:[#allocation13 + $0x60] sm:$0xf]
    %v9466 = vld [vmem:[#allocation13 + $0x64] sm:$0xf]
    %v9467 = vld [vmem:[#allocation13 + $0x68] sm:$0xf]
    %v9468 = vld [vmem:[#allocation13 + $0x6c] sm:$0xf]
    %v9469 = vld [vmem:[#allocation13 + $0x70] sm:$0xf]
    %v9470 = vld [vmem:[#allocation13 + $0x74] sm:$0xf]
    %v9471 = vld [vmem:[#allocation13 + $0x78] sm:$0xf]
    %v9472 = vld [vmem:[#allocation13 + $0x7c] sm:$0xf]
    %v9473 = vld [vmem:[#allocation13 + $0x80] sm:$0xf]
    %v9474 = vld [vmem:[#allocation13 + $0x84] sm:$0xf]
    %v9475 = vld [vmem:[#allocation13 + $0x88] sm:$0xf]
    %v9476 = vld [vmem:[#allocation13 + $0x8c] sm:$0xf]
    %v9477 = vld [vmem:[#allocation13 + $0x90] sm:$0xf]
    %v9478 = vld [vmem:[#allocation13 + $0x94] sm:$0xf]
    %v9479 = vld [vmem:[#allocation13 + $0x98] sm:$0xf]
    %v9480 = vld [vmem:[#allocation13 + $0x9c] sm:$0xf]
    %v9481 = vld [vmem:[#allocation13 + $0xa0] sm:$0xf]
    %v9482 = vld [vmem:[#allocation13 + $0xa4] sm:$0xf]
    %v9483 = vld [vmem:[#allocation13 + $0xa8] sm:$0xf]
    %v9484 = vld [vmem:[#allocation13 + $0xac] sm:$0xf]
    %v9485 = vld [vmem:[#allocation13 + $0xb0] sm:$0xf]
    %v9486 = vld [vmem:[#allocation13 + $0xb4] sm:$0xf]
    %v9487 = vld [vmem:[#allocation13 + $0xb8] sm:$0xf]
    %v9488 = vld [vmem:[#allocation13 + $0xbc] sm:$0xf]
    %v9489 = vld [vmem:[#allocation13 + $0xc0] sm:$0xf]
    %v9490 = vld [vmem:[#allocation13 + $0xc4] sm:$0xf]
    %v9491 = vld [vmem:[#allocation13 + $0xc8] sm:$0xf]
    %v9492 = vld [vmem:[#allocation13 + $0xcc] sm:$0xf]
    %v9493 = vld [vmem:[#allocation13 + $0xd0] sm:$0xf]
    %v9494 = vld [vmem:[#allocation13 + $0xd4] sm:$0xf]
    %v9495 = vld [vmem:[#allocation13 + $0xd8] sm:$0xf]
    %v9496 = vld [vmem:[#allocation13 + $0xdc] sm:$0xf]
    %v9497 = vld [vmem:[#allocation13 + $0xe0] sm:$0xf]
    %v9498 = vld [vmem:[#allocation13 + $0xe4] sm:$0xf]
    %v9499 = vld [vmem:[#allocation13 + $0xe8] sm:$0xf]
    %v9500 = vld [vmem:[#allocation13 + $0xec] sm:$0xf]
    %v9501 = vld [vmem:[#allocation13 + $0xf0] sm:$0xf]
    %v9502 = vld [vmem:[#allocation13 + $0xf4] sm:$0xf]
    %v9503 = vld [vmem:[#allocation13 + $0xf8] sm:$0xf]
    %v9504 = vld [vmem:[#allocation13 + $0xfc] sm:$0xf]
    %v9505 = vld [vmem:[#allocation14] sm:$0x1]
    %v9507 = vlaneseq
    %v9508 = vshrl.u32 %v9507, 7
    %v9509 = vsub.s32 0, %v9508
    %v9510 = vrot.slane %v9505, %v9509
    %v9576 = vunpack.c.l.b16 %v9441
    %v9577 = vunpack.c.l.b16 %v9442
    %v9578 = vunpack.c.l.b16 %v9443
    %v9579 = vunpack.c.l.b16 %v9444
    %v9580 = vunpack.c.l.b16 %v9445
    %v9581 = vunpack.c.l.b16 %v9446
    %v9582 = vunpack.c.l.b16 %v9447
    %v9583 = vunpack.c.l.b16 %v9448
    %v9584 = vunpack.c.l.b16 %v9449
    %v9585 = vunpack.c.l.b16 %v9450
    %v9586 = vunpack.c.l.b16 %v9451
    %v9587 = vunpack.c.l.b16 %v9452
    %v9588 = vunpack.c.l.b16 %v9453
    %v9589 = vunpack.c.l.b16 %v9454
    %v9590 = vunpack.c.l.b16 %v9455
    %v9591 = vunpack.c.l.b16 %v9456
    %v9592 = vunpack.c.l.b16 %v9457
    %v9593 = vunpack.c.l.b16 %v9458
    %v9594 = vunpack.c.l.b16 %v9459
    %v9595 = vunpack.c.l.b16 %v9460
    %v9596 = vunpack.c.l.b16 %v9461
    %v9597 = vunpack.c.l.b16 %v9462
    %v9598 = vunpack.c.l.b16 %v9463
    %v9599 = vunpack.c.l.b16 %v9464
    %v9600 = vunpack.c.l.b16 %v9465
    %v9601 = vunpack.c.l.b16 %v9466
    %v9602 = vunpack.c.l.b16 %v9467
    %v9603 = vunpack.c.l.b16 %v9468
    %v9604 = vunpack.c.l.b16 %v9469
    %v9605 = vunpack.c.l.b16 %v9470
    %v9606 = vunpack.c.l.b16 %v9471
    %v9607 = vunpack.c.l.b16 %v9472
    %v9608 = vunpack.c.l.b16 %v9473
    %v9609 = vunpack.c.l.b16 %v9474
    %v9610 = vunpack.c.l.b16 %v9475
    %v9611 = vunpack.c.l.b16 %v9476
    %v9612 = vunpack.c.l.b16 %v9477
    %v9613 = vunpack.c.l.b16 %v9478
    %v9614 = vunpack.c.l.b16 %v9479
    %v9615 = vunpack.c.l.b16 %v9480
    %v9616 = vunpack.c.l.b16 %v9481
    %v9617 = vunpack.c.l.b16 %v9482
    %v9618 = vunpack.c.l.b16 %v9483
    %v9619 = vunpack.c.l.b16 %v9484
    %v9620 = vunpack.c.l.b16 %v9485
    %v9621 = vunpack.c.l.b16 %v9486
    %v9622 = vunpack.c.l.b16 %v9487
    %v9623 = vunpack.c.l.b16 %v9488
    %v9624 = vunpack.c.l.b16 %v9489
    %v9625 = vunpack.c.l.b16 %v9490
    %v9626 = vunpack.c.l.b16 %v9491
    %v9627 = vunpack.c.l.b16 %v9492
    %v9628 = vunpack.c.l.b16 %v9493
    %v9629 = vunpack.c.l.b16 %v9494
    %v9630 = vunpack.c.l.b16 %v9495
    %v9631 = vunpack.c.l.b16 %v9496
    %v9632 = vunpack.c.l.b16 %v9497
    %v9633 = vunpack.c.l.b16 %v9498
    %v9634 = vunpack.c.l.b16 %v9499
    %v9635 = vunpack.c.l.b16 %v9500
    %v9636 = vunpack.c.l.b16 %v9501
    %v9637 = vunpack.c.l.b16 %v9502
    %v9638 = vunpack.c.l.b16 %v9503
    %v9639 = vunpack.c.l.b16 %v9504
    %v9640 = vpack.c.b16 %v9577, %v9576
    %v9641 = vpack.c.b16 %v9579, %v9578
    %v9642 = vpack.c.b16 %v9581, %v9580
    %v9643 = vpack.c.b16 %v9583, %v9582
    %v9644 = vpack.c.b16 %v9585, %v9584
    %v9645 = vpack.c.b16 %v9587, %v9586
    %v9646 = vpack.c.b16 %v9589, %v9588
    %v9647 = vpack.c.b16 %v9591, %v9590
    %v9648 = vpack.c.b16 %v9593, %v9592
    %v9649 = vpack.c.b16 %v9595, %v9594
    %v9650 = vpack.c.b16 %v9597, %v9596
    %v9651 = vpack.c.b16 %v9599, %v9598
    %v9652 = vpack.c.b16 %v9601, %v9600
    %v9653 = vpack.c.b16 %v9603, %v9602
    %v9654 = vpack.c.b16 %v9605, %v9604
    %v9655 = vpack.c.b16 %v9607, %v9606
    %v9656 = vpack.c.b16 %v9609, %v9608
    %v9657 = vpack.c.b16 %v9611, %v9610
    %v9658 = vpack.c.b16 %v9613, %v9612
    %v9659 = vpack.c.b16 %v9615, %v9614
    %v9660 = vpack.c.b16 %v9617, %v9616
    %v9661 = vpack.c.b16 %v9619, %v9618
    %v9662 = vpack.c.b16 %v9621, %v9620
    %v9663 = vpack.c.b16 %v9623, %v9622
    %v9664 = vpack.c.b16 %v9625, %v9624
    %v9665 = vpack.c.b16 %v9627, %v9626
    %v9666 = vpack.c.b16 %v9629, %v9628
    %v9667 = vpack.c.b16 %v9631, %v9630
    %v9668 = vpack.c.b16 %v9633, %v9632
    %v9669 = vpack.c.b16 %v9635, %v9634
    %v9670 = vpack.c.b16 %v9637, %v9636
    %v9671 = vpack.c.b16 %v9639, %v9638
    %9704 = vmatprep.subr.bf16.mxu0 0
    %9705 = vmatpush1.bf16.msra.mxu0 %v9640
    %9706 = vmatprep.subr.bf16.mxu0 0
    %9707 = vmatpush1.bf16.msra.mxu0 %v9641
    %9708 = vmatprep.subr.bf16.mxu0 0
    %9709 = vmatpush1.bf16.msra.mxu0 %v9642
    %9710 = vmatprep.subr.bf16.mxu0 0
    %9711 = vmatpush1.bf16.msra.mxu0 %v9643
    %9712 = vmatprep.subr.bf16.mxu0 0
    %9713 = vmatpush1.bf16.msra.mxu0 %v9644
    %9714 = vmatprep.subr.bf16.mxu0 0
    %9715 = vmatpush1.bf16.msra.mxu0 %v9645
    %9716 = vmatprep.subr.bf16.mxu0 0
    %9717 = vmatpush1.bf16.msra.mxu0 %v9646
    %9718 = vmatprep.subr.bf16.mxu0 0
    %9719 = vmatpush1.bf16.msra.mxu0 %v9647
    %9720 = vmatprep.subr.bf16.mxu0 0
    %9721 = vmatpush1.bf16.msra.mxu0 %v9648
    %9722 = vmatprep.subr.bf16.mxu0 0
    %9723 = vmatpush1.bf16.msra.mxu0 %v9649
    %9724 = vmatprep.subr.bf16.mxu0 0
    %9725 = vmatpush1.bf16.msra.mxu0 %v9650
    %9726 = vmatprep.subr.bf16.mxu0 0
    %9727 = vmatpush1.bf16.msra.mxu0 %v9651
    %9728 = vmatprep.subr.bf16.mxu0 0
    %9729 = vmatpush1.bf16.msra.mxu0 %v9652
    %9730 = vmatprep.subr.bf16.mxu0 0
    %9731 = vmatpush1.bf16.msra.mxu0 %v9653
    %9732 = vmatprep.subr.bf16.mxu0 0
    %9733 = vmatpush1.bf16.msra.mxu0 %v9654
    %9734 = vmatprep.subr.bf16.mxu0 0
    %9735 = vmatpush1.bf16.msra.mxu0 %v9655
    %9736 = vmatprep.mubr.bf16.mxu0 %v9438
    %9737 = vmatmul.mubr.bf16.gmra.mrb[0].mxu0 %v9437
    %v9738 = vpop.f32.mrb[0].mxu0
    %v9739 = vadd.f32 %v9510, %v9738
    %v9740 = vpop.f32.mrb[0].mxu0
    %v9741 = vpop.f32.mrb[0].mxu0
    %v9742 = vpop.f32.mrb[0].mxu0
    %9743 = vdwg.mxu0
    %9744 = vmatprep.subr.bf16.mxu0 0
    %9745 = vmatpush1.bf16.msra.mxu0 %v9656
    %9746 = vmatprep.subr.bf16.mxu0 0
    %9747 = vmatpush1.bf16.msra.mxu0 %v9657
    %9748 = vmatprep.subr.bf16.mxu0 0
    %9749 = vmatpush1.bf16.msra.mxu0 %v9658
    %9750 = vmatprep.subr.bf16.mxu0 0
    %9751 = vmatpush1.bf16.msra.mxu0 %v9659
    %9752 = vmatprep.subr.bf16.mxu0 0
    %9753 = vmatpush1.bf16.msra.mxu0 %v9660
    %9754 = vmatprep.subr.bf16.mxu0 0
    %9755 = vmatpush1.bf16.msra.mxu0 %v9661
    %9756 = vmatprep.subr.bf16.mxu0 0
    %9757 = vmatpush1.bf16.msra.mxu0 %v9662
    %9758 = vmatprep.subr.bf16.mxu0 0
    %9759 = vmatpush1.bf16.msra.mxu0 %v9663
    %9760 = vmatprep.subr.bf16.mxu0 0
    %9761 = vmatpush1.bf16.msra.mxu0 %v9664
    %9762 = vmatprep.subr.bf16.mxu0 0
    %9763 = vmatpush1.bf16.msra.mxu0 %v9665
    %9764 = vmatprep.subr.bf16.mxu0 0
    %9765 = vmatpush1.bf16.msra.mxu0 %v9666
    %9766 = vmatprep.subr.bf16.mxu0 0
    %9767 = vmatpush1.bf16.msra.mxu0 %v9667
    %9768 = vmatprep.subr.bf16.mxu0 0
    %9769 = vmatpush1.bf16.msra.mxu0 %v9668
    %9770 = vmatprep.subr.bf16.mxu0 0
    %9771 = vmatpush1.bf16.msra.mxu0 %v9669
    %9772 = vmatprep.subr.bf16.mxu0 0
    %9773 = vmatpush1.bf16.msra.mxu0 %v9670
    %9774 = vmatprep.subr.bf16.mxu0 0
    %9775 = vmatpush1.bf16.msra.mxu0 %v9671
    %9776 = vmatprep.mubr.bf16.mxu0 %v9440
    %9777 = vmatmul.mubr.bf16.gmra.mrb[0].mxu0 %v9439
    %v9778 = vpop.f32.mrb[0].mxu0
    %v9779 = vadd.f32 %v9739, %v9778
    %v9780 = vpop.f32.mrb[0].mxu0
    %v9781 = vpop.f32.mrb[0].mxu0
    %v9782 = vpop.f32.mrb[0].mxu0
    %9783 = vdwg.mxu0
    %9784 = vst [vmem:[#allocation16] sm:$0x3] %v9779
    // Predicated region
    $region70: #{mnist_cnn_forward.1} parent=1 // pred_check
      _
    $region71: #{mnist_cnn_forward.1} parent=1 // pred_check_branch
      %9786 = sbr.rel (0) target = $region73
    $region72: #{mnist_cnn_forward.1} parent=1 // pred_region
      %s9788 = ssub.s32 32, 32
      %9789 = vsyncadd [#allocation4], %s9788
      %s9791 = sshll.u32 [#allocation16], 4
      %s9792 = int_to_ptr.vmem [resolvable:$true] %s9791
      %9794 = dma.vmem_to_hbm [thread:$0]  %s9792, 32, %s9, [#allocation4]
    $region73: #{mnist_cnn_forward.1} parent=1 // pred_fallthru
      _
    // Predicated region
    $region74: #{mnist_cnn_forward.1} parent=1 // pred_check
      _
    $region75: #{mnist_cnn_forward.1} parent=1 // pred_check_branch
      %9796 = sbr.rel (0) target = $region77
    $region76: #{mnist_cnn_forward.1} parent=1 // pred_region
      %9797 = dma.done [#allocation4], 32
    $region77: #{mnist_cnn_forward.1} parent=1 // pred_fallthru
      _
    %9798 = vsyncpa [#allocation3], 1
    %9799 = vsyncpa [#allocation6], 1
    %9800 = vsyncpa [#allocation9], 1
    %9801 = vsyncpa [#allocation12], 1
    %9802 = vsyncpa [#allocation15], 1
    %9803 = vsyncpa [#allocation4], 1

</llo_original>
